<compile_context>
chip_gen: v6e
topology: v6e:2x2x1
jax: 0.10.0
libtpu: 0.0.40
codegen_flags: <defaults>
</compile_context>

<pallas_src>
import functools

import jax
import jax.numpy as jnp
from jax.experimental import pallas as pl
from jax.experimental.pallas import tpu as pltpu

LANE = 128                            # channel dims padded to the TPU lane width
VMEM_LIMIT = 48 * 1024 * 1024         # ~75% of v7x 64 MiB physical VMEM


def _pick_row_tile(n, cap=32):
    """Largest divisor of n that is <= cap (falls back to n for prime extents)."""
    best = 1
    for d in range(1, min(n, cap) + 1):
        if n % d == 0:
            best = d
    if best < 8 and n > cap:          # avoid pathological 1-row tiles
        best = n
    return best


def _pick_hw_tile(hw, cap=512):
    """Spatial tile for the head pool: prefer an exact divisor, else cap+mask."""
    if hw <= cap:
        return hw
    best = 0
    for d in range(8, cap + 1, 8):
        if hw % d == 0:
            best = d
    return best if best >= 256 else cap


# ---------------------------------------------------------------------------
# Kernel 1: generic "tap conv": build an im2col slab in VMEM by concatenating
# the tap slices along the lane axis, then ONE MXU dot (K = ntaps*C), bias,
# SiLU, optional fused 1x1 projection and fused in-block residual add.
# Grid = (B, n_row_tiles), both "parallel".
# ---------------------------------------------------------------------------
def _conv_kernel(*refs, taps, TR, Wo, act, res_tap, has_proj):
    if has_proj:
        x_ref, w_ref, b_ref, pw_ref, pb_ref, o_ref = refs
    else:
        x_ref, w_ref, b_ref, o_ref = refs
        pw_ref = pb_ref = None

    M = TR * Wo
    # Gather the tap windows once (single relayout pass) -> (TR, Wo, ntaps*C).
    pieces = [x_ref[0, 0, pl.ds(r0, TR), pl.ds(c0, Wo), :] for (r0, c0) in taps]
    slab = pieces[0] if len(pieces) == 1 else jnp.concatenate(pieces, axis=-1)
    K = slab.shape[-1]

    # One big-K MXU dot (fills the 256-deep MXU on v6e/v7x; no acc RMW passes).
    y = jnp.dot(slab.reshape(M, K), w_ref[...],
                preferred_element_type=jnp.float32)
    y = y + b_ref[...]
    if act == "silu":
        y = y * jax.nn.sigmoid(y)                     # f32 SiLU (safe on v5e)
    if has_proj:                                      # fused 1x1 project
        y = jnp.dot(y.astype(jnp.bfloat16), pw_ref[...],
                    preferred_element_type=jnp.float32) + pb_ref[...]
    if res_tap is not None:                           # residual from resident block
        r0, c0 = res_tap
        res = x_ref[0, 0, pl.ds(r0, TR), pl.ds(c0, Wo), :]
        y = y + res.reshape(M, -1).astype(jnp.float32)
    o_ref[0] = y.reshape(TR, Wo, -1).astype(o_ref.dtype)


def _conv_call(xt, w, b, *, taps, TR, Wo, Ho, act="silu", res_tap=None,
               proj_w=None, proj_b=None):
    """xt: (B, nt, L, Wc, C) bf16 row tiles; w: (ntaps*C, O) bf16; b: (O,) f32."""
    B, nt, L, Wc, C = xt.shape
    K, O = w.shape
    assert K == len(taps) * C
    has_proj = proj_w is not None
    Oo = proj_w.shape[-1] if has_proj else O

    inputs = [xt, w, b.reshape(1, -1)]
    in_specs = [
        pl.BlockSpec((1, 1, L, Wc, C), lambda bi, ti: (bi, ti, 0, 0, 0)),
        pl.BlockSpec((K, O), lambda bi, ti: (0, 0)),
        pl.BlockSpec((1, O), lambda bi, ti: (0, 0)),
    ]
    if has_proj:
        inputs += [proj_w, proj_b.reshape(1, -1)]
        in_specs += [pl.BlockSpec((O, Oo), lambda bi, ti: (0, 0)),
                     pl.BlockSpec((1, Oo), lambda bi, ti: (0, 0))]

    return pl.pallas_call(
        functools.partial(_conv_kernel, taps=taps, TR=TR, Wo=Wo, act=act,
                          res_tap=res_tap, has_proj=has_proj),
        out_shape=jax.ShapeDtypeStruct((B, Ho, Wo, Oo), jnp.bfloat16),
        grid_spec=pltpu.PrefetchScalarGridSpec(
            num_scalar_prefetch=0,
            grid=(B, nt),
            in_specs=in_specs,
            out_specs=pl.BlockSpec((1, TR, Wo, Oo), lambda bi, ti: (bi, ti, 0, 0)),
        ),
        compiler_params=pltpu.CompilerParams(
            dimension_semantics=("parallel", "parallel"),
            vmem_limit_bytes=VMEM_LIMIT),
    )(*inputs)


# ---------------------------------------------------------------------------
# 3x3 conv wrappers: build row tiles (with 1-2 halo rows) in a single fused
# XLA pad/reshape pass; stride-2 uses a 2x2 phase split so every in-kernel tap
# is a static, non-strided slice.
# ---------------------------------------------------------------------------
def conv3x3(x, w, b, *, stride, act="silu", fuse_residual=False,
            proj_w=None, proj_b=None):
    """x: (B,H,W,C) bf16; w: (9*C, O) bf16; b: (O,) f32."""
    B, H, W, C = x.shape
    s = stride
    Ho = (H - 1) // s + 1
    Wo = (W - 1) // s + 1
    TR = _pick_row_tile(Ho)
    nt = Ho // TR

    if s == 1:
        xp = jnp.pad(x, ((0, 0), (1, 1), (1, 1), (0, 0)))
        # Overlapping row tiles with a 2-row halo (only 2/TR extra HBM bytes).
        xt = jnp.stack([xp[:, t * TR:t * TR + TR + 2] for t in range(nt)], axis=1)
        L, Wc = TR + 2, W + 2
        taps = tuple((i, j) for i in range(3) for j in range(3))
        res_tap = (1, 1) if fuse_residual else None
    else:  # stride 2: pad + split into 2x2 phases, 1-row halo per phase
        Hp = -(-(H + 2) // 2) * 2
        Wp = -(-(W + 2) // 2) * 2
        xp = jnp.pad(x, ((0, 0), (1, Hp - H - 1), (1, Wp - W - 1), (0, 0)))
        Hq, Wq = Hp // 2, Wp // 2
        xs = (xp.reshape(B, Hq, 2, Wq, 2, C)
                .transpose(0, 2, 4, 1, 3, 5)
                .reshape(B, 4, Hq, Wq, C))
        Rr = TR + 1
        xt = jnp.stack([xs[:, :, t * TR:t * TR + Rr] for t in range(nt)], axis=1)
        xt = xt.reshape(B, nt, 4 * Rr, Wq, C)
        L, Wc = 4 * Rr, Wq
        taps = tuple((((i % 2) * 2 + (j % 2)) * Rr + i // 2, j // 2)
                     for i in range(3) for j in range(3))
        res_tap = None

    return _conv_call(xt, w, b, taps=taps, TR=TR, Wo=Wo, Ho=Ho, act=act,
                      res_tap=res_tap, proj_w=proj_w, proj_b=proj_b)


def stem_conv(x, w, b):
    """Stem 3x3 stride-2 conv. x: (B,H,W,3) bf16 (NOT lane padded in HBM);
    w: (27, O) bf16; b: (O,) f32.  Wrapper-side im2col (27 channels) keeps HBM
    traffic ~42x smaller than zero-padding the image to 128 channels."""
    B, H, W, Cin = x.shape
    Ho = (H - 1) // 2 + 1
    Wo = (W - 1) // 2 + 1
    Hp, Wp = 2 * Ho + 1, 2 * Wo + 1
    xp = jnp.pad(x, ((0, 0), (1, Hp - H - 1), (1, Wp - W - 1), (0, 0)))
    cols = [xp[:, i:i + 2 * Ho:2, j:j + 2 * Wo:2, :]
            for i in range(3) for j in range(3)]
    xi = jnp.concatenate(cols, axis=-1)                 # (B, Ho, Wo, 27)

    TR = _pick_row_tile(Ho)
    nt = Ho // TR
    xt = xi.reshape(B, nt, TR, Wo, 9 * Cin)             # no halo needed
    return _conv_call(xt, w, b, taps=((0, 0),), TR=TR, Wo=Wo, Ho=Ho, act="silu")


# ---------------------------------------------------------------------------
# Kernel 2: fused head 1x1 conv + SiLU + global average pool.
# Grid = (N_tiles [parallel], HW_tiles [arbitrary, last]); accumulates directly
# into the grid-resident output block (no scratch, no finalize copy).
# ---------------------------------------------------------------------------
def _head_pool_kernel(x_ref, w_ref, b_ref, o_ref, *, inv_hw, hw, thw, ragged):
    i = pl.program_id(1)                               # spatial (reduction) tile
    xb = x_ref[...]                                    # (B, thw, C) bf16
    Bb, T, C = xb.shape
    y = jnp.dot(xb.reshape(Bb * T, C), w_ref[...],
                preferred_element_type=jnp.float32)    # (B*T, TN) f32
    y = y + b_ref[...]
    # SiLU: bf16 sigmoid (fast EUP path on v6e/v7x), f32 multiply/accumulate.
    # TODO(synk): keep the sigmoid in f32 when targeting v5e (no bf16 EUP).
    y = y * jax.nn.sigmoid(y.astype(jnp.bfloat16)).astype(jnp.float32)
    y = y.reshape(Bb, T, -1)
    if ragged:                                         # mask overhang rows (SiLU(bias) != 0)
        row = i * thw + jax.lax.broadcasted_iota(jnp.int32, (Bb, T, 1), 1)
        y = jnp.where(row < hw, y, 0.0)
    part = jnp.sum(y, axis=1) * inv_hw                 # (B, TN)

    @pl.when(i == 0)
    def _():
        o_ref[...] = part

    @pl.when(i > 0)
    def _():
        o_ref[...] = o_ref[...] + part


def head_pool(h, w, b, *, tn=256):
    """h: (B,Ho,Wo,C) bf16; w: (C,N) bf16; b: (N,) f32 -> (B,N) f32."""
    B, Ho, Wo, C = h.shape
    HW = Ho * Wo
    N = w.shape[-1]
    x = h.reshape(B, HW, C)

    thw = _pick_hw_tile(HW)
    n_hw = pl.cdiv(HW, thw)
    ragged = (HW % thw) != 0
    tn = tn if N % tn == 0 else N
    n_n = N // tn

    return pl.pallas_call(
        functools.partial(_head_pool_kernel, inv_hw=1.0 / HW, hw=HW, thw=thw,
                          ragged=ragged),
        out_shape=jax.ShapeDtypeStruct((B, N), jnp.float32),
        grid_spec=pltpu.PrefetchScalarGridSpec(
            num_scalar_prefetch=0,
            grid=(n_n, n_hw),                 # N tiles parallel, reduction last
            in_specs=[
                pl.BlockSpec((B, thw, C), lambda j, i: (0, i, 0)),
                pl.BlockSpec((C, tn), lambda j, i: (0, j)),
                pl.BlockSpec((1, tn), lambda j, i: (0, j)),
            ],
            out_specs=pl.BlockSpec((B, tn), lambda j, i: (0, j)),
        ),
        compiler_params=pltpu.CompilerParams(
            dimension_semantics=("parallel", "arbitrary"),
            vmem_limit_bytes=VMEM_LIMIT),
    )(x, w, b.reshape(1, -1))


# ---------------------------------------------------------------------------
# Deterministic synthetic parameters (BN folded); channels zero-padded to 128
# so padded lanes stay exactly zero through the network.
# ---------------------------------------------------------------------------
def init_params(key):
    ks = jax.random.split(key, 10)

    def conv_w(k, kk, cin, cout):
        return jax.random.normal(k, (kk, cin, cout), jnp.float32) * (2.0 / (kk * cin)) ** 0.5

    def pad_w(w, cin_p, cout_p):
        kk, cin, cout = w.shape
        return jnp.pad(w, ((0, 0), (0, cin_p - cin), (0, cout_p - cout))).astype(jnp.bfloat16)

    def pad_b(k, cout, cout_p):
        v = jax.random.normal(k, (cout,), jnp.float32) * 0.01
        return jnp.pad(v, (0, cout_p - cout))

    stem = conv_w(ks[0], 9, 3, 24)                                   # (9,3,24)
    stem_w = jnp.pad(stem.reshape(27, 24), ((0, 0), (0, LANE - 24))).astype(jnp.bfloat16)

    return {
        "stem_w": stem_w,                                            # (27,128)
        "stem_b": pad_b(ks[1], 24, LANE),
        "b1_w": pad_w(conv_w(ks[2], 9, 24, 24), LANE, LANE).reshape(9 * LANE, LANE),
        "b1_b": pad_b(ks[3], 24, LANE),
        "b2_exp_w": pad_w(conv_w(ks[4], 9, 24, 96), LANE, LANE).reshape(9 * LANE, LANE),
        "b2_exp_b": pad_b(ks[5], 96, LANE),
        "b2_proj_w": pad_w(conv_w(ks[6], 1, 96, 48), LANE, LANE)[0],  # (128,128)
        "b2_proj_b": pad_b(ks[7], 48, LANE),
        "head_w": pad_w(conv_w(ks[8], 1, 48, 1280), LANE, 1280)[0],   # (128,1280)
        "head_b": pad_b(ks[9], 1280, 1280),
    }


# ---------------------------------------------------------------------------
# Forward pass: (B, C, H, W) NCHW -> (B, 1280)
# ---------------------------------------------------------------------------
def feature_extractor(x_nchw, params):
    x = jnp.transpose(x_nchw, (0, 2, 3, 1)).astype(jnp.bfloat16)     # NHWC bf16, C=3
    # Stem: 3x3 conv s2, 3->24, SiLU (single K=27 dot; no 3->128 HBM padding)
    h = stem_conv(x, params["stem_w"], params["stem_b"])
    # Fused-MBConv e1, s1: residual read from the resident input block
    h = conv3x3(h, params["b1_w"], params["b1_b"], stride=1, fuse_residual=True)
    # Fused-MBConv e4, s2: 3x3 expand (SiLU) + 1x1 project fused in one kernel
    h = conv3x3(h, params["b2_exp_w"], params["b2_exp_b"], stride=2,
                proj_w=params["b2_proj_w"], proj_b=params["b2_proj_b"])
    # Head: 1x1 conv -> 1280 + SiLU + global average pool, fused
    return head_pool(h, params["head_w"], params["head_b"])          # (B, 1280) f32


if __name__ == "__main__":
    key = jax.random.PRNGKey(0)
    kx, kp = jax.random.split(key)

    x = jax.random.normal(kx, (2, 3, 32, 32), jnp.float32)  # NCHW, like PyTorch
    params = init_params(kp)

    fwd = jax.jit(lambda inp: feature_extractor(inp, params))
    feats = jax.block_until_ready(fwd(x))

    assert feats.shape == (2, 1280), feats.shape
    assert feats.dtype == jnp.float32
    assert bool(jnp.all(jnp.isfinite(feats)))
    print("KERNEL_OK")
</pallas_src>

<mosaic_0001>
module attributes {stable_mosaic.version = 11 : i64} {
  func.func @_conv_kernel(%arg0: i32, %arg1: i32, %arg2: memref<1x1x16x16x27xbf16, #tpu.memory_space<vmem>>, %arg3: memref<27x128xbf16, #tpu.memory_space<vmem>>, %arg4: memref<1x128xf32, #tpu.memory_space<vmem>>, %arg5: memref<1x16x16x128xbf16, #tpu.memory_space<vmem>>) attributes {dimension_semantics = [#tpu.dimension_semantics<parallel>, #tpu.dimension_semantics<parallel>], iteration_bounds = array<i64: 2, 1>, scalar_prefetch = 0 : i64, scratch_operands = 0 : i64, tpu.core_type = #tpu.core_type<tc>, window_params = [{transform_indices = @transform_0, window_bounds = array<i64: 1, 1, 16, 16, 27>}, {pipeline_mode = #tpu.pipeline_mode<synchronous>, transform_indices = @transform_1, window_bounds = array<i64: 27, 128>}, {pipeline_mode = #tpu.pipeline_mode<synchronous>, transform_indices = @transform_2, window_bounds = array<i64: 1, 128>}, {transform_indices = @transform_3, window_bounds = array<i64: 1, 16, 16, 128>}]} {
    %c0 = arith.constant 0 : index
    %c0_0 = arith.constant 0 : index
    %c0_1 = arith.constant 0 : index
    %c0_2 = arith.constant 0 : index
    %c0_3 = arith.constant 0 : index
    %0 = vector.load %arg2[%c0, %c0_0, %c0_1, %c0_2, %c0_3] : memref<1x1x16x16x27xbf16, #tpu.memory_space<vmem>>, vector<1x1x16x16x27xbf16>
    %1 = vector.shape_cast %0 : vector<1x1x16x16x27xbf16> to vector<16x16x27xbf16>
    %2 = vector.shape_cast %1 : vector<16x16x27xbf16> to vector<256x27xbf16>
    %c0_4 = arith.constant 0 : index
    %c0_5 = arith.constant 0 : index
    %3 = vector.load %arg3[%c0_4, %c0_5] : memref<27x128xbf16, #tpu.memory_space<vmem>>, vector<27x128xbf16>
    %cst = arith.constant dense<0.000000e+00> : vector<256x128xf32>
    %4 = tpu.matmul %2, %3, %cst {dimension_numbers = #tpu.dot_dimension_numbers<[1], [0], [0], [1], [0, 0, 1, 1], [], []>} : vector<256x27xbf16>, vector<27x128xbf16>, vector<256x128xf32> -> vector<256x128xf32>
    %c0_6 = arith.constant 0 : index
    %c0_7 = arith.constant 0 : index
    %5 = vector.load %arg4[%c0_6, %c0_7] : memref<1x128xf32, #tpu.memory_space<vmem>>, vector<1x128xf32>
    %6 = vector.broadcast %5 : vector<1x128xf32> to vector<256x128xf32>
    %7 = arith.addf %4, %6 : vector<256x128xf32>
    %8 = arith.negf %7 : vector<256x128xf32>
    %9 = math.exp %8 : vector<256x128xf32>
    %cst_8 = arith.constant 1.000000e+00 : f32
    %10 = vector.broadcast %cst_8 : f32 to vector<256x128xf32>
    %11 = arith.addf %10, %9 : vector<256x128xf32>
    %12 = arith.divf %10, %11 : vector<256x128xf32>
    %13 = arith.mulf %7, %12 : vector<256x128xf32>
    %14 = vector.shape_cast %13 : vector<256x128xf32> to vector<16x16x128xf32>
    %15 = arith.truncf %14 : vector<16x16x128xf32> to vector<16x16x128xbf16>
    %c0_9 = arith.constant 0 : index
    %c0_10 = arith.constant 0 : index
    %c0_11 = arith.constant 0 : index
    %c0_12 = arith.constant 0 : index
    %16 = vector.load %arg5[%c0_9, %c0_10, %c0_11, %c0_12] : memref<1x16x16x128xbf16, #tpu.memory_space<vmem>>, vector<1x16x16x128xbf16>
    %17 = vector.shape_cast %16 : vector<1x16x16x128xbf16> to vector<16x16x128xbf16>
    %18 = vector.shape_cast %15 : vector<16x16x128xbf16> to vector<1x16x16x128xbf16>
    tpu.vector_store %arg5[%c0_9, %c0_10, %c0_11, %c0_12], %18 {strides = array<i32>} : memref<1x16x16x128xbf16, #tpu.memory_space<vmem>>, vector<1x16x16x128xbf16>,
    return
  }
  func.func @transform_0(%arg0: i32, %arg1: i32) -> (i32, i32, i32, i32, i32) {
    %c0_i32 = arith.constant 0 : i32
    %c0_i32_0 = arith.constant 0 : i32
    %c0_i32_1 = arith.constant 0 : i32
    %c0_i32_2 = arith.constant 0 : i32
    return %arg0, %arg1, %c0_i32, %c0_i32_0, %c0_i32_1 : i32, i32, i32, i32, i32
  }
  func.func @transform_1(%arg0: i32, %arg1: i32) -> (i32, i32) {
    %c0_i32 = arith.constant 0 : i32
    %c0_i32_0 = arith.constant 0 : i32
    %c0_i32_1 = arith.constant 0 : i32
    return %c0_i32, %c0_i32_0 : i32, i32
  }
  func.func @transform_2(%arg0: i32, %arg1: i32) -> (i32, i32) {
    %c0_i32 = arith.constant 0 : i32
    %c0_i32_0 = arith.constant 0 : i32
    %c0_i32_1 = arith.constant 0 : i32
    return %c0_i32, %c0_i32_0 : i32, i32
  }
  func.func @transform_3(%arg0: i32, %arg1: i32) -> (i32, i32, i32, i32) {
    %c0_i32 = arith.constant 0 : i32
    %c0_i32_0 = arith.constant 0 : i32
    %c0_i32_1 = arith.constant 0 : i32
    return %arg0, %arg1, %c0_i32, %c0_i32_0 : i32, i32, i32, i32
  }
}

module attributes {stable_mosaic.version = 11 : i64} {
  func.func @_conv_kernel(%arg0: i32, %arg1: i32, %arg2: memref<1x1x18x18x128xbf16, #tpu.memory_space<vmem>>, %arg3: memref<1152x128xbf16, #tpu.memory_space<vmem>>, %arg4: memref<1x128xf32, #tpu.memory_space<vmem>>, %arg5: memref<1x16x16x128xbf16, #tpu.memory_space<vmem>>) attributes {dimension_semantics = [#tpu.dimension_semantics<parallel>, #tpu.dimension_semantics<parallel>], iteration_bounds = array<i64: 2, 1>, scalar_prefetch = 0 : i64, scratch_operands = 0 : i64, tpu.core_type = #tpu.core_type<tc>, window_params = [{transform_indices = @transform_0, window_bounds = array<i64: 1, 1, 18, 18, 128>}, {pipeline_mode = #tpu.pipeline_mode<synchronous>, transform_indices = @transform_1, window_bounds = array<i64: 1152, 128>}, {pipeline_mode = #tpu.pipeline_mode<synchronous>, transform_indices = @transform_2, window_bounds = array<i64: 1, 128>}, {transform_indices = @transform_3, window_bounds = array<i64: 1, 16, 16, 128>}]} {
    %c0 = arith.constant 0 : index
    %c0_0 = arith.constant 0 : index
    %c0_1 = arith.constant 0 : index
    %c0_2 = arith.constant 0 : index
    %c0_3 = arith.constant 0 : index
    %0 = vector.load %arg2[%c0, %c0_0, %c0_1, %c0_2, %c0_3] : memref<1x1x18x18x128xbf16, #tpu.memory_space<vmem>>, vector<1x1x16x16x128xbf16>
    %1 = vector.shape_cast %0 : vector<1x1x16x16x128xbf16> to vector<16x16x128xbf16>
    %c0_4 = arith.constant 0 : index
    %c0_5 = arith.constant 0 : index
    %c0_6 = arith.constant 0 : index
    %c1 = arith.constant 1 : index
    %c0_7 = arith.constant 0 : index
    %2 = vector.load %arg2[%c0_4, %c0_5, %c0_6, %c1, %c0_7] : memref<1x1x18x18x128xbf16, #tpu.memory_space<vmem>>, vector<1x1x16x16x128xbf16>
    %3 = vector.shape_cast %2 : vector<1x1x16x16x128xbf16> to vector<16x16x128xbf16>
    %c0_8 = arith.constant 0 : index
    %c0_9 = arith.constant 0 : index
    %c0_10 = arith.constant 0 : index
    %c2 = arith.constant 2 : index
    %c0_11 = arith.constant 0 : index
    %4 = vector.load %arg2[%c0_8, %c0_9, %c0_10, %c2, %c0_11] : memref<1x1x18x18x128xbf16, #tpu.memory_space<vmem>>, vector<1x1x16x16x128xbf16>
    %5 = vector.shape_cast %4 : vector<1x1x16x16x128xbf16> to vector<16x16x128xbf16>
    %c0_12 = arith.constant 0 : index
    %c0_13 = arith.constant 0 : index
    %c1_14 = arith.constant 1 : index
    %c0_15 = arith.constant 0 : index
    %c0_16 = arith.constant 0 : index
    %6 = vector.load %arg2[%c0_12, %c0_13, %c1_14, %c0_15, %c0_16] : memref<1x1x18x18x128xbf16, #tpu.memory_space<vmem>>, vector<1x1x16x16x128xbf16>
    %7 = vector.shape_cast %6 : vector<1x1x16x16x128xbf16> to vector<16x16x128xbf16>
    %c0_17 = arith.constant 0 : index
    %c0_18 = arith.constant 0 : index
    %c1_19 = arith.constant 1 : index
    %c1_20 = arith.constant 1 : index
    %c0_21 = arith.constant 0 : index
    %8 = vector.load %arg2[%c0_17, %c0_18, %c1_19, %c1_20, %c0_21] : memref<1x1x18x18x128xbf16, #tpu.memory_space<vmem>>, vector<1x1x16x16x128xbf16>
    %9 = vector.shape_cast %8 : vector<1x1x16x16x128xbf16> to vector<16x16x128xbf16>
    %c0_22 = arith.constant 0 : index
    %c0_23 = arith.constant 0 : index
    %c1_24 = arith.constant 1 : index
    %c2_25 = arith.constant 2 : index
    %c0_26 = arith.constant 0 : index
    %10 = vector.load %arg2[%c0_22, %c0_23, %c1_24, %c2_25, %c0_26] : memref<1x1x18x18x128xbf16, #tpu.memory_space<vmem>>, vector<1x1x16x16x128xbf16>
    %11 = vector.shape_cast %10 : vector<1x1x16x16x128xbf16> to vector<16x16x128xbf16>
    %c0_27 = arith.constant 0 : index
    %c0_28 = arith.constant 0 : index
    %c2_29 = arith.constant 2 : index
    %c0_30 = arith.constant 0 : index
    %c0_31 = arith.constant 0 : index
    %12 = vector.load %arg2[%c0_27, %c0_28, %c2_29, %c0_30, %c0_31] : memref<1x1x18x18x128xbf16, #tpu.memory_space<vmem>>, vector<1x1x16x16x128xbf16>
    %13 = vector.shape_cast %12 : vector<1x1x16x16x128xbf16> to vector<16x16x128xbf16>
    %c0_32 = arith.constant 0 : index
    %c0_33 = arith.constant 0 : index
    %c2_34 = arith.constant 2 : index
    %c1_35 = arith.constant 1 : index
    %c0_36 = arith.constant 0 : index
    %14 = vector.load %arg2[%c0_32, %c0_33, %c2_34, %c1_35, %c0_36] : memref<1x1x18x18x128xbf16, #tpu.memory_space<vmem>>, vector<1x1x16x16x128xbf16>
    %15 = vector.shape_cast %14 : vector<1x1x16x16x128xbf16> to vector<16x16x128xbf16>
    %c0_37 = arith.constant 0 : index
    %c0_38 = arith.constant 0 : index
    %c2_39 = arith.constant 2 : index
    %c2_40 = arith.constant 2 : index
    %c0_41 = arith.constant 0 : index
    %16 = vector.load %arg2[%c0_37, %c0_38, %c2_39, %c2_40, %c0_41] : memref<1x1x18x18x128xbf16, #tpu.memory_space<vmem>>, vector<1x1x16x16x128xbf16>
    %17 = vector.shape_cast %16 : vector<1x1x16x16x128xbf16> to vector<16x16x128xbf16>
    %18 = tpu.concatenate %1, %3, %5, %7, %9, %11, %13, %15, %17 in 2 : vector<16x16x128xbf16>, vector<16x16x128xbf16>, vector<16x16x128xbf16>, vector<16x16x128xbf16>, vector<16x16x128xbf16>, vector<16x16x128xbf16>, vector<16x16x128xbf16>, vector<16x16x128xbf16>, vector<16x16x128xbf16> -> vector<16x16x1152xbf16>
    %19 = vector.shape_cast %18 : vector<16x16x1152xbf16> to vector<256x1152xbf16>
    %c0_42 = arith.constant 0 : index
    %c0_43 = arith.constant 0 : index
    %20 = vector.load %arg3[%c0_42, %c0_43] : memref<1152x128xbf16, #tpu.memory_space<vmem>>, vector<1152x128xbf16>
    %cst = arith.constant dense<0.000000e+00> : vector<256x128xf32>
    %21 = tpu.matmul %19, %20, %cst {dimension_numbers = #tpu.dot_dimension_numbers<[1], [0], [0], [1], [0, 0, 1, 1], [], []>} : vector<256x1152xbf16>, vector<1152x128xbf16>, vector<256x128xf32> -> vector<256x128xf32>
    %c0_44 = arith.constant 0 : index
    %c0_45 = arith.constant 0 : index
    %22 = vector.load %arg4[%c0_44, %c0_45] : memref<1x128xf32, #tpu.memory_space<vmem>>, vector<1x128xf32>
    %23 = vector.broadcast %22 : vector<1x128xf32> to vector<256x128xf32>
    %24 = arith.addf %21, %23 : vector<256x128xf32>
    %25 = arith.negf %24 : vector<256x128xf32>
    %26 = math.exp %25 : vector<256x128xf32>
    %cst_46 = arith.constant 1.000000e+00 : f32
    %27 = vector.broadcast %cst_46 : f32 to vector<256x128xf32>
    %28 = arith.addf %27, %26 : vector<256x128xf32>
    %29 = arith.divf %27, %28 : vector<256x128xf32>
    %30 = arith.mulf %24, %29 : vector<256x128xf32>
    %c0_47 = arith.constant 0 : index
    %c0_48 = arith.constant 0 : index
    %c1_49 = arith.constant 1 : index
    %c1_50 = arith.constant 1 : index
    %c0_51 = arith.constant 0 : index
    %31 = vector.load %arg2[%c0_47, %c0_48, %c1_49, %c1_50, %c0_51] : memref<1x1x18x18x128xbf16, #tpu.memory_space<vmem>>, vector<1x1x16x16x128xbf16>
    %32 = vector.shape_cast %31 : vector<1x1x16x16x128xbf16> to vector<16x16x128xbf16>
    %33 = vector.shape_cast %32 : vector<16x16x128xbf16> to vector<256x128xbf16>
    %34 = arith.extf %33 : vector<256x128xbf16> to vector<256x128xf32>
    %35 = arith.addf %30, %34 : vector<256x128xf32>
    %36 = vector.shape_cast %35 : vector<256x128xf32> to vector<16x16x128xf32>
    %37 = arith.truncf %36 : vector<16x16x128xf32> to vector<16x16x128xbf16>
    %c0_52 = arith.constant 0 : index
    %c0_53 = arith.constant 0 : index
    %c0_54 = arith.constant 0 : index
    %c0_55 = arith.constant 0 : index
    %38 = vector.load %arg5[%c0_52, %c0_53, %c0_54, %c0_55] : memref<1x16x16x128xbf16, #tpu.memory_space<vmem>>, vector<1x16x16x128xbf16>
    %39 = vector.shape_cast %38 : vector<1x16x16x128xbf16> to vector<16x16x128xbf16>
    %40 = vector.shape_cast %37 : vector<16x16x128xbf16> to vector<1x16x16x128xbf16>
    tpu.vector_store %arg5[%c0_52, %c0_53, %c0_54, %c0_55], %40 {strides = array<i32>} : memref<1x16x16x128xbf16, #tpu.memory_space<vmem>>, vector<1x16x16x128xbf16>,
    return
  }
  func.func @transform_0(%arg0: i32, %arg1: i32) -> (i32, i32, i32, i32, i32) {
    %c0_i32 = arith.constant 0 : i32
    %c0_i32_0 = arith.constant 0 : i32
    %c0_i32_1 = arith.constant 0 : i32
    %c0_i32_2 = arith.constant 0 : i32
    return %arg0, %arg1, %c0_i32, %c0_i32_0, %c0_i32_1 : i32, i32, i32, i32, i32
  }
  func.func @transform_1(%arg0: i32, %arg1: i32) -> (i32, i32) {
    %c0_i32 = arith.constant 0 : i32
    %c0_i32_0 = arith.constant 0 : i32
    %c0_i32_1 = arith.constant 0 : i32
    return %c0_i32, %c0_i32_0 : i32, i32
  }
  func.func @transform_2(%arg0: i32, %arg1: i32) -> (i32, i32) {
    %c0_i32 = arith.constant 0 : i32
    %c0_i32_0 = arith.constant 0 : i32
    %c0_i32_1 = arith.constant 0 : i32
    return %c0_i32, %c0_i32_0 : i32, i32
  }
  func.func @transform_3(%arg0: i32, %arg1: i32) -> (i32, i32, i32, i32) {
    %c0_i32 = arith.constant 0 : i32
    %c0_i32_0 = arith.constant 0 : i32
    %c0_i32_1 = arith.constant 0 : i32
    return %arg0, %arg1, %c0_i32, %c0_i32_0 : i32, i32, i32, i32
  }
}

module attributes {stable_mosaic.version = 11 : i64} {
  func.func @_conv_kernel(%arg0: i32, %arg1: i32, %arg2: memref<1x1x36x9x128xbf16, #tpu.memory_space<vmem>>, %arg3: memref<1152x128xbf16, #tpu.memory_space<vmem>>, %arg4: memref<1x128xf32, #tpu.memory_space<vmem>>, %arg5: memref<128x128xbf16, #tpu.memory_space<vmem>>, %arg6: memref<1x128xf32, #tpu.memory_space<vmem>>, %arg7: memref<1x8x8x128xbf16, #tpu.memory_space<vmem>>) attributes {dimension_semantics = [#tpu.dimension_semantics<parallel>, #tpu.dimension_semantics<parallel>], iteration_bounds = array<i64: 2, 1>, scalar_prefetch = 0 : i64, scratch_operands = 0 : i64, tpu.core_type = #tpu.core_type<tc>, window_params = [{transform_indices = @transform_0, window_bounds = array<i64: 1, 1, 36, 9, 128>}, {pipeline_mode = #tpu.pipeline_mode<synchronous>, transform_indices = @transform_1, window_bounds = array<i64: 1152, 128>}, {pipeline_mode = #tpu.pipeline_mode<synchronous>, transform_indices = @transform_2, window_bounds = array<i64: 1, 128>}, {pipeline_mode = #tpu.pipeline_mode<synchronous>, transform_indices = @transform_3, window_bounds = array<i64: 128, 128>}, {pipeline_mode = #tpu.pipeline_mode<synchronous>, transform_indices = @transform_4, window_bounds = array<i64: 1, 128>}, {transform_indices = @transform_5, window_bounds = array<i64: 1, 8, 8, 128>}]} {
    %c0 = arith.constant 0 : index
    %c0_0 = arith.constant 0 : index
    %c0_1 = arith.constant 0 : index
    %c0_2 = arith.constant 0 : index
    %c0_3 = arith.constant 0 : index
    %0 = vector.load %arg2[%c0, %c0_0, %c0_1, %c0_2, %c0_3] : memref<1x1x36x9x128xbf16, #tpu.memory_space<vmem>>, vector<1x1x8x8x128xbf16>
    %1 = vector.shape_cast %0 : vector<1x1x8x8x128xbf16> to vector<8x8x128xbf16>
    %c0_4 = arith.constant 0 : index
    %c0_5 = arith.constant 0 : index
    %c9 = arith.constant 9 : index
    %c0_6 = arith.constant 0 : index
    %c0_7 = arith.constant 0 : index
    %2 = vector.load %arg2[%c0_4, %c0_5, %c9, %c0_6, %c0_7] : memref<1x1x36x9x128xbf16, #tpu.memory_space<vmem>>, vector<1x1x8x8x128xbf16>
    %3 = vector.shape_cast %2 : vector<1x1x8x8x128xbf16> to vector<8x8x128xbf16>
    %c0_8 = arith.constant 0 : index
    %c0_9 = arith.constant 0 : index
    %c0_10 = arith.constant 0 : index
    %c1 = arith.constant 1 : index
    %c0_11 = arith.constant 0 : index
    %4 = vector.load %arg2[%c0_8, %c0_9, %c0_10, %c1, %c0_11] : memref<1x1x36x9x128xbf16, #tpu.memory_space<vmem>>, vector<1x1x8x8x128xbf16>
    %5 = vector.shape_cast %4 : vector<1x1x8x8x128xbf16> to vector<8x8x128xbf16>
    %c0_12 = arith.constant 0 : index
    %c0_13 = arith.constant 0 : index
    %c18 = arith.constant 18 : index
    %c0_14 = arith.constant 0 : index
    %c0_15 = arith.constant 0 : index
    %6 = vector.load %arg2[%c0_12, %c0_13, %c18, %c0_14, %c0_15] : memref<1x1x36x9x128xbf16, #tpu.memory_space<vmem>>, vector<1x1x8x8x128xbf16>
    %7 = vector.shape_cast %6 : vector<1x1x8x8x128xbf16> to vector<8x8x128xbf16>
    %c0_16 = arith.constant 0 : index
    %c0_17 = arith.constant 0 : index
    %c27 = arith.constant 27 : index
    %c0_18 = arith.constant 0 : index
    %c0_19 = arith.constant 0 : index
    %8 = vector.load %arg2[%c0_16, %c0_17, %c27, %c0_18, %c0_19] : memref<1x1x36x9x128xbf16, #tpu.memory_space<vmem>>, vector<1x1x8x8x128xbf16>
    %9 = vector.shape_cast %8 : vector<1x1x8x8x128xbf16> to vector<8x8x128xbf16>
    %c0_20 = arith.constant 0 : index
    %c0_21 = arith.constant 0 : index
    %c18_22 = arith.constant 18 : index
    %c1_23 = arith.constant 1 : index
    %c0_24 = arith.constant 0 : index
    %10 = vector.load %arg2[%c0_20, %c0_21, %c18_22, %c1_23, %c0_24] : memref<1x1x36x9x128xbf16, #tpu.memory_space<vmem>>, vector<1x1x8x8x128xbf16>
    %11 = vector.shape_cast %10 : vector<1x1x8x8x128xbf16> to vector<8x8x128xbf16>
    %c0_25 = arith.constant 0 : index
    %c0_26 = arith.constant 0 : index
    %c1_27 = arith.constant 1 : index
    %c0_28 = arith.constant 0 : index
    %c0_29 = arith.constant 0 : index
    %12 = vector.load %arg2[%c0_25, %c0_26, %c1_27, %c0_28, %c0_29] : memref<1x1x36x9x128xbf16, #tpu.memory_space<vmem>>, vector<1x1x8x8x128xbf16>
    %13 = vector.shape_cast %12 : vector<1x1x8x8x128xbf16> to vector<8x8x128xbf16>
    %c0_30 = arith.constant 0 : index
    %c0_31 = arith.constant 0 : index
    %c10 = arith.constant 10 : index
    %c0_32 = arith.constant 0 : index
    %c0_33 = arith.constant 0 : index
    %14 = vector.load %arg2[%c0_30, %c0_31, %c10, %c0_32, %c0_33] : memref<1x1x36x9x128xbf16, #tpu.memory_space<vmem>>, vector<1x1x8x8x128xbf16>
    %15 = vector.shape_cast %14 : vector<1x1x8x8x128xbf16> to vector<8x8x128xbf16>
    %c0_34 = arith.constant 0 : index
    %c0_35 = arith.constant 0 : index
    %c1_36 = arith.constant 1 : index
    %c1_37 = arith.constant 1 : index
    %c0_38 = arith.constant 0 : index
    %16 = vector.load %arg2[%c0_34, %c0_35, %c1_36, %c1_37, %c0_38] : memref<1x1x36x9x128xbf16, #tpu.memory_space<vmem>>, vector<1x1x8x8x128xbf16>
    %17 = vector.shape_cast %16 : vector<1x1x8x8x128xbf16> to vector<8x8x128xbf16>
    %18 = tpu.concatenate %1, %3, %5, %7, %9, %11, %13, %15, %17 in 2 : vector<8x8x128xbf16>, vector<8x8x128xbf16>, vector<8x8x128xbf16>, vector<8x8x128xbf16>, vector<8x8x128xbf16>, vector<8x8x128xbf16>, vector<8x8x128xbf16>, vector<8x8x128xbf16>, vector<8x8x128xbf16> -> vector<8x8x1152xbf16>
    %19 = vector.shape_cast %18 : vector<8x8x1152xbf16> to vector<64x1152xbf16>
    %c0_39 = arith.constant 0 : index
    %c0_40 = arith.constant 0 : index
    %20 = vector.load %arg3[%c0_39, %c0_40] : memref<1152x128xbf16, #tpu.memory_space<vmem>>, vector<1152x128xbf16>
    %cst = arith.constant dense<0.000000e+00> : vector<64x128xf32>
    %21 = tpu.matmul %19, %20, %cst {dimension_numbers = #tpu.dot_dimension_numbers<[1], [0], [0], [1], [0, 0, 1, 1], [], []>} : vector<64x1152xbf16>, vector<1152x128xbf16>, vector<64x128xf32> -> vector<64x128xf32>
    %c0_41 = arith.constant 0 : index
    %c0_42 = arith.constant 0 : index
    %22 = vector.load %arg4[%c0_41, %c0_42] : memref<1x128xf32, #tpu.memory_space<vmem>>, vector<1x128xf32>
    %23 = vector.broadcast %22 : vector<1x128xf32> to vector<64x128xf32>
    %24 = arith.addf %21, %23 : vector<64x128xf32>
    %25 = arith.negf %24 : vector<64x128xf32>
    %26 = math.exp %25 : vector<64x128xf32>
    %cst_43 = arith.constant 1.000000e+00 : f32
    %27 = vector.broadcast %cst_43 : f32 to vector<64x128xf32>
    %28 = arith.addf %27, %26 : vector<64x128xf32>
    %29 = arith.divf %27, %28 : vector<64x128xf32>
    %30 = arith.mulf %24, %29 : vector<64x128xf32>
    %31 = arith.truncf %30 : vector<64x128xf32> to vector<64x128xbf16>
    %c0_44 = arith.constant 0 : index
    %c0_45 = arith.constant 0 : index
    %32 = vector.load %arg5[%c0_44, %c0_45] : memref<128x128xbf16, #tpu.memory_space<vmem>>, vector<128x128xbf16>
    %cst_46 = arith.constant dense<0.000000e+00> : vector<64x128xf32>
    %33 = tpu.matmul %31, %32, %cst_46 {dimension_numbers = #tpu.dot_dimension_numbers<[1], [0], [0], [1], [0, 0, 1, 1], [], []>} : vector<64x128xbf16>, vector<128x128xbf16>, vector<64x128xf32> -> vector<64x128xf32>
    %c0_47 = arith.constant 0 : index
    %c0_48 = arith.constant 0 : index
    %34 = vector.load %arg6[%c0_47, %c0_48] : memref<1x128xf32, #tpu.memory_space<vmem>>, vector<1x128xf32>
    %35 = vector.broadcast %34 : vector<1x128xf32> to vector<64x128xf32>
    %36 = arith.addf %33, %35 : vector<64x128xf32>
    %37 = vector.shape_cast %36 : vector<64x128xf32> to vector<8x8x128xf32>
    %38 = arith.truncf %37 : vector<8x8x128xf32> to vector<8x8x128xbf16>
    %c0_49 = arith.constant 0 : index
    %c0_50 = arith.constant 0 : index
    %c0_51 = arith.constant 0 : index
    %c0_52 = arith.constant 0 : index
    %39 = vector.load %arg7[%c0_49, %c0_50, %c0_51, %c0_52] : memref<1x8x8x128xbf16, #tpu.memory_space<vmem>>, vector<1x8x8x128xbf16>
    %40 = vector.shape_cast %39 : vector<1x8x8x128xbf16> to vector<8x8x128xbf16>
    %41 = vector.shape_cast %38 : vector<8x8x128xbf16> to vector<1x8x8x128xbf16>
    tpu.vector_store %arg7[%c0_49, %c0_50, %c0_51, %c0_52], %41 {strides = array<i32>} : memref<1x8x8x128xbf16, #tpu.memory_space<vmem>>, vector<1x8x8x128xbf16>,
    return
  }
  func.func @transform_0(%arg0: i32, %arg1: i32) -> (i32, i32, i32, i32, i32) {
    %c0_i32 = arith.constant 0 : i32
    %c0_i32_0 = arith.constant 0 : i32
    %c0_i32_1 = arith.constant 0 : i32
    %c0_i32_2 = arith.constant 0 : i32
    return %arg0, %arg1, %c0_i32, %c0_i32_0, %c0_i32_1 : i32, i32, i32, i32, i32
  }
  func.func @transform_1(%arg0: i32, %arg1: i32) -> (i32, i32) {
    %c0_i32 = arith.constant 0 : i32
    %c0_i32_0 = arith.constant 0 : i32
    %c0_i32_1 = arith.constant 0 : i32
    return %c0_i32, %c0_i32_0 : i32, i32
  }
  func.func @transform_2(%arg0: i32, %arg1: i32) -> (i32, i32) {
    %c0_i32 = arith.constant 0 : i32
    %c0_i32_0 = arith.constant 0 : i32
    %c0_i32_1 = arith.constant 0 : i32
    return %c0_i32, %c0_i32_0 : i32, i32
  }
  func.func @transform_3(%arg0: i32, %arg1: i32) -> (i32, i32) {
    %c0_i32 = arith.constant 0 : i32
    %c0_i32_0 = arith.constant 0 : i32
    %c0_i32_1 = arith.constant 0 : i32
    return %c0_i32, %c0_i32_0 : i32, i32
  }
  func.func @transform_4(%arg0: i32, %arg1: i32) -> (i32, i32) {
    %c0_i32 = arith.constant 0 : i32
    %c0_i32_0 = arith.constant 0 : i32
    %c0_i32_1 = arith.constant 0 : i32
    return %c0_i32, %c0_i32_0 : i32, i32
  }
  func.func @transform_5(%arg0: i32, %arg1: i32) -> (i32, i32, i32, i32) {
    %c0_i32 = arith.constant 0 : i32
    %c0_i32_0 = arith.constant 0 : i32
    %c0_i32_1 = arith.constant 0 : i32
    return %arg0, %arg1, %c0_i32, %c0_i32_0 : i32, i32, i32, i32
  }
}

module attributes {stable_mosaic.version = 11 : i64} {
  func.func @_head_pool_kernel(%arg0: i32, %arg1: i32, %arg2: memref<2x64x128xbf16, #tpu.memory_space<vmem>>, %arg3: memref<128x256xbf16, #tpu.memory_space<vmem>>, %arg4: memref<1x256xf32, #tpu.memory_space<vmem>>, %arg5: memref<2x256xf32, #tpu.memory_space<vmem>>) attributes {dimension_semantics = [#tpu.dimension_semantics<parallel>, #tpu.dimension_semantics<arbitrary>], iteration_bounds = array<i64: 5, 1>, scalar_prefetch = 0 : i64, scratch_operands = 0 : i64, tpu.core_type = #tpu.core_type<tc>, window_params = [{transform_indices = @transform_0, window_bounds = array<i64: 2, 64, 128>}, {transform_indices = @transform_1, window_bounds = array<i64: 128, 256>}, {transform_indices = @transform_2, window_bounds = array<i64: 1, 256>}, {transform_indices = @transform_3, window_bounds = array<i64: 2, 256>}]} {
    %c0 = arith.constant 0 : index
    %c0_0 = arith.constant 0 : index
    %c0_1 = arith.constant 0 : index
    %0 = vector.load %arg2[%c0, %c0_0, %c0_1] : memref<2x64x128xbf16, #tpu.memory_space<vmem>>, vector<2x64x128xbf16>
    %1 = vector.shape_cast %0 : vector<2x64x128xbf16> to vector<128x128xbf16>
    %c0_2 = arith.constant 0 : index
    %c0_3 = arith.constant 0 : index
    %2 = vector.load %arg3[%c0_2, %c0_3] : memref<128x256xbf16, #tpu.memory_space<vmem>>, vector<128x256xbf16>
    %cst = arith.constant dense<0.000000e+00> : vector<128x256xf32>
    %3 = tpu.matmul %1, %2, %cst {dimension_numbers = #tpu.dot_dimension_numbers<[1], [0], [0], [1], [0, 0, 1, 1], [], []>} : vector<128x128xbf16>, vector<128x256xbf16>, vector<128x256xf32> -> vector<128x256xf32>
    %c0_4 = arith.constant 0 : index
    %c0_5 = arith.constant 0 : index
    %4 = vector.load %arg4[%c0_4, %c0_5] : memref<1x256xf32, #tpu.memory_space<vmem>>, vector<1x256xf32>
    %5 = vector.broadcast %4 : vector<1x256xf32> to vector<128x256xf32>
    %6 = arith.addf %3, %5 : vector<128x256xf32>
    %7 = arith.truncf %6 : vector<128x256xf32> to vector<128x256xbf16>
    %8 = arith.negf %7 : vector<128x256xbf16>
    %9 = math.exp %8 : vector<128x256xbf16>
    %cst_6 = arith.constant 1.000000e+00 : bf16
    %10 = vector.broadcast %cst_6 : bf16 to vector<128x256xbf16>
    %11 = arith.addf %10, %9 : vector<128x256xbf16>
    %12 = arith.divf %10, %11 : vector<128x256xbf16>
    %13 = arith.extf %12 : vector<128x256xbf16> to vector<128x256xf32>
    %14 = arith.mulf %6, %13 : vector<128x256xf32>
    %15 = vector.shape_cast %14 : vector<128x256xf32> to vector<2x64x256xf32>
    %cst_7 = arith.constant dense<0.000000e+00> : vector<2x256xf32>
    %16 = vector.multi_reduction <add>, %15, %cst_7 [1] : vector<2x64x256xf32> to vector<2x256xf32>
    %cst_8 = arith.constant 1.562500e-02 : f32
    %17 = vector.broadcast %cst_8 : f32 to vector<2x256xf32>
    %18 = arith.mulf %16, %17 : vector<2x256xf32>
    %c0_i32 = arith.constant 0 : i32
    %19 = arith.cmpi eq, %arg1, %c0_i32 : i32
    %20 = arith.extui %19 : i1 to i32
    %c0_i32_9 = arith.constant 0 : i32
    %21 = arith.cmpi ne, %20, %c0_i32_9 : i32
    scf.if %21 {
      %c0_12 = arith.constant 0 : index
      %c0_13 = arith.constant 0 : index
      %25 = vector.load %arg5[%c0_12, %c0_13] : memref<2x256xf32, #tpu.memory_space<vmem>>, vector<2x256xf32>
      tpu.vector_store %arg5[%c0_12, %c0_13], %18 {strides = array<i32>} : memref<2x256xf32, #tpu.memory_space<vmem>>, vector<2x256xf32>,
    } else {
    }
    %c0_i32_10 = arith.constant 0 : i32
    %22 = arith.cmpi sgt, %arg1, %c0_i32_10 : i32
    %23 = arith.extui %22 : i1 to i32
    %c0_i32_11 = arith.constant 0 : i32
    %24 = arith.cmpi ne, %23, %c0_i32_11 : i32
    scf.if %24 {
      %c0_12 = arith.constant 0 : index
      %c0_13 = arith.constant 0 : index
      %25 = vector.load %arg5[%c0_12, %c0_13] : memref<2x256xf32, #tpu.memory_space<vmem>>, vector<2x256xf32>
      %26 = arith.addf %25, %18 : vector<2x256xf32>
      %c0_14 = arith.constant 0 : index
      %c0_15 = arith.constant 0 : index
      %27 = vector.load %arg5[%c0_14, %c0_15] : memref<2x256xf32, #tpu.memory_space<vmem>>, vector<2x256xf32>
      tpu.vector_store %arg5[%c0_14, %c0_15], %26 {strides = array<i32>} : memref<2x256xf32, #tpu.memory_space<vmem>>, vector<2x256xf32>,
    } else {
    }
    return
  }
  func.func @transform_0(%arg0: i32, %arg1: i32) -> (i32, i32, i32) {
    %c0_i32 = arith.constant 0 : i32
    %c0_i32_0 = arith.constant 0 : i32
    %c0_i32_1 = arith.constant 0 : i32
    return %c0_i32, %arg1, %c0_i32_0 : i32, i32, i32
  }
  func.func @transform_1(%arg0: i32, %arg1: i32) -> (i32, i32) {
    %c0_i32 = arith.constant 0 : i32
    %c0_i32_0 = arith.constant 0 : i32
    return %c0_i32, %arg0 : i32, i32
  }
  func.func @transform_2(%arg0: i32, %arg1: i32) -> (i32, i32) {
    %c0_i32 = arith.constant 0 : i32
    %c0_i32_0 = arith.constant 0 : i32
    return %c0_i32, %arg0 : i32, i32
  }
  func.func @transform_3(%arg0: i32, %arg1: i32) -> (i32, i32) {
    %c0_i32 = arith.constant 0 : i32
    %c0_i32_0 = arith.constant 0 : i32
    return %c0_i32, %arg0 : i32, i32
  }
}

</mosaic_0001>

<llo_original>
// kernel: _lambda_.4
$region0: #{_lambda_.4}
  #allocation0 [shape = 'u32[]', space=smem, size = 0x4, offset = 0x4, fixed_abs, tag = 'smem constant byte address 0x4 - core index']
  #allocation1 [shape = 'u32[144,128]{1,0:T(1,128)}', space=vmem, size = 0x12000, scoped, tag = 'internal scratch']
  %s0 = inlined_call_operand.vmem [shape: bf16[2,1,16,16,27], index: 0, kind: input, shape index: {}]
  %s1 = inlined_call_operand.vmem [shape: bf16[27,128], index: 1, kind: input, shape index: {}]
  %s2 = inlined_call_operand.vmem [shape: f32[1,128], index: 2, kind: input, shape index: {}]
  %s3 = inlined_call_operand.vmem [shape: bf16[2,16,16,128], index: 3, kind: output, shape index: {}]
  %s4 = sld [smem:[#allocation0]]
  $region45: #{_lambda_.4} parent=0
    _
  %s6 = ssub.s32 1, %s4
  %s7 = scalar_select 0, %s6, %s4
  loop: start=0, step=1, limit=4
  $region2: #{_lambda_.4} parent=0 // loop_pre_header
    _
  $region3: #{_lambda_.4} parent=0 // loop_header
    %s9 = sphi 0, %s13
    %p10 = scmp.ge.s32.totalorder %s9, 4
    %s16 = sphi 0, %s28
    %s17 = sphi 0, %s24
    %s18 = sphi 0, %s16
    %s19 = sphi 0, %s17
    %s20 = sphi 0, %s18
    %s21 = sphi 0, %s19
    %s33 = sphi 0, %s35
    %s36 = sphi 0, %s33
    %s37 = sphi 0, %s36
    %s53 = sphi 0, %s37
    %s57 = sphi 0, %s57
    %s59 = sphi 0, %s57
    %s60 = sphi 0, %s59
    %s74 = sphi 0, %s60
    %s78 = sphi 0, %s78
    %s80 = sphi 0, %s78
    %s81 = sphi 0, %s80
    %s95 = sphi 0, %s81
    %s103 = sphi 0, %s105
    %s106 = sphi 0, %s103
    %s107 = sphi 0, %s106
    %s123 = sphi 0, %s107
  $region4: #{_lambda_.4} parent=0 // loop_header_branch
    %12 = sbr.rel (%p10) target = $region8
  $region5: #{_lambda_.4} parent=0 // loop_body
    %s14 = ssub.s32 %s9, 1
    %s15 = ssub.s32 %s9, 2
    %s22 = sadd.s32 1, %s17
    %p23 = scmp.ge.s32.totalorder %s22, 1
    %s24 = scalar_select %p23, 0, %s22
    %s25 = sadd.s32 1, %s16
    %s26 = scalar_select %p23, %s25, %s16
    %p27 = scmp.ge.s32.totalorder %s26, 2
    %s28 = scalar_select %p27, 0, %s26
    %s29 = ssub.s32 %s16, %s28
    %s30 = ssub.s32 %s17, %s24
    %s31 = sor.u32 %s29, %s30
    %p32 = scmp.eq.s32.totalorder %s31, 0
    %s34 = sadd.s32 %s33, 1
    %s35 = scalar_select %p32, %s33, %s34
    %p38 = pneg %p32
    %p39 = scmp.eq.s32.totalorder %s9, 1
    %p40 = por %p38, %p39
    %p41 = scmp.ne.s32.totalorder %s33, %s36
    %p42 = scmp.eq.s32.totalorder %s9, 0
    %p43 = por %p41, %p42
    %p44 = scmp.ne.s32.totalorder %s33, %s36
    %p45 = scmp.eq.s32.totalorder %s14, 1
    %p46 = por %p44, %p45
    %p47 = scmp.ne.s32.totalorder %s36, %s37
    %p48 = scmp.eq.s32.totalorder %s14, 0
    %p49 = por %p47, %p48
    %p50 = scmp.ne.s32.totalorder %s36, %s37
    %p51 = scmp.eq.s32.totalorder %s15, 1
    %p52 = por %p50, %p51
    %p54 = scmp.ne.s32.totalorder %s37, %s53
    %p55 = scmp.eq.s32.totalorder %s15, 0
    %p56 = por %p54, %p55
    %s58 = sadd.s32 %s57, 1
    %p61 = scmp.eq.s32.totalorder %s9, 1
    %p62 = scmp.ne.s32.totalorder %s57, %s59
    %p63 = scmp.eq.s32.totalorder %s9, 0
    %p64 = por %p62, %p63
    %p65 = scmp.ne.s32.totalorder %s57, %s59
    %p66 = scmp.eq.s32.totalorder %s14, 1
    %p67 = por %p65, %p66
    %p68 = scmp.ne.s32.totalorder %s59, %s60
    %p69 = scmp.eq.s32.totalorder %s14, 0
    %p70 = por %p68, %p69
    %p71 = scmp.ne.s32.totalorder %s59, %s60
    %p72 = scmp.eq.s32.totalorder %s15, 1
    %p73 = por %p71, %p72
    %p75 = scmp.ne.s32.totalorder %s60, %s74
    %p76 = scmp.eq.s32.totalorder %s15, 0
    %p77 = por %p75, %p76
    %s79 = sadd.s32 %s78, 1
    %p82 = scmp.eq.s32.totalorder %s9, 1
    %p83 = scmp.ne.s32.totalorder %s78, %s80
    %p84 = scmp.eq.s32.totalorder %s9, 0
    %p85 = por %p83, %p84
    %p86 = scmp.ne.s32.totalorder %s78, %s80
    %p87 = scmp.eq.s32.totalorder %s14, 1
    %p88 = por %p86, %p87
    %p89 = scmp.ne.s32.totalorder %s80, %s81
    %p90 = scmp.eq.s32.totalorder %s14, 0
    %p91 = por %p89, %p90
    %p92 = scmp.ne.s32.totalorder %s80, %s81
    %p93 = scmp.eq.s32.totalorder %s15, 1
    %p94 = por %p92, %p93
    %p96 = scmp.ne.s32.totalorder %s81, %s95
    %p97 = scmp.eq.s32.totalorder %s15, 0
    %p98 = por %p96, %p97
    %s99 = ssub.s32 %s16, %s28
    %s100 = ssub.s32 %s17, %s24
    %s101 = sor.u32 %s99, %s100
    %p102 = scmp.eq.s32.totalorder %s101, 0
    %s104 = sadd.s32 %s103, 1
    %s105 = scalar_select %p102, %s103, %s104
    %p108 = pneg %p102
    %p109 = scmp.eq.s32.totalorder %s9, 1
    %p110 = por %p108, %p109
    %p111 = scmp.ne.s32.totalorder %s103, %s106
    %p112 = scmp.eq.s32.totalorder %s9, 0
    %p113 = por %p111, %p112
    %p114 = scmp.ne.s32.totalorder %s103, %s106
    %p115 = scmp.eq.s32.totalorder %s14, 1
    %p116 = por %p114, %p115
    %p117 = scmp.ne.s32.totalorder %s106, %s107
    %p118 = scmp.eq.s32.totalorder %s14, 0
    %p119 = por %p117, %p118
    %p120 = scmp.ne.s32.totalorder %s106, %s107
    %p121 = scmp.eq.s32.totalorder %s15, 1
    %p122 = por %p120, %p121
    %p124 = scmp.ne.s32.totalorder %s107, %s123
    %p125 = scmp.eq.s32.totalorder %s15, 0
    %p126 = por %p124, %p125
    %p127 = scmp.le.s32.totalorder 1, %s9
    %p128 = scmp.lt.s32.totalorder %s9, 3
    %p129 = pnand %p127, %p128
    %p130 = pneg %p129
    // Predicated region
    $region9: #{_lambda_.4} parent=5 // pred_check
      _
    $region10: #{_lambda_.4} parent=5 // pred_check_branch
      %132 = sbr.rel (%p129) target = $region12
    $region11: #{_lambda_.4} parent=5 // pred_region
      %s133 = ssub.s32 %s9, 1
      // Predicated region
      $region13: #{_lambda_.4} parent=11 // pred_check
        %p134 = pneg %p70
      $region14: #{_lambda_.4} parent=11 // pred_check_branch
        %136 = sbr.rel (%p134) target = $region16
      $region15: #{_lambda_.4} parent=11 // pred_region
        _
      $region16: #{_lambda_.4} parent=11 // pred_fallthru
        _
      // Predicated region
      $region17: #{_lambda_.4} parent=11 // pred_check
        %p137 = pneg %p91
      $region18: #{_lambda_.4} parent=11 // pred_check_branch
        %139 = sbr.rel (%p137) target = $region20
      $region19: #{_lambda_.4} parent=11 // pred_region
        _
      $region20: #{_lambda_.4} parent=11 // pred_fallthru
        _
    $region12: #{_lambda_.4} parent=5 // pred_fallthru
      _
    %p140 = scmp.lt.s32.totalorder %s9, 2
    // Predicated region
    $region21: #{_lambda_.4} parent=5 // pred_check
      %p141 = pneg %p140
    $region22: #{_lambda_.4} parent=5 // pred_check_branch
      %143 = sbr.rel (%p141) target = $region24
    $region23: #{_lambda_.4} parent=5 // pred_region
      // Predicated region
      $region25: #{_lambda_.4} parent=23 // pred_check
        %p144 = pneg %p43
      $region26: #{_lambda_.4} parent=23 // pred_check_branch
        %146 = sbr.rel (%p144) target = $region28
      $region27: #{_lambda_.4} parent=23 // pred_region
        %p147 = scmp.lt.s32.totalorder %s16, 1
        %s148 = scalar_select %p147, %s16, 1
        %p149 = scmp.lt.s32.totalorder %s17, 0
        %s150 = scalar_select %p149, %s17, 0
        %s151 = smul.addr %s150, 32
        %s152 = smul.addr %s148, 32
        %s153 = sadd.s32 %s151, %s152
        %s154 = smul.addr %s153, 4
        %s155 = scalar_lea.vmem %s0, %s154
      $region28: #{_lambda_.4} parent=23 // pred_fallthru
        _
    $region24: #{_lambda_.4} parent=5 // pred_fallthru
      _
    %p156 = scmp.le.s32.totalorder 1, %s9
    %p157 = scmp.lt.s32.totalorder %s9, 3
    %p158 = pnand %p156, %p157
    %p159 = pneg %p158
    // Predicated region
    $region29: #{_lambda_.4} parent=5 // pred_check
      _
    $region30: #{_lambda_.4} parent=5 // pred_check_branch
      %161 = sbr.rel (%p158) target = $region32
    $region31: #{_lambda_.4} parent=5 // pred_region
      %s162 = ssub.s32 %s9, 1
      %p163 = scmp.lt.s32.totalorder %s18, 1
      %s164 = scalar_select %p163, %s18, 1
      %p165 = scmp.lt.s32.totalorder %s19, 0
      %s166 = scalar_select %p165, %s19, 0
      %s167 = smul.addr %s166, 32
      %s168 = smul.addr %s164, 32
      %s169 = sadd.s32 %s167, %s168
      %s170 = smul.addr %s169, 4
      %s171 = scalar_lea.vmem %s0, %s170
      %p172 = pneg %p49
      %p173 = pneg %p46
      %p174 = pneg %p70
      %p175 = pneg %p67
      %p176 = pneg %p91
      %p177 = pneg %p88
      %p178 = pneg %p119
      %p179 = pneg %p116
      %s180 = smul.u32 16, %s19
      %p181 = scmp.lt.s32.totalorder %s18, 1
      %s182 = scalar_select %p181, %s18, 1
      %p183 = scmp.lt.s32.totalorder %s180, 15
      %s184 = scalar_select %p183, %s180, 15
      %s185 = smul.addr %s184, 2
      %s186 = smul.addr %s182, 32
      %s187 = sadd.s32 %s185, %s186
      %s188 = smul.addr %s187, 4
      %s189 = scalar_lea.vmem %s3, %s188
      %p190 = scmp.lt.s32.totalorder %s18, 1
      %s191 = scalar_select %p190, %s18, 1
      %p192 = scmp.lt.s32.totalorder %s19, 0
      %s193 = scalar_select %p192, %s19, 0
      %s194 = smul.addr %s193, 32
      %s195 = smul.addr %s191, 32
      %s196 = sadd.s32 %s194, %s195
      %s197 = smul.addr %s196, 4
      %s198 = scalar_lea.vmem %s0, %s197
      %s199 = smul.u32 16, %s19
      %p200 = scmp.lt.s32.totalorder %s18, 1
      %s201 = scalar_select %p200, %s18, 1
      %p202 = scmp.lt.s32.totalorder %s199, 15
      %s203 = scalar_select %p202, %s199, 15
      %s204 = smul.addr %s203, 2
      %s205 = smul.addr %s201, 32
      %s206 = sadd.s32 %s204, %s205
      %s207 = smul.addr %s206, 4
      %s208 = scalar_lea.vmem %s3, %s207
      %s209 = smul.u32 16, %s19
      %v211 = vld [vmem:[%s198] sm:$0xf]
      %v212 = vld [vmem:[%s198 + $0x4] sm:$0xf]
      %v213 = vld [vmem:[%s198 + $0x8] sm:$0xf]
      %v214 = vld [vmem:[%s198 + $0xc] sm:$0xf]
      %v215 = vld [vmem:[%s198 + $0x10] sm:$0xf]
      %v216 = vld [vmem:[%s198 + $0x14] sm:$0xf]
      %v217 = vld [vmem:[%s198 + $0x18] sm:$0xf]
      %v218 = vld [vmem:[%s198 + $0x1c] sm:$0xf]
      %v219 = vld [vmem:[%s198 + $0x20] sm:$0xf]
      %v220 = vld [vmem:[%s198 + $0x24] sm:$0xf]
      %v221 = vld [vmem:[%s198 + $0x28] sm:$0xf]
      %v222 = vld [vmem:[%s198 + $0x2c] sm:$0xf]
      %v223 = vld [vmem:[%s198 + $0x30] sm:$0xf]
      %v224 = vld [vmem:[%s198 + $0x34] sm:$0xf]
      %v225 = vld [vmem:[%s198 + $0x38] sm:$0xf]
      %v226 = vld [vmem:[%s198 + $0x3c] sm:$0xf]
      %v227 = vld [vmem:[%s198 + $0x40] sm:$0xf]
      %v228 = vld [vmem:[%s198 + $0x44] sm:$0xf]
      %v229 = vld [vmem:[%s198 + $0x48] sm:$0xf]
      %v230 = vld [vmem:[%s198 + $0x4c] sm:$0xf]
      %v231 = vld [vmem:[%s198 + $0x50] sm:$0xf]
      %v232 = vld [vmem:[%s198 + $0x54] sm:$0xf]
      %v233 = vld [vmem:[%s198 + $0x58] sm:$0xf]
      %v234 = vld [vmem:[%s198 + $0x5c] sm:$0xf]
      %v235 = vld [vmem:[%s198 + $0x60] sm:$0xf]
      %v236 = vld [vmem:[%s198 + $0x64] sm:$0xf]
      %v237 = vld [vmem:[%s198 + $0x68] sm:$0xf]
      %v238 = vld [vmem:[%s198 + $0x6c] sm:$0xf]
      %v239 = vld [vmem:[%s198 + $0x70] sm:$0xf]
      %v240 = vld [vmem:[%s198 + $0x74] sm:$0xf]
      %v241 = vld [vmem:[%s198 + $0x78] sm:$0xf]
      %v242 = vld [vmem:[%s198 + $0x7c] sm:$0xf]
      %v243 = vld [vmem:[%s1] sm:$0xf]
      %v244 = vld [vmem:[%s1 + $0x4] sm:$0xf]
      %v245 = vld [vmem:[%s1 + $0x8] sm:$0xf]
      %v246 = vld [vmem:[%s1 + $0xc] sm:$0x3]
      %v247 = vld [vmem:[%s2] sm:$0x1]
      %v249 = vlaneseq
      %v250 = vshrl.u32 %v249, 7
      %v251 = vsub.s32 0, %v250
      %v252 = vrot.slane %v247, %v251
      %v286 = vunpack.c.l.b16 %v211
      %v287 = vunpack.c.l.b16 %v212
      %v288 = vunpack.c.l.b16 %v213
      %v289 = vunpack.c.l.b16 %v214
      %v290 = vunpack.c.l.b16 %v215
      %v291 = vunpack.c.l.b16 %v216
      %v292 = vunpack.c.l.b16 %v217
      %v293 = vunpack.c.l.b16 %v218
      %v294 = vunpack.c.l.b16 %v219
      %v295 = vunpack.c.l.b16 %v220
      %v296 = vunpack.c.l.b16 %v221
      %v297 = vunpack.c.l.b16 %v222
      %v298 = vunpack.c.l.b16 %v223
      %v299 = vunpack.c.l.b16 %v224
      %v300 = vunpack.c.l.b16 %v225
      %v301 = vunpack.c.l.b16 %v226
      %v302 = vunpack.c.l.b16 %v227
      %v303 = vunpack.c.l.b16 %v228
      %v304 = vunpack.c.l.b16 %v229
      %v305 = vunpack.c.l.b16 %v230
      %v306 = vunpack.c.l.b16 %v231
      %v307 = vunpack.c.l.b16 %v232
      %v308 = vunpack.c.l.b16 %v233
      %v309 = vunpack.c.l.b16 %v234
      %v310 = vunpack.c.l.b16 %v235
      %v311 = vunpack.c.l.b16 %v236
      %v312 = vunpack.c.l.b16 %v237
      %v313 = vunpack.c.l.b16 %v238
      %v314 = vunpack.c.l.b16 %v239
      %v315 = vunpack.c.l.b16 %v240
      %v316 = vunpack.c.l.b16 %v241
      %v317 = vunpack.c.l.b16 %v242
      %v318 = vpack.c.b16 %v287, %v286
      %v319 = vpack.c.b16 %v289, %v288
      %v320 = vpack.c.b16 %v291, %v290
      %v321 = vpack.c.b16 %v293, %v292
      %v322 = vpack.c.b16 %v295, %v294
      %v323 = vpack.c.b16 %v297, %v296
      %v324 = vpack.c.b16 %v299, %v298
      %v325 = vpack.c.b16 %v301, %v300
      %v326 = vpack.c.b16 %v303, %v302
      %v327 = vpack.c.b16 %v305, %v304
      %v328 = vpack.c.b16 %v307, %v306
      %v329 = vpack.c.b16 %v309, %v308
      %v330 = vpack.c.b16 %v311, %v310
      %v331 = vpack.c.b16 %v313, %v312
      %v332 = vpack.c.b16 %v315, %v314
      %v333 = vpack.c.b16 %v317, %v316
      %v338 = vunpack.c.l.b16 %v243
      %v339 = vunpack.c.l.b16 %v244
      %v340 = vunpack.c.l.b16 %v245
      %v341 = vunpack.c.l.b16 %v246
      %v342 = vpack.c.b16 %v339, %v338
      %v343 = vpack.c.b16 %v341, %v340
      %vm345 = vcmask 220160
      %v347 = vsel %vm345, %v318, 0
      %v350 = vsel %vm345, %v319, 0
      %v353 = vsel %vm345, %v320, 0
      %v356 = vsel %vm345, %v321, 0
      %v359 = vsel %vm345, %v322, 0
      %v362 = vsel %vm345, %v323, 0
      %v365 = vsel %vm345, %v324, 0
      %v368 = vsel %vm345, %v325, 0
      %v371 = vsel %vm345, %v326, 0
      %v374 = vsel %vm345, %v327, 0
      %v377 = vsel %vm345, %v328, 0
      %v380 = vsel %vm345, %v329, 0
      %v383 = vsel %vm345, %v330, 0
      %v386 = vsel %vm345, %v331, 0
      %v389 = vsel %vm345, %v332, 0
      %v392 = vsel %vm345, %v333, 0
      %vm394 = vcmask 1044480
      %vm395 = vcmask 1045504
      %v396 = vsel %vm394, 4294967295, 65535
      %v397 = vsel %vm395, %v396, 0
      %v399 = vand.u32 %v343, %v397
      %401 = vmatprep.subr.bf16.mxu0 0
      %402 = vmatpush1.bf16.msra.mxu0 0
      %403 = vmatprep.subr.bf16.mxu0 0
      %404 = vmatpush1.bf16.msra.mxu0 0
      %405 = vmatprep.subr.bf16.mxu0 0
      %406 = vmatpush1.bf16.msra.mxu0 0
      %407 = vmatprep.subr.bf16.mxu0 0
      %408 = vmatpush1.bf16.msra.mxu0 0
      %409 = vmatprep.subr.bf16.mxu0 0
      %410 = vmatpush1.bf16.msra.mxu0 0
      %411 = vmatprep.subr.bf16.mxu0 0
      %412 = vmatpush1.bf16.msra.mxu0 0
      %413 = vmatprep.subr.bf16.mxu0 0
      %414 = vmatpush1.bf16.msra.mxu0 %v399
      %415 = vmatprep.subr.bf16.mxu0 0
      %416 = vmatpush1.bf16.msra.mxu0 %v342
      %417 = vmatprep.subr.bf16.mxu0 0
      %418 = vmatpush2.bf16.msra.mxu0 0
      %419 = vmatprep.subr.bf16.mxu0 0
      %420 = vmatpush2.bf16.msra.mxu0 0
      %421 = vmatprep.subr.bf16.mxu0 0
      %422 = vmatpush2.bf16.msra.mxu0 0
      %423 = vmatprep.subr.bf16.mxu0 0
      %424 = vmatpush2.bf16.msra.mxu0 0
      %425 = vmatprep.subr.bf16.mxu0 0
      %426 = vmatpush2.bf16.msra.mxu0 0
      %427 = vmatprep.subr.bf16.mxu0 0
      %428 = vmatpush2.bf16.msra.mxu0 0
      %429 = vmatprep.subr.bf16.mxu0 0
      %430 = vmatpush2.bf16.msra.mxu0 0
      %431 = vmatprep.subr.bf16.mxu0 0
      %432 = vmatpush2.bf16.msra.mxu0 0
      %433 = vmatprep.mubr.bf16.mxu0 0
      %434 = vmatmul.mubr.bf16.gmra.mxu0 %v347
      %v435 = vpop.f32.mrf.mxu0
      %v436 = vadd.f32 %v252, %v435
      %v437 = vpop.f32.mrf.mxu0
      %v438 = vpop.f32.mrf.mxu0
      %v439 = vadd.f32 %v252, %v438
      %v440 = vpop.f32.mrf.mxu0
      %441 = vmatprep.mubr.bf16.mxu0 0
      %442 = vmatmul.mubr.bf16.gmra.mxu0 %v350
      %v443 = vpop.f32.mrf.mxu0
      %v444 = vadd.f32 %v252, %v443
      %v445 = vpop.f32.mrf.mxu0
      %v446 = vpop.f32.mrf.mxu0
      %v447 = vadd.f32 %v252, %v446
      %v448 = vpop.f32.mrf.mxu0
      %449 = vmatprep.mubr.bf16.mxu0 0
      %450 = vmatmul.mubr.bf16.gmra.mxu0 %v353
      %v451 = vpop.f32.mrf.mxu0
      %v452 = vadd.f32 %v252, %v451
      %v453 = vpop.f32.mrf.mxu0
      %v454 = vpop.f32.mrf.mxu0
      %v455 = vadd.f32 %v252, %v454
      %v456 = vpop.f32.mrf.mxu0
      %457 = vmatprep.mubr.bf16.mxu0 0
      %458 = vmatmul.mubr.bf16.gmra.mxu0 %v356
      %v459 = vpop.f32.mrf.mxu0
      %v460 = vadd.f32 %v252, %v459
      %v461 = vpop.f32.mrf.mxu0
      %v462 = vpop.f32.mrf.mxu0
      %v463 = vadd.f32 %v252, %v462
      %v464 = vpop.f32.mrf.mxu0
      %465 = vmatprep.mubr.bf16.mxu0 0
      %466 = vmatmul.mubr.bf16.gmra.mxu0 %v359
      %v467 = vpop.f32.mrf.mxu0
      %v468 = vadd.f32 %v252, %v467
      %v469 = vpop.f32.mrf.mxu0
      %v470 = vpop.f32.mrf.mxu0
      %v471 = vadd.f32 %v252, %v470
      %v472 = vpop.f32.mrf.mxu0
      %473 = vmatprep.mubr.bf16.mxu0 0
      %474 = vmatmul.mubr.bf16.gmra.mxu0 %v362
      %v475 = vpop.f32.mrf.mxu0
      %v476 = vadd.f32 %v252, %v475
      %v477 = vpop.f32.mrf.mxu0
      %v478 = vpop.f32.mrf.mxu0
      %v479 = vadd.f32 %v252, %v478
      %v480 = vpop.f32.mrf.mxu0
      %481 = vmatprep.mubr.bf16.mxu0 0
      %482 = vmatmul.mubr.bf16.gmra.mxu0 %v365
      %v483 = vpop.f32.mrf.mxu0
      %v484 = vadd.f32 %v252, %v483
      %v485 = vpop.f32.mrf.mxu0
      %v486 = vpop.f32.mrf.mxu0
      %v487 = vadd.f32 %v252, %v486
      %v488 = vpop.f32.mrf.mxu0
      %489 = vmatprep.mubr.bf16.mxu0 0
      %490 = vmatmul.mubr.bf16.gmra.mxu0 %v368
      %v491 = vpop.f32.mrf.mxu0
      %v492 = vadd.f32 %v252, %v491
      %v493 = vpop.f32.mrf.mxu0
      %v494 = vpop.f32.mrf.mxu0
      %v495 = vadd.f32 %v252, %v494
      %v496 = vpop.f32.mrf.mxu0
      %497 = vmatprep.mubr.bf16.mxu0 0
      %498 = vmatmul.mubr.bf16.gmra.mxu0 %v371
      %v499 = vpop.f32.mrf.mxu0
      %v500 = vadd.f32 %v252, %v499
      %v501 = vpop.f32.mrf.mxu0
      %v502 = vpop.f32.mrf.mxu0
      %v503 = vadd.f32 %v252, %v502
      %v504 = vpop.f32.mrf.mxu0
      %505 = vmatprep.mubr.bf16.mxu0 0
      %506 = vmatmul.mubr.bf16.gmra.mxu0 %v374
      %v507 = vpop.f32.mrf.mxu0
      %v508 = vadd.f32 %v252, %v507
      %v509 = vpop.f32.mrf.mxu0
      %v510 = vpop.f32.mrf.mxu0
      %v511 = vadd.f32 %v252, %v510
      %v512 = vpop.f32.mrf.mxu0
      %513 = vmatprep.mubr.bf16.mxu0 0
      %514 = vmatmul.mubr.bf16.gmra.mxu0 %v377
      %v515 = vpop.f32.mrf.mxu0
      %v516 = vadd.f32 %v252, %v515
      %v517 = vpop.f32.mrf.mxu0
      %v518 = vpop.f32.mrf.mxu0
      %v519 = vadd.f32 %v252, %v518
      %v520 = vpop.f32.mrf.mxu0
      %521 = vmatprep.mubr.bf16.mxu0 0
      %522 = vmatmul.mubr.bf16.gmra.mxu0 %v380
      %v523 = vpop.f32.mrf.mxu0
      %v524 = vadd.f32 %v252, %v523
      %v525 = vpop.f32.mrf.mxu0
      %v526 = vpop.f32.mrf.mxu0
      %v527 = vadd.f32 %v252, %v526
      %v528 = vpop.f32.mrf.mxu0
      %529 = vmatprep.mubr.bf16.mxu0 0
      %530 = vmatmul.mubr.bf16.gmra.mxu0 %v383
      %v531 = vpop.f32.mrf.mxu0
      %v532 = vadd.f32 %v252, %v531
      %v533 = vpop.f32.mrf.mxu0
      %v534 = vpop.f32.mrf.mxu0
      %v535 = vadd.f32 %v252, %v534
      %v536 = vpop.f32.mrf.mxu0
      %537 = vmatprep.mubr.bf16.mxu0 0
      %538 = vmatmul.mubr.bf16.gmra.mxu0 %v386
      %v539 = vpop.f32.mrf.mxu0
      %v540 = vadd.f32 %v252, %v539
      %v541 = vpop.f32.mrf.mxu0
      %v542 = vpop.f32.mrf.mxu0
      %v543 = vadd.f32 %v252, %v542
      %v544 = vpop.f32.mrf.mxu0
      %545 = vmatprep.mubr.bf16.mxu0 0
      %546 = vmatmul.mubr.bf16.gmra.mxu0 %v389
      %v547 = vpop.f32.mrf.mxu0
      %v548 = vadd.f32 %v252, %v547
      %v549 = vpop.f32.mrf.mxu0
      %v550 = vpop.f32.mrf.mxu0
      %v551 = vadd.f32 %v252, %v550
      %v552 = vpop.f32.mrf.mxu0
      %553 = vmatprep.mubr.bf16.mxu0 0
      %554 = vmatmul.mubr.bf16.gmra.mxu0 %v392
      %v555 = vpop.f32.mrf.mxu0
      %v556 = vadd.f32 %v252, %v555
      %v557 = vpop.f32.mrf.mxu0
      %v558 = vpop.f32.mrf.mxu0
      %v559 = vadd.f32 %v252, %v558
      %v560 = vpop.f32.mrf.mxu0
      %561 = vdwg.mxu0
      %v562 = vxor.u32 %v436, 2147483648
      %v563 = vxor.u32 %v439, 2147483648
      %v564 = vxor.u32 %v444, 2147483648
      %v565 = vxor.u32 %v447, 2147483648
      %v566 = vxor.u32 %v452, 2147483648
      %v567 = vxor.u32 %v455, 2147483648
      %v568 = vxor.u32 %v460, 2147483648
      %v569 = vxor.u32 %v463, 2147483648
      %v570 = vxor.u32 %v468, 2147483648
      %v571 = vxor.u32 %v471, 2147483648
      %v572 = vxor.u32 %v476, 2147483648
      %v573 = vxor.u32 %v479, 2147483648
      %v574 = vxor.u32 %v484, 2147483648
      %v575 = vxor.u32 %v487, 2147483648
      %v576 = vxor.u32 %v492, 2147483648
      %v577 = vxor.u32 %v495, 2147483648
      %v578 = vxor.u32 %v500, 2147483648
      %v579 = vxor.u32 %v503, 2147483648
      %v580 = vxor.u32 %v508, 2147483648
      %v581 = vxor.u32 %v511, 2147483648
      %v582 = vxor.u32 %v516, 2147483648
      %v583 = vxor.u32 %v519, 2147483648
      %v584 = vxor.u32 %v524, 2147483648
      %v585 = vxor.u32 %v527, 2147483648
      %v586 = vxor.u32 %v532, 2147483648
      %v587 = vxor.u32 %v535, 2147483648
      %v588 = vxor.u32 %v540, 2147483648
      %v589 = vxor.u32 %v543, 2147483648
      %v590 = vxor.u32 %v548, 2147483648
      %v591 = vxor.u32 %v551, 2147483648
      %v592 = vxor.u32 %v556, 2147483648
      %v593 = vxor.u32 %v559, 2147483648
      %v594 = vmul.f32 %v562, 1.442695
      %v595 = vpow.pop %v594
      %v596 = vmul.f32 %v563, 1.442695
      %v597 = vpow.pop %v596
      %v598 = vmul.f32 %v564, 1.442695
      %v599 = vpow.pop %v598
      %v600 = vmul.f32 %v565, 1.442695
      %v601 = vpow.pop %v600
      %v602 = vmul.f32 %v566, 1.442695
      %v603 = vpow.pop %v602
      %v604 = vmul.f32 %v567, 1.442695
      %v605 = vpow.pop %v604
      %v606 = vmul.f32 %v568, 1.442695
      %v607 = vpow.pop %v606
      %v608 = vmul.f32 %v569, 1.442695
      %v609 = vpow.pop %v608
      %v610 = vmul.f32 %v570, 1.442695
      %v611 = vpow.pop %v610
      %v612 = vmul.f32 %v571, 1.442695
      %v613 = vpow.pop %v612
      %v614 = vmul.f32 %v572, 1.442695
      %v615 = vpow.pop %v614
      %v616 = vmul.f32 %v573, 1.442695
      %v617 = vpow.pop %v616
      %v618 = vmul.f32 %v574, 1.442695
      %v619 = vpow.pop %v618
      %v620 = vmul.f32 %v575, 1.442695
      %v621 = vpow.pop %v620
      %v622 = vmul.f32 %v576, 1.442695
      %v623 = vpow.pop %v622
      %v624 = vmul.f32 %v577, 1.442695
      %v625 = vpow.pop %v624
      %v626 = vmul.f32 %v578, 1.442695
      %v627 = vpow.pop %v626
      %v628 = vmul.f32 %v579, 1.442695
      %v629 = vpow.pop %v628
      %v630 = vmul.f32 %v580, 1.442695
      %v631 = vpow.pop %v630
      %v632 = vmul.f32 %v581, 1.442695
      %v633 = vpow.pop %v632
      %v634 = vmul.f32 %v582, 1.442695
      %v635 = vpow.pop %v634
      %v636 = vmul.f32 %v583, 1.442695
      %v637 = vpow.pop %v636
      %v638 = vmul.f32 %v584, 1.442695
      %v639 = vpow.pop %v638
      %v640 = vmul.f32 %v585, 1.442695
      %v641 = vpow.pop %v640
      %v642 = vmul.f32 %v586, 1.442695
      %v643 = vpow.pop %v642
      %v644 = vmul.f32 %v587, 1.442695
      %v645 = vpow.pop %v644
      %v646 = vmul.f32 %v588, 1.442695
      %v647 = vpow.pop %v646
      %v648 = vmul.f32 %v589, 1.442695
      %v649 = vpow.pop %v648
      %v650 = vmul.f32 %v590, 1.442695
      %v651 = vpow.pop %v650
      %v652 = vmul.f32 %v591, 1.442695
      %v653 = vpow.pop %v652
      %v654 = vmul.f32 %v592, 1.442695
      %v655 = vpow.pop %v654
      %v656 = vmul.f32 %v593, 1.442695
      %v657 = vpow.pop %v656
      %v658 = vadd.f32 %v595, 1.0
      %v659 = vadd.f32 %v597, 1.0
      %v660 = vadd.f32 %v599, 1.0
      %v661 = vadd.f32 %v601, 1.0
      %v662 = vadd.f32 %v603, 1.0
      %v663 = vadd.f32 %v605, 1.0
      %v664 = vadd.f32 %v607, 1.0
      %v665 = vadd.f32 %v609, 1.0
      %v666 = vadd.f32 %v611, 1.0
      %v667 = vadd.f32 %v613, 1.0
      %v668 = vadd.f32 %v615, 1.0
      %v669 = vadd.f32 %v617, 1.0
      %v670 = vadd.f32 %v619, 1.0
      %v671 = vadd.f32 %v621, 1.0
      %v672 = vadd.f32 %v623, 1.0
      %v673 = vadd.f32 %v625, 1.0
      %v674 = vadd.f32 %v627, 1.0
      %v675 = vadd.f32 %v629, 1.0
      %v676 = vadd.f32 %v631, 1.0
      %v677 = vadd.f32 %v633, 1.0
      %v678 = vadd.f32 %v635, 1.0
      %v679 = vadd.f32 %v637, 1.0
      %v680 = vadd.f32 %v639, 1.0
      %v681 = vadd.f32 %v641, 1.0
      %v682 = vadd.f32 %v643, 1.0
      %v683 = vadd.f32 %v645, 1.0
      %v684 = vadd.f32 %v647, 1.0
      %v685 = vadd.f32 %v649, 1.0
      %v686 = vadd.f32 %v651, 1.0
      %v687 = vadd.f32 %v653, 1.0
      %v688 = vadd.f32 %v655, 1.0
      %v689 = vadd.f32 %v657, 1.0
      %v690 = vrcp.pop %v658
      %v691 = vmul.f32 1.0, %v690
      %v692 = vrcp.pop %v659
      %v693 = vmul.f32 1.0, %v692
      %v694 = vrcp.pop %v660
      %v695 = vmul.f32 1.0, %v694
      %v696 = vrcp.pop %v661
      %v697 = vmul.f32 1.0, %v696
      %v698 = vrcp.pop %v662
      %v699 = vmul.f32 1.0, %v698
      %v700 = vrcp.pop %v663
      %v701 = vmul.f32 1.0, %v700
      %v702 = vrcp.pop %v664
      %v703 = vmul.f32 1.0, %v702
      %v704 = vrcp.pop %v665
      %v705 = vmul.f32 1.0, %v704
      %v706 = vrcp.pop %v666
      %v707 = vmul.f32 1.0, %v706
      %v708 = vrcp.pop %v667
      %v709 = vmul.f32 1.0, %v708
      %v710 = vrcp.pop %v668
      %v711 = vmul.f32 1.0, %v710
      %v712 = vrcp.pop %v669
      %v713 = vmul.f32 1.0, %v712
      %v714 = vrcp.pop %v670
      %v715 = vmul.f32 1.0, %v714
      %v716 = vrcp.pop %v671
      %v717 = vmul.f32 1.0, %v716
      %v718 = vrcp.pop %v672
      %v719 = vmul.f32 1.0, %v718
      %v720 = vrcp.pop %v673
      %v721 = vmul.f32 1.0, %v720
      %v722 = vrcp.pop %v674
      %v723 = vmul.f32 1.0, %v722
      %v724 = vrcp.pop %v675
      %v725 = vmul.f32 1.0, %v724
      %v726 = vrcp.pop %v676
      %v727 = vmul.f32 1.0, %v726
      %v728 = vrcp.pop %v677
      %v729 = vmul.f32 1.0, %v728
      %v730 = vrcp.pop %v678
      %v731 = vmul.f32 1.0, %v730
      %v732 = vrcp.pop %v679
      %v733 = vmul.f32 1.0, %v732
      %v734 = vrcp.pop %v680
      %v735 = vmul.f32 1.0, %v734
      %v736 = vrcp.pop %v681
      %v737 = vmul.f32 1.0, %v736
      %v738 = vrcp.pop %v682
      %v739 = vmul.f32 1.0, %v738
      %v740 = vrcp.pop %v683
      %v741 = vmul.f32 1.0, %v740
      %v742 = vrcp.pop %v684
      %v743 = vmul.f32 1.0, %v742
      %v744 = vrcp.pop %v685
      %v745 = vmul.f32 1.0, %v744
      %v746 = vrcp.pop %v686
      %v747 = vmul.f32 1.0, %v746
      %v748 = vrcp.pop %v687
      %v749 = vmul.f32 1.0, %v748
      %v750 = vrcp.pop %v688
      %v751 = vmul.f32 1.0, %v750
      %v752 = vrcp.pop %v689
      %v753 = vmul.f32 1.0, %v752
      %v754 = vmul.f32 %v436, %v691
      %v755 = vmul.f32 %v439, %v693
      %v756 = vmul.f32 %v444, %v695
      %v757 = vmul.f32 %v447, %v697
      %v758 = vmul.f32 %v452, %v699
      %v759 = vmul.f32 %v455, %v701
      %v760 = vmul.f32 %v460, %v703
      %v761 = vmul.f32 %v463, %v705
      %v762 = vmul.f32 %v468, %v707
      %v763 = vmul.f32 %v471, %v709
      %v764 = vmul.f32 %v476, %v711
      %v765 = vmul.f32 %v479, %v713
      %v766 = vmul.f32 %v484, %v715
      %v767 = vmul.f32 %v487, %v717
      %v768 = vmul.f32 %v492, %v719
      %v769 = vmul.f32 %v495, %v721
      %v770 = vmul.f32 %v500, %v723
      %v771 = vmul.f32 %v503, %v725
      %v772 = vmul.f32 %v508, %v727
      %v773 = vmul.f32 %v511, %v729
      %v774 = vmul.f32 %v516, %v731
      %v775 = vmul.f32 %v519, %v733
      %v776 = vmul.f32 %v524, %v735
      %v777 = vmul.f32 %v527, %v737
      %v778 = vmul.f32 %v532, %v739
      %v779 = vmul.f32 %v535, %v741
      %v780 = vmul.f32 %v540, %v743
      %v781 = vmul.f32 %v543, %v745
      %v782 = vmul.f32 %v548, %v747
      %v783 = vmul.f32 %v551, %v749
      %v784 = vmul.f32 %v556, %v751
      %v785 = vmul.f32 %v559, %v753
      %v786 = vpack.c.bf16 %v755, %v754
      %v787 = vpack.c.bf16 %v757, %v756
      %v788 = vpack.c.bf16 %v759, %v758
      %v789 = vpack.c.bf16 %v761, %v760
      %v790 = vpack.c.bf16 %v763, %v762
      %v791 = vpack.c.bf16 %v765, %v764
      %v792 = vpack.c.bf16 %v767, %v766
      %v793 = vpack.c.bf16 %v769, %v768
      %v794 = vpack.c.bf16 %v771, %v770
      %v795 = vpack.c.bf16 %v773, %v772
      %v796 = vpack.c.bf16 %v775, %v774
      %v797 = vpack.c.bf16 %v777, %v776
      %v798 = vpack.c.bf16 %v779, %v778
      %v799 = vpack.c.bf16 %v781, %v780
      %v800 = vpack.c.bf16 %v783, %v782
      %v801 = vpack.c.bf16 %v785, %v784
      %v818 = vunpack.c.l.b16 %v786
      %v819 = vunpack.c.h.b16 %v786
      %v820 = vunpack.c.l.b16 %v787
      %v821 = vunpack.c.h.b16 %v787
      %v822 = vunpack.c.l.b16 %v788
      %v823 = vunpack.c.h.b16 %v788
      %v824 = vunpack.c.l.b16 %v789
      %v825 = vunpack.c.h.b16 %v789
      %v826 = vunpack.c.l.b16 %v790
      %v827 = vunpack.c.h.b16 %v790
      %v828 = vunpack.c.l.b16 %v791
      %v829 = vunpack.c.h.b16 %v791
      %v830 = vunpack.c.l.b16 %v792
      %v831 = vunpack.c.h.b16 %v792
      %v832 = vunpack.c.l.b16 %v793
      %v833 = vunpack.c.h.b16 %v793
      %v834 = vunpack.c.l.b16 %v794
      %v835 = vunpack.c.h.b16 %v794
      %v836 = vunpack.c.l.b16 %v795
      %v837 = vunpack.c.h.b16 %v795
      %v838 = vunpack.c.l.b16 %v796
      %v839 = vunpack.c.h.b16 %v796
      %v840 = vunpack.c.l.b16 %v797
      %v841 = vunpack.c.h.b16 %v797
      %v842 = vunpack.c.l.b16 %v798
      %v843 = vunpack.c.h.b16 %v798
      %v844 = vunpack.c.l.b16 %v799
      %v845 = vunpack.c.h.b16 %v799
      %v846 = vunpack.c.l.b16 %v800
      %v847 = vunpack.c.h.b16 %v800
      %v848 = vunpack.c.l.b16 %v801
      %v849 = vunpack.c.h.b16 %v801
      %v850 = vpack.c.b16 %v818, %v818
      %v851 = vpack.c.b16 %v819, %v819
      %v852 = vpack.c.b16 %v820, %v820
      %v853 = vpack.c.b16 %v821, %v821
      %v854 = vpack.c.b16 %v822, %v822
      %v855 = vpack.c.b16 %v823, %v823
      %v856 = vpack.c.b16 %v824, %v824
      %v857 = vpack.c.b16 %v825, %v825
      %v858 = vpack.c.b16 %v826, %v826
      %v859 = vpack.c.b16 %v827, %v827
      %v860 = vpack.c.b16 %v828, %v828
      %v861 = vpack.c.b16 %v829, %v829
      %v862 = vpack.c.b16 %v830, %v830
      %v863 = vpack.c.b16 %v831, %v831
      %v864 = vpack.c.b16 %v832, %v832
      %v865 = vpack.c.b16 %v833, %v833
      %v866 = vpack.c.b16 %v834, %v834
      %v867 = vpack.c.b16 %v835, %v835
      %v868 = vpack.c.b16 %v836, %v836
      %v869 = vpack.c.b16 %v837, %v837
      %v870 = vpack.c.b16 %v838, %v838
      %v871 = vpack.c.b16 %v839, %v839
      %v872 = vpack.c.b16 %v840, %v840
      %v873 = vpack.c.b16 %v841, %v841
      %v874 = vpack.c.b16 %v842, %v842
      %v875 = vpack.c.b16 %v843, %v843
      %v876 = vpack.c.b16 %v844, %v844
      %v877 = vpack.c.b16 %v845, %v845
      %v878 = vpack.c.b16 %v846, %v846
      %v879 = vpack.c.b16 %v847, %v847
      %v880 = vpack.c.b16 %v848, %v848
      %v881 = vpack.c.b16 %v849, %v849
      %914 = vst [vmem:[%s208] sm:$0xf] %v850
      %915 = vst [vmem:[%s208 + $0x4] sm:$0xf] %v851
      %916 = vst [vmem:[%s208 + $0x8] sm:$0xf] %v852
      %917 = vst [vmem:[%s208 + $0xc] sm:$0xf] %v853
      %918 = vst [vmem:[%s208 + $0x10] sm:$0xf] %v854
      %919 = vst [vmem:[%s208 + $0x14] sm:$0xf] %v855
      %920 = vst [vmem:[%s208 + $0x18] sm:$0xf] %v856
      %921 = vst [vmem:[%s208 + $0x1c] sm:$0xf] %v857
      %922 = vst [vmem:[%s208 + $0x20] sm:$0xf] %v858
      %923 = vst [vmem:[%s208 + $0x24] sm:$0xf] %v859
      %924 = vst [vmem:[%s208 + $0x28] sm:$0xf] %v860
      %925 = vst [vmem:[%s208 + $0x2c] sm:$0xf] %v861
      %926 = vst [vmem:[%s208 + $0x30] sm:$0xf] %v862
      %927 = vst [vmem:[%s208 + $0x34] sm:$0xf] %v863
      %928 = vst [vmem:[%s208 + $0x38] sm:$0xf] %v864
      %929 = vst [vmem:[%s208 + $0x3c] sm:$0xf] %v865
      %930 = vst [vmem:[%s208 + $0x40] sm:$0xf] %v866
      %931 = vst [vmem:[%s208 + $0x44] sm:$0xf] %v867
      %932 = vst [vmem:[%s208 + $0x48] sm:$0xf] %v868
      %933 = vst [vmem:[%s208 + $0x4c] sm:$0xf] %v869
      %934 = vst [vmem:[%s208 + $0x50] sm:$0xf] %v870
      %935 = vst [vmem:[%s208 + $0x54] sm:$0xf] %v871
      %936 = vst [vmem:[%s208 + $0x58] sm:$0xf] %v872
      %937 = vst [vmem:[%s208 + $0x5c] sm:$0xf] %v873
      %938 = vst [vmem:[%s208 + $0x60] sm:$0xf] %v874
      %939 = vst [vmem:[%s208 + $0x64] sm:$0xf] %v875
      %940 = vst [vmem:[%s208 + $0x68] sm:$0xf] %v876
      %941 = vst [vmem:[%s208 + $0x6c] sm:$0xf] %v877
      %942 = vst [vmem:[%s208 + $0x70] sm:$0xf] %v878
      %943 = vst [vmem:[%s208 + $0x74] sm:$0xf] %v879
      %944 = vst [vmem:[%s208 + $0x78] sm:$0xf] %v880
      %945 = vst [vmem:[%s208 + $0x7c] sm:$0xf] %v881
      %s946 = smul.u32 16, %s19
      %p947 = scmp.lt.s32.totalorder %s18, 1
      %s948 = scalar_select %p947, %s18, 1
      %p949 = scmp.lt.s32.totalorder %s946, 15
      %s950 = scalar_select %p949, %s946, 15
      %s951 = smul.addr %s950, 2
      %s952 = smul.addr %s948, 32
      %s953 = sadd.s32 %s951, %s952
      %s954 = smul.addr %s953, 4
      %s955 = scalar_lea.vmem %s3, %s954
      // Predicated region
      $region33: #{_lambda_.4} parent=31 // pred_check
        %p956 = pneg %p116
      $region34: #{_lambda_.4} parent=31 // pred_check_branch
        %958 = sbr.rel (%p956) target = $region36
      $region35: #{_lambda_.4} parent=31 // pred_region
        %s959 = smul.u32 16, %s19
      $region36: #{_lambda_.4} parent=31 // pred_fallthru
        _
    $region32: #{_lambda_.4} parent=5 // pred_fallthru
      _
    %p960 = scmp.le.s32.totalorder 2, %s9
    // Predicated region
    $region37: #{_lambda_.4} parent=5 // pred_check
      %p961 = pneg %p960
    $region38: #{_lambda_.4} parent=5 // pred_check_branch
      %963 = sbr.rel (%p961) target = $region40
    $region39: #{_lambda_.4} parent=5 // pred_region
      %s964 = ssub.s32 %s9, 2
      // Predicated region
      $region41: #{_lambda_.4} parent=39 // pred_check
        %p965 = pneg %p122
      $region42: #{_lambda_.4} parent=39 // pred_check_branch
        %967 = sbr.rel (%p965) target = $region44
      $region43: #{_lambda_.4} parent=39 // pred_region
        %s968 = smul.u32 16, %s21
        %p969 = scmp.lt.s32.totalorder %s20, 1
        %s970 = scalar_select %p969, %s20, 1
        %p971 = scmp.lt.s32.totalorder %s968, 15
        %s972 = scalar_select %p971, %s968, 15
        %s973 = smul.addr %s972, 2
        %s974 = smul.addr %s970, 32
        %s975 = sadd.s32 %s973, %s974
        %s976 = smul.addr %s975, 4
        %s977 = scalar_lea.vmem %s3, %s976
      $region44: #{_lambda_.4} parent=39 // pred_fallthru
        _
    $region40: #{_lambda_.4} parent=5 // pred_fallthru
      _
  $region6: #{_lambda_.4} parent=0 // loop_footer
    %s13 = sadd.s32 1, %s9
  $region7: #{_lambda_.4} parent=0 // loop_footer_branch
    %8 = sbr.rel target = $region3
  $region8: #{_lambda_.4} parent=0 // loop_exit
    _

// kernel: _lambda_.7
$region0: #{_lambda_.7}
  #allocation0 [shape = 'u32[]', space=smem, size = 0x4, offset = 0x4, fixed_abs, tag = 'smem constant byte address 0x4 - core index']
  #allocation1 [shape = 'u32[144,128]{1,0:T(1,128)}', space=vmem, size = 0x12000, scoped, tag = 'internal scratch']
  %s0 = inlined_call_operand.vmem [shape: bf16[2,64,128], index: 0, kind: input, shape index: {}]
  %s1 = inlined_call_operand.vmem [shape: bf16[128,1280], index: 1, kind: input, shape index: {}]
  %s2 = inlined_call_operand.vmem [shape: f32[1,1280], index: 2, kind: input, shape index: {}]
  %s3 = inlined_call_operand.hbm [shape: f32[2,1280], index: 3, kind: output, shape index: {}]
  %s4 = sld [smem:[#allocation0]]
  $region91: #{_lambda_.7} parent=0
    _
  %s6 = ssub.s32 1, %s4
  %s7 = scalar_select 0, %s6, %s4
  $region1: #{_lambda_.7} parent=0
    #allocation2 [shape = 'u8[131072]{0}', space=vmem, size = 0x20000, scoped, tag = 'input window, operand 1']
    #allocation3 [shape = 'u8[4096]{0}', space=vmem, size = 0x1000, scoped, tag = 'output window, operand 0']
    #allocation4 [shape = 's32[2]{0}', space=sflag, size = 0x8, scoped, tag = 'scoped memory for _lambda_.7']
    %8 = vsyncpa [#allocation4], 0
    %s9 = scalar_lea.sflag [#allocation4], 1
    %10 = vsyncpa %s9, 0
    loop: start=0, step=1, limit=7
    $region2: #{_lambda_.7} parent=1 // loop_pre_header
      _
    $region3: #{_lambda_.7} parent=1 // loop_header
      %s12 = sphi 0, %s16
      %p13 = scmp.ge.s32.totalorder %s12, 7
      %s19 = sphi 0, %s31
      %s20 = sphi 0, %s27
      %s21 = sphi 0, %s19
      %s22 = sphi 0, %s20
      %s23 = sphi 0, %s21
      %s24 = sphi 0, %s22
      %s34 = sphi 0, %s36
      %s37 = sphi 0, %s34
      %s38 = sphi 0, %s37
      %s54 = sphi 0, %s38
      %s60 = sphi 0, %s62
      %s63 = sphi 0, %s60
      %s64 = sphi 0, %s63
      %s80 = sphi 0, %s64
      %s86 = sphi 0, %s88
      %s89 = sphi 0, %s86
      %s90 = sphi 0, %s89
      %s106 = sphi 0, %s90
      %s112 = sphi 0, %s114
      %s115 = sphi 0, %s112
      %s116 = sphi 0, %s115
      %s132 = sphi 0, %s116
    $region4: #{_lambda_.7} parent=1 // loop_header_branch
      %15 = sbr.rel (%p13) target = $region8
    $region5: #{_lambda_.7} parent=1 // loop_body
      %s17 = ssub.s32 %s12, 1
      %s18 = ssub.s32 %s12, 2
      %s25 = sadd.s32 1, %s20
      %p26 = scmp.ge.s32.totalorder %s25, 1
      %s27 = scalar_select %p26, 0, %s25
      %s28 = sadd.s32 1, %s19
      %s29 = scalar_select %p26, %s28, %s19
      %p30 = scmp.ge.s32.totalorder %s29, 5
      %s31 = scalar_select %p30, 0, %s29
      %s32 = ssub.s32 %s20, %s27
      %p33 = scmp.eq.s32.totalorder %s32, 0
      %s35 = sadd.s32 %s34, 1
      %s36 = scalar_select %p33, %s34, %s35
      %p39 = pneg %p33
      %p40 = scmp.eq.s32.totalorder %s12, 4
      %p41 = por %p39, %p40
      %p42 = scmp.ne.s32.totalorder %s34, %s37
      %p43 = scmp.eq.s32.totalorder %s12, 0
      %p44 = por %p42, %p43
      %p45 = scmp.ne.s32.totalorder %s34, %s37
      %p46 = scmp.eq.s32.totalorder %s17, 4
      %p47 = por %p45, %p46
      %p48 = scmp.ne.s32.totalorder %s37, %s38
      %p49 = scmp.eq.s32.totalorder %s17, 0
      %p50 = por %p48, %p49
      %p51 = scmp.ne.s32.totalorder %s37, %s38
      %p52 = scmp.eq.s32.totalorder %s18, 4
      %p53 = por %p51, %p52
      %p55 = scmp.ne.s32.totalorder %s38, %s54
      %p56 = scmp.eq.s32.totalorder %s18, 0
      %p57 = por %p55, %p56
      %s58 = ssub.s32 %s19, %s31
      %p59 = scmp.eq.s32.totalorder %s58, 0
      %s61 = sadd.s32 %s60, 1
      %s62 = scalar_select %p59, %s60, %s61
      %p65 = pneg %p59
      %p66 = scmp.eq.s32.totalorder %s12, 4
      %p67 = por %p65, %p66
      %p68 = scmp.ne.s32.totalorder %s60, %s63
      %p69 = scmp.eq.s32.totalorder %s12, 0
      %p70 = por %p68, %p69
      %p71 = scmp.ne.s32.totalorder %s60, %s63
      %p72 = scmp.eq.s32.totalorder %s17, 4
      %p73 = por %p71, %p72
      %p74 = scmp.ne.s32.totalorder %s63, %s64
      %p75 = scmp.eq.s32.totalorder %s17, 0
      %p76 = por %p74, %p75
      %p77 = scmp.ne.s32.totalorder %s63, %s64
      %p78 = scmp.eq.s32.totalorder %s18, 4
      %p79 = por %p77, %p78
      %p81 = scmp.ne.s32.totalorder %s64, %s80
      %p82 = scmp.eq.s32.totalorder %s18, 0
      %p83 = por %p81, %p82
      %s84 = ssub.s32 %s19, %s31
      %p85 = scmp.eq.s32.totalorder %s84, 0
      %s87 = sadd.s32 %s86, 1
      %s88 = scalar_select %p85, %s86, %s87
      %p91 = pneg %p85
      %p92 = scmp.eq.s32.totalorder %s12, 4
      %p93 = por %p91, %p92
      %p94 = scmp.ne.s32.totalorder %s86, %s89
      %p95 = scmp.eq.s32.totalorder %s12, 0
      %p96 = por %p94, %p95
      %p97 = scmp.ne.s32.totalorder %s86, %s89
      %p98 = scmp.eq.s32.totalorder %s17, 4
      %p99 = por %p97, %p98
      %p100 = scmp.ne.s32.totalorder %s89, %s90
      %p101 = scmp.eq.s32.totalorder %s17, 0
      %p102 = por %p100, %p101
      %p103 = scmp.ne.s32.totalorder %s89, %s90
      %p104 = scmp.eq.s32.totalorder %s18, 4
      %p105 = por %p103, %p104
      %p107 = scmp.ne.s32.totalorder %s90, %s106
      %p108 = scmp.eq.s32.totalorder %s18, 0
      %p109 = por %p107, %p108
      %s110 = ssub.s32 %s19, %s31
      %p111 = scmp.eq.s32.totalorder %s110, 0
      %s113 = sadd.s32 %s112, 1
      %s114 = scalar_select %p111, %s112, %s113
      %p117 = pneg %p111
      %p118 = scmp.eq.s32.totalorder %s12, 4
      %p119 = por %p117, %p118
      %p120 = scmp.ne.s32.totalorder %s112, %s115
      %p121 = scmp.eq.s32.totalorder %s12, 0
      %p122 = por %p120, %p121
      %p123 = scmp.ne.s32.totalorder %s112, %s115
      %p124 = scmp.eq.s32.totalorder %s17, 4
      %p125 = por %p123, %p124
      %p126 = scmp.ne.s32.totalorder %s115, %s116
      %p127 = scmp.eq.s32.totalorder %s17, 0
      %p128 = por %p126, %p127
      %p129 = scmp.ne.s32.totalorder %s115, %s116
      %p130 = scmp.eq.s32.totalorder %s18, 4
      %p131 = por %p129, %p130
      %p133 = scmp.ne.s32.totalorder %s116, %s132
      %p134 = scmp.eq.s32.totalorder %s18, 0
      %p135 = por %p133, %p134
      %p136 = scmp.le.s32.totalorder 1, %s12
      %p137 = scmp.lt.s32.totalorder %s12, 6
      %p138 = pnand %p136, %p137
      %p139 = pneg %p138
      // Predicated region
      $region9: #{_lambda_.7} parent=5 // pred_check
        _
      $region10: #{_lambda_.7} parent=5 // pred_check_branch
        %141 = sbr.rel (%p138) target = $region12
      $region11: #{_lambda_.7} parent=5 // pred_region
        %s142 = ssub.s32 %s12, 1
        // Predicated region
        $region13: #{_lambda_.7} parent=11 // pred_check
          %p143 = pneg %p50
        $region14: #{_lambda_.7} parent=11 // pred_check_branch
          %145 = sbr.rel (%p143) target = $region16
        $region15: #{_lambda_.7} parent=11 // pred_region
          %s146 = smul.u32 8, %s22
          %p147 = scmp.lt.s32.totalorder %s146, 7
          %s148 = scalar_select %p147, %s146, 7
          %s149 = smul.addr %s148, 4
          %s150 = scalar_lea.vmem %s0, %s149
          %s151 = smul.u32 8, %s22
        $region16: #{_lambda_.7} parent=11 // pred_fallthru
          _
      $region12: #{_lambda_.7} parent=5 // pred_fallthru
        _
      %p152 = scmp.lt.s32.totalorder %s12, 5
      // Predicated region
      $region17: #{_lambda_.7} parent=5 // pred_check
        %p153 = pneg %p152
      $region18: #{_lambda_.7} parent=5 // pred_check_branch
        %155 = sbr.rel (%p153) target = $region20
      $region19: #{_lambda_.7} parent=5 // pred_region
        // Predicated region
        $region21: #{_lambda_.7} parent=19 // pred_check
          %p156 = pneg %p70
        $region22: #{_lambda_.7} parent=19 // pred_check_branch
          %158 = sbr.rel (%p156) target = $region24
        $region23: #{_lambda_.7} parent=19 // pred_region
          %s159 = sand.u32 %s60, 1
          %s160 = sand.u32 %s60, 1
          %s161 = smul.addr %s160, 128
          %s162 = scalar_lea.vmem [#allocation2], %s161
          %s163 = smul.u32 2, %s19
          %s164 = smul.addr %s163, 4
          %s165 = scalar_lea.vmem %s1, %s164
          // Predicated region
          $region25: #{_lambda_.7} parent=23 // pred_check
            _
          $region26: #{_lambda_.7} parent=23 // pred_check_branch
            %167 = sbr.rel (0) target = $region28
          $region27: #{_lambda_.7} parent=23 // pred_region
            // Predicated region
            $region29: #{_lambda_.7} parent=27 // pred_check
              _
            $region30: #{_lambda_.7} parent=27 // pred_check_branch
              %169 = sbr.rel (0) target = $region32
            $region31: #{_lambda_.7} parent=27 // pred_region
              // Predicated region
              $region44: #{_lambda_.7} parent=31 // pred_check
                _
              $region45: #{_lambda_.7} parent=31 // pred_check_branch
                %215 = sbr.rel (0) target = $region47
              $region46: #{_lambda_.7} parent=31 // pred_region
                loop: start=0, step=1, limit=1
                $region48: #{_lambda_.7} parent=46 // loop_pre_header
                  _
                $region49: #{_lambda_.7} parent=46 // loop_header
                  %s217 = sphi 0, %s221
                  %p218 = scmp.ge.s32.totalorder %s217, 1
                  %s222 = sphi %s165, %s165
                  %s223 = sphi %s162, %s162
                $region50: #{_lambda_.7} parent=46 // loop_header_branch
                  %220 = sbr.rel (%p218) target = $region54
                $region51: #{_lambda_.7} parent=46 // loop_body
                  %v224 = vld [vmem:[%s222] sm:$0xff]
                  %225 = vst [vmem:[%s223] sm:$0xff] %v224
                  %v226 = vld [vmem:[%s222 + $0x28] sm:$0xff]
                  %227 = vst [vmem:[%s223 + $0x8] sm:$0xff] %v226
                  %v228 = vld [vmem:[%s222 + $0x50] sm:$0xff]
                  %229 = vst [vmem:[%s223 + $0x10] sm:$0xff] %v228
                  %v230 = vld [vmem:[%s222 + $0x78] sm:$0xff]
                  %231 = vst [vmem:[%s223 + $0x18] sm:$0xff] %v230
                  %v232 = vld [vmem:[%s222 + $0xa0] sm:$0xff]
                  %233 = vst [vmem:[%s223 + $0x20] sm:$0xff] %v232
                  %v234 = vld [vmem:[%s222 + $0xc8] sm:$0xff]
                  %235 = vst [vmem:[%s223 + $0x28] sm:$0xff] %v234
                  %v236 = vld [vmem:[%s222 + $0xf0] sm:$0xff]
                  %237 = vst [vmem:[%s223 + $0x30] sm:$0xff] %v236
                  %v238 = vld [vmem:[%s222 + $0x118] sm:$0xff]
                  %239 = vst [vmem:[%s223 + $0x38] sm:$0xff] %v238
                  %v240 = vld [vmem:[%s222 + $0x140] sm:$0xff]
                  %241 = vst [vmem:[%s223 + $0x40] sm:$0xff] %v240
                  %v242 = vld [vmem:[%s222 + $0x168] sm:$0xff]
                  %243 = vst [vmem:[%s223 + $0x48] sm:$0xff] %v242
                  %v244 = vld [vmem:[%s222 + $0x190] sm:$0xff]
                  %245 = vst [vmem:[%s223 + $0x50] sm:$0xff] %v244
                  %v246 = vld [vmem:[%s222 + $0x1b8] sm:$0xff]
                  %247 = vst [vmem:[%s223 + $0x58] sm:$0xff] %v246
                  %v248 = vld [vmem:[%s222 + $0x1e0] sm:$0xff]
                  %249 = vst [vmem:[%s223 + $0x60] sm:$0xff] %v248
                  %v250 = vld [vmem:[%s222 + $0x208] sm:$0xff]
                  %251 = vst [vmem:[%s223 + $0x68] sm:$0xff] %v250
                  %v252 = vld [vmem:[%s222 + $0x230] sm:$0xff]
                  %253 = vst [vmem:[%s223 + $0x70] sm:$0xff] %v252
                  %v254 = vld [vmem:[%s222 + $0x258] sm:$0xff]
                  %255 = vst [vmem:[%s223 + $0x78] sm:$0xff] %v254
                $region52: #{_lambda_.7} parent=46 // loop_footer
                  %s221 = sadd.s32 1, %s217
                $region53: #{_lambda_.7} parent=46 // loop_footer_branch
                  %216 = sbr.rel target = $region49
                $region54: #{_lambda_.7} parent=46 // loop_exit
                  _
              $region47: #{_lambda_.7} parent=31 // pred_fallthru
                _
              // Predicated region
              $region55: #{_lambda_.7} parent=31 // pred_check
                _
              $region56: #{_lambda_.7} parent=31 // pred_check_branch
                %257 = sbr.rel target = $region58
              $region57: #{_lambda_.7} parent=31 // pred_region
                _
              $region58: #{_lambda_.7} parent=31 // pred_fallthru
                _
            $region32: #{_lambda_.7} parent=27 // pred_fallthru
              _
            // Predicated region
            $region33: #{_lambda_.7} parent=27 // pred_check
              _
            $region34: #{_lambda_.7} parent=27 // pred_check_branch
              %171 = sbr.rel target = $region36
            $region35: #{_lambda_.7} parent=27 // pred_region
              %s173 = ssub.s32 256, 1
              loop: start=0, step=1, limit=1
              $region37: #{_lambda_.7} parent=35 // loop_pre_header
                _
              $region38: #{_lambda_.7} parent=35 // loop_header
                %s175 = sphi 0, %s179
                %p176 = scmp.ge.s32.totalorder %s175, 1
                %s180 = sphi %s165, %s165
                %s181 = sphi %s162, %s162
              $region39: #{_lambda_.7} parent=35 // loop_header_branch
                %178 = sbr.rel (%p176) target = $region43
              $region40: #{_lambda_.7} parent=35 // loop_body
                %v182 = vld [vmem:[%s180] sm:%s173]
                %183 = vst [vmem:[%s181] sm:%s173] %v182
                %v184 = vld [vmem:[%s180 + $0x28] sm:%s173]
                %185 = vst [vmem:[%s181 + $0x8] sm:%s173] %v184
                %v186 = vld [vmem:[%s180 + $0x50] sm:%s173]
                %187 = vst [vmem:[%s181 + $0x10] sm:%s173] %v186
                %v188 = vld [vmem:[%s180 + $0x78] sm:%s173]
                %189 = vst [vmem:[%s181 + $0x18] sm:%s173] %v188
                %v190 = vld [vmem:[%s180 + $0xa0] sm:%s173]
                %191 = vst [vmem:[%s181 + $0x20] sm:%s173] %v190
                %v192 = vld [vmem:[%s180 + $0xc8] sm:%s173]
                %193 = vst [vmem:[%s181 + $0x28] sm:%s173] %v192
                %v194 = vld [vmem:[%s180 + $0xf0] sm:%s173]
                %195 = vst [vmem:[%s181 + $0x30] sm:%s173] %v194
                %v196 = vld [vmem:[%s180 + $0x118] sm:%s173]
                %197 = vst [vmem:[%s181 + $0x38] sm:%s173] %v196
                %v198 = vld [vmem:[%s180 + $0x140] sm:%s173]
                %199 = vst [vmem:[%s181 + $0x40] sm:%s173] %v198
                %v200 = vld [vmem:[%s180 + $0x168] sm:%s173]
                %201 = vst [vmem:[%s181 + $0x48] sm:%s173] %v200
                %v202 = vld [vmem:[%s180 + $0x190] sm:%s173]
                %203 = vst [vmem:[%s181 + $0x50] sm:%s173] %v202
                %v204 = vld [vmem:[%s180 + $0x1b8] sm:%s173]
                %205 = vst [vmem:[%s181 + $0x58] sm:%s173] %v204
                %v206 = vld [vmem:[%s180 + $0x1e0] sm:%s173]
                %207 = vst [vmem:[%s181 + $0x60] sm:%s173] %v206
                %v208 = vld [vmem:[%s180 + $0x208] sm:%s173]
                %209 = vst [vmem:[%s181 + $0x68] sm:%s173] %v208
                %v210 = vld [vmem:[%s180 + $0x230] sm:%s173]
                %211 = vst [vmem:[%s181 + $0x70] sm:%s173] %v210
                %v212 = vld [vmem:[%s180 + $0x258] sm:%s173]
                %213 = vst [vmem:[%s181 + $0x78] sm:%s173] %v212
              $region41: #{_lambda_.7} parent=35 // loop_footer
                %s179 = sadd.s32 1, %s175
              $region42: #{_lambda_.7} parent=35 // loop_footer_branch
                %174 = sbr.rel target = $region38
              $region43: #{_lambda_.7} parent=35 // loop_exit
                _
            $region36: #{_lambda_.7} parent=27 // pred_fallthru
              _
          $region28: #{_lambda_.7} parent=23 // pred_fallthru
            _
          %258 = vnop
        $region24: #{_lambda_.7} parent=19 // pred_fallthru
          _
        // Predicated region
        $region59: #{_lambda_.7} parent=19 // pred_check
          %p259 = pneg %p96
        $region60: #{_lambda_.7} parent=19 // pred_check_branch
          %261 = sbr.rel (%p259) target = $region62
        $region61: #{_lambda_.7} parent=19 // pred_region
          %s262 = smul.u32 2, %s19
          %p263 = scmp.lt.s32.totalorder %s262, 9
          %s264 = scalar_select %p263, %s262, 9
          %s265 = scalar_lea.vmem %s2, %s264
          %s266 = smul.u32 2, %s19
        $region62: #{_lambda_.7} parent=19 // pred_fallthru
          _
      $region20: #{_lambda_.7} parent=5 // pred_fallthru
        _
      %p267 = scmp.le.s32.totalorder 1, %s12
      %p268 = scmp.lt.s32.totalorder %s12, 6
      %p269 = pnand %p267, %p268
      %p270 = pneg %p269
      // Predicated region
      $region63: #{_lambda_.7} parent=5 // pred_check
        _
      $region64: #{_lambda_.7} parent=5 // pred_check_branch
        %272 = sbr.rel (%p269) target = $region66
      $region65: #{_lambda_.7} parent=5 // pred_region
        %s273 = ssub.s32 %s12, 1
        %s274 = sand.u32 %s63, 1
        %s275 = sand.u32 %s63, 1
        %s276 = smul.addr %s275, 128
        %s277 = scalar_lea.vmem [#allocation2], %s276
        // Predicated region
        $region67: #{_lambda_.7} parent=65 // pred_check
          %p278 = pneg %p76
        $region68: #{_lambda_.7} parent=65 // pred_check_branch
          %280 = sbr.rel (%p278) target = $region70
        $region69: #{_lambda_.7} parent=65 // pred_region
          _
        $region70: #{_lambda_.7} parent=65 // pred_fallthru
          _
        %s281 = smul.u32 8, %s22
        %p282 = scmp.lt.s32.totalorder %s281, 7
        %s283 = scalar_select %p282, %s281, 7
        %s284 = smul.addr %s283, 4
        %s285 = scalar_lea.vmem %s0, %s284
        %p286 = pneg %p50
        %p287 = pneg %p47
        %s288 = sand.u32 %s63, 1
        %s289 = sand.u32 %s63, 1
        %s290 = smul.addr %s289, 128
        %s291 = scalar_lea.vmem [#allocation2], %s290
        %p292 = pneg %p76
        %p293 = pneg %p73
        %s294 = smul.u32 2, %s21
        %p295 = scmp.lt.s32.totalorder %s294, 9
        %s296 = scalar_select %p295, %s294, 9
        %s297 = scalar_lea.vmem %s2, %s296
        %p298 = pneg %p102
        %p299 = pneg %p99
        %p300 = pneg %p128
        %p301 = pneg %p125
        %s302 = sand.u32 %s115, 1
        %s303 = scalar_lea.sflag [#allocation4], %s302
        %s304 = sand.u32 %s115, 1
        %s305 = smul.addr %s304, 4
        %s306 = scalar_lea.vmem [#allocation3], %s305
        %s307 = smul.u32 8, %s22
        %p308 = scmp.lt.s32.totalorder %s307, 7
        %s309 = scalar_select %p308, %s307, 7
        %s310 = smul.addr %s309, 4
        %s311 = scalar_lea.vmem %s0, %s310
        %s312 = smul.u32 8, %s22
        %s313 = smul.u32 2, %s21
        %s314 = smul.u32 2, %s21
        %p315 = scmp.lt.s32.totalorder %s314, 9
        %s316 = scalar_select %p315, %s314, 9
        %s317 = scalar_lea.vmem %s2, %s316
        %s318 = smul.u32 2, %s21
        %s319 = smul.u32 2, %s21
        %v322 = vld [vmem:[%s311] sm:$0xf]
        %v323 = vld [vmem:[%s311 + $0x4] sm:$0xf]
        %v324 = vld [vmem:[%s311 + $0x8] sm:$0xf]
        %v325 = vld [vmem:[%s311 + $0xc] sm:$0xf]
        %v326 = vld [vmem:[%s311 + $0x10] sm:$0xf]
        %v327 = vld [vmem:[%s311 + $0x14] sm:$0xf]
        %v328 = vld [vmem:[%s311 + $0x18] sm:$0xf]
        %v329 = vld [vmem:[%s311 + $0x1c] sm:$0xf]
        %v330 = vld [vmem:[%s311 + $0x20] sm:$0xf]
        %v331 = vld [vmem:[%s311 + $0x24] sm:$0xf]
        %v332 = vld [vmem:[%s311 + $0x28] sm:$0xf]
        %v333 = vld [vmem:[%s311 + $0x2c] sm:$0xf]
        %v334 = vld [vmem:[%s311 + $0x30] sm:$0xf]
        %v335 = vld [vmem:[%s311 + $0x34] sm:$0xf]
        %v336 = vld [vmem:[%s311 + $0x38] sm:$0xf]
        %v337 = vld [vmem:[%s311 + $0x3c] sm:$0xf]
        %v338 = vld [vmem:[%s277] sm:$0xff]
        %v339 = vld [vmem:[%s277 + $0x8] sm:$0xff]
        %v340 = vld [vmem:[%s277 + $0x10] sm:$0xff]
        %v341 = vld [vmem:[%s277 + $0x18] sm:$0xff]
        %v342 = vld [vmem:[%s277 + $0x20] sm:$0xff]
        %v343 = vld [vmem:[%s277 + $0x28] sm:$0xff]
        %v344 = vld [vmem:[%s277 + $0x30] sm:$0xff]
        %v345 = vld [vmem:[%s277 + $0x38] sm:$0xff]
        %v346 = vld [vmem:[%s277 + $0x40] sm:$0xff]
        %v347 = vld [vmem:[%s277 + $0x48] sm:$0xff]
        %v348 = vld [vmem:[%s277 + $0x50] sm:$0xff]
        %v349 = vld [vmem:[%s277 + $0x58] sm:$0xff]
        %v350 = vld [vmem:[%s277 + $0x60] sm:$0xff]
        %v351 = vld [vmem:[%s277 + $0x68] sm:$0xff]
        %v352 = vld [vmem:[%s277 + $0x70] sm:$0xff]
        %v353 = vld [vmem:[%s277 + $0x78] sm:$0xff]
        %v354 = vld [vmem:[%s317] sm:$0x3]
        %v356 = vlaneseq
        %v357 = vshrl.u32 %v356, 7
        %v358 = vsub.s32 0, %v357
        %v359 = vrot.slane %v354, %v358
        %v360 = vlaneseq
        %v361 = vshrl.u32 %v360, 7
        %v362 = vsub.s32 1, %v361
        %v363 = vrot.slane %v354, %v362
        %v382 = vunpack.c.l.b16 %v322
        %v383 = vunpack.c.l.b16 %v323
        %v384 = vunpack.c.l.b16 %v324
        %v385 = vunpack.c.l.b16 %v325
        %v386 = vunpack.c.l.b16 %v326
        %v387 = vunpack.c.l.b16 %v327
        %v388 = vunpack.c.l.b16 %v328
        %v389 = vunpack.c.l.b16 %v329
        %v390 = vunpack.c.l.b16 %v330
        %v391 = vunpack.c.l.b16 %v331
        %v392 = vunpack.c.l.b16 %v332
        %v393 = vunpack.c.l.b16 %v333
        %v394 = vunpack.c.l.b16 %v334
        %v395 = vunpack.c.l.b16 %v335
        %v396 = vunpack.c.l.b16 %v336
        %v397 = vunpack.c.l.b16 %v337
        %v398 = vpack.c.b16 %v383, %v382
        %v399 = vpack.c.b16 %v385, %v384
        %v400 = vpack.c.b16 %v387, %v386
        %v401 = vpack.c.b16 %v389, %v388
        %v402 = vpack.c.b16 %v391, %v390
        %v403 = vpack.c.b16 %v393, %v392
        %v404 = vpack.c.b16 %v395, %v394
        %v405 = vpack.c.b16 %v397, %v396
        %v430 = vunpack.c.l.b16 %v338
        %v431 = vunpack.c.h.b16 %v338
        %v432 = vunpack.c.l.b16 %v339
        %v433 = vunpack.c.h.b16 %v339
        %v434 = vunpack.c.l.b16 %v340
        %v435 = vunpack.c.h.b16 %v340
        %v436 = vunpack.c.l.b16 %v341
        %v437 = vunpack.c.h.b16 %v341
        %v438 = vunpack.c.l.b16 %v342
        %v439 = vunpack.c.h.b16 %v342
        %v440 = vunpack.c.l.b16 %v343
        %v441 = vunpack.c.h.b16 %v343
        %v442 = vunpack.c.l.b16 %v344
        %v443 = vunpack.c.h.b16 %v344
        %v444 = vunpack.c.l.b16 %v345
        %v445 = vunpack.c.h.b16 %v345
        %v446 = vunpack.c.l.b16 %v346
        %v447 = vunpack.c.h.b16 %v346
        %v448 = vunpack.c.l.b16 %v347
        %v449 = vunpack.c.h.b16 %v347
        %v450 = vunpack.c.l.b16 %v348
        %v451 = vunpack.c.h.b16 %v348
        %v452 = vunpack.c.l.b16 %v349
        %v453 = vunpack.c.h.b16 %v349
        %v454 = vunpack.c.l.b16 %v350
        %v455 = vunpack.c.h.b16 %v350
        %v456 = vunpack.c.l.b16 %v351
        %v457 = vunpack.c.h.b16 %v351
        %v458 = vunpack.c.l.b16 %v352
        %v459 = vunpack.c.h.b16 %v352
        %v460 = vunpack.c.l.b16 %v353
        %v461 = vunpack.c.h.b16 %v353
        %v462 = vpack.c.b16 %v432, %v430
        %v463 = vpack.c.b16 %v433, %v431
        %v464 = vpack.c.b16 %v436, %v434
        %v465 = vpack.c.b16 %v437, %v435
        %v466 = vpack.c.b16 %v440, %v438
        %v467 = vpack.c.b16 %v441, %v439
        %v468 = vpack.c.b16 %v444, %v442
        %v469 = vpack.c.b16 %v445, %v443
        %v470 = vpack.c.b16 %v448, %v446
        %v471 = vpack.c.b16 %v449, %v447
        %v472 = vpack.c.b16 %v452, %v450
        %v473 = vpack.c.b16 %v453, %v451
        %v474 = vpack.c.b16 %v456, %v454
        %v475 = vpack.c.b16 %v457, %v455
        %v476 = vpack.c.b16 %v460, %v458
        %v477 = vpack.c.b16 %v461, %v459
        %494 = vmatprep.subr.bf16.mxu0 %v477
        %495 = vmatpush1.bf16.msra.mxu0 %v476
        %496 = vmatprep.subr.bf16.mxu0 %v475
        %497 = vmatpush1.bf16.msra.mxu0 %v474
        %498 = vmatprep.subr.bf16.mxu0 %v473
        %499 = vmatpush1.bf16.msra.mxu0 %v472
        %500 = vmatprep.subr.bf16.mxu0 %v471
        %501 = vmatpush1.bf16.msra.mxu0 %v470
        %502 = vmatprep.subr.bf16.mxu0 %v469
        %503 = vmatpush1.bf16.msra.mxu0 %v468
        %504 = vmatprep.subr.bf16.mxu0 %v467
        %505 = vmatpush1.bf16.msra.mxu0 %v466
        %506 = vmatprep.subr.bf16.mxu0 %v465
        %507 = vmatpush1.bf16.msra.mxu0 %v464
        %508 = vmatprep.subr.bf16.mxu0 %v463
        %509 = vmatpush1.bf16.msra.mxu0 %v462
        %510 = vmatprep.subr.bf16.mxu0 0
        %511 = vmatpush2.bf16.msra.mxu0 0
        %512 = vmatprep.subr.bf16.mxu0 0
        %513 = vmatpush2.bf16.msra.mxu0 0
        %514 = vmatprep.subr.bf16.mxu0 0
        %515 = vmatpush2.bf16.msra.mxu0 0
        %516 = vmatprep.subr.bf16.mxu0 0
        %517 = vmatpush2.bf16.msra.mxu0 0
        %518 = vmatprep.subr.bf16.mxu0 0
        %519 = vmatpush2.bf16.msra.mxu0 0
        %520 = vmatprep.subr.bf16.mxu0 0
        %521 = vmatpush2.bf16.msra.mxu0 0
        %522 = vmatprep.subr.bf16.mxu0 0
        %523 = vmatpush2.bf16.msra.mxu0 0
        %524 = vmatprep.subr.bf16.mxu0 0
        %525 = vmatpush2.bf16.msra.mxu0 0
        %526 = vmatprep.mubr.bf16.mxu0 0
        %527 = vmatmul.mubr.bf16.gmra.mxu0 %v398
        %v528 = vpop.f32.mrf.mxu0
        %v529 = vadd.f32 %v359, %v528
        %v530 = vpop.f32.mrf.mxu0
        %v531 = vadd.f32 %v363, %v530
        %v532 = vpop.f32.mrf.mxu0
        %v533 = vadd.f32 %v359, %v532
        %v534 = vpop.f32.mrf.mxu0
        %v535 = vadd.f32 %v363, %v534
        %536 = vmatprep.mubr.bf16.mxu0 0
        %537 = vmatmul.mubr.bf16.gmra.mxu0 %v399
        %v538 = vpop.f32.mrf.mxu0
        %v539 = vadd.f32 %v359, %v538
        %v540 = vpop.f32.mrf.mxu0
        %v541 = vadd.f32 %v363, %v540
        %v542 = vpop.f32.mrf.mxu0
        %v543 = vadd.f32 %v359, %v542
        %v544 = vpop.f32.mrf.mxu0
        %v545 = vadd.f32 %v363, %v544
        %546 = vmatprep.mubr.bf16.mxu0 0
        %547 = vmatmul.mubr.bf16.gmra.mxu0 %v400
        %v548 = vpop.f32.mrf.mxu0
        %v549 = vadd.f32 %v359, %v548
        %v550 = vpop.f32.mrf.mxu0
        %v551 = vadd.f32 %v363, %v550
        %v552 = vpop.f32.mrf.mxu0
        %v553 = vadd.f32 %v359, %v552
        %v554 = vpop.f32.mrf.mxu0
        %v555 = vadd.f32 %v363, %v554
        %556 = vmatprep.mubr.bf16.mxu0 0
        %557 = vmatmul.mubr.bf16.gmra.mxu0 %v401
        %v558 = vpop.f32.mrf.mxu0
        %v559 = vadd.f32 %v359, %v558
        %v560 = vpop.f32.mrf.mxu0
        %v561 = vadd.f32 %v363, %v560
        %v562 = vpop.f32.mrf.mxu0
        %v563 = vadd.f32 %v359, %v562
        %v564 = vpop.f32.mrf.mxu0
        %v565 = vadd.f32 %v363, %v564
        %566 = vmatprep.mubr.bf16.mxu0 0
        %567 = vmatmul.mubr.bf16.gmra.mxu0 %v402
        %v568 = vpop.f32.mrf.mxu0
        %v569 = vadd.f32 %v359, %v568
        %v570 = vpop.f32.mrf.mxu0
        %v571 = vadd.f32 %v363, %v570
        %v572 = vpop.f32.mrf.mxu0
        %v573 = vadd.f32 %v359, %v572
        %v574 = vpop.f32.mrf.mxu0
        %v575 = vadd.f32 %v363, %v574
        %576 = vmatprep.mubr.bf16.mxu0 0
        %577 = vmatmul.mubr.bf16.gmra.mxu0 %v403
        %v578 = vpop.f32.mrf.mxu0
        %v579 = vadd.f32 %v359, %v578
        %v580 = vpop.f32.mrf.mxu0
        %v581 = vadd.f32 %v363, %v580
        %v582 = vpop.f32.mrf.mxu0
        %v583 = vadd.f32 %v359, %v582
        %v584 = vpop.f32.mrf.mxu0
        %v585 = vadd.f32 %v363, %v584
        %586 = vmatprep.mubr.bf16.mxu0 0
        %587 = vmatmul.mubr.bf16.gmra.mxu0 %v404
        %v588 = vpop.f32.mrf.mxu0
        %v589 = vadd.f32 %v359, %v588
        %v590 = vpop.f32.mrf.mxu0
        %v591 = vadd.f32 %v363, %v590
        %v592 = vpop.f32.mrf.mxu0
        %v593 = vadd.f32 %v359, %v592
        %v594 = vpop.f32.mrf.mxu0
        %v595 = vadd.f32 %v363, %v594
        %596 = vmatprep.mubr.bf16.mxu0 0
        %597 = vmatmul.mubr.bf16.gmra.mxu0 %v405
        %v598 = vpop.f32.mrf.mxu0
        %v599 = vadd.f32 %v359, %v598
        %v600 = vpop.f32.mrf.mxu0
        %v601 = vadd.f32 %v363, %v600
        %v602 = vpop.f32.mrf.mxu0
        %v603 = vadd.f32 %v359, %v602
        %v604 = vpop.f32.mrf.mxu0
        %v605 = vadd.f32 %v363, %v604
        %606 = vdwg.mxu0
        %v607 = vpack.c.bf16 %v533, %v529
        %v608 = vpack.c.bf16 %v535, %v531
        %v609 = vpack.c.bf16 %v543, %v539
        %v610 = vpack.c.bf16 %v545, %v541
        %v611 = vpack.c.bf16 %v553, %v549
        %v612 = vpack.c.bf16 %v555, %v551
        %v613 = vpack.c.bf16 %v563, %v559
        %v614 = vpack.c.bf16 %v565, %v561
        %v615 = vpack.c.bf16 %v573, %v569
        %v616 = vpack.c.bf16 %v575, %v571
        %v617 = vpack.c.bf16 %v583, %v579
        %v618 = vpack.c.bf16 %v585, %v581
        %v619 = vpack.c.bf16 %v593, %v589
        %v620 = vpack.c.bf16 %v595, %v591
        %v621 = vpack.c.bf16 %v603, %v599
        %v622 = vpack.c.bf16 %v605, %v601
        %v623 = vxor.u32 %v607, 2147516416
        %v624 = vxor.u32 %v608, 2147516416
        %v625 = vxor.u32 %v609, 2147516416
        %v626 = vxor.u32 %v610, 2147516416
        %v627 = vxor.u32 %v611, 2147516416
        %v628 = vxor.u32 %v612, 2147516416
        %v629 = vxor.u32 %v613, 2147516416
        %v630 = vxor.u32 %v614, 2147516416
        %v631 = vxor.u32 %v615, 2147516416
        %v632 = vxor.u32 %v616, 2147516416
        %v633 = vxor.u32 %v617, 2147516416
        %v634 = vxor.u32 %v618, 2147516416
        %v635 = vxor.u32 %v619, 2147516416
        %v636 = vxor.u32 %v620, 2147516416
        %v637 = vxor.u32 %v621, 2147516416
        %v638 = vxor.u32 %v622, 2147516416
        %v640 = vmul.bf16 %v623, 1069105081
        %v641 = vpow.bf16.pop %v640
        %v643 = vmul.bf16 %v624, 1069105081
        %v644 = vpow.bf16.pop %v643
        %v646 = vmul.bf16 %v625, 1069105081
        %v647 = vpow.bf16.pop %v646
        %v649 = vmul.bf16 %v626, 1069105081
        %v650 = vpow.bf16.pop %v649
        %v652 = vmul.bf16 %v627, 1069105081
        %v653 = vpow.bf16.pop %v652
        %v655 = vmul.bf16 %v628, 1069105081
        %v656 = vpow.bf16.pop %v655
        %v658 = vmul.bf16 %v629, 1069105081
        %v659 = vpow.bf16.pop %v658
        %v661 = vmul.bf16 %v630, 1069105081
        %v662 = vpow.bf16.pop %v661
        %v664 = vmul.bf16 %v631, 1069105081
        %v665 = vpow.bf16.pop %v664
        %v667 = vmul.bf16 %v632, 1069105081
        %v668 = vpow.bf16.pop %v667
        %v670 = vmul.bf16 %v633, 1069105081
        %v671 = vpow.bf16.pop %v670
        %v673 = vmul.bf16 %v634, 1069105081
        %v674 = vpow.bf16.pop %v673
        %v676 = vmul.bf16 %v635, 1069105081
        %v677 = vpow.bf16.pop %v676
        %v679 = vmul.bf16 %v636, 1069105081
        %v680 = vpow.bf16.pop %v679
        %v682 = vmul.bf16 %v637, 1069105081
        %v683 = vpow.bf16.pop %v682
        %v685 = vmul.bf16 %v638, 1069105081
        %v686 = vpow.bf16.pop %v685
        %v687 = vadd.bf16 %v641, 1065369472
        %v688 = vadd.bf16 %v644, 1065369472
        %v689 = vadd.bf16 %v647, 1065369472
        %v690 = vadd.bf16 %v650, 1065369472
        %v691 = vadd.bf16 %v653, 1065369472
        %v692 = vadd.bf16 %v656, 1065369472
        %v693 = vadd.bf16 %v659, 1065369472
        %v694 = vadd.bf16 %v662, 1065369472
        %v695 = vadd.bf16 %v665, 1065369472
        %v696 = vadd.bf16 %v668, 1065369472
        %v697 = vadd.bf16 %v671, 1065369472
        %v698 = vadd.bf16 %v674, 1065369472
        %v699 = vadd.bf16 %v677, 1065369472
        %v700 = vadd.bf16 %v680, 1065369472
        %v701 = vadd.bf16 %v683, 1065369472
        %v702 = vadd.bf16 %v686, 1065369472
        %v703 = vrcp.bf16.pop %v687
        %v704 = vmul.bf16 1065369472, %v703
        %v705 = vrcp.bf16.pop %v688
        %v706 = vmul.bf16 1065369472, %v705
        %v707 = vrcp.bf16.pop %v689
        %v708 = vmul.bf16 1065369472, %v707
        %v709 = vrcp.bf16.pop %v690
        %v710 = vmul.bf16 1065369472, %v709
        %v711 = vrcp.bf16.pop %v691
        %v712 = vmul.bf16 1065369472, %v711
        %v713 = vrcp.bf16.pop %v692
        %v714 = vmul.bf16 1065369472, %v713
        %v715 = vrcp.bf16.pop %v693
        %v716 = vmul.bf16 1065369472, %v715
        %v717 = vrcp.bf16.pop %v694
        %v718 = vmul.bf16 1065369472, %v717
        %v719 = vrcp.bf16.pop %v695
        %v720 = vmul.bf16 1065369472, %v719
        %v721 = vrcp.bf16.pop %v696
        %v722 = vmul.bf16 1065369472, %v721
        %v723 = vrcp.bf16.pop %v697
        %v724 = vmul.bf16 1065369472, %v723
        %v725 = vrcp.bf16.pop %v698
        %v726 = vmul.bf16 1065369472, %v725
        %v727 = vrcp.bf16.pop %v699
        %v728 = vmul.bf16 1065369472, %v727
        %v729 = vrcp.bf16.pop %v700
        %v730 = vmul.bf16 1065369472, %v729
        %v731 = vrcp.bf16.pop %v701
        %v732 = vmul.bf16 1065369472, %v731
        %v733 = vrcp.bf16.pop %v702
        %v734 = vmul.bf16 1065369472, %v733
        %v735 = vunpack.c.l.bf16 %v704
        %v736 = vunpack.c.l.bf16 %v706
        %v737 = vunpack.c.h.bf16 %v704
        %v738 = vunpack.c.h.bf16 %v706
        %v739 = vunpack.c.l.bf16 %v708
        %v740 = vunpack.c.l.bf16 %v710
        %v741 = vunpack.c.h.bf16 %v708
        %v742 = vunpack.c.h.bf16 %v710
        %v743 = vunpack.c.l.bf16 %v712
        %v744 = vunpack.c.l.bf16 %v714
        %v745 = vunpack.c.h.bf16 %v712
        %v746 = vunpack.c.h.bf16 %v714
        %v747 = vunpack.c.l.bf16 %v716
        %v748 = vunpack.c.l.bf16 %v718
        %v749 = vunpack.c.h.bf16 %v716
        %v750 = vunpack.c.h.bf16 %v718
        %v751 = vunpack.c.l.bf16 %v720
        %v752 = vunpack.c.l.bf16 %v722
        %v753 = vunpack.c.h.bf16 %v720
        %v754 = vunpack.c.h.bf16 %v722
        %v755 = vunpack.c.l.bf16 %v724
        %v756 = vunpack.c.l.bf16 %v726
        %v757 = vunpack.c.h.bf16 %v724
        %v758 = vunpack.c.h.bf16 %v726
        %v759 = vunpack.c.l.bf16 %v728
        %v760 = vunpack.c.l.bf16 %v730
        %v761 = vunpack.c.h.bf16 %v728
        %v762 = vunpack.c.h.bf16 %v730
        %v763 = vunpack.c.l.bf16 %v732
        %v764 = vunpack.c.l.bf16 %v734
        %v765 = vunpack.c.h.bf16 %v732
        %v766 = vunpack.c.h.bf16 %v734
        %v767 = vmul.f32 %v529, %v735
        %v768 = vmul.f32 %v531, %v736
        %v769 = vmul.f32 %v533, %v737
        %v770 = vmul.f32 %v535, %v738
        %v771 = vmul.f32 %v539, %v739
        %v772 = vmul.f32 %v541, %v740
        %v773 = vmul.f32 %v543, %v741
        %v774 = vmul.f32 %v545, %v742
        %v775 = vmul.f32 %v549, %v743
        %v776 = vmul.f32 %v551, %v744
        %v777 = vmul.f32 %v553, %v745
        %v778 = vmul.f32 %v555, %v746
        %v779 = vmul.f32 %v559, %v747
        %v780 = vmul.f32 %v561, %v748
        %v781 = vmul.f32 %v563, %v749
        %v782 = vmul.f32 %v565, %v750
        %v783 = vmul.f32 %v569, %v751
        %v784 = vmul.f32 %v571, %v752
        %v785 = vmul.f32 %v573, %v753
        %v786 = vmul.f32 %v575, %v754
        %v787 = vmul.f32 %v579, %v755
        %v788 = vmul.f32 %v581, %v756
        %v789 = vmul.f32 %v583, %v757
        %v790 = vmul.f32 %v585, %v758
        %v791 = vmul.f32 %v589, %v759
        %v792 = vmul.f32 %v591, %v760
        %v793 = vmul.f32 %v593, %v761
        %v794 = vmul.f32 %v595, %v762
        %v795 = vmul.f32 %v599, %v763
        %v796 = vmul.f32 %v601, %v764
        %v797 = vmul.f32 %v603, %v765
        %v798 = vmul.f32 %v605, %v766
        %v799 = vadd.f32 %v767, %v769
        %v800 = vadd.f32 %v799, %v771
        %v801 = vadd.f32 %v800, %v773
        %v802 = vadd.f32 %v801, %v775
        %v803 = vadd.f32 %v802, %v777
        %v804 = vadd.f32 %v803, %v779
        %v805 = vadd.f32 %v804, %v781
        %v806 = vrot.slane %v805, 4
        %v807 = vadd.f32 %v805, %v806
        %v808 = vrot.slane %v807, 2
        %v809 = vadd.f32 %v807, %v808
        %v810 = vrot.slane %v809, 1
        %v811 = vadd.f32 %v809, %v810
        %v812 = vadd.f32 %v768, %v770
        %v813 = vadd.f32 %v812, %v772
        %v814 = vadd.f32 %v813, %v774
        %v815 = vadd.f32 %v814, %v776
        %v816 = vadd.f32 %v815, %v778
        %v817 = vadd.f32 %v816, %v780
        %v818 = vadd.f32 %v817, %v782
        %v819 = vrot.slane %v818, 4
        %v820 = vadd.f32 %v818, %v819
        %v821 = vrot.slane %v820, 2
        %v822 = vadd.f32 %v820, %v821
        %v823 = vrot.slane %v822, 1
        %v824 = vadd.f32 %v822, %v823
        %v825 = vadd.f32 %v783, %v785
        %v826 = vadd.f32 %v825, %v787
        %v827 = vadd.f32 %v826, %v789
        %v828 = vadd.f32 %v827, %v791
        %v829 = vadd.f32 %v828, %v793
        %v830 = vadd.f32 %v829, %v795
        %v831 = vadd.f32 %v830, %v797
        %v832 = vrot.slane %v831, 4
        %v833 = vadd.f32 %v831, %v832
        %v834 = vrot.slane %v833, 2
        %v835 = vadd.f32 %v833, %v834
        %v836 = vrot.slane %v835, 1
        %v837 = vadd.f32 %v835, %v836
        %v838 = vadd.f32 %v784, %v786
        %v839 = vadd.f32 %v838, %v788
        %v840 = vadd.f32 %v839, %v790
        %v841 = vadd.f32 %v840, %v792
        %v842 = vadd.f32 %v841, %v794
        %v843 = vadd.f32 %v842, %v796
        %v844 = vadd.f32 %v843, %v798
        %v845 = vrot.slane %v844, 4
        %v846 = vadd.f32 %v844, %v845
        %v847 = vrot.slane %v846, 2
        %v848 = vadd.f32 %v846, %v847
        %v849 = vrot.slane %v848, 1
        %v850 = vadd.f32 %v848, %v849
        %v851 = vmul.f32 %v811, 0.015625
        %v852 = vmul.f32 %v824, 0.015625
        %v853 = vmul.f32 %v837, 0.015625
        %v854 = vmul.f32 %v850, 0.015625
        %p855 = scmp.eq.s32.totalorder %s22, 0
        // Predicated region
        $region71: #{_lambda_.7} parent=65 // pred_check
          %p856 = pneg %p855
        $region72: #{_lambda_.7} parent=65 // pred_check_branch
          %858 = sbr.rel (%p856) target = $region74
        $region73: #{_lambda_.7} parent=65 // pred_region
          %v863 = vcombine.low %v851, %v852
          %v865 = vunpack.c.l.s4 1983009808
          %v866 = vunpack.c.0.s8 %v865
          %v867 = vlaneseq
          %v868 = vshrl.u32 %v867, 7
          %v869 = vsub.s32 %v866, %v868
          %v870 = vrot.slane %v863, %v869
          %v871 = vcombine.low %v853, %v854
          %v873 = vunpack.c.l.s4 1983009808
          %v874 = vunpack.c.0.s8 %v873
          %v875 = vlaneseq
          %v876 = vshrl.u32 %v875, 7
          %v877 = vsub.s32 %v874, %v876
          %v878 = vrot.slane %v871, %v877
          %vm879 = vcmask 1044484
          %v880 = vsel %vm879, %v870, %v870
          %vm881 = vcmask 1046534
          %v882 = vsel %vm881, %v870, %v880
          %v883 = vrot.slane %v878, 7
          %vm884 = vcmask 1041409
          %v885 = vsel %vm884, %v883, %v882
          %vm886 = vcmask 1043459
          %v887 = vsel %vm886, %v883, %v885
          %vm888 = vcmask 1045509
          %v889 = vsel %vm888, %v883, %v887
          %vm890 = vcmask 1047559
          %v891 = vsel %vm890, %v883, %v889
          %893 = vst [vmem:[%s306] sm:$0xf] %v891
        $region74: #{_lambda_.7} parent=65 // pred_fallthru
          _
        %p894 = scmp.gt.s32.totalorder %s22, 0
        // Predicated region
        $region75: #{_lambda_.7} parent=65 // pred_check
          %p895 = pneg %p894
        $region76: #{_lambda_.7} parent=65 // pred_check_branch
          %897 = sbr.rel (%p895) target = $region78
        $region77: #{_lambda_.7} parent=65 // pred_region
          %v898 = vld [vmem:[%s306] sm:$0xf]
          %v903 = vcombine.low %v851, %v852
          %v905 = vunpack.c.l.s4 1983009808
          %v906 = vunpack.c.0.s8 %v905
          %v907 = vlaneseq
          %v908 = vshrl.u32 %v907, 7
          %v909 = vsub.s32 %v906, %v908
          %v910 = vrot.slane %v903, %v909
          %v911 = vcombine.low %v853, %v854
          %v913 = vunpack.c.l.s4 1983009808
          %v914 = vunpack.c.0.s8 %v913
          %v915 = vlaneseq
          %v916 = vshrl.u32 %v915, 7
          %v917 = vsub.s32 %v914, %v916
          %v918 = vrot.slane %v911, %v917
          %vm919 = vcmask 1044484
          %v920 = vsel %vm919, %v910, %v910
          %vm921 = vcmask 1046534
          %v922 = vsel %vm921, %v910, %v920
          %v923 = vrot.slane %v918, 7
          %vm924 = vcmask 1041409
          %v925 = vsel %vm924, %v923, %v922
          %vm926 = vcmask 1043459
          %v927 = vsel %vm926, %v923, %v925
          %vm928 = vcmask 1045509
          %v929 = vsel %vm928, %v923, %v927
          %vm930 = vcmask 1047559
          %v931 = vsel %vm930, %v923, %v929
          %v933 = vadd.f32 %v898, %v931
          %934 = vst [vmem:[%s306] sm:$0xf] %v933
        $region78: #{_lambda_.7} parent=65 // pred_fallthru
          _
        %s935 = sand.u32 %s115, 1
        %s936 = scalar_lea.sflag [#allocation4], %s935
        %s937 = sand.u32 %s115, 1
        %s938 = smul.addr %s937, 4
        %s939 = scalar_lea.vmem [#allocation3], %s938
        // Predicated region
        $region79: #{_lambda_.7} parent=65 // pred_check
          %p940 = pneg %p125
        $region80: #{_lambda_.7} parent=65 // pred_check_branch
          %942 = sbr.rel (%p940) target = $region82
        $region81: #{_lambda_.7} parent=65 // pred_region
          %s943 = smul.u32 2, %s21
          %s945 = ssub.s32 64, 64
          %946 = vsyncadd %s936, %s945
          %s947 = smul.addr %s943, 32
          %s948 = scalar_lea.hbm %s3, %s947
          %s950 = sshll.u32 %s939, 4
          %s951 = int_to_ptr.vmem [resolvable:$true] %s950
          %953 = dma.vmem_to_hbm [thread:$0]  %s951, 64, %s948, %s936
        $region82: #{_lambda_.7} parent=65 // pred_fallthru
          _
      $region66: #{_lambda_.7} parent=5 // pred_fallthru
        _
      %p954 = scmp.le.s32.totalorder 2, %s12
      // Predicated region
      $region83: #{_lambda_.7} parent=5 // pred_check
        %p955 = pneg %p954
      $region84: #{_lambda_.7} parent=5 // pred_check_branch
        %957 = sbr.rel (%p955) target = $region86
      $region85: #{_lambda_.7} parent=5 // pred_region
        %s958 = ssub.s32 %s12, 2
        // Predicated region
        $region87: #{_lambda_.7} parent=85 // pred_check
          %p959 = pneg %p131
        $region88: #{_lambda_.7} parent=85 // pred_check_branch
          %961 = sbr.rel (%p959) target = $region90
        $region89: #{_lambda_.7} parent=85 // pred_region
          %s962 = sand.u32 %s116, 1
          %s963 = scalar_lea.sflag [#allocation4], %s962
          %s964 = sand.u32 %s116, 1
          %s965 = smul.addr %s964, 4
          %s966 = scalar_lea.vmem [#allocation3], %s965
          %967 = dma.done %s963, 64
        $region90: #{_lambda_.7} parent=85 // pred_fallthru
          _
      $region86: #{_lambda_.7} parent=5 // pred_fallthru
        _
    $region6: #{_lambda_.7} parent=1 // loop_footer
      %s16 = sadd.s32 1, %s12
    $region7: #{_lambda_.7} parent=1 // loop_footer_branch
      %11 = sbr.rel target = $region3
    $region8: #{_lambda_.7} parent=1 // loop_exit
      _
    %968 = vsyncpa [#allocation4], 1
    %s969 = scalar_lea.sflag [#allocation4], 1
    %970 = vsyncpa %s969, 1

// kernel: _lambda_.6
$region0: #{_lambda_.6}
  #allocation0 [shape = 'u32[]', space=smem, size = 0x4, offset = 0x4, fixed_abs, tag = 'smem constant byte address 0x4 - core index']
  #allocation1 [shape = 'u32[144,128]{1,0:T(1,128)}', space=vmem, size = 0x12000, scoped, tag = 'internal scratch']
  %s0 = inlined_call_operand.vmem [shape: bf16[2,1,36,9,128], index: 0, kind: input, shape index: {}]
  %s1 = inlined_call_operand.vmem [shape: bf16[1152,128], index: 1, kind: input, shape index: {}]
  %s2 = inlined_call_operand.vmem [shape: f32[1,128], index: 2, kind: input, shape index: {}]
  %s3 = inlined_call_operand.vmem [shape: bf16[128,128], index: 3, kind: input, shape index: {}]
  %s4 = inlined_call_operand.vmem [shape: f32[1,128], index: 4, kind: input, shape index: {}]
  %s5 = inlined_call_operand.vmem [shape: bf16[2,8,8,128], index: 5, kind: output, shape index: {}]
  %s6 = sld [smem:[#allocation0]]
  $region53: #{_lambda_.6} parent=0
    _
  %s8 = ssub.s32 1, %s6
  %s9 = scalar_select 0, %s8, %s6
  loop: start=0, step=1, limit=4
  $region2: #{_lambda_.6} parent=0 // loop_pre_header
    _
  $region3: #{_lambda_.6} parent=0 // loop_header
    %s11 = sphi 0, %s15
    %p12 = scmp.ge.s32.totalorder %s11, 4
    %s18 = sphi 0, %s30
    %s19 = sphi 0, %s26
    %s20 = sphi 0, %s18
    %s21 = sphi 0, %s19
    %s22 = sphi 0, %s20
    %s23 = sphi 0, %s21
    %s35 = sphi 0, %s37
    %s38 = sphi 0, %s35
    %s39 = sphi 0, %s38
    %s55 = sphi 0, %s39
    %s59 = sphi 0, %s59
    %s61 = sphi 0, %s59
    %s62 = sphi 0, %s61
    %s76 = sphi 0, %s62
    %s80 = sphi 0, %s80
    %s82 = sphi 0, %s80
    %s83 = sphi 0, %s82
    %s97 = sphi 0, %s83
    %s101 = sphi 0, %s101
    %s103 = sphi 0, %s101
    %s104 = sphi 0, %s103
    %s118 = sphi 0, %s104
    %s122 = sphi 0, %s122
    %s124 = sphi 0, %s122
    %s125 = sphi 0, %s124
    %s139 = sphi 0, %s125
    %s147 = sphi 0, %s149
    %s150 = sphi 0, %s147
    %s151 = sphi 0, %s150
    %s167 = sphi 0, %s151
  $region4: #{_lambda_.6} parent=0 // loop_header_branch
    %14 = sbr.rel (%p12) target = $region8
  $region5: #{_lambda_.6} parent=0 // loop_body
    %s16 = ssub.s32 %s11, 1
    %s17 = ssub.s32 %s11, 2
    %s24 = sadd.s32 1, %s19
    %p25 = scmp.ge.s32.totalorder %s24, 1
    %s26 = scalar_select %p25, 0, %s24
    %s27 = sadd.s32 1, %s18
    %s28 = scalar_select %p25, %s27, %s18
    %p29 = scmp.ge.s32.totalorder %s28, 2
    %s30 = scalar_select %p29, 0, %s28
    %s31 = ssub.s32 %s18, %s30
    %s32 = ssub.s32 %s19, %s26
    %s33 = sor.u32 %s31, %s32
    %p34 = scmp.eq.s32.totalorder %s33, 0
    %s36 = sadd.s32 %s35, 1
    %s37 = scalar_select %p34, %s35, %s36
    %p40 = pneg %p34
    %p41 = scmp.eq.s32.totalorder %s11, 1
    %p42 = por %p40, %p41
    %p43 = scmp.ne.s32.totalorder %s35, %s38
    %p44 = scmp.eq.s32.totalorder %s11, 0
    %p45 = por %p43, %p44
    %p46 = scmp.ne.s32.totalorder %s35, %s38
    %p47 = scmp.eq.s32.totalorder %s16, 1
    %p48 = por %p46, %p47
    %p49 = scmp.ne.s32.totalorder %s38, %s39
    %p50 = scmp.eq.s32.totalorder %s16, 0
    %p51 = por %p49, %p50
    %p52 = scmp.ne.s32.totalorder %s38, %s39
    %p53 = scmp.eq.s32.totalorder %s17, 1
    %p54 = por %p52, %p53
    %p56 = scmp.ne.s32.totalorder %s39, %s55
    %p57 = scmp.eq.s32.totalorder %s17, 0
    %p58 = por %p56, %p57
    %s60 = sadd.s32 %s59, 1
    %p63 = scmp.eq.s32.totalorder %s11, 1
    %p64 = scmp.ne.s32.totalorder %s59, %s61
    %p65 = scmp.eq.s32.totalorder %s11, 0
    %p66 = por %p64, %p65
    %p67 = scmp.ne.s32.totalorder %s59, %s61
    %p68 = scmp.eq.s32.totalorder %s16, 1
    %p69 = por %p67, %p68
    %p70 = scmp.ne.s32.totalorder %s61, %s62
    %p71 = scmp.eq.s32.totalorder %s16, 0
    %p72 = por %p70, %p71
    %p73 = scmp.ne.s32.totalorder %s61, %s62
    %p74 = scmp.eq.s32.totalorder %s17, 1
    %p75 = por %p73, %p74
    %p77 = scmp.ne.s32.totalorder %s62, %s76
    %p78 = scmp.eq.s32.totalorder %s17, 0
    %p79 = por %p77, %p78
    %s81 = sadd.s32 %s80, 1
    %p84 = scmp.eq.s32.totalorder %s11, 1
    %p85 = scmp.ne.s32.totalorder %s80, %s82
    %p86 = scmp.eq.s32.totalorder %s11, 0
    %p87 = por %p85, %p86
    %p88 = scmp.ne.s32.totalorder %s80, %s82
    %p89 = scmp.eq.s32.totalorder %s16, 1
    %p90 = por %p88, %p89
    %p91 = scmp.ne.s32.totalorder %s82, %s83
    %p92 = scmp.eq.s32.totalorder %s16, 0
    %p93 = por %p91, %p92
    %p94 = scmp.ne.s32.totalorder %s82, %s83
    %p95 = scmp.eq.s32.totalorder %s17, 1
    %p96 = por %p94, %p95
    %p98 = scmp.ne.s32.totalorder %s83, %s97
    %p99 = scmp.eq.s32.totalorder %s17, 0
    %p100 = por %p98, %p99
    %s102 = sadd.s32 %s101, 1
    %p105 = scmp.eq.s32.totalorder %s11, 1
    %p106 = scmp.ne.s32.totalorder %s101, %s103
    %p107 = scmp.eq.s32.totalorder %s11, 0
    %p108 = por %p106, %p107
    %p109 = scmp.ne.s32.totalorder %s101, %s103
    %p110 = scmp.eq.s32.totalorder %s16, 1
    %p111 = por %p109, %p110
    %p112 = scmp.ne.s32.totalorder %s103, %s104
    %p113 = scmp.eq.s32.totalorder %s16, 0
    %p114 = por %p112, %p113
    %p115 = scmp.ne.s32.totalorder %s103, %s104
    %p116 = scmp.eq.s32.totalorder %s17, 1
    %p117 = por %p115, %p116
    %p119 = scmp.ne.s32.totalorder %s104, %s118
    %p120 = scmp.eq.s32.totalorder %s17, 0
    %p121 = por %p119, %p120
    %s123 = sadd.s32 %s122, 1
    %p126 = scmp.eq.s32.totalorder %s11, 1
    %p127 = scmp.ne.s32.totalorder %s122, %s124
    %p128 = scmp.eq.s32.totalorder %s11, 0
    %p129 = por %p127, %p128
    %p130 = scmp.ne.s32.totalorder %s122, %s124
    %p131 = scmp.eq.s32.totalorder %s16, 1
    %p132 = por %p130, %p131
    %p133 = scmp.ne.s32.totalorder %s124, %s125
    %p134 = scmp.eq.s32.totalorder %s16, 0
    %p135 = por %p133, %p134
    %p136 = scmp.ne.s32.totalorder %s124, %s125
    %p137 = scmp.eq.s32.totalorder %s17, 1
    %p138 = por %p136, %p137
    %p140 = scmp.ne.s32.totalorder %s125, %s139
    %p141 = scmp.eq.s32.totalorder %s17, 0
    %p142 = por %p140, %p141
    %s143 = ssub.s32 %s18, %s30
    %s144 = ssub.s32 %s19, %s26
    %s145 = sor.u32 %s143, %s144
    %p146 = scmp.eq.s32.totalorder %s145, 0
    %s148 = sadd.s32 %s147, 1
    %s149 = scalar_select %p146, %s147, %s148
    %p152 = pneg %p146
    %p153 = scmp.eq.s32.totalorder %s11, 1
    %p154 = por %p152, %p153
    %p155 = scmp.ne.s32.totalorder %s147, %s150
    %p156 = scmp.eq.s32.totalorder %s11, 0
    %p157 = por %p155, %p156
    %p158 = scmp.ne.s32.totalorder %s147, %s150
    %p159 = scmp.eq.s32.totalorder %s16, 1
    %p160 = por %p158, %p159
    %p161 = scmp.ne.s32.totalorder %s150, %s151
    %p162 = scmp.eq.s32.totalorder %s16, 0
    %p163 = por %p161, %p162
    %p164 = scmp.ne.s32.totalorder %s150, %s151
    %p165 = scmp.eq.s32.totalorder %s17, 1
    %p166 = por %p164, %p165
    %p168 = scmp.ne.s32.totalorder %s151, %s167
    %p169 = scmp.eq.s32.totalorder %s17, 0
    %p170 = por %p168, %p169
    %p171 = scmp.le.s32.totalorder 1, %s11
    %p172 = scmp.lt.s32.totalorder %s11, 3
    %p173 = pnand %p171, %p172
    %p174 = pneg %p173
    // Predicated region
    $region9: #{_lambda_.6} parent=5 // pred_check
      _
    $region10: #{_lambda_.6} parent=5 // pred_check_branch
      %176 = sbr.rel (%p173) target = $region12
    $region11: #{_lambda_.6} parent=5 // pred_region
      %s177 = ssub.s32 %s11, 1
      // Predicated region
      $region13: #{_lambda_.6} parent=11 // pred_check
        %p178 = pneg %p72
      $region14: #{_lambda_.6} parent=11 // pred_check_branch
        %180 = sbr.rel (%p178) target = $region16
      $region15: #{_lambda_.6} parent=11 // pred_region
        _
      $region16: #{_lambda_.6} parent=11 // pred_fallthru
        _
      // Predicated region
      $region17: #{_lambda_.6} parent=11 // pred_check
        %p181 = pneg %p93
      $region18: #{_lambda_.6} parent=11 // pred_check_branch
        %183 = sbr.rel (%p181) target = $region20
      $region19: #{_lambda_.6} parent=11 // pred_region
        _
      $region20: #{_lambda_.6} parent=11 // pred_fallthru
        _
      // Predicated region
      $region21: #{_lambda_.6} parent=11 // pred_check
        %p184 = pneg %p114
      $region22: #{_lambda_.6} parent=11 // pred_check_branch
        %186 = sbr.rel (%p184) target = $region24
      $region23: #{_lambda_.6} parent=11 // pred_region
        _
      $region24: #{_lambda_.6} parent=11 // pred_fallthru
        _
      // Predicated region
      $region25: #{_lambda_.6} parent=11 // pred_check
        %p187 = pneg %p135
      $region26: #{_lambda_.6} parent=11 // pred_check_branch
        %189 = sbr.rel (%p187) target = $region28
      $region27: #{_lambda_.6} parent=11 // pred_region
        _
      $region28: #{_lambda_.6} parent=11 // pred_fallthru
        _
    $region12: #{_lambda_.6} parent=5 // pred_fallthru
      _
    %p190 = scmp.lt.s32.totalorder %s11, 2
    // Predicated region
    $region29: #{_lambda_.6} parent=5 // pred_check
      %p191 = pneg %p190
    $region30: #{_lambda_.6} parent=5 // pred_check_branch
      %193 = sbr.rel (%p191) target = $region32
    $region31: #{_lambda_.6} parent=5 // pred_region
      // Predicated region
      $region33: #{_lambda_.6} parent=31 // pred_check
        %p194 = pneg %p45
      $region34: #{_lambda_.6} parent=31 // pred_check_branch
        %196 = sbr.rel (%p194) target = $region36
      $region35: #{_lambda_.6} parent=31 // pred_region
        %p197 = scmp.lt.s32.totalorder %s18, 1
        %s198 = scalar_select %p197, %s18, 1
        %p199 = scmp.lt.s32.totalorder %s19, 0
        %s200 = scalar_select %p199, %s19, 0
        %s201 = smul.addr %s200, 72
        %s202 = smul.addr %s198, 72
        %s203 = sadd.s32 %s201, %s202
        %s204 = smul.addr %s203, 4
        %s205 = scalar_lea.vmem %s0, %s204
      $region36: #{_lambda_.6} parent=31 // pred_fallthru
        _
    $region32: #{_lambda_.6} parent=5 // pred_fallthru
      _
    %p206 = scmp.le.s32.totalorder 1, %s11
    %p207 = scmp.lt.s32.totalorder %s11, 3
    %p208 = pnand %p206, %p207
    %p209 = pneg %p208
    // Predicated region
    $region37: #{_lambda_.6} parent=5 // pred_check
      _
    $region38: #{_lambda_.6} parent=5 // pred_check_branch
      %211 = sbr.rel (%p208) target = $region40
    $region39: #{_lambda_.6} parent=5 // pred_region
      %s212 = ssub.s32 %s11, 1
      %p213 = scmp.lt.s32.totalorder %s20, 1
      %s214 = scalar_select %p213, %s20, 1
      %p215 = scmp.lt.s32.totalorder %s21, 0
      %s216 = scalar_select %p215, %s21, 0
      %s217 = smul.addr %s216, 72
      %s218 = smul.addr %s214, 72
      %s219 = sadd.s32 %s217, %s218
      %s220 = smul.addr %s219, 4
      %s221 = scalar_lea.vmem %s0, %s220
      %p222 = pneg %p51
      %p223 = pneg %p48
      %p224 = pneg %p72
      %p225 = pneg %p69
      %p226 = pneg %p93
      %p227 = pneg %p90
      %p228 = pneg %p114
      %p229 = pneg %p111
      %p230 = pneg %p135
      %p231 = pneg %p132
      %p232 = pneg %p163
      %p233 = pneg %p160
      %s234 = smul.u32 8, %s21
      %p235 = scmp.lt.s32.totalorder %s20, 1
      %s236 = scalar_select %p235, %s20, 1
      %p237 = scmp.lt.s32.totalorder %s234, 7
      %s238 = scalar_select %p237, %s234, 7
      %s239 = smul.addr %s236, 8
      %s240 = sadd.s32 %s238, %s239
      %s241 = smul.addr %s240, 4
      %s242 = scalar_lea.vmem %s5, %s241
      %p243 = scmp.lt.s32.totalorder %s20, 1
      %s244 = scalar_select %p243, %s20, 1
      %p245 = scmp.lt.s32.totalorder %s21, 0
      %s246 = scalar_select %p245, %s21, 0
      %s247 = smul.addr %s246, 72
      %s248 = smul.addr %s244, 72
      %s249 = sadd.s32 %s247, %s248
      %s250 = smul.addr %s249, 4
      %s251 = scalar_lea.vmem %s0, %s250
      %s252 = smul.u32 8, %s21
      %p253 = scmp.lt.s32.totalorder %s20, 1
      %s254 = scalar_select %p253, %s20, 1
      %p255 = scmp.lt.s32.totalorder %s252, 7
      %s256 = scalar_select %p255, %s252, 7
      %s257 = smul.addr %s254, 8
      %s258 = sadd.s32 %s256, %s257
      %s259 = smul.addr %s258, 4
      %s260 = scalar_lea.vmem %s5, %s259
      %s261 = smul.u32 8, %s21
      %v263 = vld [vmem:[%s251] sm:$0xf]
      %v264 = vld [vmem:[%s251 + $0x8] sm:$0xf]
      %v265 = vld [vmem:[%s251 + $0x10] sm:$0xf]
      %v266 = vld [vmem:[%s251 + $0x18] sm:$0xf]
      %v267 = vld [vmem:[%s251 + $0x20] sm:$0xf]
      %v268 = vld [vmem:[%s251 + $0x28] sm:$0xf]
      %v269 = vld [vmem:[%s251 + $0x30] sm:$0xf]
      %v270 = vld [vmem:[%s251 + $0x38] sm:$0xf]
      %s271 = scalar_lea.vmem %s251, 72
      %v272 = vld [vmem:[%s271] sm:$0xf]
      %v273 = vld [vmem:[%s271 + $0x8] sm:$0xf]
      %v274 = vld [vmem:[%s271 + $0x10] sm:$0xf]
      %v275 = vld [vmem:[%s271 + $0x18] sm:$0xf]
      %v276 = vld [vmem:[%s271 + $0x20] sm:$0xf]
      %v277 = vld [vmem:[%s271 + $0x28] sm:$0xf]
      %v278 = vld [vmem:[%s271 + $0x30] sm:$0xf]
      %v279 = vld [vmem:[%s271 + $0x38] sm:$0xf]
      %v280 = vld [vmem:[%s251 + $0x4] sm:$0x1]
      %v281 = vld [vmem:[%s251 + $0xc] sm:$0x1]
      %v282 = vld [vmem:[%s251 + $0x14] sm:$0x1]
      %v283 = vld [vmem:[%s251 + $0x1c] sm:$0x1]
      %v284 = vld [vmem:[%s251 + $0x24] sm:$0x1]
      %v285 = vld [vmem:[%s251 + $0x2c] sm:$0x1]
      %v286 = vld [vmem:[%s251 + $0x34] sm:$0x1]
      %v287 = vld [vmem:[%s251 + $0x3c] sm:$0x1]
      %s288 = scalar_lea.vmem %s251, 144
      %v289 = vld [vmem:[%s288] sm:$0xf]
      %v290 = vld [vmem:[%s288 + $0x8] sm:$0xf]
      %v291 = vld [vmem:[%s288 + $0x10] sm:$0xf]
      %v292 = vld [vmem:[%s288 + $0x18] sm:$0xf]
      %v293 = vld [vmem:[%s288 + $0x20] sm:$0xf]
      %v294 = vld [vmem:[%s288 + $0x28] sm:$0xf]
      %v295 = vld [vmem:[%s288 + $0x30] sm:$0xf]
      %v296 = vld [vmem:[%s288 + $0x38] sm:$0xf]
      %s297 = scalar_lea.vmem %s251, 216
      %v298 = vld [vmem:[%s297] sm:$0xf]
      %v299 = vld [vmem:[%s297 + $0x8] sm:$0xf]
      %v300 = vld [vmem:[%s297 + $0x10] sm:$0xf]
      %v301 = vld [vmem:[%s297 + $0x18] sm:$0xf]
      %v302 = vld [vmem:[%s297 + $0x20] sm:$0xf]
      %v303 = vld [vmem:[%s297 + $0x28] sm:$0xf]
      %v304 = vld [vmem:[%s297 + $0x30] sm:$0xf]
      %v305 = vld [vmem:[%s297 + $0x38] sm:$0xf]
      %v306 = vld [vmem:[%s288 + $0x4] sm:$0x1]
      %v307 = vld [vmem:[%s288 + $0xc] sm:$0x1]
      %v308 = vld [vmem:[%s288 + $0x14] sm:$0x1]
      %v309 = vld [vmem:[%s288 + $0x1c] sm:$0x1]
      %v310 = vld [vmem:[%s288 + $0x24] sm:$0x1]
      %v311 = vld [vmem:[%s288 + $0x2c] sm:$0x1]
      %v312 = vld [vmem:[%s288 + $0x34] sm:$0x1]
      %v313 = vld [vmem:[%s288 + $0x3c] sm:$0x1]
      %s314 = scalar_lea.vmem %s251, 8
      %v315 = vld [vmem:[%s314] sm:$0xf]
      %v316 = vld [vmem:[%s314 + $0x8] sm:$0xf]
      %v317 = vld [vmem:[%s314 + $0x10] sm:$0xf]
      %v318 = vld [vmem:[%s314 + $0x18] sm:$0xf]
      %v319 = vld [vmem:[%s314 + $0x20] sm:$0xf]
      %v320 = vld [vmem:[%s314 + $0x28] sm:$0xf]
      %v321 = vld [vmem:[%s314 + $0x30] sm:$0xf]
      %v322 = vld [vmem:[%s314 + $0x38] sm:$0xf]
      %s323 = scalar_lea.vmem %s251, 80
      %v324 = vld [vmem:[%s323] sm:$0xf]
      %v325 = vld [vmem:[%s323 + $0x8] sm:$0xf]
      %v326 = vld [vmem:[%s323 + $0x10] sm:$0xf]
      %v327 = vld [vmem:[%s323 + $0x18] sm:$0xf]
      %v328 = vld [vmem:[%s323 + $0x20] sm:$0xf]
      %v329 = vld [vmem:[%s323 + $0x28] sm:$0xf]
      %v330 = vld [vmem:[%s323 + $0x30] sm:$0xf]
      %v331 = vld [vmem:[%s323 + $0x38] sm:$0xf]
      %v332 = vld [vmem:[%s314 + $0x4] sm:$0x1]
      %v333 = vld [vmem:[%s314 + $0xc] sm:$0x1]
      %v334 = vld [vmem:[%s314 + $0x14] sm:$0x1]
      %v335 = vld [vmem:[%s314 + $0x1c] sm:$0x1]
      %v336 = vld [vmem:[%s314 + $0x24] sm:$0x1]
      %v337 = vld [vmem:[%s314 + $0x2c] sm:$0x1]
      %v338 = vld [vmem:[%s314 + $0x34] sm:$0x1]
      %v339 = vld [vmem:[%s314 + $0x3c] sm:$0x1]
      %v356 = vunpack.c.l.b16 %v263
      %v357 = vunpack.c.l.b16 %v280
      %v358 = vunpack.c.l.b16 %v264
      %v359 = vunpack.c.l.b16 %v281
      %v360 = vunpack.c.l.b16 %v265
      %v361 = vunpack.c.l.b16 %v282
      %v362 = vunpack.c.l.b16 %v266
      %v363 = vunpack.c.l.b16 %v283
      %v364 = vunpack.c.l.b16 %v267
      %v365 = vunpack.c.l.b16 %v284
      %v366 = vunpack.c.l.b16 %v268
      %v367 = vunpack.c.l.b16 %v285
      %v368 = vunpack.c.l.b16 %v269
      %v369 = vunpack.c.l.b16 %v286
      %v370 = vunpack.c.l.b16 %v270
      %v371 = vunpack.c.l.b16 %v287
      %v372 = vpack.c.b16 %v357, %v356
      %v373 = vpack.c.b16 %v359, %v358
      %v374 = vpack.c.b16 %v361, %v360
      %v375 = vpack.c.b16 %v363, %v362
      %v376 = vpack.c.b16 %v365, %v364
      %v377 = vpack.c.b16 %v367, %v366
      %v378 = vpack.c.b16 %v369, %v368
      %v379 = vpack.c.b16 %v371, %v370
      %v381 = vshrl.u32 %v372, 16
      %v383 = vshll.u32 %v372, 16
      %v385 = vrot.slane %v383, 1
      %v386 = vor.u32 %v381, %v385
      %v388 = vshrl.u32 %v373, 16
      %v390 = vshll.u32 %v373, 16
      %v392 = vrot.slane %v390, 1
      %v393 = vor.u32 %v388, %v392
      %v395 = vshrl.u32 %v374, 16
      %v397 = vshll.u32 %v374, 16
      %v399 = vrot.slane %v397, 1
      %v400 = vor.u32 %v395, %v399
      %v402 = vshrl.u32 %v375, 16
      %v404 = vshll.u32 %v375, 16
      %v406 = vrot.slane %v404, 1
      %v407 = vor.u32 %v402, %v406
      %v409 = vshrl.u32 %v376, 16
      %v411 = vshll.u32 %v376, 16
      %v413 = vrot.slane %v411, 1
      %v414 = vor.u32 %v409, %v413
      %v416 = vshrl.u32 %v377, 16
      %v418 = vshll.u32 %v377, 16
      %v420 = vrot.slane %v418, 1
      %v421 = vor.u32 %v416, %v420
      %v423 = vshrl.u32 %v378, 16
      %v425 = vshll.u32 %v378, 16
      %v427 = vrot.slane %v425, 1
      %v428 = vor.u32 %v423, %v427
      %v430 = vshrl.u32 %v379, 16
      %v432 = vshll.u32 %v379, 16
      %v434 = vrot.slane %v432, 1
      %v435 = vor.u32 %v430, %v434
      %v452 = vunpack.c.l.b16 %v289
      %v453 = vunpack.c.l.b16 %v306
      %v454 = vunpack.c.l.b16 %v290
      %v455 = vunpack.c.l.b16 %v307
      %v456 = vunpack.c.l.b16 %v291
      %v457 = vunpack.c.l.b16 %v308
      %v458 = vunpack.c.l.b16 %v292
      %v459 = vunpack.c.l.b16 %v309
      %v460 = vunpack.c.l.b16 %v293
      %v461 = vunpack.c.l.b16 %v310
      %v462 = vunpack.c.l.b16 %v294
      %v463 = vunpack.c.l.b16 %v311
      %v464 = vunpack.c.l.b16 %v295
      %v465 = vunpack.c.l.b16 %v312
      %v466 = vunpack.c.l.b16 %v296
      %v467 = vunpack.c.l.b16 %v313
      %v468 = vpack.c.b16 %v453, %v452
      %v469 = vpack.c.b16 %v455, %v454
      %v470 = vpack.c.b16 %v457, %v456
      %v471 = vpack.c.b16 %v459, %v458
      %v472 = vpack.c.b16 %v461, %v460
      %v473 = vpack.c.b16 %v463, %v462
      %v474 = vpack.c.b16 %v465, %v464
      %v475 = vpack.c.b16 %v467, %v466
      %v477 = vshrl.u32 %v468, 16
      %v479 = vshll.u32 %v468, 16
      %v481 = vrot.slane %v479, 1
      %v482 = vor.u32 %v477, %v481
      %v484 = vshrl.u32 %v469, 16
      %v486 = vshll.u32 %v469, 16
      %v488 = vrot.slane %v486, 1
      %v489 = vor.u32 %v484, %v488
      %v491 = vshrl.u32 %v470, 16
      %v493 = vshll.u32 %v470, 16
      %v495 = vrot.slane %v493, 1
      %v496 = vor.u32 %v491, %v495
      %v498 = vshrl.u32 %v471, 16
      %v500 = vshll.u32 %v471, 16
      %v502 = vrot.slane %v500, 1
      %v503 = vor.u32 %v498, %v502
      %v505 = vshrl.u32 %v472, 16
      %v507 = vshll.u32 %v472, 16
      %v509 = vrot.slane %v507, 1
      %v510 = vor.u32 %v505, %v509
      %v512 = vshrl.u32 %v473, 16
      %v514 = vshll.u32 %v473, 16
      %v516 = vrot.slane %v514, 1
      %v517 = vor.u32 %v512, %v516
      %v519 = vshrl.u32 %v474, 16
      %v521 = vshll.u32 %v474, 16
      %v523 = vrot.slane %v521, 1
      %v524 = vor.u32 %v519, %v523
      %v526 = vshrl.u32 %v475, 16
      %v528 = vshll.u32 %v475, 16
      %v530 = vrot.slane %v528, 1
      %v531 = vor.u32 %v526, %v530
      %v548 = vunpack.c.l.b16 %v315
      %v549 = vunpack.c.l.b16 %v332
      %v550 = vunpack.c.l.b16 %v316
      %v551 = vunpack.c.l.b16 %v333
      %v552 = vunpack.c.l.b16 %v317
      %v553 = vunpack.c.l.b16 %v334
      %v554 = vunpack.c.l.b16 %v318
      %v555 = vunpack.c.l.b16 %v335
      %v556 = vunpack.c.l.b16 %v319
      %v557 = vunpack.c.l.b16 %v336
      %v558 = vunpack.c.l.b16 %v320
      %v559 = vunpack.c.l.b16 %v337
      %v560 = vunpack.c.l.b16 %v321
      %v561 = vunpack.c.l.b16 %v338
      %v562 = vunpack.c.l.b16 %v322
      %v563 = vunpack.c.l.b16 %v339
      %v564 = vpack.c.b16 %v549, %v548
      %v565 = vpack.c.b16 %v551, %v550
      %v566 = vpack.c.b16 %v553, %v552
      %v567 = vpack.c.b16 %v555, %v554
      %v568 = vpack.c.b16 %v557, %v556
      %v569 = vpack.c.b16 %v559, %v558
      %v570 = vpack.c.b16 %v561, %v560
      %v571 = vpack.c.b16 %v563, %v562
      %v573 = vshrl.u32 %v564, 16
      %v575 = vshll.u32 %v564, 16
      %v577 = vrot.slane %v575, 1
      %v578 = vor.u32 %v573, %v577
      %v580 = vshrl.u32 %v565, 16
      %v582 = vshll.u32 %v565, 16
      %v584 = vrot.slane %v582, 1
      %v585 = vor.u32 %v580, %v584
      %v587 = vshrl.u32 %v566, 16
      %v589 = vshll.u32 %v566, 16
      %v591 = vrot.slane %v589, 1
      %v592 = vor.u32 %v587, %v591
      %v594 = vshrl.u32 %v567, 16
      %v596 = vshll.u32 %v567, 16
      %v598 = vrot.slane %v596, 1
      %v599 = vor.u32 %v594, %v598
      %v601 = vshrl.u32 %v568, 16
      %v603 = vshll.u32 %v568, 16
      %v605 = vrot.slane %v603, 1
      %v606 = vor.u32 %v601, %v605
      %v608 = vshrl.u32 %v569, 16
      %v610 = vshll.u32 %v569, 16
      %v612 = vrot.slane %v610, 1
      %v613 = vor.u32 %v608, %v612
      %v615 = vshrl.u32 %v570, 16
      %v617 = vshll.u32 %v570, 16
      %v619 = vrot.slane %v617, 1
      %v620 = vor.u32 %v615, %v619
      %v622 = vshrl.u32 %v571, 16
      %v624 = vshll.u32 %v571, 16
      %v626 = vrot.slane %v624, 1
      %v627 = vor.u32 %v622, %v626
      %v652 = vunpack.c.l.b16 %v272
      %v653 = vunpack.c.l.b16 %v386
      %v654 = vunpack.c.l.b16 %v298
      %v655 = vunpack.c.l.b16 %v482
      %v656 = vunpack.c.l.b16 %v324
      %v657 = vunpack.c.l.b16 %v578
      %v658 = vunpack.c.l.b16 %v273
      %v659 = vunpack.c.l.b16 %v393
      %v660 = vunpack.c.l.b16 %v299
      %v661 = vunpack.c.l.b16 %v489
      %v662 = vunpack.c.l.b16 %v325
      %v663 = vunpack.c.l.b16 %v585
      %v664 = vunpack.c.l.b16 %v274
      %v665 = vunpack.c.l.b16 %v400
      %v666 = vunpack.c.l.b16 %v300
      %v667 = vunpack.c.l.b16 %v496
      %v668 = vunpack.c.l.b16 %v326
      %v669 = vunpack.c.l.b16 %v592
      %v670 = vunpack.c.l.b16 %v275
      %v671 = vunpack.c.l.b16 %v407
      %v672 = vunpack.c.l.b16 %v301
      %v673 = vunpack.c.l.b16 %v503
      %v674 = vunpack.c.l.b16 %v327
      %v675 = vunpack.c.l.b16 %v599
      %v676 = vunpack.c.l.b16 %v276
      %v677 = vunpack.c.l.b16 %v414
      %v678 = vunpack.c.l.b16 %v302
      %v679 = vunpack.c.l.b16 %v510
      %v680 = vunpack.c.l.b16 %v328
      %v681 = vunpack.c.l.b16 %v606
      %v682 = vunpack.c.l.b16 %v277
      %v683 = vunpack.c.l.b16 %v421
      %v684 = vunpack.c.l.b16 %v303
      %v685 = vunpack.c.l.b16 %v517
      %v686 = vunpack.c.l.b16 %v329
      %v687 = vunpack.c.l.b16 %v613
      %v688 = vunpack.c.l.b16 %v278
      %v689 = vunpack.c.l.b16 %v428
      %v690 = vunpack.c.l.b16 %v304
      %v691 = vunpack.c.l.b16 %v524
      %v692 = vunpack.c.l.b16 %v330
      %v693 = vunpack.c.l.b16 %v620
      %v694 = vunpack.c.l.b16 %v279
      %v695 = vunpack.c.l.b16 %v435
      %v696 = vunpack.c.l.b16 %v305
      %v697 = vunpack.c.l.b16 %v531
      %v698 = vunpack.c.l.b16 %v331
      %v699 = vunpack.c.l.b16 %v627
      %v700 = vld [vmem:[%s1] sm:$0xf]
      %v701 = vld [vmem:[%s1 + $0x4] sm:$0xf]
      %v702 = vld [vmem:[%s1 + $0x8] sm:$0xf]
      %v703 = vld [vmem:[%s1 + $0xc] sm:$0xf]
      %v704 = vld [vmem:[%s1 + $0x10] sm:$0xf]
      %v705 = vld [vmem:[%s1 + $0x14] sm:$0xf]
      %v706 = vld [vmem:[%s1 + $0x18] sm:$0xf]
      %v707 = vld [vmem:[%s1 + $0x1c] sm:$0xf]
      %v708 = vld [vmem:[%s1 + $0x20] sm:$0xf]
      %v709 = vld [vmem:[%s1 + $0x24] sm:$0xf]
      %v710 = vld [vmem:[%s1 + $0x28] sm:$0xf]
      %v711 = vld [vmem:[%s1 + $0x2c] sm:$0xf]
      %v712 = vld [vmem:[%s1 + $0x30] sm:$0xf]
      %v713 = vld [vmem:[%s1 + $0x34] sm:$0xf]
      %v714 = vld [vmem:[%s1 + $0x38] sm:$0xf]
      %v715 = vld [vmem:[%s1 + $0x3c] sm:$0xf]
      %v716 = vld [vmem:[%s1 + $0x40] sm:$0xf]
      %v717 = vld [vmem:[%s1 + $0x44] sm:$0xf]
      %v718 = vld [vmem:[%s1 + $0x48] sm:$0xf]
      %v719 = vld [vmem:[%s1 + $0x4c] sm:$0xf]
      %v720 = vld [vmem:[%s1 + $0x50] sm:$0xf]
      %v721 = vld [vmem:[%s1 + $0x54] sm:$0xf]
      %v722 = vld [vmem:[%s1 + $0x58] sm:$0xf]
      %v723 = vld [vmem:[%s1 + $0x5c] sm:$0xf]
      %v724 = vld [vmem:[%s1 + $0x60] sm:$0xf]
      %v725 = vld [vmem:[%s1 + $0x64] sm:$0xf]
      %v726 = vld [vmem:[%s1 + $0x68] sm:$0xf]
      %v727 = vld [vmem:[%s1 + $0x6c] sm:$0xf]
      %v728 = vld [vmem:[%s1 + $0x70] sm:$0xf]
      %v729 = vld [vmem:[%s1 + $0x74] sm:$0xf]
      %v730 = vld [vmem:[%s1 + $0x78] sm:$0xf]
      %v731 = vld [vmem:[%s1 + $0x7c] sm:$0xf]
      %v732 = vld [vmem:[%s1 + $0x80] sm:$0xf]
      %v733 = vld [vmem:[%s1 + $0x84] sm:$0xf]
      %v734 = vld [vmem:[%s1 + $0x88] sm:$0xf]
      %v735 = vld [vmem:[%s1 + $0x8c] sm:$0xf]
      %v736 = vld [vmem:[%s1 + $0x90] sm:$0xf]
      %v737 = vld [vmem:[%s1 + $0x94] sm:$0xf]
      %v738 = vld [vmem:[%s1 + $0x98] sm:$0xf]
      %v739 = vld [vmem:[%s1 + $0x9c] sm:$0xf]
      %v740 = vld [vmem:[%s1 + $0xa0] sm:$0xf]
      %v741 = vld [vmem:[%s1 + $0xa4] sm:$0xf]
      %v742 = vld [vmem:[%s1 + $0xa8] sm:$0xf]
      %v743 = vld [vmem:[%s1 + $0xac] sm:$0xf]
      %v744 = vld [vmem:[%s1 + $0xb0] sm:$0xf]
      %v745 = vld [vmem:[%s1 + $0xb4] sm:$0xf]
      %v746 = vld [vmem:[%s1 + $0xb8] sm:$0xf]
      %v747 = vld [vmem:[%s1 + $0xbc] sm:$0xf]
      %v748 = vld [vmem:[%s1 + $0xc0] sm:$0xf]
      %v749 = vld [vmem:[%s1 + $0xc4] sm:$0xf]
      %v750 = vld [vmem:[%s1 + $0xc8] sm:$0xf]
      %v751 = vld [vmem:[%s1 + $0xcc] sm:$0xf]
      %v752 = vld [vmem:[%s1 + $0xd0] sm:$0xf]
      %v753 = vld [vmem:[%s1 + $0xd4] sm:$0xf]
      %v754 = vld [vmem:[%s1 + $0xd8] sm:$0xf]
      %v755 = vld [vmem:[%s1 + $0xdc] sm:$0xf]
      %v756 = vld [vmem:[%s1 + $0xe0] sm:$0xf]
      %v757 = vld [vmem:[%s1 + $0xe4] sm:$0xf]
      %v758 = vld [vmem:[%s1 + $0xe8] sm:$0xf]
      %v759 = vld [vmem:[%s1 + $0xec] sm:$0xf]
      %v760 = vld [vmem:[%s1 + $0xf0] sm:$0xf]
      %v761 = vld [vmem:[%s1 + $0xf4] sm:$0xf]
      %v762 = vld [vmem:[%s1 + $0xf8] sm:$0xf]
      %v763 = vld [vmem:[%s1 + $0xfc] sm:$0xf]
      %v764 = vld [vmem:[%s1 + $0x100] sm:$0xf]
      %v765 = vld [vmem:[%s1 + $0x104] sm:$0xf]
      %v766 = vld [vmem:[%s1 + $0x108] sm:$0xf]
      %v767 = vld [vmem:[%s1 + $0x10c] sm:$0xf]
      %v768 = vld [vmem:[%s1 + $0x110] sm:$0xf]
      %v769 = vld [vmem:[%s1 + $0x114] sm:$0xf]
      %v770 = vld [vmem:[%s1 + $0x118] sm:$0xf]
      %v771 = vld [vmem:[%s1 + $0x11c] sm:$0xf]
      %v772 = vld [vmem:[%s1 + $0x120] sm:$0xf]
      %v773 = vld [vmem:[%s1 + $0x124] sm:$0xf]
      %v774 = vld [vmem:[%s1 + $0x128] sm:$0xf]
      %v775 = vld [vmem:[%s1 + $0x12c] sm:$0xf]
      %v776 = vld [vmem:[%s1 + $0x130] sm:$0xf]
      %v777 = vld [vmem:[%s1 + $0x134] sm:$0xf]
      %v778 = vld [vmem:[%s1 + $0x138] sm:$0xf]
      %v779 = vld [vmem:[%s1 + $0x13c] sm:$0xf]
      %v780 = vld [vmem:[%s1 + $0x140] sm:$0xf]
      %v781 = vld [vmem:[%s1 + $0x144] sm:$0xf]
      %v782 = vld [vmem:[%s1 + $0x148] sm:$0xf]
      %v783 = vld [vmem:[%s1 + $0x14c] sm:$0xf]
      %v784 = vld [vmem:[%s1 + $0x150] sm:$0xf]
      %v785 = vld [vmem:[%s1 + $0x154] sm:$0xf]
      %v786 = vld [vmem:[%s1 + $0x158] sm:$0xf]
      %v787 = vld [vmem:[%s1 + $0x15c] sm:$0xf]
      %v788 = vld [vmem:[%s1 + $0x160] sm:$0xf]
      %v789 = vld [vmem:[%s1 + $0x164] sm:$0xf]
      %v790 = vld [vmem:[%s1 + $0x168] sm:$0xf]
      %v791 = vld [vmem:[%s1 + $0x16c] sm:$0xf]
      %v792 = vld [vmem:[%s1 + $0x170] sm:$0xf]
      %v793 = vld [vmem:[%s1 + $0x174] sm:$0xf]
      %v794 = vld [vmem:[%s1 + $0x178] sm:$0xf]
      %v795 = vld [vmem:[%s1 + $0x17c] sm:$0xf]
      %v796 = vld [vmem:[%s1 + $0x180] sm:$0xf]
      %v797 = vld [vmem:[%s1 + $0x184] sm:$0xf]
      %v798 = vld [vmem:[%s1 + $0x188] sm:$0xf]
      %v799 = vld [vmem:[%s1 + $0x18c] sm:$0xf]
      %v800 = vld [vmem:[%s1 + $0x190] sm:$0xf]
      %v801 = vld [vmem:[%s1 + $0x194] sm:$0xf]
      %v802 = vld [vmem:[%s1 + $0x198] sm:$0xf]
      %v803 = vld [vmem:[%s1 + $0x19c] sm:$0xf]
      %v804 = vld [vmem:[%s1 + $0x1a0] sm:$0xf]
      %v805 = vld [vmem:[%s1 + $0x1a4] sm:$0xf]
      %v806 = vld [vmem:[%s1 + $0x1a8] sm:$0xf]
      %v807 = vld [vmem:[%s1 + $0x1ac] sm:$0xf]
      %v808 = vld [vmem:[%s1 + $0x1b0] sm:$0xf]
      %v809 = vld [vmem:[%s1 + $0x1b4] sm:$0xf]
      %v810 = vld [vmem:[%s1 + $0x1b8] sm:$0xf]
      %v811 = vld [vmem:[%s1 + $0x1bc] sm:$0xf]
      %v812 = vld [vmem:[%s1 + $0x1c0] sm:$0xf]
      %v813 = vld [vmem:[%s1 + $0x1c4] sm:$0xf]
      %v814 = vld [vmem:[%s1 + $0x1c8] sm:$0xf]
      %v815 = vld [vmem:[%s1 + $0x1cc] sm:$0xf]
      %v816 = vld [vmem:[%s1 + $0x1d0] sm:$0xf]
      %v817 = vld [vmem:[%s1 + $0x1d4] sm:$0xf]
      %v818 = vld [vmem:[%s1 + $0x1d8] sm:$0xf]
      %v819 = vld [vmem:[%s1 + $0x1dc] sm:$0xf]
      %v820 = vld [vmem:[%s1 + $0x1e0] sm:$0xf]
      %v821 = vld [vmem:[%s1 + $0x1e4] sm:$0xf]
      %v822 = vld [vmem:[%s1 + $0x1e8] sm:$0xf]
      %v823 = vld [vmem:[%s1 + $0x1ec] sm:$0xf]
      %v824 = vld [vmem:[%s1 + $0x1f0] sm:$0xf]
      %v825 = vld [vmem:[%s1 + $0x1f4] sm:$0xf]
      %v826 = vld [vmem:[%s1 + $0x1f8] sm:$0xf]
      %v827 = vld [vmem:[%s1 + $0x1fc] sm:$0xf]
      %v828 = vld [vmem:[%s1 + $0x200] sm:$0xf]
      %v829 = vld [vmem:[%s1 + $0x204] sm:$0xf]
      %v830 = vld [vmem:[%s1 + $0x208] sm:$0xf]
      %v831 = vld [vmem:[%s1 + $0x20c] sm:$0xf]
      %v832 = vld [vmem:[%s1 + $0x210] sm:$0xf]
      %v833 = vld [vmem:[%s1 + $0x214] sm:$0xf]
      %v834 = vld [vmem:[%s1 + $0x218] sm:$0xf]
      %v835 = vld [vmem:[%s1 + $0x21c] sm:$0xf]
      %v836 = vld [vmem:[%s1 + $0x220] sm:$0xf]
      %v837 = vld [vmem:[%s1 + $0x224] sm:$0xf]
      %v838 = vld [vmem:[%s1 + $0x228] sm:$0xf]
      %v839 = vld [vmem:[%s1 + $0x22c] sm:$0xf]
      %v840 = vld [vmem:[%s1 + $0x230] sm:$0xf]
      %v841 = vld [vmem:[%s1 + $0x234] sm:$0xf]
      %v842 = vld [vmem:[%s1 + $0x238] sm:$0xf]
      %v843 = vld [vmem:[%s1 + $0x23c] sm:$0xf]
      %v844 = vld [vmem:[%s2] sm:$0x1]
      %v846 = vlaneseq
      %v847 = vshrl.u32 %v846, 7
      %v848 = vsub.s32 0, %v847
      %v849 = vrot.slane %v844, %v848
      %v851 = vpack.c.b16 %v358, %v356
      %v852 = vpack.c.b16 %v658, %v652
      %v853 = vpack.c.b16 %v659, %v653
      %v854 = vpack.c.b16 %v454, %v452
      %v855 = vpack.c.b16 %v660, %v654
      %v856 = vpack.c.b16 %v661, %v655
      %v857 = vpack.c.b16 %v550, %v548
      %v858 = vpack.c.b16 %v662, %v656
      %v859 = vpack.c.b16 %v663, %v657
      %v860 = vpack.c.b16 %v362, %v360
      %v861 = vpack.c.b16 %v670, %v664
      %v862 = vpack.c.b16 %v671, %v665
      %v863 = vpack.c.b16 %v458, %v456
      %v864 = vpack.c.b16 %v672, %v666
      %v865 = vpack.c.b16 %v673, %v667
      %v866 = vpack.c.b16 %v554, %v552
      %v867 = vpack.c.b16 %v674, %v668
      %v868 = vpack.c.b16 %v675, %v669
      %v869 = vpack.c.b16 %v366, %v364
      %v870 = vpack.c.b16 %v682, %v676
      %v871 = vpack.c.b16 %v683, %v677
      %v872 = vpack.c.b16 %v462, %v460
      %v873 = vpack.c.b16 %v684, %v678
      %v874 = vpack.c.b16 %v685, %v679
      %v875 = vpack.c.b16 %v558, %v556
      %v876 = vpack.c.b16 %v686, %v680
      %v877 = vpack.c.b16 %v687, %v681
      %v878 = vpack.c.b16 %v370, %v368
      %v879 = vpack.c.b16 %v694, %v688
      %v880 = vpack.c.b16 %v695, %v689
      %v881 = vpack.c.b16 %v466, %v464
      %v882 = vpack.c.b16 %v696, %v690
      %v883 = vpack.c.b16 %v697, %v691
      %v884 = vpack.c.b16 %v562, %v560
      %v885 = vpack.c.b16 %v698, %v692
      %v886 = vpack.c.b16 %v699, %v693
      %v1067 = vunpack.c.l.b16 %v700
      %v1068 = vunpack.c.l.b16 %v701
      %v1069 = vunpack.c.l.b16 %v702
      %v1070 = vunpack.c.l.b16 %v703
      %v1071 = vunpack.c.l.b16 %v704
      %v1072 = vunpack.c.l.b16 %v705
      %v1073 = vunpack.c.l.b16 %v706
      %v1074 = vunpack.c.l.b16 %v707
      %v1075 = vunpack.c.l.b16 %v708
      %v1076 = vunpack.c.l.b16 %v709
      %v1077 = vunpack.c.l.b16 %v710
      %v1078 = vunpack.c.l.b16 %v711
      %v1079 = vunpack.c.l.b16 %v712
      %v1080 = vunpack.c.l.b16 %v713
      %v1081 = vunpack.c.l.b16 %v714
      %v1082 = vunpack.c.l.b16 %v715
      %v1083 = vunpack.c.l.b16 %v716
      %v1084 = vunpack.c.l.b16 %v717
      %v1085 = vunpack.c.l.b16 %v718
      %v1086 = vunpack.c.l.b16 %v719
      %v1087 = vunpack.c.l.b16 %v720
      %v1088 = vunpack.c.l.b16 %v721
      %v1089 = vunpack.c.l.b16 %v722
      %v1090 = vunpack.c.l.b16 %v723
      %v1091 = vunpack.c.l.b16 %v724
      %v1092 = vunpack.c.l.b16 %v725
      %v1093 = vunpack.c.l.b16 %v726
      %v1094 = vunpack.c.l.b16 %v727
      %v1095 = vunpack.c.l.b16 %v728
      %v1096 = vunpack.c.l.b16 %v729
      %v1097 = vunpack.c.l.b16 %v730
      %v1098 = vunpack.c.l.b16 %v731
      %v1099 = vunpack.c.l.b16 %v732
      %v1100 = vunpack.c.l.b16 %v733
      %v1101 = vunpack.c.l.b16 %v734
      %v1102 = vunpack.c.l.b16 %v735
      %v1103 = vunpack.c.l.b16 %v736
      %v1104 = vunpack.c.l.b16 %v737
      %v1105 = vunpack.c.l.b16 %v738
      %v1106 = vunpack.c.l.b16 %v739
      %v1107 = vunpack.c.l.b16 %v740
      %v1108 = vunpack.c.l.b16 %v741
      %v1109 = vunpack.c.l.b16 %v742
      %v1110 = vunpack.c.l.b16 %v743
      %v1111 = vunpack.c.l.b16 %v744
      %v1112 = vunpack.c.l.b16 %v745
      %v1113 = vunpack.c.l.b16 %v746
      %v1114 = vunpack.c.l.b16 %v747
      %v1115 = vunpack.c.l.b16 %v748
      %v1116 = vunpack.c.l.b16 %v749
      %v1117 = vunpack.c.l.b16 %v750
      %v1118 = vunpack.c.l.b16 %v751
      %v1119 = vunpack.c.l.b16 %v752
      %v1120 = vunpack.c.l.b16 %v753
      %v1121 = vunpack.c.l.b16 %v754
      %v1122 = vunpack.c.l.b16 %v755
      %v1123 = vunpack.c.l.b16 %v756
      %v1124 = vunpack.c.l.b16 %v757
      %v1125 = vunpack.c.l.b16 %v758
      %v1126 = vunpack.c.l.b16 %v759
      %v1127 = vunpack.c.l.b16 %v760
      %v1128 = vunpack.c.l.b16 %v761
      %v1129 = vunpack.c.l.b16 %v762
      %v1130 = vunpack.c.l.b16 %v763
      %v1131 = vunpack.c.l.b16 %v764
      %v1132 = vunpack.c.l.b16 %v765
      %v1133 = vunpack.c.l.b16 %v766
      %v1134 = vunpack.c.l.b16 %v767
      %v1135 = vunpack.c.l.b16 %v768
      %v1136 = vunpack.c.l.b16 %v769
      %v1137 = vunpack.c.l.b16 %v770
      %v1138 = vunpack.c.l.b16 %v771
      %v1139 = vunpack.c.l.b16 %v772
      %v1140 = vunpack.c.l.b16 %v773
      %v1141 = vunpack.c.l.b16 %v774
      %v1142 = vunpack.c.l.b16 %v775
      %v1143 = vunpack.c.l.b16 %v776
      %v1144 = vunpack.c.l.b16 %v777
      %v1145 = vunpack.c.l.b16 %v778
      %v1146 = vunpack.c.l.b16 %v779
      %v1147 = vunpack.c.l.b16 %v780
      %v1148 = vunpack.c.l.b16 %v781
      %v1149 = vunpack.c.l.b16 %v782
      %v1150 = vunpack.c.l.b16 %v783
      %v1151 = vunpack.c.l.b16 %v784
      %v1152 = vunpack.c.l.b16 %v785
      %v1153 = vunpack.c.l.b16 %v786
      %v1154 = vunpack.c.l.b16 %v787
      %v1155 = vunpack.c.l.b16 %v788
      %v1156 = vunpack.c.l.b16 %v789
      %v1157 = vunpack.c.l.b16 %v790
      %v1158 = vunpack.c.l.b16 %v791
      %v1159 = vunpack.c.l.b16 %v792
      %v1160 = vunpack.c.l.b16 %v793
      %v1161 = vunpack.c.l.b16 %v794
      %v1162 = vunpack.c.l.b16 %v795
      %v1163 = vunpack.c.l.b16 %v796
      %v1164 = vunpack.c.l.b16 %v797
      %v1165 = vunpack.c.l.b16 %v798
      %v1166 = vunpack.c.l.b16 %v799
      %v1167 = vunpack.c.l.b16 %v800
      %v1168 = vunpack.c.l.b16 %v801
      %v1169 = vunpack.c.l.b16 %v802
      %v1170 = vunpack.c.l.b16 %v803
      %v1171 = vunpack.c.l.b16 %v804
      %v1172 = vunpack.c.l.b16 %v805
      %v1173 = vunpack.c.l.b16 %v806
      %v1174 = vunpack.c.l.b16 %v807
      %v1175 = vunpack.c.l.b16 %v808
      %v1176 = vunpack.c.l.b16 %v809
      %v1177 = vunpack.c.l.b16 %v810
      %v1178 = vunpack.c.l.b16 %v811
      %v1179 = vunpack.c.l.b16 %v812
      %v1180 = vunpack.c.l.b16 %v813
      %v1181 = vunpack.c.l.b16 %v814
      %v1182 = vunpack.c.l.b16 %v815
      %v1183 = vunpack.c.l.b16 %v816
      %v1184 = vunpack.c.l.b16 %v817
      %v1185 = vunpack.c.l.b16 %v818
      %v1186 = vunpack.c.l.b16 %v819
      %v1187 = vunpack.c.l.b16 %v820
      %v1188 = vunpack.c.l.b16 %v821
      %v1189 = vunpack.c.l.b16 %v822
      %v1190 = vunpack.c.l.b16 %v823
      %v1191 = vunpack.c.l.b16 %v824
      %v1192 = vunpack.c.l.b16 %v825
      %v1193 = vunpack.c.l.b16 %v826
      %v1194 = vunpack.c.l.b16 %v827
      %v1195 = vunpack.c.l.b16 %v828
      %v1196 = vunpack.c.l.b16 %v829
      %v1197 = vunpack.c.l.b16 %v830
      %v1198 = vunpack.c.l.b16 %v831
      %v1199 = vunpack.c.l.b16 %v832
      %v1200 = vunpack.c.l.b16 %v833
      %v1201 = vunpack.c.l.b16 %v834
      %v1202 = vunpack.c.l.b16 %v835
      %v1203 = vunpack.c.l.b16 %v836
      %v1204 = vunpack.c.l.b16 %v837
      %v1205 = vunpack.c.l.b16 %v838
      %v1206 = vunpack.c.l.b16 %v839
      %v1207 = vunpack.c.l.b16 %v840
      %v1208 = vunpack.c.l.b16 %v841
      %v1209 = vunpack.c.l.b16 %v842
      %v1210 = vunpack.c.l.b16 %v843
      %v1211 = vpack.c.b16 %v1068, %v1067
      %v1212 = vpack.c.b16 %v1070, %v1069
      %v1213 = vpack.c.b16 %v1072, %v1071
      %v1214 = vpack.c.b16 %v1074, %v1073
      %v1215 = vpack.c.b16 %v1076, %v1075
      %v1216 = vpack.c.b16 %v1078, %v1077
      %v1217 = vpack.c.b16 %v1080, %v1079
      %v1218 = vpack.c.b16 %v1082, %v1081
      %v1219 = vpack.c.b16 %v1084, %v1083
      %v1220 = vpack.c.b16 %v1086, %v1085
      %v1221 = vpack.c.b16 %v1088, %v1087
      %v1222 = vpack.c.b16 %v1090, %v1089
      %v1223 = vpack.c.b16 %v1092, %v1091
      %v1224 = vpack.c.b16 %v1094, %v1093
      %v1225 = vpack.c.b16 %v1096, %v1095
      %v1226 = vpack.c.b16 %v1098, %v1097
      %v1227 = vpack.c.b16 %v1100, %v1099
      %v1228 = vpack.c.b16 %v1102, %v1101
      %v1229 = vpack.c.b16 %v1104, %v1103
      %v1230 = vpack.c.b16 %v1106, %v1105
      %v1231 = vpack.c.b16 %v1108, %v1107
      %v1232 = vpack.c.b16 %v1110, %v1109
      %v1233 = vpack.c.b16 %v1112, %v1111
      %v1234 = vpack.c.b16 %v1114, %v1113
      %v1235 = vpack.c.b16 %v1116, %v1115
      %v1236 = vpack.c.b16 %v1118, %v1117
      %v1237 = vpack.c.b16 %v1120, %v1119
      %v1238 = vpack.c.b16 %v1122, %v1121
      %v1239 = vpack.c.b16 %v1124, %v1123
      %v1240 = vpack.c.b16 %v1126, %v1125
      %v1241 = vpack.c.b16 %v1128, %v1127
      %v1242 = vpack.c.b16 %v1130, %v1129
      %v1243 = vpack.c.b16 %v1132, %v1131
      %v1244 = vpack.c.b16 %v1134, %v1133
      %v1245 = vpack.c.b16 %v1136, %v1135
      %v1246 = vpack.c.b16 %v1138, %v1137
      %v1247 = vpack.c.b16 %v1140, %v1139
      %v1248 = vpack.c.b16 %v1142, %v1141
      %v1249 = vpack.c.b16 %v1144, %v1143
      %v1250 = vpack.c.b16 %v1146, %v1145
      %v1251 = vpack.c.b16 %v1148, %v1147
      %v1252 = vpack.c.b16 %v1150, %v1149
      %v1253 = vpack.c.b16 %v1152, %v1151
      %v1254 = vpack.c.b16 %v1154, %v1153
      %v1255 = vpack.c.b16 %v1156, %v1155
      %v1256 = vpack.c.b16 %v1158, %v1157
      %v1257 = vpack.c.b16 %v1160, %v1159
      %v1258 = vpack.c.b16 %v1162, %v1161
      %v1259 = vpack.c.b16 %v1164, %v1163
      %v1260 = vpack.c.b16 %v1166, %v1165
      %v1261 = vpack.c.b16 %v1168, %v1167
      %v1262 = vpack.c.b16 %v1170, %v1169
      %v1263 = vpack.c.b16 %v1172, %v1171
      %v1264 = vpack.c.b16 %v1174, %v1173
      %v1265 = vpack.c.b16 %v1176, %v1175
      %v1266 = vpack.c.b16 %v1178, %v1177
      %v1267 = vpack.c.b16 %v1180, %v1179
      %v1268 = vpack.c.b16 %v1182, %v1181
      %v1269 = vpack.c.b16 %v1184, %v1183
      %v1270 = vpack.c.b16 %v1186, %v1185
      %v1271 = vpack.c.b16 %v1188, %v1187
      %v1272 = vpack.c.b16 %v1190, %v1189
      %v1273 = vpack.c.b16 %v1192, %v1191
      %v1274 = vpack.c.b16 %v1194, %v1193
      %v1275 = vpack.c.b16 %v1196, %v1195
      %v1276 = vpack.c.b16 %v1198, %v1197
      %v1277 = vpack.c.b16 %v1200, %v1199
      %v1278 = vpack.c.b16 %v1202, %v1201
      %v1279 = vpack.c.b16 %v1204, %v1203
      %v1280 = vpack.c.b16 %v1206, %v1205
      %v1281 = vpack.c.b16 %v1208, %v1207
      %v1282 = vpack.c.b16 %v1210, %v1209
      %1355 = vmatprep.subr.bf16.mxu0 0
      %1356 = vmatpush1.bf16.msra.mxu0 %v1218
      %1357 = vmatprep.subr.bf16.mxu0 0
      %1358 = vmatpush1.bf16.msra.mxu0 %v1217
      %1359 = vmatprep.subr.bf16.mxu0 0
      %1360 = vmatpush1.bf16.msra.mxu0 %v1216
      %1361 = vmatprep.subr.bf16.mxu0 0
      %1362 = vmatpush1.bf16.msra.mxu0 %v1215
      %1363 = vmatprep.subr.bf16.mxu0 0
      %1364 = vmatpush1.bf16.msra.mxu0 %v1214
      %1365 = vmatprep.subr.bf16.mxu0 0
      %1366 = vmatpush1.bf16.msra.mxu0 %v1213
      %1367 = vmatprep.subr.bf16.mxu0 0
      %1368 = vmatpush1.bf16.msra.mxu0 %v1212
      %1369 = vmatprep.subr.bf16.mxu0 0
      %1370 = vmatpush1.bf16.msra.mxu0 %v1211
      %1371 = vmatprep.subr.bf16.mxu0 0
      %1372 = vmatpush2.bf16.msra.mxu0 %v1226
      %1373 = vmatprep.subr.bf16.mxu0 0
      %1374 = vmatpush2.bf16.msra.mxu0 %v1225
      %1375 = vmatprep.subr.bf16.mxu0 0
      %1376 = vmatpush2.bf16.msra.mxu0 %v1224
      %1377 = vmatprep.subr.bf16.mxu0 0
      %1378 = vmatpush2.bf16.msra.mxu0 %v1223
      %1379 = vmatprep.subr.bf16.mxu0 0
      %1380 = vmatpush2.bf16.msra.mxu0 %v1222
      %1381 = vmatprep.subr.bf16.mxu0 0
      %1382 = vmatpush2.bf16.msra.mxu0 %v1221
      %1383 = vmatprep.subr.bf16.mxu0 0
      %1384 = vmatpush2.bf16.msra.mxu0 %v1220
      %1385 = vmatprep.subr.bf16.mxu0 0
      %1386 = vmatpush2.bf16.msra.mxu0 %v1219
      %1387 = vmatprep.mubr.bf16.mxu0 %v852
      %1388 = vmatmul.mubr.bf16.gmra.mxu0 %v851
      %v1389 = vpop.f32.mrf.mxu0
      %v1390 = vadd.f32 %v849, %v1389
      %v1391 = vpop.f32.mrf.mxu0
      %v1392 = vpop.f32.mrf.mxu0
      %v1393 = vadd.f32 %v849, %v1392
      %v1394 = vpop.f32.mrf.mxu0
      %1395 = vmatprep.mubr.bf16.mxu0 %v861
      %1396 = vmatmul.mubr.bf16.gmra.mxu0 %v860
      %v1397 = vpop.f32.mrf.mxu0
      %v1398 = vadd.f32 %v849, %v1397
      %v1399 = vpop.f32.mrf.mxu0
      %v1400 = vpop.f32.mrf.mxu0
      %v1401 = vadd.f32 %v849, %v1400
      %v1402 = vpop.f32.mrf.mxu0
      %1403 = vmatprep.mubr.bf16.mxu0 %v870
      %1404 = vmatmul.mubr.bf16.gmra.mxu0 %v869
      %v1405 = vpop.f32.mrf.mxu0
      %v1406 = vadd.f32 %v849, %v1405
      %v1407 = vpop.f32.mrf.mxu0
      %v1408 = vpop.f32.mrf.mxu0
      %v1409 = vadd.f32 %v849, %v1408
      %v1410 = vpop.f32.mrf.mxu0
      %1411 = vmatprep.mubr.bf16.mxu0 %v879
      %1412 = vmatmul.mubr.bf16.gmra.mxu0 %v878
      %v1413 = vpop.f32.mrf.mxu0
      %v1414 = vadd.f32 %v849, %v1413
      %v1415 = vpop.f32.mrf.mxu0
      %v1416 = vpop.f32.mrf.mxu0
      %v1417 = vadd.f32 %v849, %v1416
      %v1418 = vpop.f32.mrf.mxu0
      %1419 = vdwg.mxu0
      %1420 = vmatprep.subr.bf16.mxu0 0
      %1421 = vmatpush1.bf16.msra.mxu0 %v1234
      %1422 = vmatprep.subr.bf16.mxu0 0
      %1423 = vmatpush1.bf16.msra.mxu0 %v1233
      %1424 = vmatprep.subr.bf16.mxu0 0
      %1425 = vmatpush1.bf16.msra.mxu0 %v1232
      %1426 = vmatprep.subr.bf16.mxu0 0
      %1427 = vmatpush1.bf16.msra.mxu0 %v1231
      %1428 = vmatprep.subr.bf16.mxu0 0
      %1429 = vmatpush1.bf16.msra.mxu0 %v1230
      %1430 = vmatprep.subr.bf16.mxu0 0
      %1431 = vmatpush1.bf16.msra.mxu0 %v1229
      %1432 = vmatprep.subr.bf16.mxu0 0
      %1433 = vmatpush1.bf16.msra.mxu0 %v1228
      %1434 = vmatprep.subr.bf16.mxu0 0
      %1435 = vmatpush1.bf16.msra.mxu0 %v1227
      %1436 = vmatprep.subr.bf16.mxu0 0
      %1437 = vmatpush2.bf16.msra.mxu0 %v1242
      %1438 = vmatprep.subr.bf16.mxu0 0
      %1439 = vmatpush2.bf16.msra.mxu0 %v1241
      %1440 = vmatprep.subr.bf16.mxu0 0
      %1441 = vmatpush2.bf16.msra.mxu0 %v1240
      %1442 = vmatprep.subr.bf16.mxu0 0
      %1443 = vmatpush2.bf16.msra.mxu0 %v1239
      %1444 = vmatprep.subr.bf16.mxu0 0
      %1445 = vmatpush2.bf16.msra.mxu0 %v1238
      %1446 = vmatprep.subr.bf16.mxu0 0
      %1447 = vmatpush2.bf16.msra.mxu0 %v1237
      %1448 = vmatprep.subr.bf16.mxu0 0
      %1449 = vmatpush2.bf16.msra.mxu0 %v1236
      %1450 = vmatprep.subr.bf16.mxu0 0
      %1451 = vmatpush2.bf16.msra.mxu0 %v1235
      %1452 = vmatprep.mubr.bf16.mxu0 %v854
      %1453 = vmatmul.mubr.bf16.gmra.mxu0 %v853
      %v1454 = vpop.f32.mrf.mxu0
      %v1455 = vadd.f32 %v1390, %v1454
      %v1456 = vpop.f32.mrf.mxu0
      %v1457 = vpop.f32.mrf.mxu0
      %v1458 = vadd.f32 %v1393, %v1457
      %v1459 = vpop.f32.mrf.mxu0
      %1460 = vmatprep.mubr.bf16.mxu0 %v863
      %1461 = vmatmul.mubr.bf16.gmra.mxu0 %v862
      %v1462 = vpop.f32.mrf.mxu0
      %v1463 = vadd.f32 %v1398, %v1462
      %v1464 = vpop.f32.mrf.mxu0
      %v1465 = vpop.f32.mrf.mxu0
      %v1466 = vadd.f32 %v1401, %v1465
      %v1467 = vpop.f32.mrf.mxu0
      %1468 = vmatprep.mubr.bf16.mxu0 %v872
      %1469 = vmatmul.mubr.bf16.gmra.mxu0 %v871
      %v1470 = vpop.f32.mrf.mxu0
      %v1471 = vadd.f32 %v1406, %v1470
      %v1472 = vpop.f32.mrf.mxu0
      %v1473 = vpop.f32.mrf.mxu0
      %v1474 = vadd.f32 %v1409, %v1473
      %v1475 = vpop.f32.mrf.mxu0
      %1476 = vmatprep.mubr.bf16.mxu0 %v881
      %1477 = vmatmul.mubr.bf16.gmra.mxu0 %v880
      %v1478 = vpop.f32.mrf.mxu0
      %v1479 = vadd.f32 %v1414, %v1478
      %v1480 = vpop.f32.mrf.mxu0
      %v1481 = vpop.f32.mrf.mxu0
      %v1482 = vadd.f32 %v1417, %v1481
      %v1483 = vpop.f32.mrf.mxu0
      %1484 = vdwg.mxu0
      %1485 = vmatprep.subr.bf16.mxu0 0
      %1486 = vmatpush1.bf16.msra.mxu0 %v1250
      %1487 = vmatprep.subr.bf16.mxu0 0
      %1488 = vmatpush1.bf16.msra.mxu0 %v1249
      %1489 = vmatprep.subr.bf16.mxu0 0
      %1490 = vmatpush1.bf16.msra.mxu0 %v1248
      %1491 = vmatprep.subr.bf16.mxu0 0
      %1492 = vmatpush1.bf16.msra.mxu0 %v1247
      %1493 = vmatprep.subr.bf16.mxu0 0
      %1494 = vmatpush1.bf16.msra.mxu0 %v1246
      %1495 = vmatprep.subr.bf16.mxu0 0
      %1496 = vmatpush1.bf16.msra.mxu0 %v1245
      %1497 = vmatprep.subr.bf16.mxu0 0
      %1498 = vmatpush1.bf16.msra.mxu0 %v1244
      %1499 = vmatprep.subr.bf16.mxu0 0
      %1500 = vmatpush1.bf16.msra.mxu0 %v1243
      %1501 = vmatprep.subr.bf16.mxu0 0
      %1502 = vmatpush2.bf16.msra.mxu0 %v1258
      %1503 = vmatprep.subr.bf16.mxu0 0
      %1504 = vmatpush2.bf16.msra.mxu0 %v1257
      %1505 = vmatprep.subr.bf16.mxu0 0
      %1506 = vmatpush2.bf16.msra.mxu0 %v1256
      %1507 = vmatprep.subr.bf16.mxu0 0
      %1508 = vmatpush2.bf16.msra.mxu0 %v1255
      %1509 = vmatprep.subr.bf16.mxu0 0
      %1510 = vmatpush2.bf16.msra.mxu0 %v1254
      %1511 = vmatprep.subr.bf16.mxu0 0
      %1512 = vmatpush2.bf16.msra.mxu0 %v1253
      %1513 = vmatprep.subr.bf16.mxu0 0
      %1514 = vmatpush2.bf16.msra.mxu0 %v1252
      %1515 = vmatprep.subr.bf16.mxu0 0
      %1516 = vmatpush2.bf16.msra.mxu0 %v1251
      %1517 = vmatprep.mubr.bf16.mxu0 %v856
      %1518 = vmatmul.mubr.bf16.gmra.mxu0 %v855
      %v1519 = vpop.f32.mrf.mxu0
      %v1520 = vadd.f32 %v1455, %v1519
      %v1521 = vpop.f32.mrf.mxu0
      %v1522 = vpop.f32.mrf.mxu0
      %v1523 = vadd.f32 %v1458, %v1522
      %v1524 = vpop.f32.mrf.mxu0
      %1525 = vmatprep.mubr.bf16.mxu0 %v865
      %1526 = vmatmul.mubr.bf16.gmra.mxu0 %v864
      %v1527 = vpop.f32.mrf.mxu0
      %v1528 = vadd.f32 %v1463, %v1527
      %v1529 = vpop.f32.mrf.mxu0
      %v1530 = vpop.f32.mrf.mxu0
      %v1531 = vadd.f32 %v1466, %v1530
      %v1532 = vpop.f32.mrf.mxu0
      %1533 = vmatprep.mubr.bf16.mxu0 %v874
      %1534 = vmatmul.mubr.bf16.gmra.mxu0 %v873
      %v1535 = vpop.f32.mrf.mxu0
      %v1536 = vadd.f32 %v1471, %v1535
      %v1537 = vpop.f32.mrf.mxu0
      %v1538 = vpop.f32.mrf.mxu0
      %v1539 = vadd.f32 %v1474, %v1538
      %v1540 = vpop.f32.mrf.mxu0
      %1541 = vmatprep.mubr.bf16.mxu0 %v883
      %1542 = vmatmul.mubr.bf16.gmra.mxu0 %v882
      %v1543 = vpop.f32.mrf.mxu0
      %v1544 = vadd.f32 %v1479, %v1543
      %v1545 = vpop.f32.mrf.mxu0
      %v1546 = vpop.f32.mrf.mxu0
      %v1547 = vadd.f32 %v1482, %v1546
      %v1548 = vpop.f32.mrf.mxu0
      %1549 = vdwg.mxu0
      %1550 = vmatprep.subr.bf16.mxu0 0
      %1551 = vmatpush1.bf16.msra.mxu0 %v1266
      %1552 = vmatprep.subr.bf16.mxu0 0
      %1553 = vmatpush1.bf16.msra.mxu0 %v1265
      %1554 = vmatprep.subr.bf16.mxu0 0
      %1555 = vmatpush1.bf16.msra.mxu0 %v1264
      %1556 = vmatprep.subr.bf16.mxu0 0
      %1557 = vmatpush1.bf16.msra.mxu0 %v1263
      %1558 = vmatprep.subr.bf16.mxu0 0
      %1559 = vmatpush1.bf16.msra.mxu0 %v1262
      %1560 = vmatprep.subr.bf16.mxu0 0
      %1561 = vmatpush1.bf16.msra.mxu0 %v1261
      %1562 = vmatprep.subr.bf16.mxu0 0
      %1563 = vmatpush1.bf16.msra.mxu0 %v1260
      %1564 = vmatprep.subr.bf16.mxu0 0
      %1565 = vmatpush1.bf16.msra.mxu0 %v1259
      %1566 = vmatprep.subr.bf16.mxu0 0
      %1567 = vmatpush2.bf16.msra.mxu0 %v1274
      %1568 = vmatprep.subr.bf16.mxu0 0
      %1569 = vmatpush2.bf16.msra.mxu0 %v1273
      %1570 = vmatprep.subr.bf16.mxu0 0
      %1571 = vmatpush2.bf16.msra.mxu0 %v1272
      %1572 = vmatprep.subr.bf16.mxu0 0
      %1573 = vmatpush2.bf16.msra.mxu0 %v1271
      %1574 = vmatprep.subr.bf16.mxu0 0
      %1575 = vmatpush2.bf16.msra.mxu0 %v1270
      %1576 = vmatprep.subr.bf16.mxu0 0
      %1577 = vmatpush2.bf16.msra.mxu0 %v1269
      %1578 = vmatprep.subr.bf16.mxu0 0
      %1579 = vmatpush2.bf16.msra.mxu0 %v1268
      %1580 = vmatprep.subr.bf16.mxu0 0
      %1581 = vmatpush2.bf16.msra.mxu0 %v1267
      %1582 = vmatprep.mubr.bf16.mxu0 %v858
      %1583 = vmatmul.mubr.bf16.gmra.mxu0 %v857
      %v1584 = vpop.f32.mrf.mxu0
      %v1585 = vadd.f32 %v1520, %v1584
      %v1586 = vpop.f32.mrf.mxu0
      %v1587 = vpop.f32.mrf.mxu0
      %v1588 = vadd.f32 %v1523, %v1587
      %v1589 = vpop.f32.mrf.mxu0
      %1590 = vmatprep.mubr.bf16.mxu0 %v867
      %1591 = vmatmul.mubr.bf16.gmra.mxu0 %v866
      %v1592 = vpop.f32.mrf.mxu0
      %v1593 = vadd.f32 %v1528, %v1592
      %v1594 = vpop.f32.mrf.mxu0
      %v1595 = vpop.f32.mrf.mxu0
      %v1596 = vadd.f32 %v1531, %v1595
      %v1597 = vpop.f32.mrf.mxu0
      %1598 = vmatprep.mubr.bf16.mxu0 %v876
      %1599 = vmatmul.mubr.bf16.gmra.mxu0 %v875
      %v1600 = vpop.f32.mrf.mxu0
      %v1601 = vadd.f32 %v1536, %v1600
      %v1602 = vpop.f32.mrf.mxu0
      %v1603 = vpop.f32.mrf.mxu0
      %v1604 = vadd.f32 %v1539, %v1603
      %v1605 = vpop.f32.mrf.mxu0
      %1606 = vmatprep.mubr.bf16.mxu0 %v885
      %1607 = vmatmul.mubr.bf16.gmra.mxu0 %v884
      %v1608 = vpop.f32.mrf.mxu0
      %v1609 = vadd.f32 %v1544, %v1608
      %v1610 = vpop.f32.mrf.mxu0
      %v1611 = vpop.f32.mrf.mxu0
      %v1612 = vadd.f32 %v1547, %v1611
      %v1613 = vpop.f32.mrf.mxu0
      %1614 = vdwg.mxu0
      %1615 = vmatprep.subr.bf16.mxu0 0
      %1616 = vmatpush1.bf16.msra.mxu0 %v1282
      %1617 = vmatprep.subr.bf16.mxu0 0
      %1618 = vmatpush1.bf16.msra.mxu0 %v1281
      %1619 = vmatprep.subr.bf16.mxu0 0
      %1620 = vmatpush1.bf16.msra.mxu0 %v1280
      %1621 = vmatprep.subr.bf16.mxu0 0
      %1622 = vmatpush1.bf16.msra.mxu0 %v1279
      %1623 = vmatprep.subr.bf16.mxu0 0
      %1624 = vmatpush1.bf16.msra.mxu0 %v1278
      %1625 = vmatprep.subr.bf16.mxu0 0
      %1626 = vmatpush1.bf16.msra.mxu0 %v1277
      %1627 = vmatprep.subr.bf16.mxu0 0
      %1628 = vmatpush1.bf16.msra.mxu0 %v1276
      %1629 = vmatprep.subr.bf16.mxu0 0
      %1630 = vmatpush1.bf16.msra.mxu0 %v1275
      %1631 = vmatprep.subr.bf16.mxu0 0
      %1632 = vmatpush2.bf16.msra.mxu0 0
      %1633 = vmatprep.subr.bf16.mxu0 0
      %1634 = vmatpush2.bf16.msra.mxu0 0
      %1635 = vmatprep.subr.bf16.mxu0 0
      %1636 = vmatpush2.bf16.msra.mxu0 0
      %1637 = vmatprep.subr.bf16.mxu0 0
      %1638 = vmatpush2.bf16.msra.mxu0 0
      %1639 = vmatprep.subr.bf16.mxu0 0
      %1640 = vmatpush2.bf16.msra.mxu0 0
      %1641 = vmatprep.subr.bf16.mxu0 0
      %1642 = vmatpush2.bf16.msra.mxu0 0
      %1643 = vmatprep.subr.bf16.mxu0 0
      %1644 = vmatpush2.bf16.msra.mxu0 0
      %1645 = vmatprep.subr.bf16.mxu0 0
      %1646 = vmatpush2.bf16.msra.mxu0 0
      %1647 = vmatprep.mubr.bf16.mxu0 0
      %1648 = vmatmul.mubr.bf16.gmra.mxu0 %v859
      %v1649 = vpop.f32.mrf.mxu0
      %v1650 = vadd.f32 %v1585, %v1649
      %v1651 = vpop.f32.mrf.mxu0
      %v1652 = vpop.f32.mrf.mxu0
      %v1653 = vadd.f32 %v1588, %v1652
      %v1654 = vpop.f32.mrf.mxu0
      %1655 = vmatprep.mubr.bf16.mxu0 0
      %1656 = vmatmul.mubr.bf16.gmra.mxu0 %v868
      %v1657 = vpop.f32.mrf.mxu0
      %v1658 = vadd.f32 %v1593, %v1657
      %v1659 = vpop.f32.mrf.mxu0
      %v1660 = vpop.f32.mrf.mxu0
      %v1661 = vadd.f32 %v1596, %v1660
      %v1662 = vpop.f32.mrf.mxu0
      %1663 = vmatprep.mubr.bf16.mxu0 0
      %1664 = vmatmul.mubr.bf16.gmra.mxu0 %v877
      %v1665 = vpop.f32.mrf.mxu0
      %v1666 = vadd.f32 %v1601, %v1665
      %v1667 = vpop.f32.mrf.mxu0
      %v1668 = vpop.f32.mrf.mxu0
      %v1669 = vadd.f32 %v1604, %v1668
      %v1670 = vpop.f32.mrf.mxu0
      %1671 = vmatprep.mubr.bf16.mxu0 0
      %1672 = vmatmul.mubr.bf16.gmra.mxu0 %v886
      %v1673 = vpop.f32.mrf.mxu0
      %v1674 = vadd.f32 %v1609, %v1673
      %v1675 = vpop.f32.mrf.mxu0
      %v1676 = vpop.f32.mrf.mxu0
      %v1677 = vadd.f32 %v1612, %v1676
      %v1678 = vpop.f32.mrf.mxu0
      %1679 = vdwg.mxu0
      %v1680 = vxor.u32 %v1650, 2147483648
      %v1681 = vxor.u32 %v1653, 2147483648
      %v1682 = vxor.u32 %v1658, 2147483648
      %v1683 = vxor.u32 %v1661, 2147483648
      %v1684 = vxor.u32 %v1666, 2147483648
      %v1685 = vxor.u32 %v1669, 2147483648
      %v1686 = vxor.u32 %v1674, 2147483648
      %v1687 = vxor.u32 %v1677, 2147483648
      %v1688 = vmul.f32 %v1680, 1.442695
      %v1689 = vpow.pop %v1688
      %v1690 = vmul.f32 %v1681, 1.442695
      %v1691 = vpow.pop %v1690
      %v1692 = vmul.f32 %v1682, 1.442695
      %v1693 = vpow.pop %v1692
      %v1694 = vmul.f32 %v1683, 1.442695
      %v1695 = vpow.pop %v1694
      %v1696 = vmul.f32 %v1684, 1.442695
      %v1697 = vpow.pop %v1696
      %v1698 = vmul.f32 %v1685, 1.442695
      %v1699 = vpow.pop %v1698
      %v1700 = vmul.f32 %v1686, 1.442695
      %v1701 = vpow.pop %v1700
      %v1702 = vmul.f32 %v1687, 1.442695
      %v1703 = vpow.pop %v1702
      %v1704 = vadd.f32 %v1689, 1.0
      %v1705 = vadd.f32 %v1691, 1.0
      %v1706 = vadd.f32 %v1693, 1.0
      %v1707 = vadd.f32 %v1695, 1.0
      %v1708 = vadd.f32 %v1697, 1.0
      %v1709 = vadd.f32 %v1699, 1.0
      %v1710 = vadd.f32 %v1701, 1.0
      %v1711 = vadd.f32 %v1703, 1.0
      %v1712 = vrcp.pop %v1704
      %v1713 = vmul.f32 1.0, %v1712
      %v1714 = vrcp.pop %v1705
      %v1715 = vmul.f32 1.0, %v1714
      %v1716 = vrcp.pop %v1706
      %v1717 = vmul.f32 1.0, %v1716
      %v1718 = vrcp.pop %v1707
      %v1719 = vmul.f32 1.0, %v1718
      %v1720 = vrcp.pop %v1708
      %v1721 = vmul.f32 1.0, %v1720
      %v1722 = vrcp.pop %v1709
      %v1723 = vmul.f32 1.0, %v1722
      %v1724 = vrcp.pop %v1710
      %v1725 = vmul.f32 1.0, %v1724
      %v1726 = vrcp.pop %v1711
      %v1727 = vmul.f32 1.0, %v1726
      %v1728 = vmul.f32 %v1650, %v1713
      %v1729 = vmul.f32 %v1653, %v1715
      %v1730 = vmul.f32 %v1658, %v1717
      %v1731 = vmul.f32 %v1661, %v1719
      %v1732 = vmul.f32 %v1666, %v1721
      %v1733 = vmul.f32 %v1669, %v1723
      %v1734 = vmul.f32 %v1674, %v1725
      %v1735 = vmul.f32 %v1677, %v1727
      %v1736 = vpack.c.bf16 %v1729, %v1728
      %v1737 = vpack.c.bf16 %v1731, %v1730
      %v1738 = vpack.c.bf16 %v1733, %v1732
      %v1739 = vpack.c.bf16 %v1735, %v1734
      %v1740 = vld [vmem:[%s3] sm:$0xf]
      %v1741 = vld [vmem:[%s3 + $0x4] sm:$0xf]
      %v1742 = vld [vmem:[%s3 + $0x8] sm:$0xf]
      %v1743 = vld [vmem:[%s3 + $0xc] sm:$0xf]
      %v1744 = vld [vmem:[%s3 + $0x10] sm:$0xf]
      %v1745 = vld [vmem:[%s3 + $0x14] sm:$0xf]
      %v1746 = vld [vmem:[%s3 + $0x18] sm:$0xf]
      %v1747 = vld [vmem:[%s3 + $0x1c] sm:$0xf]
      %v1748 = vld [vmem:[%s3 + $0x20] sm:$0xf]
      %v1749 = vld [vmem:[%s3 + $0x24] sm:$0xf]
      %v1750 = vld [vmem:[%s3 + $0x28] sm:$0xf]
      %v1751 = vld [vmem:[%s3 + $0x2c] sm:$0xf]
      %v1752 = vld [vmem:[%s3 + $0x30] sm:$0xf]
      %v1753 = vld [vmem:[%s3 + $0x34] sm:$0xf]
      %v1754 = vld [vmem:[%s3 + $0x38] sm:$0xf]
      %v1755 = vld [vmem:[%s3 + $0x3c] sm:$0xf]
      %v1756 = vld [vmem:[%s4] sm:$0x1]
      %v1758 = vlaneseq
      %v1759 = vshrl.u32 %v1758, 7
      %v1760 = vsub.s32 0, %v1759
      %v1761 = vrot.slane %v1756, %v1760
      %v1779 = vunpack.c.l.b16 %v1740
      %v1780 = vunpack.c.l.b16 %v1741
      %v1781 = vunpack.c.l.b16 %v1742
      %v1782 = vunpack.c.l.b16 %v1743
      %v1783 = vunpack.c.l.b16 %v1744
      %v1784 = vunpack.c.l.b16 %v1745
      %v1785 = vunpack.c.l.b16 %v1746
      %v1786 = vunpack.c.l.b16 %v1747
      %v1787 = vunpack.c.l.b16 %v1748
      %v1788 = vunpack.c.l.b16 %v1749
      %v1789 = vunpack.c.l.b16 %v1750
      %v1790 = vunpack.c.l.b16 %v1751
      %v1791 = vunpack.c.l.b16 %v1752
      %v1792 = vunpack.c.l.b16 %v1753
      %v1793 = vunpack.c.l.b16 %v1754
      %v1794 = vunpack.c.l.b16 %v1755
      %v1795 = vpack.c.b16 %v1780, %v1779
      %v1796 = vpack.c.b16 %v1782, %v1781
      %v1797 = vpack.c.b16 %v1784, %v1783
      %v1798 = vpack.c.b16 %v1786, %v1785
      %v1799 = vpack.c.b16 %v1788, %v1787
      %v1800 = vpack.c.b16 %v1790, %v1789
      %v1801 = vpack.c.b16 %v1792, %v1791
      %v1802 = vpack.c.b16 %v1794, %v1793
      %1811 = vmatprep.subr.bf16.mxu0 0
      %1812 = vmatpush1.bf16.msra.mxu0 %v1802
      %1813 = vmatprep.subr.bf16.mxu0 0
      %1814 = vmatpush1.bf16.msra.mxu0 %v1801
      %1815 = vmatprep.subr.bf16.mxu0 0
      %1816 = vmatpush1.bf16.msra.mxu0 %v1800
      %1817 = vmatprep.subr.bf16.mxu0 0
      %1818 = vmatpush1.bf16.msra.mxu0 %v1799
      %1819 = vmatprep.subr.bf16.mxu0 0
      %1820 = vmatpush1.bf16.msra.mxu0 %v1798
      %1821 = vmatprep.subr.bf16.mxu0 0
      %1822 = vmatpush1.bf16.msra.mxu0 %v1797
      %1823 = vmatprep.subr.bf16.mxu0 0
      %1824 = vmatpush1.bf16.msra.mxu0 %v1796
      %1825 = vmatprep.subr.bf16.mxu0 0
      %1826 = vmatpush1.bf16.msra.mxu0 %v1795
      %1827 = vmatprep.subr.bf16.mxu0 0
      %1828 = vmatpush2.bf16.msra.mxu0 0
      %1829 = vmatprep.subr.bf16.mxu0 0
      %1830 = vmatpush2.bf16.msra.mxu0 0
      %1831 = vmatprep.subr.bf16.mxu0 0
      %1832 = vmatpush2.bf16.msra.mxu0 0
      %1833 = vmatprep.subr.bf16.mxu0 0
      %1834 = vmatpush2.bf16.msra.mxu0 0
      %1835 = vmatprep.subr.bf16.mxu0 0
      %1836 = vmatpush2.bf16.msra.mxu0 0
      %1837 = vmatprep.subr.bf16.mxu0 0
      %1838 = vmatpush2.bf16.msra.mxu0 0
      %1839 = vmatprep.subr.bf16.mxu0 0
      %1840 = vmatpush2.bf16.msra.mxu0 0
      %1841 = vmatprep.subr.bf16.mxu0 0
      %1842 = vmatpush2.bf16.msra.mxu0 0
      %1843 = vmatprep.mubr.bf16.mxu0 0
      %1844 = vmatmul.mubr.bf16.gmra.mxu0 %v1736
      %v1845 = vpop.f32.mrf.mxu0
      %v1846 = vadd.f32 %v1761, %v1845
      %v1847 = vpop.f32.mrf.mxu0
      %v1848 = vpop.f32.mrf.mxu0
      %v1849 = vadd.f32 %v1761, %v1848
      %v1850 = vpop.f32.mrf.mxu0
      %1851 = vmatprep.mubr.bf16.mxu0 0
      %1852 = vmatmul.mubr.bf16.gmra.mxu0 %v1737
      %v1853 = vpop.f32.mrf.mxu0
      %v1854 = vadd.f32 %v1761, %v1853
      %v1855 = vpop.f32.mrf.mxu0
      %v1856 = vpop.f32.mrf.mxu0
      %v1857 = vadd.f32 %v1761, %v1856
      %v1858 = vpop.f32.mrf.mxu0
      %1859 = vmatprep.mubr.bf16.mxu0 0
      %1860 = vmatmul.mubr.bf16.gmra.mxu0 %v1738
      %v1861 = vpop.f32.mrf.mxu0
      %v1862 = vadd.f32 %v1761, %v1861
      %v1863 = vpop.f32.mrf.mxu0
      %v1864 = vpop.f32.mrf.mxu0
      %v1865 = vadd.f32 %v1761, %v1864
      %v1866 = vpop.f32.mrf.mxu0
      %1867 = vmatprep.mubr.bf16.mxu0 0
      %1868 = vmatmul.mubr.bf16.gmra.mxu0 %v1739
      %v1869 = vpop.f32.mrf.mxu0
      %v1870 = vadd.f32 %v1761, %v1869
      %v1871 = vpop.f32.mrf.mxu0
      %v1872 = vpop.f32.mrf.mxu0
      %v1873 = vadd.f32 %v1761, %v1872
      %v1874 = vpop.f32.mrf.mxu0
      %1875 = vdwg.mxu0
      %v1876 = vpack.c.bf16 %v1846, %v1846
      %v1877 = vpack.c.bf16 %v1849, %v1849
      %v1878 = vpack.c.bf16 %v1854, %v1854
      %v1879 = vpack.c.bf16 %v1857, %v1857
      %v1880 = vpack.c.bf16 %v1862, %v1862
      %v1881 = vpack.c.bf16 %v1865, %v1865
      %v1882 = vpack.c.bf16 %v1870, %v1870
      %v1883 = vpack.c.bf16 %v1873, %v1873
      %1884 = vst [vmem:[%s260] sm:$0xf] %v1876
      %1885 = vst [vmem:[%s260 + $0x4] sm:$0xf] %v1877
      %1886 = vst [vmem:[%s260 + $0x8] sm:$0xf] %v1878
      %1887 = vst [vmem:[%s260 + $0xc] sm:$0xf] %v1879
      %1888 = vst [vmem:[%s260 + $0x10] sm:$0xf] %v1880
      %1889 = vst [vmem:[%s260 + $0x14] sm:$0xf] %v1881
      %1890 = vst [vmem:[%s260 + $0x18] sm:$0xf] %v1882
      %1891 = vst [vmem:[%s260 + $0x1c] sm:$0xf] %v1883
      %s1892 = smul.u32 8, %s21
      %p1893 = scmp.lt.s32.totalorder %s20, 1
      %s1894 = scalar_select %p1893, %s20, 1
      %p1895 = scmp.lt.s32.totalorder %s1892, 7
      %s1896 = scalar_select %p1895, %s1892, 7
      %s1897 = smul.addr %s1894, 8
      %s1898 = sadd.s32 %s1896, %s1897
      %s1899 = smul.addr %s1898, 4
      %s1900 = scalar_lea.vmem %s5, %s1899
      // Predicated region
      $region41: #{_lambda_.6} parent=39 // pred_check
        %p1901 = pneg %p160
      $region42: #{_lambda_.6} parent=39 // pred_check_branch
        %1903 = sbr.rel (%p1901) target = $region44
      $region43: #{_lambda_.6} parent=39 // pred_region
        %s1904 = smul.u32 8, %s21
      $region44: #{_lambda_.6} parent=39 // pred_fallthru
        _
    $region40: #{_lambda_.6} parent=5 // pred_fallthru
      _
    %p1905 = scmp.le.s32.totalorder 2, %s11
    // Predicated region
    $region45: #{_lambda_.6} parent=5 // pred_check
      %p1906 = pneg %p1905
    $region46: #{_lambda_.6} parent=5 // pred_check_branch
      %1908 = sbr.rel (%p1906) target = $region48
    $region47: #{_lambda_.6} parent=5 // pred_region
      %s1909 = ssub.s32 %s11, 2
      // Predicated region
      $region49: #{_lambda_.6} parent=47 // pred_check
        %p1910 = pneg %p166
      $region50: #{_lambda_.6} parent=47 // pred_check_branch
        %1912 = sbr.rel (%p1910) target = $region52
      $region51: #{_lambda_.6} parent=47 // pred_region
        %s1913 = smul.u32 8, %s23
        %p1914 = scmp.lt.s32.totalorder %s22, 1
        %s1915 = scalar_select %p1914, %s22, 1
        %p1916 = scmp.lt.s32.totalorder %s1913, 7
        %s1917 = scalar_select %p1916, %s1913, 7
        %s1918 = smul.addr %s1915, 8
        %s1919 = sadd.s32 %s1917, %s1918
        %s1920 = smul.addr %s1919, 4
        %s1921 = scalar_lea.vmem %s5, %s1920
      $region52: #{_lambda_.6} parent=47 // pred_fallthru
        _
    $region48: #{_lambda_.6} parent=5 // pred_fallthru
      _
  $region6: #{_lambda_.6} parent=0 // loop_footer
    %s15 = sadd.s32 1, %s11
  $region7: #{_lambda_.6} parent=0 // loop_footer_branch
    %10 = sbr.rel target = $region3
  $region8: #{_lambda_.6} parent=0 // loop_exit
    _

// kernel: _lambda_.5
$region0: #{_lambda_.5}
  #allocation0 [shape = 'u32[]', space=smem, size = 0x4, offset = 0x4, fixed_abs, tag = 'smem constant byte address 0x4 - core index']
  #allocation1 [shape = 'u32[144,128]{1,0:T(1,128)}', space=vmem, size = 0x12000, scoped, tag = 'internal scratch']
  %s0 = inlined_call_operand.vmem [shape: bf16[2,1,18,18,128], index: 0, kind: input, shape index: {}]
  %s1 = inlined_call_operand.vmem [shape: bf16[1152,128], index: 1, kind: input, shape index: {}]
  %s2 = inlined_call_operand.vmem [shape: f32[1,128], index: 2, kind: input, shape index: {}]
  %s3 = inlined_call_operand.vmem [shape: bf16[2,16,16,128], index: 3, kind: output, shape index: {}]
  %s4 = sld [smem:[#allocation0]]
  $region45: #{_lambda_.5} parent=0
    _
  %s6 = ssub.s32 1, %s4
  %s7 = scalar_select 0, %s6, %s4
  loop: start=0, step=1, limit=4
  $region2: #{_lambda_.5} parent=0 // loop_pre_header
    _
  $region3: #{_lambda_.5} parent=0 // loop_header
    %s9 = sphi 0, %s13
    %p10 = scmp.ge.s32.totalorder %s9, 4
    %s16 = sphi 0, %s28
    %s17 = sphi 0, %s24
    %s18 = sphi 0, %s16
    %s19 = sphi 0, %s17
    %s20 = sphi 0, %s18
    %s21 = sphi 0, %s19
    %s33 = sphi 0, %s35
    %s36 = sphi 0, %s33
    %s37 = sphi 0, %s36
    %s53 = sphi 0, %s37
    %s57 = sphi 0, %s57
    %s59 = sphi 0, %s57
    %s60 = sphi 0, %s59
    %s74 = sphi 0, %s60
    %s78 = sphi 0, %s78
    %s80 = sphi 0, %s78
    %s81 = sphi 0, %s80
    %s95 = sphi 0, %s81
    %s103 = sphi 0, %s105
    %s106 = sphi 0, %s103
    %s107 = sphi 0, %s106
    %s123 = sphi 0, %s107
  $region4: #{_lambda_.5} parent=0 // loop_header_branch
    %12 = sbr.rel (%p10) target = $region8
  $region5: #{_lambda_.5} parent=0 // loop_body
    %s14 = ssub.s32 %s9, 1
    %s15 = ssub.s32 %s9, 2
    %s22 = sadd.s32 1, %s17
    %p23 = scmp.ge.s32.totalorder %s22, 1
    %s24 = scalar_select %p23, 0, %s22
    %s25 = sadd.s32 1, %s16
    %s26 = scalar_select %p23, %s25, %s16
    %p27 = scmp.ge.s32.totalorder %s26, 2
    %s28 = scalar_select %p27, 0, %s26
    %s29 = ssub.s32 %s16, %s28
    %s30 = ssub.s32 %s17, %s24
    %s31 = sor.u32 %s29, %s30
    %p32 = scmp.eq.s32.totalorder %s31, 0
    %s34 = sadd.s32 %s33, 1
    %s35 = scalar_select %p32, %s33, %s34
    %p38 = pneg %p32
    %p39 = scmp.eq.s32.totalorder %s9, 1
    %p40 = por %p38, %p39
    %p41 = scmp.ne.s32.totalorder %s33, %s36
    %p42 = scmp.eq.s32.totalorder %s9, 0
    %p43 = por %p41, %p42
    %p44 = scmp.ne.s32.totalorder %s33, %s36
    %p45 = scmp.eq.s32.totalorder %s14, 1
    %p46 = por %p44, %p45
    %p47 = scmp.ne.s32.totalorder %s36, %s37
    %p48 = scmp.eq.s32.totalorder %s14, 0
    %p49 = por %p47, %p48
    %p50 = scmp.ne.s32.totalorder %s36, %s37
    %p51 = scmp.eq.s32.totalorder %s15, 1
    %p52 = por %p50, %p51
    %p54 = scmp.ne.s32.totalorder %s37, %s53
    %p55 = scmp.eq.s32.totalorder %s15, 0
    %p56 = por %p54, %p55
    %s58 = sadd.s32 %s57, 1
    %p61 = scmp.eq.s32.totalorder %s9, 1
    %p62 = scmp.ne.s32.totalorder %s57, %s59
    %p63 = scmp.eq.s32.totalorder %s9, 0
    %p64 = por %p62, %p63
    %p65 = scmp.ne.s32.totalorder %s57, %s59
    %p66 = scmp.eq.s32.totalorder %s14, 1
    %p67 = por %p65, %p66
    %p68 = scmp.ne.s32.totalorder %s59, %s60
    %p69 = scmp.eq.s32.totalorder %s14, 0
    %p70 = por %p68, %p69
    %p71 = scmp.ne.s32.totalorder %s59, %s60
    %p72 = scmp.eq.s32.totalorder %s15, 1
    %p73 = por %p71, %p72
    %p75 = scmp.ne.s32.totalorder %s60, %s74
    %p76 = scmp.eq.s32.totalorder %s15, 0
    %p77 = por %p75, %p76
    %s79 = sadd.s32 %s78, 1
    %p82 = scmp.eq.s32.totalorder %s9, 1
    %p83 = scmp.ne.s32.totalorder %s78, %s80
    %p84 = scmp.eq.s32.totalorder %s9, 0
    %p85 = por %p83, %p84
    %p86 = scmp.ne.s32.totalorder %s78, %s80
    %p87 = scmp.eq.s32.totalorder %s14, 1
    %p88 = por %p86, %p87
    %p89 = scmp.ne.s32.totalorder %s80, %s81
    %p90 = scmp.eq.s32.totalorder %s14, 0
    %p91 = por %p89, %p90
    %p92 = scmp.ne.s32.totalorder %s80, %s81
    %p93 = scmp.eq.s32.totalorder %s15, 1
    %p94 = por %p92, %p93
    %p96 = scmp.ne.s32.totalorder %s81, %s95
    %p97 = scmp.eq.s32.totalorder %s15, 0
    %p98 = por %p96, %p97
    %s99 = ssub.s32 %s16, %s28
    %s100 = ssub.s32 %s17, %s24
    %s101 = sor.u32 %s99, %s100
    %p102 = scmp.eq.s32.totalorder %s101, 0
    %s104 = sadd.s32 %s103, 1
    %s105 = scalar_select %p102, %s103, %s104
    %p108 = pneg %p102
    %p109 = scmp.eq.s32.totalorder %s9, 1
    %p110 = por %p108, %p109
    %p111 = scmp.ne.s32.totalorder %s103, %s106
    %p112 = scmp.eq.s32.totalorder %s9, 0
    %p113 = por %p111, %p112
    %p114 = scmp.ne.s32.totalorder %s103, %s106
    %p115 = scmp.eq.s32.totalorder %s14, 1
    %p116 = por %p114, %p115
    %p117 = scmp.ne.s32.totalorder %s106, %s107
    %p118 = scmp.eq.s32.totalorder %s14, 0
    %p119 = por %p117, %p118
    %p120 = scmp.ne.s32.totalorder %s106, %s107
    %p121 = scmp.eq.s32.totalorder %s15, 1
    %p122 = por %p120, %p121
    %p124 = scmp.ne.s32.totalorder %s107, %s123
    %p125 = scmp.eq.s32.totalorder %s15, 0
    %p126 = por %p124, %p125
    %p127 = scmp.le.s32.totalorder 1, %s9
    %p128 = scmp.lt.s32.totalorder %s9, 3
    %p129 = pnand %p127, %p128
    %p130 = pneg %p129
    // Predicated region
    $region9: #{_lambda_.5} parent=5 // pred_check
      _
    $region10: #{_lambda_.5} parent=5 // pred_check_branch
      %132 = sbr.rel (%p129) target = $region12
    $region11: #{_lambda_.5} parent=5 // pred_region
      %s133 = ssub.s32 %s9, 1
      // Predicated region
      $region13: #{_lambda_.5} parent=11 // pred_check
        %p134 = pneg %p70
      $region14: #{_lambda_.5} parent=11 // pred_check_branch
        %136 = sbr.rel (%p134) target = $region16
      $region15: #{_lambda_.5} parent=11 // pred_region
        _
      $region16: #{_lambda_.5} parent=11 // pred_fallthru
        _
      // Predicated region
      $region17: #{_lambda_.5} parent=11 // pred_check
        %p137 = pneg %p91
      $region18: #{_lambda_.5} parent=11 // pred_check_branch
        %139 = sbr.rel (%p137) target = $region20
      $region19: #{_lambda_.5} parent=11 // pred_region
        _
      $region20: #{_lambda_.5} parent=11 // pred_fallthru
        _
    $region12: #{_lambda_.5} parent=5 // pred_fallthru
      _
    %p140 = scmp.lt.s32.totalorder %s9, 2
    // Predicated region
    $region21: #{_lambda_.5} parent=5 // pred_check
      %p141 = pneg %p140
    $region22: #{_lambda_.5} parent=5 // pred_check_branch
      %143 = sbr.rel (%p141) target = $region24
    $region23: #{_lambda_.5} parent=5 // pred_region
      // Predicated region
      $region25: #{_lambda_.5} parent=23 // pred_check
        %p144 = pneg %p43
      $region26: #{_lambda_.5} parent=23 // pred_check_branch
        %146 = sbr.rel (%p144) target = $region28
      $region27: #{_lambda_.5} parent=23 // pred_region
        %p147 = scmp.lt.s32.totalorder %s16, 1
        %s148 = scalar_select %p147, %s16, 1
        %p149 = scmp.lt.s32.totalorder %s17, 0
        %s150 = scalar_select %p149, %s17, 0
        %s151 = smul.addr %s150, 54
        %s152 = smul.addr %s148, 54
        %s153 = sadd.s32 %s151, %s152
        %s154 = smul.addr %s153, 4
        %s155 = scalar_lea.vmem %s0, %s154
      $region28: #{_lambda_.5} parent=23 // pred_fallthru
        _
    $region24: #{_lambda_.5} parent=5 // pred_fallthru
      _
    %p156 = scmp.le.s32.totalorder 1, %s9
    %p157 = scmp.lt.s32.totalorder %s9, 3
    %p158 = pnand %p156, %p157
    %p159 = pneg %p158
    // Predicated region
    $region29: #{_lambda_.5} parent=5 // pred_check
      _
    $region30: #{_lambda_.5} parent=5 // pred_check_branch
      %161 = sbr.rel (%p158) target = $region32
    $region31: #{_lambda_.5} parent=5 // pred_region
      %s162 = ssub.s32 %s9, 1
      %p163 = scmp.lt.s32.totalorder %s18, 1
      %s164 = scalar_select %p163, %s18, 1
      %p165 = scmp.lt.s32.totalorder %s19, 0
      %s166 = scalar_select %p165, %s19, 0
      %s167 = smul.addr %s166, 54
      %s168 = smul.addr %s164, 54
      %s169 = sadd.s32 %s167, %s168
      %s170 = smul.addr %s169, 4
      %s171 = scalar_lea.vmem %s0, %s170
      %p172 = pneg %p49
      %p173 = pneg %p46
      %p174 = pneg %p70
      %p175 = pneg %p67
      %p176 = pneg %p91
      %p177 = pneg %p88
      %p178 = pneg %p119
      %p179 = pneg %p116
      %s180 = smul.u32 16, %s19
      %p181 = scmp.lt.s32.totalorder %s18, 1
      %s182 = scalar_select %p181, %s18, 1
      %p183 = scmp.lt.s32.totalorder %s180, 15
      %s184 = scalar_select %p183, %s180, 15
      %s185 = smul.addr %s184, 2
      %s186 = smul.addr %s182, 32
      %s187 = sadd.s32 %s185, %s186
      %s188 = smul.addr %s187, 4
      %s189 = scalar_lea.vmem %s3, %s188
      %p190 = scmp.lt.s32.totalorder %s18, 1
      %s191 = scalar_select %p190, %s18, 1
      %p192 = scmp.lt.s32.totalorder %s19, 0
      %s193 = scalar_select %p192, %s19, 0
      %s194 = smul.addr %s193, 54
      %s195 = smul.addr %s191, 54
      %s196 = sadd.s32 %s194, %s195
      %s197 = smul.addr %s196, 4
      %s198 = scalar_lea.vmem %s0, %s197
      %s199 = smul.u32 16, %s19
      %p200 = scmp.lt.s32.totalorder %s18, 1
      %s201 = scalar_select %p200, %s18, 1
      %p202 = scmp.lt.s32.totalorder %s199, 15
      %s203 = scalar_select %p202, %s199, 15
      %s204 = smul.addr %s203, 2
      %s205 = smul.addr %s201, 32
      %s206 = sadd.s32 %s204, %s205
      %s207 = smul.addr %s206, 4
      %s208 = scalar_lea.vmem %s3, %s207
      %s209 = smul.u32 16, %s19
      %v211 = vld [vmem:[%s198] sm:$0xf]
      %v212 = vld [vmem:[%s198 + $0x4] sm:$0xf]
      %v213 = vld [vmem:[%s198 + $0xc] sm:$0xf]
      %v214 = vld [vmem:[%s198 + $0x10] sm:$0xf]
      %v215 = vld [vmem:[%s198 + $0x18] sm:$0xf]
      %v216 = vld [vmem:[%s198 + $0x1c] sm:$0xf]
      %v217 = vld [vmem:[%s198 + $0x24] sm:$0xf]
      %v218 = vld [vmem:[%s198 + $0x28] sm:$0xf]
      %v219 = vld [vmem:[%s198 + $0x30] sm:$0xf]
      %v220 = vld [vmem:[%s198 + $0x34] sm:$0xf]
      %v221 = vld [vmem:[%s198 + $0x3c] sm:$0xf]
      %v222 = vld [vmem:[%s198 + $0x40] sm:$0xf]
      %v223 = vld [vmem:[%s198 + $0x48] sm:$0xf]
      %v224 = vld [vmem:[%s198 + $0x4c] sm:$0xf]
      %v225 = vld [vmem:[%s198 + $0x54] sm:$0xf]
      %v226 = vld [vmem:[%s198 + $0x58] sm:$0xf]
      %v227 = vld [vmem:[%s198 + $0x60] sm:$0xf]
      %v228 = vld [vmem:[%s198 + $0x64] sm:$0xf]
      %v229 = vld [vmem:[%s198 + $0x6c] sm:$0xf]
      %v230 = vld [vmem:[%s198 + $0x70] sm:$0xf]
      %v231 = vld [vmem:[%s198 + $0x78] sm:$0xf]
      %v232 = vld [vmem:[%s198 + $0x7c] sm:$0xf]
      %v233 = vld [vmem:[%s198 + $0x84] sm:$0xf]
      %v234 = vld [vmem:[%s198 + $0x88] sm:$0xf]
      %v235 = vld [vmem:[%s198 + $0x90] sm:$0xf]
      %v236 = vld [vmem:[%s198 + $0x94] sm:$0xf]
      %v237 = vld [vmem:[%s198 + $0x9c] sm:$0xf]
      %v238 = vld [vmem:[%s198 + $0xa0] sm:$0xf]
      %v239 = vld [vmem:[%s198 + $0xa8] sm:$0xf]
      %v240 = vld [vmem:[%s198 + $0xac] sm:$0xf]
      %v241 = vld [vmem:[%s198 + $0xb4] sm:$0xf]
      %v242 = vld [vmem:[%s198 + $0xb8] sm:$0xf]
      %v243 = vld [vmem:[%s198 + $0x8] sm:$0x1]
      %v244 = vld [vmem:[%s198 + $0x14] sm:$0x1]
      %v245 = vld [vmem:[%s198 + $0x20] sm:$0x1]
      %v246 = vld [vmem:[%s198 + $0x2c] sm:$0x1]
      %v247 = vld [vmem:[%s198 + $0x38] sm:$0x1]
      %v248 = vld [vmem:[%s198 + $0x44] sm:$0x1]
      %v249 = vld [vmem:[%s198 + $0x50] sm:$0x1]
      %v250 = vld [vmem:[%s198 + $0x5c] sm:$0x1]
      %v251 = vld [vmem:[%s198 + $0x68] sm:$0x1]
      %v252 = vld [vmem:[%s198 + $0x74] sm:$0x1]
      %v253 = vld [vmem:[%s198 + $0x80] sm:$0x1]
      %v254 = vld [vmem:[%s198 + $0x8c] sm:$0x1]
      %v255 = vld [vmem:[%s198 + $0x98] sm:$0x1]
      %v256 = vld [vmem:[%s198 + $0xa4] sm:$0x1]
      %v257 = vld [vmem:[%s198 + $0xb0] sm:$0x1]
      %v258 = vld [vmem:[%s198 + $0xbc] sm:$0x1]
      %v259 = vld [vmem:[%s198] sm:$0xe]
      %v260 = vld [vmem:[%s198 + $0xc] sm:$0xe]
      %v261 = vld [vmem:[%s198 + $0x18] sm:$0xe]
      %v262 = vld [vmem:[%s198 + $0x24] sm:$0xe]
      %v263 = vld [vmem:[%s198 + $0x30] sm:$0xe]
      %v264 = vld [vmem:[%s198 + $0x3c] sm:$0xe]
      %v265 = vld [vmem:[%s198 + $0x48] sm:$0xe]
      %v266 = vld [vmem:[%s198 + $0x54] sm:$0xe]
      %v267 = vld [vmem:[%s198 + $0x60] sm:$0xe]
      %v268 = vld [vmem:[%s198 + $0x6c] sm:$0xe]
      %v269 = vld [vmem:[%s198 + $0x78] sm:$0xe]
      %v270 = vld [vmem:[%s198 + $0x84] sm:$0xe]
      %v271 = vld [vmem:[%s198 + $0x90] sm:$0xe]
      %v272 = vld [vmem:[%s198 + $0x9c] sm:$0xe]
      %v273 = vld [vmem:[%s198 + $0xa8] sm:$0xe]
      %v274 = vld [vmem:[%s198 + $0xb4] sm:$0xe]
      %s275 = scalar_lea.vmem %s198, 12
      %v276 = vld [vmem:[%s275] sm:$0xf]
      %v277 = vld [vmem:[%s275 + $0x4] sm:$0xf]
      %v278 = vld [vmem:[%s275 + $0xc] sm:$0xf]
      %v279 = vld [vmem:[%s275 + $0x10] sm:$0xf]
      %v280 = vld [vmem:[%s275 + $0x18] sm:$0xf]
      %v281 = vld [vmem:[%s275 + $0x1c] sm:$0xf]
      %v282 = vld [vmem:[%s275 + $0x24] sm:$0xf]
      %v283 = vld [vmem:[%s275 + $0x28] sm:$0xf]
      %v284 = vld [vmem:[%s275 + $0x30] sm:$0xf]
      %v285 = vld [vmem:[%s275 + $0x34] sm:$0xf]
      %v286 = vld [vmem:[%s275 + $0x3c] sm:$0xf]
      %v287 = vld [vmem:[%s275 + $0x40] sm:$0xf]
      %v288 = vld [vmem:[%s275 + $0x48] sm:$0xf]
      %v289 = vld [vmem:[%s275 + $0x4c] sm:$0xf]
      %v290 = vld [vmem:[%s275 + $0x54] sm:$0xf]
      %v291 = vld [vmem:[%s275 + $0x58] sm:$0xf]
      %v292 = vld [vmem:[%s275 + $0x60] sm:$0xf]
      %v293 = vld [vmem:[%s275 + $0x64] sm:$0xf]
      %v294 = vld [vmem:[%s275 + $0x6c] sm:$0xf]
      %v295 = vld [vmem:[%s275 + $0x70] sm:$0xf]
      %v296 = vld [vmem:[%s275 + $0x78] sm:$0xf]
      %v297 = vld [vmem:[%s275 + $0x7c] sm:$0xf]
      %v298 = vld [vmem:[%s275 + $0x84] sm:$0xf]
      %v299 = vld [vmem:[%s275 + $0x88] sm:$0xf]
      %v300 = vld [vmem:[%s275 + $0x90] sm:$0xf]
      %v301 = vld [vmem:[%s275 + $0x94] sm:$0xf]
      %v302 = vld [vmem:[%s275 + $0x9c] sm:$0xf]
      %v303 = vld [vmem:[%s275 + $0xa0] sm:$0xf]
      %v304 = vld [vmem:[%s275 + $0xa8] sm:$0xf]
      %v305 = vld [vmem:[%s275 + $0xac] sm:$0xf]
      %v306 = vld [vmem:[%s275 + $0xb4] sm:$0xf]
      %v307 = vld [vmem:[%s275 + $0xb8] sm:$0xf]
      %v308 = vld [vmem:[%s275 + $0x8] sm:$0x1]
      %v309 = vld [vmem:[%s275 + $0x14] sm:$0x1]
      %v310 = vld [vmem:[%s275 + $0x20] sm:$0x1]
      %v311 = vld [vmem:[%s275 + $0x2c] sm:$0x1]
      %v312 = vld [vmem:[%s275 + $0x38] sm:$0x1]
      %v313 = vld [vmem:[%s275 + $0x44] sm:$0x1]
      %v314 = vld [vmem:[%s275 + $0x50] sm:$0x1]
      %v315 = vld [vmem:[%s275 + $0x5c] sm:$0x1]
      %v316 = vld [vmem:[%s275 + $0x68] sm:$0x1]
      %v317 = vld [vmem:[%s275 + $0x74] sm:$0x1]
      %v318 = vld [vmem:[%s275 + $0x80] sm:$0x1]
      %v319 = vld [vmem:[%s275 + $0x8c] sm:$0x1]
      %v320 = vld [vmem:[%s275 + $0x98] sm:$0x1]
      %v321 = vld [vmem:[%s275 + $0xa4] sm:$0x1]
      %v322 = vld [vmem:[%s275 + $0xb0] sm:$0x1]
      %v323 = vld [vmem:[%s275 + $0xbc] sm:$0x1]
      %v324 = vld [vmem:[%s275] sm:$0xe]
      %v325 = vld [vmem:[%s275 + $0xc] sm:$0xe]
      %v326 = vld [vmem:[%s275 + $0x18] sm:$0xe]
      %v327 = vld [vmem:[%s275 + $0x24] sm:$0xe]
      %v328 = vld [vmem:[%s275 + $0x30] sm:$0xe]
      %v329 = vld [vmem:[%s275 + $0x3c] sm:$0xe]
      %v330 = vld [vmem:[%s275 + $0x48] sm:$0xe]
      %v331 = vld [vmem:[%s275 + $0x54] sm:$0xe]
      %v332 = vld [vmem:[%s275 + $0x60] sm:$0xe]
      %v333 = vld [vmem:[%s275 + $0x6c] sm:$0xe]
      %v334 = vld [vmem:[%s275 + $0x78] sm:$0xe]
      %v335 = vld [vmem:[%s275 + $0x84] sm:$0xe]
      %v336 = vld [vmem:[%s275 + $0x90] sm:$0xe]
      %v337 = vld [vmem:[%s275 + $0x9c] sm:$0xe]
      %v338 = vld [vmem:[%s275 + $0xa8] sm:$0xe]
      %v339 = vld [vmem:[%s275 + $0xb4] sm:$0xe]
      %s340 = scalar_lea.vmem %s198, 24
      %v341 = vld [vmem:[%s340] sm:$0xf]
      %v342 = vld [vmem:[%s340 + $0x4] sm:$0xf]
      %v343 = vld [vmem:[%s340 + $0xc] sm:$0xf]
      %v344 = vld [vmem:[%s340 + $0x10] sm:$0xf]
      %v345 = vld [vmem:[%s340 + $0x18] sm:$0xf]
      %v346 = vld [vmem:[%s340 + $0x1c] sm:$0xf]
      %v347 = vld [vmem:[%s340 + $0x24] sm:$0xf]
      %v348 = vld [vmem:[%s340 + $0x28] sm:$0xf]
      %v349 = vld [vmem:[%s340 + $0x30] sm:$0xf]
      %v350 = vld [vmem:[%s340 + $0x34] sm:$0xf]
      %v351 = vld [vmem:[%s340 + $0x3c] sm:$0xf]
      %v352 = vld [vmem:[%s340 + $0x40] sm:$0xf]
      %v353 = vld [vmem:[%s340 + $0x48] sm:$0xf]
      %v354 = vld [vmem:[%s340 + $0x4c] sm:$0xf]
      %v355 = vld [vmem:[%s340 + $0x54] sm:$0xf]
      %v356 = vld [vmem:[%s340 + $0x58] sm:$0xf]
      %v357 = vld [vmem:[%s340 + $0x60] sm:$0xf]
      %v358 = vld [vmem:[%s340 + $0x64] sm:$0xf]
      %v359 = vld [vmem:[%s340 + $0x6c] sm:$0xf]
      %v360 = vld [vmem:[%s340 + $0x70] sm:$0xf]
      %v361 = vld [vmem:[%s340 + $0x78] sm:$0xf]
      %v362 = vld [vmem:[%s340 + $0x7c] sm:$0xf]
      %v363 = vld [vmem:[%s340 + $0x84] sm:$0xf]
      %v364 = vld [vmem:[%s340 + $0x88] sm:$0xf]
      %v365 = vld [vmem:[%s340 + $0x90] sm:$0xf]
      %v366 = vld [vmem:[%s340 + $0x94] sm:$0xf]
      %v367 = vld [vmem:[%s340 + $0x9c] sm:$0xf]
      %v368 = vld [vmem:[%s340 + $0xa0] sm:$0xf]
      %v369 = vld [vmem:[%s340 + $0xa8] sm:$0xf]
      %v370 = vld [vmem:[%s340 + $0xac] sm:$0xf]
      %v371 = vld [vmem:[%s340 + $0xb4] sm:$0xf]
      %v372 = vld [vmem:[%s340 + $0xb8] sm:$0xf]
      %v373 = vld [vmem:[%s340 + $0x8] sm:$0x1]
      %v374 = vld [vmem:[%s340 + $0x14] sm:$0x1]
      %v375 = vld [vmem:[%s340 + $0x20] sm:$0x1]
      %v376 = vld [vmem:[%s340 + $0x2c] sm:$0x1]
      %v377 = vld [vmem:[%s340 + $0x38] sm:$0x1]
      %v378 = vld [vmem:[%s340 + $0x44] sm:$0x1]
      %v379 = vld [vmem:[%s340 + $0x50] sm:$0x1]
      %v380 = vld [vmem:[%s340 + $0x5c] sm:$0x1]
      %v381 = vld [vmem:[%s340 + $0x68] sm:$0x1]
      %v382 = vld [vmem:[%s340 + $0x74] sm:$0x1]
      %v383 = vld [vmem:[%s340 + $0x80] sm:$0x1]
      %v384 = vld [vmem:[%s340 + $0x8c] sm:$0x1]
      %v385 = vld [vmem:[%s340 + $0x98] sm:$0x1]
      %v386 = vld [vmem:[%s340 + $0xa4] sm:$0x1]
      %v387 = vld [vmem:[%s340 + $0xb0] sm:$0x1]
      %v388 = vld [vmem:[%s340 + $0xbc] sm:$0x1]
      %v389 = vld [vmem:[%s340] sm:$0xe]
      %v390 = vld [vmem:[%s340 + $0xc] sm:$0xe]
      %v391 = vld [vmem:[%s340 + $0x18] sm:$0xe]
      %v392 = vld [vmem:[%s340 + $0x24] sm:$0xe]
      %v393 = vld [vmem:[%s340 + $0x30] sm:$0xe]
      %v394 = vld [vmem:[%s340 + $0x3c] sm:$0xe]
      %v395 = vld [vmem:[%s340 + $0x48] sm:$0xe]
      %v396 = vld [vmem:[%s340 + $0x54] sm:$0xe]
      %v397 = vld [vmem:[%s340 + $0x60] sm:$0xe]
      %v398 = vld [vmem:[%s340 + $0x6c] sm:$0xe]
      %v399 = vld [vmem:[%s340 + $0x78] sm:$0xe]
      %v400 = vld [vmem:[%s340 + $0x84] sm:$0xe]
      %v401 = vld [vmem:[%s340 + $0x90] sm:$0xe]
      %v402 = vld [vmem:[%s340 + $0x9c] sm:$0xe]
      %v403 = vld [vmem:[%s340 + $0xa8] sm:$0xe]
      %v404 = vld [vmem:[%s340 + $0xb4] sm:$0xe]
      %v437 = vunpack.c.l.b16 %v211
      %v438 = vunpack.c.l.b16 %v212
      %v439 = vunpack.c.l.b16 %v213
      %v440 = vunpack.c.l.b16 %v214
      %v441 = vunpack.c.l.b16 %v215
      %v442 = vunpack.c.l.b16 %v216
      %v443 = vunpack.c.l.b16 %v217
      %v444 = vunpack.c.l.b16 %v218
      %v445 = vunpack.c.l.b16 %v219
      %v446 = vunpack.c.l.b16 %v220
      %v447 = vunpack.c.l.b16 %v221
      %v448 = vunpack.c.l.b16 %v222
      %v449 = vunpack.c.l.b16 %v223
      %v450 = vunpack.c.l.b16 %v224
      %v451 = vunpack.c.l.b16 %v225
      %v452 = vunpack.c.l.b16 %v226
      %v453 = vunpack.c.l.b16 %v227
      %v454 = vunpack.c.l.b16 %v228
      %v455 = vunpack.c.l.b16 %v229
      %v456 = vunpack.c.l.b16 %v230
      %v457 = vunpack.c.l.b16 %v231
      %v458 = vunpack.c.l.b16 %v232
      %v459 = vunpack.c.l.b16 %v233
      %v460 = vunpack.c.l.b16 %v234
      %v461 = vunpack.c.l.b16 %v235
      %v462 = vunpack.c.l.b16 %v236
      %v463 = vunpack.c.l.b16 %v237
      %v464 = vunpack.c.l.b16 %v238
      %v465 = vunpack.c.l.b16 %v239
      %v466 = vunpack.c.l.b16 %v240
      %v467 = vunpack.c.l.b16 %v241
      %v468 = vunpack.c.l.b16 %v242
      %v469 = vpack.c.b16 %v438, %v437
      %v470 = vpack.c.b16 %v440, %v439
      %v471 = vpack.c.b16 %v442, %v441
      %v472 = vpack.c.b16 %v444, %v443
      %v473 = vpack.c.b16 %v446, %v445
      %v474 = vpack.c.b16 %v448, %v447
      %v475 = vpack.c.b16 %v450, %v449
      %v476 = vpack.c.b16 %v452, %v451
      %v477 = vpack.c.b16 %v454, %v453
      %v478 = vpack.c.b16 %v456, %v455
      %v479 = vpack.c.b16 %v458, %v457
      %v480 = vpack.c.b16 %v460, %v459
      %v481 = vpack.c.b16 %v462, %v461
      %v482 = vpack.c.b16 %v464, %v463
      %v483 = vpack.c.b16 %v466, %v465
      %v484 = vpack.c.b16 %v468, %v467
      %v517 = vunpack.c.l.b16 %v243
      %v518 = vunpack.c.l.b16 %v244
      %v519 = vunpack.c.l.b16 %v245
      %v520 = vunpack.c.l.b16 %v246
      %v521 = vunpack.c.l.b16 %v247
      %v522 = vunpack.c.l.b16 %v248
      %v523 = vunpack.c.l.b16 %v249
      %v524 = vunpack.c.l.b16 %v250
      %v525 = vunpack.c.l.b16 %v251
      %v526 = vunpack.c.l.b16 %v252
      %v527 = vunpack.c.l.b16 %v253
      %v528 = vunpack.c.l.b16 %v254
      %v529 = vunpack.c.l.b16 %v255
      %v530 = vunpack.c.l.b16 %v256
      %v531 = vunpack.c.l.b16 %v257
      %v532 = vunpack.c.l.b16 %v258
      %v533 = vpack.c.b16 %v517, %v517
      %v534 = vpack.c.b16 %v518, %v518
      %v535 = vpack.c.b16 %v519, %v519
      %v536 = vpack.c.b16 %v520, %v520
      %v537 = vpack.c.b16 %v521, %v521
      %v538 = vpack.c.b16 %v522, %v522
      %v539 = vpack.c.b16 %v523, %v523
      %v540 = vpack.c.b16 %v524, %v524
      %v541 = vpack.c.b16 %v525, %v525
      %v542 = vpack.c.b16 %v526, %v526
      %v543 = vpack.c.b16 %v527, %v527
      %v544 = vpack.c.b16 %v528, %v528
      %v545 = vpack.c.b16 %v529, %v529
      %v546 = vpack.c.b16 %v530, %v530
      %v547 = vpack.c.b16 %v531, %v531
      %v548 = vpack.c.b16 %v532, %v532
      %vm549 = vsmask.f32 7424
      %v551 = vshrl.u32 %v469, 16
      %v553 = vshll.u32 %v469, 16
      %v555 = vrot.slane %v553, 1
      %v556 = vor.u32 %v551, %v555
      %v558 = vshll.u32 %v533, 16
      %v560 = vrot.slane %v558, 1
      %v561 = vsel %vm549, %v556, %v560
      %v563 = vshrl.u32 %v470, 16
      %v565 = vshll.u32 %v470, 16
      %v567 = vrot.slane %v565, 1
      %v568 = vor.u32 %v563, %v567
      %v570 = vshll.u32 %v534, 16
      %v572 = vrot.slane %v570, 1
      %v573 = vsel %vm549, %v568, %v572
      %v575 = vshrl.u32 %v471, 16
      %v577 = vshll.u32 %v471, 16
      %v579 = vrot.slane %v577, 1
      %v580 = vor.u32 %v575, %v579
      %v582 = vshll.u32 %v535, 16
      %v584 = vrot.slane %v582, 1
      %v585 = vsel %vm549, %v580, %v584
      %v587 = vshrl.u32 %v472, 16
      %v589 = vshll.u32 %v472, 16
      %v591 = vrot.slane %v589, 1
      %v592 = vor.u32 %v587, %v591
      %v594 = vshll.u32 %v536, 16
      %v596 = vrot.slane %v594, 1
      %v597 = vsel %vm549, %v592, %v596
      %v599 = vshrl.u32 %v473, 16
      %v601 = vshll.u32 %v473, 16
      %v603 = vrot.slane %v601, 1
      %v604 = vor.u32 %v599, %v603
      %v606 = vshll.u32 %v537, 16
      %v608 = vrot.slane %v606, 1
      %v609 = vsel %vm549, %v604, %v608
      %v611 = vshrl.u32 %v474, 16
      %v613 = vshll.u32 %v474, 16
      %v615 = vrot.slane %v613, 1
      %v616 = vor.u32 %v611, %v615
      %v618 = vshll.u32 %v538, 16
      %v620 = vrot.slane %v618, 1
      %v621 = vsel %vm549, %v616, %v620
      %v623 = vshrl.u32 %v475, 16
      %v625 = vshll.u32 %v475, 16
      %v627 = vrot.slane %v625, 1
      %v628 = vor.u32 %v623, %v627
      %v630 = vshll.u32 %v539, 16
      %v632 = vrot.slane %v630, 1
      %v633 = vsel %vm549, %v628, %v632
      %v635 = vshrl.u32 %v476, 16
      %v637 = vshll.u32 %v476, 16
      %v639 = vrot.slane %v637, 1
      %v640 = vor.u32 %v635, %v639
      %v642 = vshll.u32 %v540, 16
      %v644 = vrot.slane %v642, 1
      %v645 = vsel %vm549, %v640, %v644
      %v647 = vshrl.u32 %v477, 16
      %v649 = vshll.u32 %v477, 16
      %v651 = vrot.slane %v649, 1
      %v652 = vor.u32 %v647, %v651
      %v654 = vshll.u32 %v541, 16
      %v656 = vrot.slane %v654, 1
      %v657 = vsel %vm549, %v652, %v656
      %v659 = vshrl.u32 %v478, 16
      %v661 = vshll.u32 %v478, 16
      %v663 = vrot.slane %v661, 1
      %v664 = vor.u32 %v659, %v663
      %v666 = vshll.u32 %v542, 16
      %v668 = vrot.slane %v666, 1
      %v669 = vsel %vm549, %v664, %v668
      %v671 = vshrl.u32 %v479, 16
      %v673 = vshll.u32 %v479, 16
      %v675 = vrot.slane %v673, 1
      %v676 = vor.u32 %v671, %v675
      %v678 = vshll.u32 %v543, 16
      %v680 = vrot.slane %v678, 1
      %v681 = vsel %vm549, %v676, %v680
      %v683 = vshrl.u32 %v480, 16
      %v685 = vshll.u32 %v480, 16
      %v687 = vrot.slane %v685, 1
      %v688 = vor.u32 %v683, %v687
      %v690 = vshll.u32 %v544, 16
      %v692 = vrot.slane %v690, 1
      %v693 = vsel %vm549, %v688, %v692
      %v695 = vshrl.u32 %v481, 16
      %v697 = vshll.u32 %v481, 16
      %v699 = vrot.slane %v697, 1
      %v700 = vor.u32 %v695, %v699
      %v702 = vshll.u32 %v545, 16
      %v704 = vrot.slane %v702, 1
      %v705 = vsel %vm549, %v700, %v704
      %v707 = vshrl.u32 %v482, 16
      %v709 = vshll.u32 %v482, 16
      %v711 = vrot.slane %v709, 1
      %v712 = vor.u32 %v707, %v711
      %v714 = vshll.u32 %v546, 16
      %v716 = vrot.slane %v714, 1
      %v717 = vsel %vm549, %v712, %v716
      %v719 = vshrl.u32 %v483, 16
      %v721 = vshll.u32 %v483, 16
      %v723 = vrot.slane %v721, 1
      %v724 = vor.u32 %v719, %v723
      %v726 = vshll.u32 %v547, 16
      %v728 = vrot.slane %v726, 1
      %v729 = vsel %vm549, %v724, %v728
      %v731 = vshrl.u32 %v484, 16
      %v733 = vshll.u32 %v484, 16
      %v735 = vrot.slane %v733, 1
      %v736 = vor.u32 %v731, %v735
      %v738 = vshll.u32 %v548, 16
      %v740 = vrot.slane %v738, 1
      %v741 = vsel %vm549, %v736, %v740
      %v774 = vunpack.c.l.b16 %v259
      %v775 = vunpack.c.l.b16 %v260
      %v776 = vunpack.c.l.b16 %v261
      %v777 = vunpack.c.l.b16 %v262
      %v778 = vunpack.c.l.b16 %v263
      %v779 = vunpack.c.l.b16 %v264
      %v780 = vunpack.c.l.b16 %v265
      %v781 = vunpack.c.l.b16 %v266
      %v782 = vunpack.c.l.b16 %v267
      %v783 = vunpack.c.l.b16 %v268
      %v784 = vunpack.c.l.b16 %v269
      %v785 = vunpack.c.l.b16 %v270
      %v786 = vunpack.c.l.b16 %v271
      %v787 = vunpack.c.l.b16 %v272
      %v788 = vunpack.c.l.b16 %v273
      %v789 = vunpack.c.l.b16 %v274
      %v790 = vpack.c.b16 %v438, %v774
      %v791 = vpack.c.b16 %v440, %v775
      %v792 = vpack.c.b16 %v442, %v776
      %v793 = vpack.c.b16 %v444, %v777
      %v794 = vpack.c.b16 %v446, %v778
      %v795 = vpack.c.b16 %v448, %v779
      %v796 = vpack.c.b16 %v450, %v780
      %v797 = vpack.c.b16 %v452, %v781
      %v798 = vpack.c.b16 %v454, %v782
      %v799 = vpack.c.b16 %v456, %v783
      %v800 = vpack.c.b16 %v458, %v784
      %v801 = vpack.c.b16 %v460, %v785
      %v802 = vpack.c.b16 %v462, %v786
      %v803 = vpack.c.b16 %v464, %v787
      %v804 = vpack.c.b16 %v466, %v788
      %v805 = vpack.c.b16 %v468, %v789
      %vm806 = vcmask 1046528
      %v807 = vrot.slane %v790, 1
      %v808 = vrot.slane %v533, 1
      %v809 = vsel %vm806, %v807, %v808
      %v810 = vrot.slane %v791, 1
      %v811 = vrot.slane %v534, 1
      %v812 = vsel %vm806, %v810, %v811
      %v813 = vrot.slane %v792, 1
      %v814 = vrot.slane %v535, 1
      %v815 = vsel %vm806, %v813, %v814
      %v816 = vrot.slane %v793, 1
      %v817 = vrot.slane %v536, 1
      %v818 = vsel %vm806, %v816, %v817
      %v819 = vrot.slane %v794, 1
      %v820 = vrot.slane %v537, 1
      %v821 = vsel %vm806, %v819, %v820
      %v822 = vrot.slane %v795, 1
      %v823 = vrot.slane %v538, 1
      %v824 = vsel %vm806, %v822, %v823
      %v825 = vrot.slane %v796, 1
      %v826 = vrot.slane %v539, 1
      %v827 = vsel %vm806, %v825, %v826
      %v828 = vrot.slane %v797, 1
      %v829 = vrot.slane %v540, 1
      %v830 = vsel %vm806, %v828, %v829
      %v831 = vrot.slane %v798, 1
      %v832 = vrot.slane %v541, 1
      %v833 = vsel %vm806, %v831, %v832
      %v834 = vrot.slane %v799, 1
      %v835 = vrot.slane %v542, 1
      %v836 = vsel %vm806, %v834, %v835
      %v837 = vrot.slane %v800, 1
      %v838 = vrot.slane %v543, 1
      %v839 = vsel %vm806, %v837, %v838
      %v840 = vrot.slane %v801, 1
      %v841 = vrot.slane %v544, 1
      %v842 = vsel %vm806, %v840, %v841
      %v843 = vrot.slane %v802, 1
      %v844 = vrot.slane %v545, 1
      %v845 = vsel %vm806, %v843, %v844
      %v846 = vrot.slane %v803, 1
      %v847 = vrot.slane %v546, 1
      %v848 = vsel %vm806, %v846, %v847
      %v849 = vrot.slane %v804, 1
      %v850 = vrot.slane %v547, 1
      %v851 = vsel %vm806, %v849, %v850
      %v852 = vrot.slane %v805, 1
      %v853 = vrot.slane %v548, 1
      %v854 = vsel %vm806, %v852, %v853
      %v903 = vunpack.c.l.b16 %v276
      %v904 = vunpack.c.l.b16 %v277
      %v905 = vunpack.c.l.b16 %v278
      %v906 = vunpack.c.l.b16 %v279
      %v907 = vunpack.c.l.b16 %v280
      %v908 = vunpack.c.l.b16 %v281
      %v909 = vunpack.c.l.b16 %v282
      %v910 = vunpack.c.l.b16 %v283
      %v911 = vunpack.c.l.b16 %v284
      %v912 = vunpack.c.l.b16 %v285
      %v913 = vunpack.c.l.b16 %v286
      %v914 = vunpack.c.l.b16 %v287
      %v915 = vunpack.c.l.b16 %v288
      %v916 = vunpack.c.l.b16 %v289
      %v917 = vunpack.c.l.b16 %v290
      %v918 = vunpack.c.l.b16 %v291
      %v919 = vunpack.c.l.b16 %v292
      %v920 = vunpack.c.l.b16 %v293
      %v921 = vunpack.c.l.b16 %v294
      %v922 = vunpack.c.l.b16 %v295
      %v923 = vunpack.c.l.b16 %v296
      %v924 = vunpack.c.l.b16 %v297
      %v925 = vunpack.c.l.b16 %v298
      %v926 = vunpack.c.l.b16 %v299
      %v927 = vunpack.c.l.b16 %v300
      %v928 = vunpack.c.l.b16 %v301
      %v929 = vunpack.c.l.b16 %v302
      %v930 = vunpack.c.l.b16 %v303
      %v931 = vunpack.c.l.b16 %v304
      %v932 = vunpack.c.l.b16 %v305
      %v933 = vunpack.c.l.b16 %v306
      %v934 = vunpack.c.l.b16 %v307
      %v935 = vpack.c.b16 %v904, %v903
      %v936 = vpack.c.b16 %v906, %v905
      %v937 = vpack.c.b16 %v908, %v907
      %v938 = vpack.c.b16 %v910, %v909
      %v939 = vpack.c.b16 %v912, %v911
      %v940 = vpack.c.b16 %v914, %v913
      %v941 = vpack.c.b16 %v916, %v915
      %v942 = vpack.c.b16 %v918, %v917
      %v943 = vpack.c.b16 %v920, %v919
      %v944 = vpack.c.b16 %v922, %v921
      %v945 = vpack.c.b16 %v924, %v923
      %v946 = vpack.c.b16 %v926, %v925
      %v947 = vpack.c.b16 %v928, %v927
      %v948 = vpack.c.b16 %v930, %v929
      %v949 = vpack.c.b16 %v932, %v931
      %v950 = vpack.c.b16 %v934, %v933
      %v983 = vunpack.c.l.b16 %v308
      %v984 = vunpack.c.l.b16 %v309
      %v985 = vunpack.c.l.b16 %v310
      %v986 = vunpack.c.l.b16 %v311
      %v987 = vunpack.c.l.b16 %v312
      %v988 = vunpack.c.l.b16 %v313
      %v989 = vunpack.c.l.b16 %v314
      %v990 = vunpack.c.l.b16 %v315
      %v991 = vunpack.c.l.b16 %v316
      %v992 = vunpack.c.l.b16 %v317
      %v993 = vunpack.c.l.b16 %v318
      %v994 = vunpack.c.l.b16 %v319
      %v995 = vunpack.c.l.b16 %v320
      %v996 = vunpack.c.l.b16 %v321
      %v997 = vunpack.c.l.b16 %v322
      %v998 = vunpack.c.l.b16 %v323
      %v999 = vpack.c.b16 %v983, %v983
      %v1000 = vpack.c.b16 %v984, %v984
      %v1001 = vpack.c.b16 %v985, %v985
      %v1002 = vpack.c.b16 %v986, %v986
      %v1003 = vpack.c.b16 %v987, %v987
      %v1004 = vpack.c.b16 %v988, %v988
      %v1005 = vpack.c.b16 %v989, %v989
      %v1006 = vpack.c.b16 %v990, %v990
      %v1007 = vpack.c.b16 %v991, %v991
      %v1008 = vpack.c.b16 %v992, %v992
      %v1009 = vpack.c.b16 %v993, %v993
      %v1010 = vpack.c.b16 %v994, %v994
      %v1011 = vpack.c.b16 %v995, %v995
      %v1012 = vpack.c.b16 %v996, %v996
      %v1013 = vpack.c.b16 %v997, %v997
      %v1014 = vpack.c.b16 %v998, %v998
      %v1016 = vshrl.u32 %v935, 16
      %v1018 = vshll.u32 %v935, 16
      %v1020 = vrot.slane %v1018, 1
      %v1021 = vor.u32 %v1016, %v1020
      %v1023 = vshll.u32 %v999, 16
      %v1025 = vrot.slane %v1023, 1
      %v1026 = vsel %vm549, %v1021, %v1025
      %v1028 = vshrl.u32 %v936, 16
      %v1030 = vshll.u32 %v936, 16
      %v1032 = vrot.slane %v1030, 1
      %v1033 = vor.u32 %v1028, %v1032
      %v1035 = vshll.u32 %v1000, 16
      %v1037 = vrot.slane %v1035, 1
      %v1038 = vsel %vm549, %v1033, %v1037
      %v1040 = vshrl.u32 %v937, 16
      %v1042 = vshll.u32 %v937, 16
      %v1044 = vrot.slane %v1042, 1
      %v1045 = vor.u32 %v1040, %v1044
      %v1047 = vshll.u32 %v1001, 16
      %v1049 = vrot.slane %v1047, 1
      %v1050 = vsel %vm549, %v1045, %v1049
      %v1052 = vshrl.u32 %v938, 16
      %v1054 = vshll.u32 %v938, 16
      %v1056 = vrot.slane %v1054, 1
      %v1057 = vor.u32 %v1052, %v1056
      %v1059 = vshll.u32 %v1002, 16
      %v1061 = vrot.slane %v1059, 1
      %v1062 = vsel %vm549, %v1057, %v1061
      %v1064 = vshrl.u32 %v939, 16
      %v1066 = vshll.u32 %v939, 16
      %v1068 = vrot.slane %v1066, 1
      %v1069 = vor.u32 %v1064, %v1068
      %v1071 = vshll.u32 %v1003, 16
      %v1073 = vrot.slane %v1071, 1
      %v1074 = vsel %vm549, %v1069, %v1073
      %v1076 = vshrl.u32 %v940, 16
      %v1078 = vshll.u32 %v940, 16
      %v1080 = vrot.slane %v1078, 1
      %v1081 = vor.u32 %v1076, %v1080
      %v1083 = vshll.u32 %v1004, 16
      %v1085 = vrot.slane %v1083, 1
      %v1086 = vsel %vm549, %v1081, %v1085
      %v1088 = vshrl.u32 %v941, 16
      %v1090 = vshll.u32 %v941, 16
      %v1092 = vrot.slane %v1090, 1
      %v1093 = vor.u32 %v1088, %v1092
      %v1095 = vshll.u32 %v1005, 16
      %v1097 = vrot.slane %v1095, 1
      %v1098 = vsel %vm549, %v1093, %v1097
      %v1100 = vshrl.u32 %v942, 16
      %v1102 = vshll.u32 %v942, 16
      %v1104 = vrot.slane %v1102, 1
      %v1105 = vor.u32 %v1100, %v1104
      %v1107 = vshll.u32 %v1006, 16
      %v1109 = vrot.slane %v1107, 1
      %v1110 = vsel %vm549, %v1105, %v1109
      %v1112 = vshrl.u32 %v943, 16
      %v1114 = vshll.u32 %v943, 16
      %v1116 = vrot.slane %v1114, 1
      %v1117 = vor.u32 %v1112, %v1116
      %v1119 = vshll.u32 %v1007, 16
      %v1121 = vrot.slane %v1119, 1
      %v1122 = vsel %vm549, %v1117, %v1121
      %v1124 = vshrl.u32 %v944, 16
      %v1126 = vshll.u32 %v944, 16
      %v1128 = vrot.slane %v1126, 1
      %v1129 = vor.u32 %v1124, %v1128
      %v1131 = vshll.u32 %v1008, 16
      %v1133 = vrot.slane %v1131, 1
      %v1134 = vsel %vm549, %v1129, %v1133
      %v1136 = vshrl.u32 %v945, 16
      %v1138 = vshll.u32 %v945, 16
      %v1140 = vrot.slane %v1138, 1
      %v1141 = vor.u32 %v1136, %v1140
      %v1143 = vshll.u32 %v1009, 16
      %v1145 = vrot.slane %v1143, 1
      %v1146 = vsel %vm549, %v1141, %v1145
      %v1148 = vshrl.u32 %v946, 16
      %v1150 = vshll.u32 %v946, 16
      %v1152 = vrot.slane %v1150, 1
      %v1153 = vor.u32 %v1148, %v1152
      %v1155 = vshll.u32 %v1010, 16
      %v1157 = vrot.slane %v1155, 1
      %v1158 = vsel %vm549, %v1153, %v1157
      %v1160 = vshrl.u32 %v947, 16
      %v1162 = vshll.u32 %v947, 16
      %v1164 = vrot.slane %v1162, 1
      %v1165 = vor.u32 %v1160, %v1164
      %v1167 = vshll.u32 %v1011, 16
      %v1169 = vrot.slane %v1167, 1
      %v1170 = vsel %vm549, %v1165, %v1169
      %v1172 = vshrl.u32 %v948, 16
      %v1174 = vshll.u32 %v948, 16
      %v1176 = vrot.slane %v1174, 1
      %v1177 = vor.u32 %v1172, %v1176
      %v1179 = vshll.u32 %v1012, 16
      %v1181 = vrot.slane %v1179, 1
      %v1182 = vsel %vm549, %v1177, %v1181
      %v1184 = vshrl.u32 %v949, 16
      %v1186 = vshll.u32 %v949, 16
      %v1188 = vrot.slane %v1186, 1
      %v1189 = vor.u32 %v1184, %v1188
      %v1191 = vshll.u32 %v1013, 16
      %v1193 = vrot.slane %v1191, 1
      %v1194 = vsel %vm549, %v1189, %v1193
      %v1196 = vshrl.u32 %v950, 16
      %v1198 = vshll.u32 %v950, 16
      %v1200 = vrot.slane %v1198, 1
      %v1201 = vor.u32 %v1196, %v1200
      %v1203 = vshll.u32 %v1014, 16
      %v1205 = vrot.slane %v1203, 1
      %v1206 = vsel %vm549, %v1201, %v1205
      %v1239 = vunpack.c.l.b16 %v324
      %v1240 = vunpack.c.l.b16 %v325
      %v1241 = vunpack.c.l.b16 %v326
      %v1242 = vunpack.c.l.b16 %v327
      %v1243 = vunpack.c.l.b16 %v328
      %v1244 = vunpack.c.l.b16 %v329
      %v1245 = vunpack.c.l.b16 %v330
      %v1246 = vunpack.c.l.b16 %v331
      %v1247 = vunpack.c.l.b16 %v332
      %v1248 = vunpack.c.l.b16 %v333
      %v1249 = vunpack.c.l.b16 %v334
      %v1250 = vunpack.c.l.b16 %v335
      %v1251 = vunpack.c.l.b16 %v336
      %v1252 = vunpack.c.l.b16 %v337
      %v1253 = vunpack.c.l.b16 %v338
      %v1254 = vunpack.c.l.b16 %v339
      %v1255 = vpack.c.b16 %v904, %v1239
      %v1256 = vpack.c.b16 %v906, %v1240
      %v1257 = vpack.c.b16 %v908, %v1241
      %v1258 = vpack.c.b16 %v910, %v1242
      %v1259 = vpack.c.b16 %v912, %v1243
      %v1260 = vpack.c.b16 %v914, %v1244
      %v1261 = vpack.c.b16 %v916, %v1245
      %v1262 = vpack.c.b16 %v918, %v1246
      %v1263 = vpack.c.b16 %v920, %v1247
      %v1264 = vpack.c.b16 %v922, %v1248
      %v1265 = vpack.c.b16 %v924, %v1249
      %v1266 = vpack.c.b16 %v926, %v1250
      %v1267 = vpack.c.b16 %v928, %v1251
      %v1268 = vpack.c.b16 %v930, %v1252
      %v1269 = vpack.c.b16 %v932, %v1253
      %v1270 = vpack.c.b16 %v934, %v1254
      %v1271 = vrot.slane %v1255, 1
      %v1272 = vrot.slane %v999, 1
      %v1273 = vsel %vm806, %v1271, %v1272
      %v1274 = vrot.slane %v1256, 1
      %v1275 = vrot.slane %v1000, 1
      %v1276 = vsel %vm806, %v1274, %v1275
      %v1277 = vrot.slane %v1257, 1
      %v1278 = vrot.slane %v1001, 1
      %v1279 = vsel %vm806, %v1277, %v1278
      %v1280 = vrot.slane %v1258, 1
      %v1281 = vrot.slane %v1002, 1
      %v1282 = vsel %vm806, %v1280, %v1281
      %v1283 = vrot.slane %v1259, 1
      %v1284 = vrot.slane %v1003, 1
      %v1285 = vsel %vm806, %v1283, %v1284
      %v1286 = vrot.slane %v1260, 1
      %v1287 = vrot.slane %v1004, 1
      %v1288 = vsel %vm806, %v1286, %v1287
      %v1289 = vrot.slane %v1261, 1
      %v1290 = vrot.slane %v1005, 1
      %v1291 = vsel %vm806, %v1289, %v1290
      %v1292 = vrot.slane %v1262, 1
      %v1293 = vrot.slane %v1006, 1
      %v1294 = vsel %vm806, %v1292, %v1293
      %v1295 = vrot.slane %v1263, 1
      %v1296 = vrot.slane %v1007, 1
      %v1297 = vsel %vm806, %v1295, %v1296
      %v1298 = vrot.slane %v1264, 1
      %v1299 = vrot.slane %v1008, 1
      %v1300 = vsel %vm806, %v1298, %v1299
      %v1301 = vrot.slane %v1265, 1
      %v1302 = vrot.slane %v1009, 1
      %v1303 = vsel %vm806, %v1301, %v1302
      %v1304 = vrot.slane %v1266, 1
      %v1305 = vrot.slane %v1010, 1
      %v1306 = vsel %vm806, %v1304, %v1305
      %v1307 = vrot.slane %v1267, 1
      %v1308 = vrot.slane %v1011, 1
      %v1309 = vsel %vm806, %v1307, %v1308
      %v1310 = vrot.slane %v1268, 1
      %v1311 = vrot.slane %v1012, 1
      %v1312 = vsel %vm806, %v1310, %v1311
      %v1313 = vrot.slane %v1269, 1
      %v1314 = vrot.slane %v1013, 1
      %v1315 = vsel %vm806, %v1313, %v1314
      %v1316 = vrot.slane %v1270, 1
      %v1317 = vrot.slane %v1014, 1
      %v1318 = vsel %vm806, %v1316, %v1317
      %v1367 = vunpack.c.l.b16 %v341
      %v1368 = vunpack.c.l.b16 %v342
      %v1369 = vunpack.c.l.b16 %v343
      %v1370 = vunpack.c.l.b16 %v344
      %v1371 = vunpack.c.l.b16 %v345
      %v1372 = vunpack.c.l.b16 %v346
      %v1373 = vunpack.c.l.b16 %v347
      %v1374 = vunpack.c.l.b16 %v348
      %v1375 = vunpack.c.l.b16 %v349
      %v1376 = vunpack.c.l.b16 %v350
      %v1377 = vunpack.c.l.b16 %v351
      %v1378 = vunpack.c.l.b16 %v352
      %v1379 = vunpack.c.l.b16 %v353
      %v1380 = vunpack.c.l.b16 %v354
      %v1381 = vunpack.c.l.b16 %v355
      %v1382 = vunpack.c.l.b16 %v356
      %v1383 = vunpack.c.l.b16 %v357
      %v1384 = vunpack.c.l.b16 %v358
      %v1385 = vunpack.c.l.b16 %v359
      %v1386 = vunpack.c.l.b16 %v360
      %v1387 = vunpack.c.l.b16 %v361
      %v1388 = vunpack.c.l.b16 %v362
      %v1389 = vunpack.c.l.b16 %v363
      %v1390 = vunpack.c.l.b16 %v364
      %v1391 = vunpack.c.l.b16 %v365
      %v1392 = vunpack.c.l.b16 %v366
      %v1393 = vunpack.c.l.b16 %v367
      %v1394 = vunpack.c.l.b16 %v368
      %v1395 = vunpack.c.l.b16 %v369
      %v1396 = vunpack.c.l.b16 %v370
      %v1397 = vunpack.c.l.b16 %v371
      %v1398 = vunpack.c.l.b16 %v372
      %v1399 = vpack.c.b16 %v1368, %v1367
      %v1400 = vpack.c.b16 %v1370, %v1369
      %v1401 = vpack.c.b16 %v1372, %v1371
      %v1402 = vpack.c.b16 %v1374, %v1373
      %v1403 = vpack.c.b16 %v1376, %v1375
      %v1404 = vpack.c.b16 %v1378, %v1377
      %v1405 = vpack.c.b16 %v1380, %v1379
      %v1406 = vpack.c.b16 %v1382, %v1381
      %v1407 = vpack.c.b16 %v1384, %v1383
      %v1408 = vpack.c.b16 %v1386, %v1385
      %v1409 = vpack.c.b16 %v1388, %v1387
      %v1410 = vpack.c.b16 %v1390, %v1389
      %v1411 = vpack.c.b16 %v1392, %v1391
      %v1412 = vpack.c.b16 %v1394, %v1393
      %v1413 = vpack.c.b16 %v1396, %v1395
      %v1414 = vpack.c.b16 %v1398, %v1397
      %v1447 = vunpack.c.l.b16 %v373
      %v1448 = vunpack.c.l.b16 %v374
      %v1449 = vunpack.c.l.b16 %v375
      %v1450 = vunpack.c.l.b16 %v376
      %v1451 = vunpack.c.l.b16 %v377
      %v1452 = vunpack.c.l.b16 %v378
      %v1453 = vunpack.c.l.b16 %v379
      %v1454 = vunpack.c.l.b16 %v380
      %v1455 = vunpack.c.l.b16 %v381
      %v1456 = vunpack.c.l.b16 %v382
      %v1457 = vunpack.c.l.b16 %v383
      %v1458 = vunpack.c.l.b16 %v384
      %v1459 = vunpack.c.l.b16 %v385
      %v1460 = vunpack.c.l.b16 %v386
      %v1461 = vunpack.c.l.b16 %v387
      %v1462 = vunpack.c.l.b16 %v388
      %v1463 = vpack.c.b16 %v1447, %v1447
      %v1464 = vpack.c.b16 %v1448, %v1448
      %v1465 = vpack.c.b16 %v1449, %v1449
      %v1466 = vpack.c.b16 %v1450, %v1450
      %v1467 = vpack.c.b16 %v1451, %v1451
      %v1468 = vpack.c.b16 %v1452, %v1452
      %v1469 = vpack.c.b16 %v1453, %v1453
      %v1470 = vpack.c.b16 %v1454, %v1454
      %v1471 = vpack.c.b16 %v1455, %v1455
      %v1472 = vpack.c.b16 %v1456, %v1456
      %v1473 = vpack.c.b16 %v1457, %v1457
      %v1474 = vpack.c.b16 %v1458, %v1458
      %v1475 = vpack.c.b16 %v1459, %v1459
      %v1476 = vpack.c.b16 %v1460, %v1460
      %v1477 = vpack.c.b16 %v1461, %v1461
      %v1478 = vpack.c.b16 %v1462, %v1462
      %v1480 = vshrl.u32 %v1399, 16
      %v1482 = vshll.u32 %v1399, 16
      %v1484 = vrot.slane %v1482, 1
      %v1485 = vor.u32 %v1480, %v1484
      %v1487 = vshll.u32 %v1463, 16
      %v1489 = vrot.slane %v1487, 1
      %v1490 = vsel %vm549, %v1485, %v1489
      %v1492 = vshrl.u32 %v1400, 16
      %v1494 = vshll.u32 %v1400, 16
      %v1496 = vrot.slane %v1494, 1
      %v1497 = vor.u32 %v1492, %v1496
      %v1499 = vshll.u32 %v1464, 16
      %v1501 = vrot.slane %v1499, 1
      %v1502 = vsel %vm549, %v1497, %v1501
      %v1504 = vshrl.u32 %v1401, 16
      %v1506 = vshll.u32 %v1401, 16
      %v1508 = vrot.slane %v1506, 1
      %v1509 = vor.u32 %v1504, %v1508
      %v1511 = vshll.u32 %v1465, 16
      %v1513 = vrot.slane %v1511, 1
      %v1514 = vsel %vm549, %v1509, %v1513
      %v1516 = vshrl.u32 %v1402, 16
      %v1518 = vshll.u32 %v1402, 16
      %v1520 = vrot.slane %v1518, 1
      %v1521 = vor.u32 %v1516, %v1520
      %v1523 = vshll.u32 %v1466, 16
      %v1525 = vrot.slane %v1523, 1
      %v1526 = vsel %vm549, %v1521, %v1525
      %v1528 = vshrl.u32 %v1403, 16
      %v1530 = vshll.u32 %v1403, 16
      %v1532 = vrot.slane %v1530, 1
      %v1533 = vor.u32 %v1528, %v1532
      %v1535 = vshll.u32 %v1467, 16
      %v1537 = vrot.slane %v1535, 1
      %v1538 = vsel %vm549, %v1533, %v1537
      %v1540 = vshrl.u32 %v1404, 16
      %v1542 = vshll.u32 %v1404, 16
      %v1544 = vrot.slane %v1542, 1
      %v1545 = vor.u32 %v1540, %v1544
      %v1547 = vshll.u32 %v1468, 16
      %v1549 = vrot.slane %v1547, 1
      %v1550 = vsel %vm549, %v1545, %v1549
      %v1552 = vshrl.u32 %v1405, 16
      %v1554 = vshll.u32 %v1405, 16
      %v1556 = vrot.slane %v1554, 1
      %v1557 = vor.u32 %v1552, %v1556
      %v1559 = vshll.u32 %v1469, 16
      %v1561 = vrot.slane %v1559, 1
      %v1562 = vsel %vm549, %v1557, %v1561
      %v1564 = vshrl.u32 %v1406, 16
      %v1566 = vshll.u32 %v1406, 16
      %v1568 = vrot.slane %v1566, 1
      %v1569 = vor.u32 %v1564, %v1568
      %v1571 = vshll.u32 %v1470, 16
      %v1573 = vrot.slane %v1571, 1
      %v1574 = vsel %vm549, %v1569, %v1573
      %v1576 = vshrl.u32 %v1407, 16
      %v1578 = vshll.u32 %v1407, 16
      %v1580 = vrot.slane %v1578, 1
      %v1581 = vor.u32 %v1576, %v1580
      %v1583 = vshll.u32 %v1471, 16
      %v1585 = vrot.slane %v1583, 1
      %v1586 = vsel %vm549, %v1581, %v1585
      %v1588 = vshrl.u32 %v1408, 16
      %v1590 = vshll.u32 %v1408, 16
      %v1592 = vrot.slane %v1590, 1
      %v1593 = vor.u32 %v1588, %v1592
      %v1595 = vshll.u32 %v1472, 16
      %v1597 = vrot.slane %v1595, 1
      %v1598 = vsel %vm549, %v1593, %v1597
      %v1600 = vshrl.u32 %v1409, 16
      %v1602 = vshll.u32 %v1409, 16
      %v1604 = vrot.slane %v1602, 1
      %v1605 = vor.u32 %v1600, %v1604
      %v1607 = vshll.u32 %v1473, 16
      %v1609 = vrot.slane %v1607, 1
      %v1610 = vsel %vm549, %v1605, %v1609
      %v1612 = vshrl.u32 %v1410, 16
      %v1614 = vshll.u32 %v1410, 16
      %v1616 = vrot.slane %v1614, 1
      %v1617 = vor.u32 %v1612, %v1616
      %v1619 = vshll.u32 %v1474, 16
      %v1621 = vrot.slane %v1619, 1
      %v1622 = vsel %vm549, %v1617, %v1621
      %v1624 = vshrl.u32 %v1411, 16
      %v1626 = vshll.u32 %v1411, 16
      %v1628 = vrot.slane %v1626, 1
      %v1629 = vor.u32 %v1624, %v1628
      %v1631 = vshll.u32 %v1475, 16
      %v1633 = vrot.slane %v1631, 1
      %v1634 = vsel %vm549, %v1629, %v1633
      %v1636 = vshrl.u32 %v1412, 16
      %v1638 = vshll.u32 %v1412, 16
      %v1640 = vrot.slane %v1638, 1
      %v1641 = vor.u32 %v1636, %v1640
      %v1643 = vshll.u32 %v1476, 16
      %v1645 = vrot.slane %v1643, 1
      %v1646 = vsel %vm549, %v1641, %v1645
      %v1648 = vshrl.u32 %v1413, 16
      %v1650 = vshll.u32 %v1413, 16
      %v1652 = vrot.slane %v1650, 1
      %v1653 = vor.u32 %v1648, %v1652
      %v1655 = vshll.u32 %v1477, 16
      %v1657 = vrot.slane %v1655, 1
      %v1658 = vsel %vm549, %v1653, %v1657
      %v1660 = vshrl.u32 %v1414, 16
      %v1662 = vshll.u32 %v1414, 16
      %v1664 = vrot.slane %v1662, 1
      %v1665 = vor.u32 %v1660, %v1664
      %v1667 = vshll.u32 %v1478, 16
      %v1669 = vrot.slane %v1667, 1
      %v1670 = vsel %vm549, %v1665, %v1669
      %v1703 = vunpack.c.l.b16 %v389
      %v1704 = vunpack.c.l.b16 %v390
      %v1705 = vunpack.c.l.b16 %v391
      %v1706 = vunpack.c.l.b16 %v392
      %v1707 = vunpack.c.l.b16 %v393
      %v1708 = vunpack.c.l.b16 %v394
      %v1709 = vunpack.c.l.b16 %v395
      %v1710 = vunpack.c.l.b16 %v396
      %v1711 = vunpack.c.l.b16 %v397
      %v1712 = vunpack.c.l.b16 %v398
      %v1713 = vunpack.c.l.b16 %v399
      %v1714 = vunpack.c.l.b16 %v400
      %v1715 = vunpack.c.l.b16 %v401
      %v1716 = vunpack.c.l.b16 %v402
      %v1717 = vunpack.c.l.b16 %v403
      %v1718 = vunpack.c.l.b16 %v404
      %v1719 = vpack.c.b16 %v1368, %v1703
      %v1720 = vpack.c.b16 %v1370, %v1704
      %v1721 = vpack.c.b16 %v1372, %v1705
      %v1722 = vpack.c.b16 %v1374, %v1706
      %v1723 = vpack.c.b16 %v1376, %v1707
      %v1724 = vpack.c.b16 %v1378, %v1708
      %v1725 = vpack.c.b16 %v1380, %v1709
      %v1726 = vpack.c.b16 %v1382, %v1710
      %v1727 = vpack.c.b16 %v1384, %v1711
      %v1728 = vpack.c.b16 %v1386, %v1712
      %v1729 = vpack.c.b16 %v1388, %v1713
      %v1730 = vpack.c.b16 %v1390, %v1714
      %v1731 = vpack.c.b16 %v1392, %v1715
      %v1732 = vpack.c.b16 %v1394, %v1716
      %v1733 = vpack.c.b16 %v1396, %v1717
      %v1734 = vpack.c.b16 %v1398, %v1718
      %v1735 = vrot.slane %v1719, 1
      %v1736 = vrot.slane %v1463, 1
      %v1737 = vsel %vm806, %v1735, %v1736
      %v1738 = vrot.slane %v1720, 1
      %v1739 = vrot.slane %v1464, 1
      %v1740 = vsel %vm806, %v1738, %v1739
      %v1741 = vrot.slane %v1721, 1
      %v1742 = vrot.slane %v1465, 1
      %v1743 = vsel %vm806, %v1741, %v1742
      %v1744 = vrot.slane %v1722, 1
      %v1745 = vrot.slane %v1466, 1
      %v1746 = vsel %vm806, %v1744, %v1745
      %v1747 = vrot.slane %v1723, 1
      %v1748 = vrot.slane %v1467, 1
      %v1749 = vsel %vm806, %v1747, %v1748
      %v1750 = vrot.slane %v1724, 1
      %v1751 = vrot.slane %v1468, 1
      %v1752 = vsel %vm806, %v1750, %v1751
      %v1753 = vrot.slane %v1725, 1
      %v1754 = vrot.slane %v1469, 1
      %v1755 = vsel %vm806, %v1753, %v1754
      %v1756 = vrot.slane %v1726, 1
      %v1757 = vrot.slane %v1470, 1
      %v1758 = vsel %vm806, %v1756, %v1757
      %v1759 = vrot.slane %v1727, 1
      %v1760 = vrot.slane %v1471, 1
      %v1761 = vsel %vm806, %v1759, %v1760
      %v1762 = vrot.slane %v1728, 1
      %v1763 = vrot.slane %v1472, 1
      %v1764 = vsel %vm806, %v1762, %v1763
      %v1765 = vrot.slane %v1729, 1
      %v1766 = vrot.slane %v1473, 1
      %v1767 = vsel %vm806, %v1765, %v1766
      %v1768 = vrot.slane %v1730, 1
      %v1769 = vrot.slane %v1474, 1
      %v1770 = vsel %vm806, %v1768, %v1769
      %v1771 = vrot.slane %v1731, 1
      %v1772 = vrot.slane %v1475, 1
      %v1773 = vsel %vm806, %v1771, %v1772
      %v1774 = vrot.slane %v1732, 1
      %v1775 = vrot.slane %v1476, 1
      %v1776 = vsel %vm806, %v1774, %v1775
      %v1777 = vrot.slane %v1733, 1
      %v1778 = vrot.slane %v1477, 1
      %v1779 = vsel %vm806, %v1777, %v1778
      %v1780 = vrot.slane %v1734, 1
      %v1781 = vrot.slane %v1478, 1
      %v1782 = vsel %vm806, %v1780, %v1781
      %v1799 = vld [vmem:[%s1] sm:$0xf]
      %v1800 = vld [vmem:[%s1 + $0x4] sm:$0xf]
      %v1801 = vld [vmem:[%s1 + $0x8] sm:$0xf]
      %v1802 = vld [vmem:[%s1 + $0xc] sm:$0xf]
      %v1803 = vld [vmem:[%s1 + $0x10] sm:$0xf]
      %v1804 = vld [vmem:[%s1 + $0x14] sm:$0xf]
      %v1805 = vld [vmem:[%s1 + $0x18] sm:$0xf]
      %v1806 = vld [vmem:[%s1 + $0x1c] sm:$0xf]
      %v1807 = vld [vmem:[%s1 + $0x20] sm:$0xf]
      %v1808 = vld [vmem:[%s1 + $0x24] sm:$0xf]
      %v1809 = vld [vmem:[%s1 + $0x28] sm:$0xf]
      %v1810 = vld [vmem:[%s1 + $0x2c] sm:$0xf]
      %v1811 = vld [vmem:[%s1 + $0x30] sm:$0xf]
      %v1812 = vld [vmem:[%s1 + $0x34] sm:$0xf]
      %v1813 = vld [vmem:[%s1 + $0x38] sm:$0xf]
      %v1814 = vld [vmem:[%s1 + $0x3c] sm:$0xf]
      %v1815 = vld [vmem:[%s1 + $0x40] sm:$0xf]
      %v1816 = vld [vmem:[%s1 + $0x44] sm:$0xf]
      %v1817 = vld [vmem:[%s1 + $0x48] sm:$0xf]
      %v1818 = vld [vmem:[%s1 + $0x4c] sm:$0xf]
      %v1819 = vld [vmem:[%s1 + $0x50] sm:$0xf]
      %v1820 = vld [vmem:[%s1 + $0x54] sm:$0xf]
      %v1821 = vld [vmem:[%s1 + $0x58] sm:$0xf]
      %v1822 = vld [vmem:[%s1 + $0x5c] sm:$0xf]
      %v1823 = vld [vmem:[%s1 + $0x60] sm:$0xf]
      %v1824 = vld [vmem:[%s1 + $0x64] sm:$0xf]
      %v1825 = vld [vmem:[%s1 + $0x68] sm:$0xf]
      %v1826 = vld [vmem:[%s1 + $0x6c] sm:$0xf]
      %v1827 = vld [vmem:[%s1 + $0x70] sm:$0xf]
      %v1828 = vld [vmem:[%s1 + $0x74] sm:$0xf]
      %v1829 = vld [vmem:[%s1 + $0x78] sm:$0xf]
      %v1830 = vld [vmem:[%s1 + $0x7c] sm:$0xf]
      %v1831 = vld [vmem:[%s1 + $0x80] sm:$0xf]
      %v1832 = vld [vmem:[%s1 + $0x84] sm:$0xf]
      %v1833 = vld [vmem:[%s1 + $0x88] sm:$0xf]
      %v1834 = vld [vmem:[%s1 + $0x8c] sm:$0xf]
      %v1835 = vld [vmem:[%s1 + $0x90] sm:$0xf]
      %v1836 = vld [vmem:[%s1 + $0x94] sm:$0xf]
      %v1837 = vld [vmem:[%s1 + $0x98] sm:$0xf]
      %v1838 = vld [vmem:[%s1 + $0x9c] sm:$0xf]
      %v1839 = vld [vmem:[%s1 + $0xa0] sm:$0xf]
      %v1840 = vld [vmem:[%s1 + $0xa4] sm:$0xf]
      %v1841 = vld [vmem:[%s1 + $0xa8] sm:$0xf]
      %v1842 = vld [vmem:[%s1 + $0xac] sm:$0xf]
      %v1843 = vld [vmem:[%s1 + $0xb0] sm:$0xf]
      %v1844 = vld [vmem:[%s1 + $0xb4] sm:$0xf]
      %v1845 = vld [vmem:[%s1 + $0xb8] sm:$0xf]
      %v1846 = vld [vmem:[%s1 + $0xbc] sm:$0xf]
      %v1847 = vld [vmem:[%s1 + $0xc0] sm:$0xf]
      %v1848 = vld [vmem:[%s1 + $0xc4] sm:$0xf]
      %v1849 = vld [vmem:[%s1 + $0xc8] sm:$0xf]
      %v1850 = vld [vmem:[%s1 + $0xcc] sm:$0xf]
      %v1851 = vld [vmem:[%s1 + $0xd0] sm:$0xf]
      %v1852 = vld [vmem:[%s1 + $0xd4] sm:$0xf]
      %v1853 = vld [vmem:[%s1 + $0xd8] sm:$0xf]
      %v1854 = vld [vmem:[%s1 + $0xdc] sm:$0xf]
      %v1855 = vld [vmem:[%s1 + $0xe0] sm:$0xf]
      %v1856 = vld [vmem:[%s1 + $0xe4] sm:$0xf]
      %v1857 = vld [vmem:[%s1 + $0xe8] sm:$0xf]
      %v1858 = vld [vmem:[%s1 + $0xec] sm:$0xf]
      %v1859 = vld [vmem:[%s1 + $0xf0] sm:$0xf]
      %v1860 = vld [vmem:[%s1 + $0xf4] sm:$0xf]
      %v1861 = vld [vmem:[%s1 + $0xf8] sm:$0xf]
      %v1862 = vld [vmem:[%s1 + $0xfc] sm:$0xf]
      %v1863 = vld [vmem:[%s1 + $0x100] sm:$0xf]
      %v1864 = vld [vmem:[%s1 + $0x104] sm:$0xf]
      %v1865 = vld [vmem:[%s1 + $0x108] sm:$0xf]
      %v1866 = vld [vmem:[%s1 + $0x10c] sm:$0xf]
      %v1867 = vld [vmem:[%s1 + $0x110] sm:$0xf]
      %v1868 = vld [vmem:[%s1 + $0x114] sm:$0xf]
      %v1869 = vld [vmem:[%s1 + $0x118] sm:$0xf]
      %v1870 = vld [vmem:[%s1 + $0x11c] sm:$0xf]
      %v1871 = vld [vmem:[%s1 + $0x120] sm:$0xf]
      %v1872 = vld [vmem:[%s1 + $0x124] sm:$0xf]
      %v1873 = vld [vmem:[%s1 + $0x128] sm:$0xf]
      %v1874 = vld [vmem:[%s1 + $0x12c] sm:$0xf]
      %v1875 = vld [vmem:[%s1 + $0x130] sm:$0xf]
      %v1876 = vld [vmem:[%s1 + $0x134] sm:$0xf]
      %v1877 = vld [vmem:[%s1 + $0x138] sm:$0xf]
      %v1878 = vld [vmem:[%s1 + $0x13c] sm:$0xf]
      %v1879 = vld [vmem:[%s1 + $0x140] sm:$0xf]
      %v1880 = vld [vmem:[%s1 + $0x144] sm:$0xf]
      %v1881 = vld [vmem:[%s1 + $0x148] sm:$0xf]
      %v1882 = vld [vmem:[%s1 + $0x14c] sm:$0xf]
      %v1883 = vld [vmem:[%s1 + $0x150] sm:$0xf]
      %v1884 = vld [vmem:[%s1 + $0x154] sm:$0xf]
      %v1885 = vld [vmem:[%s1 + $0x158] sm:$0xf]
      %v1886 = vld [vmem:[%s1 + $0x15c] sm:$0xf]
      %v1887 = vld [vmem:[%s1 + $0x160] sm:$0xf]
      %v1888 = vld [vmem:[%s1 + $0x164] sm:$0xf]
      %v1889 = vld [vmem:[%s1 + $0x168] sm:$0xf]
      %v1890 = vld [vmem:[%s1 + $0x16c] sm:$0xf]
      %v1891 = vld [vmem:[%s1 + $0x170] sm:$0xf]
      %v1892 = vld [vmem:[%s1 + $0x174] sm:$0xf]
      %v1893 = vld [vmem:[%s1 + $0x178] sm:$0xf]
      %v1894 = vld [vmem:[%s1 + $0x17c] sm:$0xf]
      %v1895 = vld [vmem:[%s1 + $0x180] sm:$0xf]
      %v1896 = vld [vmem:[%s1 + $0x184] sm:$0xf]
      %v1897 = vld [vmem:[%s1 + $0x188] sm:$0xf]
      %v1898 = vld [vmem:[%s1 + $0x18c] sm:$0xf]
      %v1899 = vld [vmem:[%s1 + $0x190] sm:$0xf]
      %v1900 = vld [vmem:[%s1 + $0x194] sm:$0xf]
      %v1901 = vld [vmem:[%s1 + $0x198] sm:$0xf]
      %v1902 = vld [vmem:[%s1 + $0x19c] sm:$0xf]
      %v1903 = vld [vmem:[%s1 + $0x1a0] sm:$0xf]
      %v1904 = vld [vmem:[%s1 + $0x1a4] sm:$0xf]
      %v1905 = vld [vmem:[%s1 + $0x1a8] sm:$0xf]
      %v1906 = vld [vmem:[%s1 + $0x1ac] sm:$0xf]
      %v1907 = vld [vmem:[%s1 + $0x1b0] sm:$0xf]
      %v1908 = vld [vmem:[%s1 + $0x1b4] sm:$0xf]
      %v1909 = vld [vmem:[%s1 + $0x1b8] sm:$0xf]
      %v1910 = vld [vmem:[%s1 + $0x1bc] sm:$0xf]
      %v1911 = vld [vmem:[%s1 + $0x1c0] sm:$0xf]
      %v1912 = vld [vmem:[%s1 + $0x1c4] sm:$0xf]
      %v1913 = vld [vmem:[%s1 + $0x1c8] sm:$0xf]
      %v1914 = vld [vmem:[%s1 + $0x1cc] sm:$0xf]
      %v1915 = vld [vmem:[%s1 + $0x1d0] sm:$0xf]
      %v1916 = vld [vmem:[%s1 + $0x1d4] sm:$0xf]
      %v1917 = vld [vmem:[%s1 + $0x1d8] sm:$0xf]
      %v1918 = vld [vmem:[%s1 + $0x1dc] sm:$0xf]
      %v1919 = vld [vmem:[%s1 + $0x1e0] sm:$0xf]
      %v1920 = vld [vmem:[%s1 + $0x1e4] sm:$0xf]
      %v1921 = vld [vmem:[%s1 + $0x1e8] sm:$0xf]
      %v1922 = vld [vmem:[%s1 + $0x1ec] sm:$0xf]
      %v1923 = vld [vmem:[%s1 + $0x1f0] sm:$0xf]
      %v1924 = vld [vmem:[%s1 + $0x1f4] sm:$0xf]
      %v1925 = vld [vmem:[%s1 + $0x1f8] sm:$0xf]
      %v1926 = vld [vmem:[%s1 + $0x1fc] sm:$0xf]
      %v1927 = vld [vmem:[%s1 + $0x200] sm:$0xf]
      %v1928 = vld [vmem:[%s1 + $0x204] sm:$0xf]
      %v1929 = vld [vmem:[%s1 + $0x208] sm:$0xf]
      %v1930 = vld [vmem:[%s1 + $0x20c] sm:$0xf]
      %v1931 = vld [vmem:[%s1 + $0x210] sm:$0xf]
      %v1932 = vld [vmem:[%s1 + $0x214] sm:$0xf]
      %v1933 = vld [vmem:[%s1 + $0x218] sm:$0xf]
      %v1934 = vld [vmem:[%s1 + $0x21c] sm:$0xf]
      %v1935 = vld [vmem:[%s1 + $0x220] sm:$0xf]
      %v1936 = vld [vmem:[%s1 + $0x224] sm:$0xf]
      %v1937 = vld [vmem:[%s1 + $0x228] sm:$0xf]
      %v1938 = vld [vmem:[%s1 + $0x22c] sm:$0xf]
      %v1939 = vld [vmem:[%s1 + $0x230] sm:$0xf]
      %v1940 = vld [vmem:[%s1 + $0x234] sm:$0xf]
      %v1941 = vld [vmem:[%s1 + $0x238] sm:$0xf]
      %v1942 = vld [vmem:[%s1 + $0x23c] sm:$0xf]
      %v1943 = vld [vmem:[%s2] sm:$0x1]
      %v1945 = vlaneseq
      %v1946 = vshrl.u32 %v1945, 7
      %v1947 = vsub.s32 0, %v1946
      %v1948 = vrot.slane %v1943, %v1947
      %v2094 = vunpack.c.l.b16 %v1799
      %v2095 = vunpack.c.l.b16 %v1800
      %v2096 = vunpack.c.l.b16 %v1801
      %v2097 = vunpack.c.l.b16 %v1802
      %v2098 = vunpack.c.l.b16 %v1803
      %v2099 = vunpack.c.l.b16 %v1804
      %v2100 = vunpack.c.l.b16 %v1805
      %v2101 = vunpack.c.l.b16 %v1806
      %v2102 = vunpack.c.l.b16 %v1807
      %v2103 = vunpack.c.l.b16 %v1808
      %v2104 = vunpack.c.l.b16 %v1809
      %v2105 = vunpack.c.l.b16 %v1810
      %v2106 = vunpack.c.l.b16 %v1811
      %v2107 = vunpack.c.l.b16 %v1812
      %v2108 = vunpack.c.l.b16 %v1813
      %v2109 = vunpack.c.l.b16 %v1814
      %v2110 = vunpack.c.l.b16 %v1815
      %v2111 = vunpack.c.l.b16 %v1816
      %v2112 = vunpack.c.l.b16 %v1817
      %v2113 = vunpack.c.l.b16 %v1818
      %v2114 = vunpack.c.l.b16 %v1819
      %v2115 = vunpack.c.l.b16 %v1820
      %v2116 = vunpack.c.l.b16 %v1821
      %v2117 = vunpack.c.l.b16 %v1822
      %v2118 = vunpack.c.l.b16 %v1823
      %v2119 = vunpack.c.l.b16 %v1824
      %v2120 = vunpack.c.l.b16 %v1825
      %v2121 = vunpack.c.l.b16 %v1826
      %v2122 = vunpack.c.l.b16 %v1827
      %v2123 = vunpack.c.l.b16 %v1828
      %v2124 = vunpack.c.l.b16 %v1829
      %v2125 = vunpack.c.l.b16 %v1830
      %v2126 = vunpack.c.l.b16 %v1831
      %v2127 = vunpack.c.l.b16 %v1832
      %v2128 = vunpack.c.l.b16 %v1833
      %v2129 = vunpack.c.l.b16 %v1834
      %v2130 = vunpack.c.l.b16 %v1835
      %v2131 = vunpack.c.l.b16 %v1836
      %v2132 = vunpack.c.l.b16 %v1837
      %v2133 = vunpack.c.l.b16 %v1838
      %v2134 = vunpack.c.l.b16 %v1839
      %v2135 = vunpack.c.l.b16 %v1840
      %v2136 = vunpack.c.l.b16 %v1841
      %v2137 = vunpack.c.l.b16 %v1842
      %v2138 = vunpack.c.l.b16 %v1843
      %v2139 = vunpack.c.l.b16 %v1844
      %v2140 = vunpack.c.l.b16 %v1845
      %v2141 = vunpack.c.l.b16 %v1846
      %v2142 = vunpack.c.l.b16 %v1847
      %v2143 = vunpack.c.l.b16 %v1848
      %v2144 = vunpack.c.l.b16 %v1849
      %v2145 = vunpack.c.l.b16 %v1850
      %v2146 = vunpack.c.l.b16 %v1851
      %v2147 = vunpack.c.l.b16 %v1852
      %v2148 = vunpack.c.l.b16 %v1853
      %v2149 = vunpack.c.l.b16 %v1854
      %v2150 = vunpack.c.l.b16 %v1855
      %v2151 = vunpack.c.l.b16 %v1856
      %v2152 = vunpack.c.l.b16 %v1857
      %v2153 = vunpack.c.l.b16 %v1858
      %v2154 = vunpack.c.l.b16 %v1859
      %v2155 = vunpack.c.l.b16 %v1860
      %v2156 = vunpack.c.l.b16 %v1861
      %v2157 = vunpack.c.l.b16 %v1862
      %v2158 = vunpack.c.l.b16 %v1863
      %v2159 = vunpack.c.l.b16 %v1864
      %v2160 = vunpack.c.l.b16 %v1865
      %v2161 = vunpack.c.l.b16 %v1866
      %v2162 = vunpack.c.l.b16 %v1867
      %v2163 = vunpack.c.l.b16 %v1868
      %v2164 = vunpack.c.l.b16 %v1869
      %v2165 = vunpack.c.l.b16 %v1870
      %v2166 = vunpack.c.l.b16 %v1871
      %v2167 = vunpack.c.l.b16 %v1872
      %v2168 = vunpack.c.l.b16 %v1873
      %v2169 = vunpack.c.l.b16 %v1874
      %v2170 = vunpack.c.l.b16 %v1875
      %v2171 = vunpack.c.l.b16 %v1876
      %v2172 = vunpack.c.l.b16 %v1877
      %v2173 = vunpack.c.l.b16 %v1878
      %v2174 = vunpack.c.l.b16 %v1879
      %v2175 = vunpack.c.l.b16 %v1880
      %v2176 = vunpack.c.l.b16 %v1881
      %v2177 = vunpack.c.l.b16 %v1882
      %v2178 = vunpack.c.l.b16 %v1883
      %v2179 = vunpack.c.l.b16 %v1884
      %v2180 = vunpack.c.l.b16 %v1885
      %v2181 = vunpack.c.l.b16 %v1886
      %v2182 = vunpack.c.l.b16 %v1887
      %v2183 = vunpack.c.l.b16 %v1888
      %v2184 = vunpack.c.l.b16 %v1889
      %v2185 = vunpack.c.l.b16 %v1890
      %v2186 = vunpack.c.l.b16 %v1891
      %v2187 = vunpack.c.l.b16 %v1892
      %v2188 = vunpack.c.l.b16 %v1893
      %v2189 = vunpack.c.l.b16 %v1894
      %v2190 = vunpack.c.l.b16 %v1895
      %v2191 = vunpack.c.l.b16 %v1896
      %v2192 = vunpack.c.l.b16 %v1897
      %v2193 = vunpack.c.l.b16 %v1898
      %v2194 = vunpack.c.l.b16 %v1899
      %v2195 = vunpack.c.l.b16 %v1900
      %v2196 = vunpack.c.l.b16 %v1901
      %v2197 = vunpack.c.l.b16 %v1902
      %v2198 = vunpack.c.l.b16 %v1903
      %v2199 = vunpack.c.l.b16 %v1904
      %v2200 = vunpack.c.l.b16 %v1905
      %v2201 = vunpack.c.l.b16 %v1906
      %v2202 = vunpack.c.l.b16 %v1907
      %v2203 = vunpack.c.l.b16 %v1908
      %v2204 = vunpack.c.l.b16 %v1909
      %v2205 = vunpack.c.l.b16 %v1910
      %v2206 = vunpack.c.l.b16 %v1911
      %v2207 = vunpack.c.l.b16 %v1912
      %v2208 = vunpack.c.l.b16 %v1913
      %v2209 = vunpack.c.l.b16 %v1914
      %v2210 = vunpack.c.l.b16 %v1915
      %v2211 = vunpack.c.l.b16 %v1916
      %v2212 = vunpack.c.l.b16 %v1917
      %v2213 = vunpack.c.l.b16 %v1918
      %v2214 = vunpack.c.l.b16 %v1919
      %v2215 = vunpack.c.l.b16 %v1920
      %v2216 = vunpack.c.l.b16 %v1921
      %v2217 = vunpack.c.l.b16 %v1922
      %v2218 = vunpack.c.l.b16 %v1923
      %v2219 = vunpack.c.l.b16 %v1924
      %v2220 = vunpack.c.l.b16 %v1925
      %v2221 = vunpack.c.l.b16 %v1926
      %v2222 = vunpack.c.l.b16 %v1927
      %v2223 = vunpack.c.l.b16 %v1928
      %v2224 = vunpack.c.l.b16 %v1929
      %v2225 = vunpack.c.l.b16 %v1930
      %v2226 = vunpack.c.l.b16 %v1931
      %v2227 = vunpack.c.l.b16 %v1932
      %v2228 = vunpack.c.l.b16 %v1933
      %v2229 = vunpack.c.l.b16 %v1934
      %v2230 = vunpack.c.l.b16 %v1935
      %v2231 = vunpack.c.l.b16 %v1936
      %v2232 = vunpack.c.l.b16 %v1937
      %v2233 = vunpack.c.l.b16 %v1938
      %v2234 = vunpack.c.l.b16 %v1939
      %v2235 = vunpack.c.l.b16 %v1940
      %v2236 = vunpack.c.l.b16 %v1941
      %v2237 = vunpack.c.l.b16 %v1942
      %v2238 = vpack.c.b16 %v2095, %v2094
      %v2239 = vpack.c.b16 %v2097, %v2096
      %v2240 = vpack.c.b16 %v2099, %v2098
      %v2241 = vpack.c.b16 %v2101, %v2100
      %v2242 = vpack.c.b16 %v2103, %v2102
      %v2243 = vpack.c.b16 %v2105, %v2104
      %v2244 = vpack.c.b16 %v2107, %v2106
      %v2245 = vpack.c.b16 %v2109, %v2108
      %v2246 = vpack.c.b16 %v2111, %v2110
      %v2247 = vpack.c.b16 %v2113, %v2112
      %v2248 = vpack.c.b16 %v2115, %v2114
      %v2249 = vpack.c.b16 %v2117, %v2116
      %v2250 = vpack.c.b16 %v2119, %v2118
      %v2251 = vpack.c.b16 %v2121, %v2120
      %v2252 = vpack.c.b16 %v2123, %v2122
      %v2253 = vpack.c.b16 %v2125, %v2124
      %v2254 = vpack.c.b16 %v2127, %v2126
      %v2255 = vpack.c.b16 %v2129, %v2128
      %v2256 = vpack.c.b16 %v2131, %v2130
      %v2257 = vpack.c.b16 %v2133, %v2132
      %v2258 = vpack.c.b16 %v2135, %v2134
      %v2259 = vpack.c.b16 %v2137, %v2136
      %v2260 = vpack.c.b16 %v2139, %v2138
      %v2261 = vpack.c.b16 %v2141, %v2140
      %v2262 = vpack.c.b16 %v2143, %v2142
      %v2263 = vpack.c.b16 %v2145, %v2144
      %v2264 = vpack.c.b16 %v2147, %v2146
      %v2265 = vpack.c.b16 %v2149, %v2148
      %v2266 = vpack.c.b16 %v2151, %v2150
      %v2267 = vpack.c.b16 %v2153, %v2152
      %v2268 = vpack.c.b16 %v2155, %v2154
      %v2269 = vpack.c.b16 %v2157, %v2156
      %v2270 = vpack.c.b16 %v2159, %v2158
      %v2271 = vpack.c.b16 %v2161, %v2160
      %v2272 = vpack.c.b16 %v2163, %v2162
      %v2273 = vpack.c.b16 %v2165, %v2164
      %v2274 = vpack.c.b16 %v2167, %v2166
      %v2275 = vpack.c.b16 %v2169, %v2168
      %v2276 = vpack.c.b16 %v2171, %v2170
      %v2277 = vpack.c.b16 %v2173, %v2172
      %v2278 = vpack.c.b16 %v2175, %v2174
      %v2279 = vpack.c.b16 %v2177, %v2176
      %v2280 = vpack.c.b16 %v2179, %v2178
      %v2281 = vpack.c.b16 %v2181, %v2180
      %v2282 = vpack.c.b16 %v2183, %v2182
      %v2283 = vpack.c.b16 %v2185, %v2184
      %v2284 = vpack.c.b16 %v2187, %v2186
      %v2285 = vpack.c.b16 %v2189, %v2188
      %v2286 = vpack.c.b16 %v2191, %v2190
      %v2287 = vpack.c.b16 %v2193, %v2192
      %v2288 = vpack.c.b16 %v2195, %v2194
      %v2289 = vpack.c.b16 %v2197, %v2196
      %v2290 = vpack.c.b16 %v2199, %v2198
      %v2291 = vpack.c.b16 %v2201, %v2200
      %v2292 = vpack.c.b16 %v2203, %v2202
      %v2293 = vpack.c.b16 %v2205, %v2204
      %v2294 = vpack.c.b16 %v2207, %v2206
      %v2295 = vpack.c.b16 %v2209, %v2208
      %v2296 = vpack.c.b16 %v2211, %v2210
      %v2297 = vpack.c.b16 %v2213, %v2212
      %v2298 = vpack.c.b16 %v2215, %v2214
      %v2299 = vpack.c.b16 %v2217, %v2216
      %v2300 = vpack.c.b16 %v2219, %v2218
      %v2301 = vpack.c.b16 %v2221, %v2220
      %v2302 = vpack.c.b16 %v2223, %v2222
      %v2303 = vpack.c.b16 %v2225, %v2224
      %v2304 = vpack.c.b16 %v2227, %v2226
      %v2305 = vpack.c.b16 %v2229, %v2228
      %v2306 = vpack.c.b16 %v2231, %v2230
      %v2307 = vpack.c.b16 %v2233, %v2232
      %v2308 = vpack.c.b16 %v2235, %v2234
      %v2309 = vpack.c.b16 %v2237, %v2236
      %2382 = vmatprep.subr.bf16.mxu0 0
      %2383 = vmatpush1.bf16.msra.mxu0 %v2245
      %2384 = vmatprep.subr.bf16.mxu0 0
      %2385 = vmatpush1.bf16.msra.mxu0 %v2244
      %2386 = vmatprep.subr.bf16.mxu0 0
      %2387 = vmatpush1.bf16.msra.mxu0 %v2243
      %2388 = vmatprep.subr.bf16.mxu0 0
      %2389 = vmatpush1.bf16.msra.mxu0 %v2242
      %2390 = vmatprep.subr.bf16.mxu0 0
      %2391 = vmatpush1.bf16.msra.mxu0 %v2241
      %2392 = vmatprep.subr.bf16.mxu0 0
      %2393 = vmatpush1.bf16.msra.mxu0 %v2240
      %2394 = vmatprep.subr.bf16.mxu0 0
      %2395 = vmatpush1.bf16.msra.mxu0 %v2239
      %2396 = vmatprep.subr.bf16.mxu0 0
      %2397 = vmatpush1.bf16.msra.mxu0 %v2238
      %2398 = vmatprep.subr.bf16.mxu0 0
      %2399 = vmatpush2.bf16.msra.mxu0 %v2253
      %2400 = vmatprep.subr.bf16.mxu0 0
      %2401 = vmatpush2.bf16.msra.mxu0 %v2252
      %2402 = vmatprep.subr.bf16.mxu0 0
      %2403 = vmatpush2.bf16.msra.mxu0 %v2251
      %2404 = vmatprep.subr.bf16.mxu0 0
      %2405 = vmatpush2.bf16.msra.mxu0 %v2250
      %2406 = vmatprep.subr.bf16.mxu0 0
      %2407 = vmatpush2.bf16.msra.mxu0 %v2249
      %2408 = vmatprep.subr.bf16.mxu0 0
      %2409 = vmatpush2.bf16.msra.mxu0 %v2248
      %2410 = vmatprep.subr.bf16.mxu0 0
      %2411 = vmatpush2.bf16.msra.mxu0 %v2247
      %2412 = vmatprep.subr.bf16.mxu0 0
      %2413 = vmatpush2.bf16.msra.mxu0 %v2246
      %2414 = vmatprep.mubr.bf16.mxu0 %v561
      %2415 = vmatmul.mubr.bf16.gmra.mxu0 %v469
      %v2416 = vpop.f32.mrf.mxu0
      %v2417 = vadd.f32 %v1948, %v2416
      %v2418 = vpop.f32.mrf.mxu0
      %v2419 = vpop.f32.mrf.mxu0
      %v2420 = vadd.f32 %v1948, %v2419
      %v2421 = vpop.f32.mrf.mxu0
      %2422 = vmatprep.mubr.bf16.mxu0 %v573
      %2423 = vmatmul.mubr.bf16.gmra.mxu0 %v470
      %v2424 = vpop.f32.mrf.mxu0
      %v2425 = vadd.f32 %v1948, %v2424
      %v2426 = vpop.f32.mrf.mxu0
      %v2427 = vpop.f32.mrf.mxu0
      %v2428 = vadd.f32 %v1948, %v2427
      %v2429 = vpop.f32.mrf.mxu0
      %2430 = vmatprep.mubr.bf16.mxu0 %v585
      %2431 = vmatmul.mubr.bf16.gmra.mxu0 %v471
      %v2432 = vpop.f32.mrf.mxu0
      %v2433 = vadd.f32 %v1948, %v2432
      %v2434 = vpop.f32.mrf.mxu0
      %v2435 = vpop.f32.mrf.mxu0
      %v2436 = vadd.f32 %v1948, %v2435
      %v2437 = vpop.f32.mrf.mxu0
      %2438 = vmatprep.mubr.bf16.mxu0 %v597
      %2439 = vmatmul.mubr.bf16.gmra.mxu0 %v472
      %v2440 = vpop.f32.mrf.mxu0
      %v2441 = vadd.f32 %v1948, %v2440
      %v2442 = vpop.f32.mrf.mxu0
      %v2443 = vpop.f32.mrf.mxu0
      %v2444 = vadd.f32 %v1948, %v2443
      %v2445 = vpop.f32.mrf.mxu0
      %2446 = vmatprep.mubr.bf16.mxu0 %v609
      %2447 = vmatmul.mubr.bf16.gmra.mxu0 %v473
      %v2448 = vpop.f32.mrf.mxu0
      %v2449 = vadd.f32 %v1948, %v2448
      %v2450 = vpop.f32.mrf.mxu0
      %v2451 = vpop.f32.mrf.mxu0
      %v2452 = vadd.f32 %v1948, %v2451
      %v2453 = vpop.f32.mrf.mxu0
      %2454 = vmatprep.mubr.bf16.mxu0 %v621
      %2455 = vmatmul.mubr.bf16.gmra.mxu0 %v474
      %v2456 = vpop.f32.mrf.mxu0
      %v2457 = vadd.f32 %v1948, %v2456
      %v2458 = vpop.f32.mrf.mxu0
      %v2459 = vpop.f32.mrf.mxu0
      %v2460 = vadd.f32 %v1948, %v2459
      %v2461 = vpop.f32.mrf.mxu0
      %2462 = vmatprep.mubr.bf16.mxu0 %v633
      %2463 = vmatmul.mubr.bf16.gmra.mxu0 %v475
      %v2464 = vpop.f32.mrf.mxu0
      %v2465 = vadd.f32 %v1948, %v2464
      %v2466 = vpop.f32.mrf.mxu0
      %v2467 = vpop.f32.mrf.mxu0
      %v2468 = vadd.f32 %v1948, %v2467
      %v2469 = vpop.f32.mrf.mxu0
      %2470 = vmatprep.mubr.bf16.mxu0 %v645
      %2471 = vmatmul.mubr.bf16.gmra.mxu0 %v476
      %v2472 = vpop.f32.mrf.mxu0
      %v2473 = vadd.f32 %v1948, %v2472
      %v2474 = vpop.f32.mrf.mxu0
      %v2475 = vpop.f32.mrf.mxu0
      %v2476 = vadd.f32 %v1948, %v2475
      %v2477 = vpop.f32.mrf.mxu0
      %2478 = vmatprep.mubr.bf16.mxu0 %v657
      %2479 = vmatmul.mubr.bf16.gmra.mxu0 %v477
      %v2480 = vpop.f32.mrf.mxu0
      %v2481 = vadd.f32 %v1948, %v2480
      %v2482 = vpop.f32.mrf.mxu0
      %v2483 = vpop.f32.mrf.mxu0
      %v2484 = vadd.f32 %v1948, %v2483
      %v2485 = vpop.f32.mrf.mxu0
      %2486 = vmatprep.mubr.bf16.mxu0 %v669
      %2487 = vmatmul.mubr.bf16.gmra.mxu0 %v478
      %v2488 = vpop.f32.mrf.mxu0
      %v2489 = vadd.f32 %v1948, %v2488
      %v2490 = vpop.f32.mrf.mxu0
      %v2491 = vpop.f32.mrf.mxu0
      %v2492 = vadd.f32 %v1948, %v2491
      %v2493 = vpop.f32.mrf.mxu0
      %2494 = vmatprep.mubr.bf16.mxu0 %v681
      %2495 = vmatmul.mubr.bf16.gmra.mxu0 %v479
      %v2496 = vpop.f32.mrf.mxu0
      %v2497 = vadd.f32 %v1948, %v2496
      %v2498 = vpop.f32.mrf.mxu0
      %v2499 = vpop.f32.mrf.mxu0
      %v2500 = vadd.f32 %v1948, %v2499
      %v2501 = vpop.f32.mrf.mxu0
      %2502 = vmatprep.mubr.bf16.mxu0 %v693
      %2503 = vmatmul.mubr.bf16.gmra.mxu0 %v480
      %v2504 = vpop.f32.mrf.mxu0
      %v2505 = vadd.f32 %v1948, %v2504
      %v2506 = vpop.f32.mrf.mxu0
      %v2507 = vpop.f32.mrf.mxu0
      %v2508 = vadd.f32 %v1948, %v2507
      %v2509 = vpop.f32.mrf.mxu0
      %2510 = vmatprep.mubr.bf16.mxu0 %v705
      %2511 = vmatmul.mubr.bf16.gmra.mxu0 %v481
      %v2512 = vpop.f32.mrf.mxu0
      %v2513 = vadd.f32 %v1948, %v2512
      %v2514 = vpop.f32.mrf.mxu0
      %v2515 = vpop.f32.mrf.mxu0
      %v2516 = vadd.f32 %v1948, %v2515
      %v2517 = vpop.f32.mrf.mxu0
      %2518 = vmatprep.mubr.bf16.mxu0 %v717
      %2519 = vmatmul.mubr.bf16.gmra.mxu0 %v482
      %v2520 = vpop.f32.mrf.mxu0
      %v2521 = vadd.f32 %v1948, %v2520
      %v2522 = vpop.f32.mrf.mxu0
      %v2523 = vpop.f32.mrf.mxu0
      %v2524 = vadd.f32 %v1948, %v2523
      %v2525 = vpop.f32.mrf.mxu0
      %2526 = vmatprep.mubr.bf16.mxu0 %v729
      %2527 = vmatmul.mubr.bf16.gmra.mxu0 %v483
      %v2528 = vpop.f32.mrf.mxu0
      %v2529 = vadd.f32 %v1948, %v2528
      %v2530 = vpop.f32.mrf.mxu0
      %v2531 = vpop.f32.mrf.mxu0
      %v2532 = vadd.f32 %v1948, %v2531
      %v2533 = vpop.f32.mrf.mxu0
      %2534 = vmatprep.mubr.bf16.mxu0 %v741
      %2535 = vmatmul.mubr.bf16.gmra.mxu0 %v484
      %v2536 = vpop.f32.mrf.mxu0
      %v2537 = vadd.f32 %v1948, %v2536
      %v2538 = vpop.f32.mrf.mxu0
      %v2539 = vpop.f32.mrf.mxu0
      %v2540 = vadd.f32 %v1948, %v2539
      %v2541 = vpop.f32.mrf.mxu0
      %2542 = vdwg.mxu0
      %2543 = vmatprep.subr.bf16.mxu0 0
      %2544 = vmatpush1.bf16.msra.mxu0 %v2261
      %2545 = vmatprep.subr.bf16.mxu0 0
      %2546 = vmatpush1.bf16.msra.mxu0 %v2260
      %2547 = vmatprep.subr.bf16.mxu0 0
      %2548 = vmatpush1.bf16.msra.mxu0 %v2259
      %2549 = vmatprep.subr.bf16.mxu0 0
      %2550 = vmatpush1.bf16.msra.mxu0 %v2258
      %2551 = vmatprep.subr.bf16.mxu0 0
      %2552 = vmatpush1.bf16.msra.mxu0 %v2257
      %2553 = vmatprep.subr.bf16.mxu0 0
      %2554 = vmatpush1.bf16.msra.mxu0 %v2256
      %2555 = vmatprep.subr.bf16.mxu0 0
      %2556 = vmatpush1.bf16.msra.mxu0 %v2255
      %2557 = vmatprep.subr.bf16.mxu0 0
      %2558 = vmatpush1.bf16.msra.mxu0 %v2254
      %2559 = vmatprep.subr.bf16.mxu0 0
      %2560 = vmatpush2.bf16.msra.mxu0 %v2269
      %2561 = vmatprep.subr.bf16.mxu0 0
      %2562 = vmatpush2.bf16.msra.mxu0 %v2268
      %2563 = vmatprep.subr.bf16.mxu0 0
      %2564 = vmatpush2.bf16.msra.mxu0 %v2267
      %2565 = vmatprep.subr.bf16.mxu0 0
      %2566 = vmatpush2.bf16.msra.mxu0 %v2266
      %2567 = vmatprep.subr.bf16.mxu0 0
      %2568 = vmatpush2.bf16.msra.mxu0 %v2265
      %2569 = vmatprep.subr.bf16.mxu0 0
      %2570 = vmatpush2.bf16.msra.mxu0 %v2264
      %2571 = vmatprep.subr.bf16.mxu0 0
      %2572 = vmatpush2.bf16.msra.mxu0 %v2263
      %2573 = vmatprep.subr.bf16.mxu0 0
      %2574 = vmatpush2.bf16.msra.mxu0 %v2262
      %2575 = vmatprep.mubr.bf16.mxu0 %v935
      %2576 = vmatmul.mubr.bf16.gmra.mxu0 %v809
      %v2577 = vpop.f32.mrf.mxu0
      %v2578 = vadd.f32 %v2417, %v2577
      %v2579 = vpop.f32.mrf.mxu0
      %v2580 = vpop.f32.mrf.mxu0
      %v2581 = vadd.f32 %v2420, %v2580
      %v2582 = vpop.f32.mrf.mxu0
      %2583 = vmatprep.mubr.bf16.mxu0 %v936
      %2584 = vmatmul.mubr.bf16.gmra.mxu0 %v812
      %v2585 = vpop.f32.mrf.mxu0
      %v2586 = vadd.f32 %v2425, %v2585
      %v2587 = vpop.f32.mrf.mxu0
      %v2588 = vpop.f32.mrf.mxu0
      %v2589 = vadd.f32 %v2428, %v2588
      %v2590 = vpop.f32.mrf.mxu0
      %2591 = vmatprep.mubr.bf16.mxu0 %v937
      %2592 = vmatmul.mubr.bf16.gmra.mxu0 %v815
      %v2593 = vpop.f32.mrf.mxu0
      %v2594 = vadd.f32 %v2433, %v2593
      %v2595 = vpop.f32.mrf.mxu0
      %v2596 = vpop.f32.mrf.mxu0
      %v2597 = vadd.f32 %v2436, %v2596
      %v2598 = vpop.f32.mrf.mxu0
      %2599 = vmatprep.mubr.bf16.mxu0 %v938
      %2600 = vmatmul.mubr.bf16.gmra.mxu0 %v818
      %v2601 = vpop.f32.mrf.mxu0
      %v2602 = vadd.f32 %v2441, %v2601
      %v2603 = vpop.f32.mrf.mxu0
      %v2604 = vpop.f32.mrf.mxu0
      %v2605 = vadd.f32 %v2444, %v2604
      %v2606 = vpop.f32.mrf.mxu0
      %2607 = vmatprep.mubr.bf16.mxu0 %v939
      %2608 = vmatmul.mubr.bf16.gmra.mxu0 %v821
      %v2609 = vpop.f32.mrf.mxu0
      %v2610 = vadd.f32 %v2449, %v2609
      %v2611 = vpop.f32.mrf.mxu0
      %v2612 = vpop.f32.mrf.mxu0
      %v2613 = vadd.f32 %v2452, %v2612
      %v2614 = vpop.f32.mrf.mxu0
      %2615 = vmatprep.mubr.bf16.mxu0 %v940
      %2616 = vmatmul.mubr.bf16.gmra.mxu0 %v824
      %v2617 = vpop.f32.mrf.mxu0
      %v2618 = vadd.f32 %v2457, %v2617
      %v2619 = vpop.f32.mrf.mxu0
      %v2620 = vpop.f32.mrf.mxu0
      %v2621 = vadd.f32 %v2460, %v2620
      %v2622 = vpop.f32.mrf.mxu0
      %2623 = vmatprep.mubr.bf16.mxu0 %v941
      %2624 = vmatmul.mubr.bf16.gmra.mxu0 %v827
      %v2625 = vpop.f32.mrf.mxu0
      %v2626 = vadd.f32 %v2465, %v2625
      %v2627 = vpop.f32.mrf.mxu0
      %v2628 = vpop.f32.mrf.mxu0
      %v2629 = vadd.f32 %v2468, %v2628
      %v2630 = vpop.f32.mrf.mxu0
      %2631 = vmatprep.mubr.bf16.mxu0 %v942
      %2632 = vmatmul.mubr.bf16.gmra.mxu0 %v830
      %v2633 = vpop.f32.mrf.mxu0
      %v2634 = vadd.f32 %v2473, %v2633
      %v2635 = vpop.f32.mrf.mxu0
      %v2636 = vpop.f32.mrf.mxu0
      %v2637 = vadd.f32 %v2476, %v2636
      %v2638 = vpop.f32.mrf.mxu0
      %2639 = vmatprep.mubr.bf16.mxu0 %v943
      %2640 = vmatmul.mubr.bf16.gmra.mxu0 %v833
      %v2641 = vpop.f32.mrf.mxu0
      %v2642 = vadd.f32 %v2481, %v2641
      %v2643 = vpop.f32.mrf.mxu0
      %v2644 = vpop.f32.mrf.mxu0
      %v2645 = vadd.f32 %v2484, %v2644
      %v2646 = vpop.f32.mrf.mxu0
      %2647 = vmatprep.mubr.bf16.mxu0 %v944
      %2648 = vmatmul.mubr.bf16.gmra.mxu0 %v836
      %v2649 = vpop.f32.mrf.mxu0
      %v2650 = vadd.f32 %v2489, %v2649
      %v2651 = vpop.f32.mrf.mxu0
      %v2652 = vpop.f32.mrf.mxu0
      %v2653 = vadd.f32 %v2492, %v2652
      %v2654 = vpop.f32.mrf.mxu0
      %2655 = vmatprep.mubr.bf16.mxu0 %v945
      %2656 = vmatmul.mubr.bf16.gmra.mxu0 %v839
      %v2657 = vpop.f32.mrf.mxu0
      %v2658 = vadd.f32 %v2497, %v2657
      %v2659 = vpop.f32.mrf.mxu0
      %v2660 = vpop.f32.mrf.mxu0
      %v2661 = vadd.f32 %v2500, %v2660
      %v2662 = vpop.f32.mrf.mxu0
      %2663 = vmatprep.mubr.bf16.mxu0 %v946
      %2664 = vmatmul.mubr.bf16.gmra.mxu0 %v842
      %v2665 = vpop.f32.mrf.mxu0
      %v2666 = vadd.f32 %v2505, %v2665
      %v2667 = vpop.f32.mrf.mxu0
      %v2668 = vpop.f32.mrf.mxu0
      %v2669 = vadd.f32 %v2508, %v2668
      %v2670 = vpop.f32.mrf.mxu0
      %2671 = vmatprep.mubr.bf16.mxu0 %v947
      %2672 = vmatmul.mubr.bf16.gmra.mxu0 %v845
      %v2673 = vpop.f32.mrf.mxu0
      %v2674 = vadd.f32 %v2513, %v2673
      %v2675 = vpop.f32.mrf.mxu0
      %v2676 = vpop.f32.mrf.mxu0
      %v2677 = vadd.f32 %v2516, %v2676
      %v2678 = vpop.f32.mrf.mxu0
      %2679 = vmatprep.mubr.bf16.mxu0 %v948
      %2680 = vmatmul.mubr.bf16.gmra.mxu0 %v848
      %v2681 = vpop.f32.mrf.mxu0
      %v2682 = vadd.f32 %v2521, %v2681
      %v2683 = vpop.f32.mrf.mxu0
      %v2684 = vpop.f32.mrf.mxu0
      %v2685 = vadd.f32 %v2524, %v2684
      %v2686 = vpop.f32.mrf.mxu0
      %2687 = vmatprep.mubr.bf16.mxu0 %v949
      %2688 = vmatmul.mubr.bf16.gmra.mxu0 %v851
      %v2689 = vpop.f32.mrf.mxu0
      %v2690 = vadd.f32 %v2529, %v2689
      %v2691 = vpop.f32.mrf.mxu0
      %v2692 = vpop.f32.mrf.mxu0
      %v2693 = vadd.f32 %v2532, %v2692
      %v2694 = vpop.f32.mrf.mxu0
      %2695 = vmatprep.mubr.bf16.mxu0 %v950
      %2696 = vmatmul.mubr.bf16.gmra.mxu0 %v854
      %v2697 = vpop.f32.mrf.mxu0
      %v2698 = vadd.f32 %v2537, %v2697
      %v2699 = vpop.f32.mrf.mxu0
      %v2700 = vpop.f32.mrf.mxu0
      %v2701 = vadd.f32 %v2540, %v2700
      %v2702 = vpop.f32.mrf.mxu0
      %2703 = vdwg.mxu0
      %2704 = vmatprep.subr.bf16.mxu0 0
      %2705 = vmatpush1.bf16.msra.mxu0 %v2277
      %2706 = vmatprep.subr.bf16.mxu0 0
      %2707 = vmatpush1.bf16.msra.mxu0 %v2276
      %2708 = vmatprep.subr.bf16.mxu0 0
      %2709 = vmatpush1.bf16.msra.mxu0 %v2275
      %2710 = vmatprep.subr.bf16.mxu0 0
      %2711 = vmatpush1.bf16.msra.mxu0 %v2274
      %2712 = vmatprep.subr.bf16.mxu0 0
      %2713 = vmatpush1.bf16.msra.mxu0 %v2273
      %2714 = vmatprep.subr.bf16.mxu0 0
      %2715 = vmatpush1.bf16.msra.mxu0 %v2272
      %2716 = vmatprep.subr.bf16.mxu0 0
      %2717 = vmatpush1.bf16.msra.mxu0 %v2271
      %2718 = vmatprep.subr.bf16.mxu0 0
      %2719 = vmatpush1.bf16.msra.mxu0 %v2270
      %2720 = vmatprep.subr.bf16.mxu0 0
      %2721 = vmatpush2.bf16.msra.mxu0 %v2285
      %2722 = vmatprep.subr.bf16.mxu0 0
      %2723 = vmatpush2.bf16.msra.mxu0 %v2284
      %2724 = vmatprep.subr.bf16.mxu0 0
      %2725 = vmatpush2.bf16.msra.mxu0 %v2283
      %2726 = vmatprep.subr.bf16.mxu0 0
      %2727 = vmatpush2.bf16.msra.mxu0 %v2282
      %2728 = vmatprep.subr.bf16.mxu0 0
      %2729 = vmatpush2.bf16.msra.mxu0 %v2281
      %2730 = vmatprep.subr.bf16.mxu0 0
      %2731 = vmatpush2.bf16.msra.mxu0 %v2280
      %2732 = vmatprep.subr.bf16.mxu0 0
      %2733 = vmatpush2.bf16.msra.mxu0 %v2279
      %2734 = vmatprep.subr.bf16.mxu0 0
      %2735 = vmatpush2.bf16.msra.mxu0 %v2278
      %2736 = vmatprep.mubr.bf16.mxu0 %v1273
      %2737 = vmatmul.mubr.bf16.gmra.mxu0 %v1026
      %v2738 = vpop.f32.mrf.mxu0
      %v2739 = vadd.f32 %v2578, %v2738
      %v2740 = vpop.f32.mrf.mxu0
      %v2741 = vpop.f32.mrf.mxu0
      %v2742 = vadd.f32 %v2581, %v2741
      %v2743 = vpop.f32.mrf.mxu0
      %2744 = vmatprep.mubr.bf16.mxu0 %v1276
      %2745 = vmatmul.mubr.bf16.gmra.mxu0 %v1038
      %v2746 = vpop.f32.mrf.mxu0
      %v2747 = vadd.f32 %v2586, %v2746
      %v2748 = vpop.f32.mrf.mxu0
      %v2749 = vpop.f32.mrf.mxu0
      %v2750 = vadd.f32 %v2589, %v2749
      %v2751 = vpop.f32.mrf.mxu0
      %2752 = vmatprep.mubr.bf16.mxu0 %v1279
      %2753 = vmatmul.mubr.bf16.gmra.mxu0 %v1050
      %v2754 = vpop.f32.mrf.mxu0
      %v2755 = vadd.f32 %v2594, %v2754
      %v2756 = vpop.f32.mrf.mxu0
      %v2757 = vpop.f32.mrf.mxu0
      %v2758 = vadd.f32 %v2597, %v2757
      %v2759 = vpop.f32.mrf.mxu0
      %2760 = vmatprep.mubr.bf16.mxu0 %v1282
      %2761 = vmatmul.mubr.bf16.gmra.mxu0 %v1062
      %v2762 = vpop.f32.mrf.mxu0
      %v2763 = vadd.f32 %v2602, %v2762
      %v2764 = vpop.f32.mrf.mxu0
      %v2765 = vpop.f32.mrf.mxu0
      %v2766 = vadd.f32 %v2605, %v2765
      %v2767 = vpop.f32.mrf.mxu0
      %2768 = vmatprep.mubr.bf16.mxu0 %v1285
      %2769 = vmatmul.mubr.bf16.gmra.mxu0 %v1074
      %v2770 = vpop.f32.mrf.mxu0
      %v2771 = vadd.f32 %v2610, %v2770
      %v2772 = vpop.f32.mrf.mxu0
      %v2773 = vpop.f32.mrf.mxu0
      %v2774 = vadd.f32 %v2613, %v2773
      %v2775 = vpop.f32.mrf.mxu0
      %2776 = vmatprep.mubr.bf16.mxu0 %v1288
      %2777 = vmatmul.mubr.bf16.gmra.mxu0 %v1086
      %v2778 = vpop.f32.mrf.mxu0
      %v2779 = vadd.f32 %v2618, %v2778
      %v2780 = vpop.f32.mrf.mxu0
      %v2781 = vpop.f32.mrf.mxu0
      %v2782 = vadd.f32 %v2621, %v2781
      %v2783 = vpop.f32.mrf.mxu0
      %2784 = vmatprep.mubr.bf16.mxu0 %v1291
      %2785 = vmatmul.mubr.bf16.gmra.mxu0 %v1098
      %v2786 = vpop.f32.mrf.mxu0
      %v2787 = vadd.f32 %v2626, %v2786
      %v2788 = vpop.f32.mrf.mxu0
      %v2789 = vpop.f32.mrf.mxu0
      %v2790 = vadd.f32 %v2629, %v2789
      %v2791 = vpop.f32.mrf.mxu0
      %2792 = vmatprep.mubr.bf16.mxu0 %v1294
      %2793 = vmatmul.mubr.bf16.gmra.mxu0 %v1110
      %v2794 = vpop.f32.mrf.mxu0
      %v2795 = vadd.f32 %v2634, %v2794
      %v2796 = vpop.f32.mrf.mxu0
      %v2797 = vpop.f32.mrf.mxu0
      %v2798 = vadd.f32 %v2637, %v2797
      %v2799 = vpop.f32.mrf.mxu0
      %2800 = vmatprep.mubr.bf16.mxu0 %v1297
      %2801 = vmatmul.mubr.bf16.gmra.mxu0 %v1122
      %v2802 = vpop.f32.mrf.mxu0
      %v2803 = vadd.f32 %v2642, %v2802
      %v2804 = vpop.f32.mrf.mxu0
      %v2805 = vpop.f32.mrf.mxu0
      %v2806 = vadd.f32 %v2645, %v2805
      %v2807 = vpop.f32.mrf.mxu0
      %2808 = vmatprep.mubr.bf16.mxu0 %v1300
      %2809 = vmatmul.mubr.bf16.gmra.mxu0 %v1134
      %v2810 = vpop.f32.mrf.mxu0
      %v2811 = vadd.f32 %v2650, %v2810
      %v2812 = vpop.f32.mrf.mxu0
      %v2813 = vpop.f32.mrf.mxu0
      %v2814 = vadd.f32 %v2653, %v2813
      %v2815 = vpop.f32.mrf.mxu0
      %2816 = vmatprep.mubr.bf16.mxu0 %v1303
      %2817 = vmatmul.mubr.bf16.gmra.mxu0 %v1146
      %v2818 = vpop.f32.mrf.mxu0
      %v2819 = vadd.f32 %v2658, %v2818
      %v2820 = vpop.f32.mrf.mxu0
      %v2821 = vpop.f32.mrf.mxu0
      %v2822 = vadd.f32 %v2661, %v2821
      %v2823 = vpop.f32.mrf.mxu0
      %2824 = vmatprep.mubr.bf16.mxu0 %v1306
      %2825 = vmatmul.mubr.bf16.gmra.mxu0 %v1158
      %v2826 = vpop.f32.mrf.mxu0
      %v2827 = vadd.f32 %v2666, %v2826
      %v2828 = vpop.f32.mrf.mxu0
      %v2829 = vpop.f32.mrf.mxu0
      %v2830 = vadd.f32 %v2669, %v2829
      %v2831 = vpop.f32.mrf.mxu0
      %2832 = vmatprep.mubr.bf16.mxu0 %v1309
      %2833 = vmatmul.mubr.bf16.gmra.mxu0 %v1170
      %v2834 = vpop.f32.mrf.mxu0
      %v2835 = vadd.f32 %v2674, %v2834
      %v2836 = vpop.f32.mrf.mxu0
      %v2837 = vpop.f32.mrf.mxu0
      %v2838 = vadd.f32 %v2677, %v2837
      %v2839 = vpop.f32.mrf.mxu0
      %2840 = vmatprep.mubr.bf16.mxu0 %v1312
      %2841 = vmatmul.mubr.bf16.gmra.mxu0 %v1182
      %v2842 = vpop.f32.mrf.mxu0
      %v2843 = vadd.f32 %v2682, %v2842
      %v2844 = vpop.f32.mrf.mxu0
      %v2845 = vpop.f32.mrf.mxu0
      %v2846 = vadd.f32 %v2685, %v2845
      %v2847 = vpop.f32.mrf.mxu0
      %2848 = vmatprep.mubr.bf16.mxu0 %v1315
      %2849 = vmatmul.mubr.bf16.gmra.mxu0 %v1194
      %v2850 = vpop.f32.mrf.mxu0
      %v2851 = vadd.f32 %v2690, %v2850
      %v2852 = vpop.f32.mrf.mxu0
      %v2853 = vpop.f32.mrf.mxu0
      %v2854 = vadd.f32 %v2693, %v2853
      %v2855 = vpop.f32.mrf.mxu0
      %2856 = vmatprep.mubr.bf16.mxu0 %v1318
      %2857 = vmatmul.mubr.bf16.gmra.mxu0 %v1206
      %v2858 = vpop.f32.mrf.mxu0
      %v2859 = vadd.f32 %v2698, %v2858
      %v2860 = vpop.f32.mrf.mxu0
      %v2861 = vpop.f32.mrf.mxu0
      %v2862 = vadd.f32 %v2701, %v2861
      %v2863 = vpop.f32.mrf.mxu0
      %2864 = vdwg.mxu0
      %2865 = vmatprep.subr.bf16.mxu0 0
      %2866 = vmatpush1.bf16.msra.mxu0 %v2293
      %2867 = vmatprep.subr.bf16.mxu0 0
      %2868 = vmatpush1.bf16.msra.mxu0 %v2292
      %2869 = vmatprep.subr.bf16.mxu0 0
      %2870 = vmatpush1.bf16.msra.mxu0 %v2291
      %2871 = vmatprep.subr.bf16.mxu0 0
      %2872 = vmatpush1.bf16.msra.mxu0 %v2290
      %2873 = vmatprep.subr.bf16.mxu0 0
      %2874 = vmatpush1.bf16.msra.mxu0 %v2289
      %2875 = vmatprep.subr.bf16.mxu0 0
      %2876 = vmatpush1.bf16.msra.mxu0 %v2288
      %2877 = vmatprep.subr.bf16.mxu0 0
      %2878 = vmatpush1.bf16.msra.mxu0 %v2287
      %2879 = vmatprep.subr.bf16.mxu0 0
      %2880 = vmatpush1.bf16.msra.mxu0 %v2286
      %2881 = vmatprep.subr.bf16.mxu0 0
      %2882 = vmatpush2.bf16.msra.mxu0 %v2301
      %2883 = vmatprep.subr.bf16.mxu0 0
      %2884 = vmatpush2.bf16.msra.mxu0 %v2300
      %2885 = vmatprep.subr.bf16.mxu0 0
      %2886 = vmatpush2.bf16.msra.mxu0 %v2299
      %2887 = vmatprep.subr.bf16.mxu0 0
      %2888 = vmatpush2.bf16.msra.mxu0 %v2298
      %2889 = vmatprep.subr.bf16.mxu0 0
      %2890 = vmatpush2.bf16.msra.mxu0 %v2297
      %2891 = vmatprep.subr.bf16.mxu0 0
      %2892 = vmatpush2.bf16.msra.mxu0 %v2296
      %2893 = vmatprep.subr.bf16.mxu0 0
      %2894 = vmatpush2.bf16.msra.mxu0 %v2295
      %2895 = vmatprep.subr.bf16.mxu0 0
      %2896 = vmatpush2.bf16.msra.mxu0 %v2294
      %2897 = vmatprep.mubr.bf16.mxu0 %v1490
      %2898 = vmatmul.mubr.bf16.gmra.mxu0 %v1399
      %v2899 = vpop.f32.mrf.mxu0
      %v2900 = vadd.f32 %v2739, %v2899
      %v2901 = vpop.f32.mrf.mxu0
      %v2902 = vpop.f32.mrf.mxu0
      %v2903 = vadd.f32 %v2742, %v2902
      %v2904 = vpop.f32.mrf.mxu0
      %2905 = vmatprep.mubr.bf16.mxu0 %v1502
      %2906 = vmatmul.mubr.bf16.gmra.mxu0 %v1400
      %v2907 = vpop.f32.mrf.mxu0
      %v2908 = vadd.f32 %v2747, %v2907
      %v2909 = vpop.f32.mrf.mxu0
      %v2910 = vpop.f32.mrf.mxu0
      %v2911 = vadd.f32 %v2750, %v2910
      %v2912 = vpop.f32.mrf.mxu0
      %2913 = vmatprep.mubr.bf16.mxu0 %v1514
      %2914 = vmatmul.mubr.bf16.gmra.mxu0 %v1401
      %v2915 = vpop.f32.mrf.mxu0
      %v2916 = vadd.f32 %v2755, %v2915
      %v2917 = vpop.f32.mrf.mxu0
      %v2918 = vpop.f32.mrf.mxu0
      %v2919 = vadd.f32 %v2758, %v2918
      %v2920 = vpop.f32.mrf.mxu0
      %2921 = vmatprep.mubr.bf16.mxu0 %v1526
      %2922 = vmatmul.mubr.bf16.gmra.mxu0 %v1402
      %v2923 = vpop.f32.mrf.mxu0
      %v2924 = vadd.f32 %v2763, %v2923
      %v2925 = vpop.f32.mrf.mxu0
      %v2926 = vpop.f32.mrf.mxu0
      %v2927 = vadd.f32 %v2766, %v2926
      %v2928 = vpop.f32.mrf.mxu0
      %2929 = vmatprep.mubr.bf16.mxu0 %v1538
      %2930 = vmatmul.mubr.bf16.gmra.mxu0 %v1403
      %v2931 = vpop.f32.mrf.mxu0
      %v2932 = vadd.f32 %v2771, %v2931
      %v2933 = vpop.f32.mrf.mxu0
      %v2934 = vpop.f32.mrf.mxu0
      %v2935 = vadd.f32 %v2774, %v2934
      %v2936 = vpop.f32.mrf.mxu0
      %2937 = vmatprep.mubr.bf16.mxu0 %v1550
      %2938 = vmatmul.mubr.bf16.gmra.mxu0 %v1404
      %v2939 = vpop.f32.mrf.mxu0
      %v2940 = vadd.f32 %v2779, %v2939
      %v2941 = vpop.f32.mrf.mxu0
      %v2942 = vpop.f32.mrf.mxu0
      %v2943 = vadd.f32 %v2782, %v2942
      %v2944 = vpop.f32.mrf.mxu0
      %2945 = vmatprep.mubr.bf16.mxu0 %v1562
      %2946 = vmatmul.mubr.bf16.gmra.mxu0 %v1405
      %v2947 = vpop.f32.mrf.mxu0
      %v2948 = vadd.f32 %v2787, %v2947
      %v2949 = vpop.f32.mrf.mxu0
      %v2950 = vpop.f32.mrf.mxu0
      %v2951 = vadd.f32 %v2790, %v2950
      %v2952 = vpop.f32.mrf.mxu0
      %2953 = vmatprep.mubr.bf16.mxu0 %v1574
      %2954 = vmatmul.mubr.bf16.gmra.mxu0 %v1406
      %v2955 = vpop.f32.mrf.mxu0
      %v2956 = vadd.f32 %v2795, %v2955
      %v2957 = vpop.f32.mrf.mxu0
      %v2958 = vpop.f32.mrf.mxu0
      %v2959 = vadd.f32 %v2798, %v2958
      %v2960 = vpop.f32.mrf.mxu0
      %2961 = vmatprep.mubr.bf16.mxu0 %v1586
      %2962 = vmatmul.mubr.bf16.gmra.mxu0 %v1407
      %v2963 = vpop.f32.mrf.mxu0
      %v2964 = vadd.f32 %v2803, %v2963
      %v2965 = vpop.f32.mrf.mxu0
      %v2966 = vpop.f32.mrf.mxu0
      %v2967 = vadd.f32 %v2806, %v2966
      %v2968 = vpop.f32.mrf.mxu0
      %2969 = vmatprep.mubr.bf16.mxu0 %v1598
      %2970 = vmatmul.mubr.bf16.gmra.mxu0 %v1408
      %v2971 = vpop.f32.mrf.mxu0
      %v2972 = vadd.f32 %v2811, %v2971
      %v2973 = vpop.f32.mrf.mxu0
      %v2974 = vpop.f32.mrf.mxu0
      %v2975 = vadd.f32 %v2814, %v2974
      %v2976 = vpop.f32.mrf.mxu0
      %2977 = vmatprep.mubr.bf16.mxu0 %v1610
      %2978 = vmatmul.mubr.bf16.gmra.mxu0 %v1409
      %v2979 = vpop.f32.mrf.mxu0
      %v2980 = vadd.f32 %v2819, %v2979
      %v2981 = vpop.f32.mrf.mxu0
      %v2982 = vpop.f32.mrf.mxu0
      %v2983 = vadd.f32 %v2822, %v2982
      %v2984 = vpop.f32.mrf.mxu0
      %2985 = vmatprep.mubr.bf16.mxu0 %v1622
      %2986 = vmatmul.mubr.bf16.gmra.mxu0 %v1410
      %v2987 = vpop.f32.mrf.mxu0
      %v2988 = vadd.f32 %v2827, %v2987
      %v2989 = vpop.f32.mrf.mxu0
      %v2990 = vpop.f32.mrf.mxu0
      %v2991 = vadd.f32 %v2830, %v2990
      %v2992 = vpop.f32.mrf.mxu0
      %2993 = vmatprep.mubr.bf16.mxu0 %v1634
      %2994 = vmatmul.mubr.bf16.gmra.mxu0 %v1411
      %v2995 = vpop.f32.mrf.mxu0
      %v2996 = vadd.f32 %v2835, %v2995
      %v2997 = vpop.f32.mrf.mxu0
      %v2998 = vpop.f32.mrf.mxu0
      %v2999 = vadd.f32 %v2838, %v2998
      %v3000 = vpop.f32.mrf.mxu0
      %3001 = vmatprep.mubr.bf16.mxu0 %v1646
      %3002 = vmatmul.mubr.bf16.gmra.mxu0 %v1412
      %v3003 = vpop.f32.mrf.mxu0
      %v3004 = vadd.f32 %v2843, %v3003
      %v3005 = vpop.f32.mrf.mxu0
      %v3006 = vpop.f32.mrf.mxu0
      %v3007 = vadd.f32 %v2846, %v3006
      %v3008 = vpop.f32.mrf.mxu0
      %3009 = vmatprep.mubr.bf16.mxu0 %v1658
      %3010 = vmatmul.mubr.bf16.gmra.mxu0 %v1413
      %v3011 = vpop.f32.mrf.mxu0
      %v3012 = vadd.f32 %v2851, %v3011
      %v3013 = vpop.f32.mrf.mxu0
      %v3014 = vpop.f32.mrf.mxu0
      %v3015 = vadd.f32 %v2854, %v3014
      %v3016 = vpop.f32.mrf.mxu0
      %3017 = vmatprep.mubr.bf16.mxu0 %v1670
      %3018 = vmatmul.mubr.bf16.gmra.mxu0 %v1414
      %v3019 = vpop.f32.mrf.mxu0
      %v3020 = vadd.f32 %v2859, %v3019
      %v3021 = vpop.f32.mrf.mxu0
      %v3022 = vpop.f32.mrf.mxu0
      %v3023 = vadd.f32 %v2862, %v3022
      %v3024 = vpop.f32.mrf.mxu0
      %3025 = vdwg.mxu0
      %3026 = vmatprep.subr.bf16.mxu0 0
      %3027 = vmatpush1.bf16.msra.mxu0 %v2309
      %3028 = vmatprep.subr.bf16.mxu0 0
      %3029 = vmatpush1.bf16.msra.mxu0 %v2308
      %3030 = vmatprep.subr.bf16.mxu0 0
      %3031 = vmatpush1.bf16.msra.mxu0 %v2307
      %3032 = vmatprep.subr.bf16.mxu0 0
      %3033 = vmatpush1.bf16.msra.mxu0 %v2306
      %3034 = vmatprep.subr.bf16.mxu0 0
      %3035 = vmatpush1.bf16.msra.mxu0 %v2305
      %3036 = vmatprep.subr.bf16.mxu0 0
      %3037 = vmatpush1.bf16.msra.mxu0 %v2304
      %3038 = vmatprep.subr.bf16.mxu0 0
      %3039 = vmatpush1.bf16.msra.mxu0 %v2303
      %3040 = vmatprep.subr.bf16.mxu0 0
      %3041 = vmatpush1.bf16.msra.mxu0 %v2302
      %3042 = vmatprep.subr.bf16.mxu0 0
      %3043 = vmatpush2.bf16.msra.mxu0 0
      %3044 = vmatprep.subr.bf16.mxu0 0
      %3045 = vmatpush2.bf16.msra.mxu0 0
      %3046 = vmatprep.subr.bf16.mxu0 0
      %3047 = vmatpush2.bf16.msra.mxu0 0
      %3048 = vmatprep.subr.bf16.mxu0 0
      %3049 = vmatpush2.bf16.msra.mxu0 0
      %3050 = vmatprep.subr.bf16.mxu0 0
      %3051 = vmatpush2.bf16.msra.mxu0 0
      %3052 = vmatprep.subr.bf16.mxu0 0
      %3053 = vmatpush2.bf16.msra.mxu0 0
      %3054 = vmatprep.subr.bf16.mxu0 0
      %3055 = vmatpush2.bf16.msra.mxu0 0
      %3056 = vmatprep.subr.bf16.mxu0 0
      %3057 = vmatpush2.bf16.msra.mxu0 0
      %3058 = vmatprep.mubr.bf16.mxu0 0
      %3059 = vmatmul.mubr.bf16.gmra.mxu0 %v1737
      %v3060 = vpop.f32.mrf.mxu0
      %v3061 = vadd.f32 %v2900, %v3060
      %v3062 = vpop.f32.mrf.mxu0
      %v3063 = vpop.f32.mrf.mxu0
      %v3064 = vadd.f32 %v2903, %v3063
      %v3065 = vpop.f32.mrf.mxu0
      %3066 = vmatprep.mubr.bf16.mxu0 0
      %3067 = vmatmul.mubr.bf16.gmra.mxu0 %v1740
      %v3068 = vpop.f32.mrf.mxu0
      %v3069 = vadd.f32 %v2908, %v3068
      %v3070 = vpop.f32.mrf.mxu0
      %v3071 = vpop.f32.mrf.mxu0
      %v3072 = vadd.f32 %v2911, %v3071
      %v3073 = vpop.f32.mrf.mxu0
      %3074 = vmatprep.mubr.bf16.mxu0 0
      %3075 = vmatmul.mubr.bf16.gmra.mxu0 %v1743
      %v3076 = vpop.f32.mrf.mxu0
      %v3077 = vadd.f32 %v2916, %v3076
      %v3078 = vpop.f32.mrf.mxu0
      %v3079 = vpop.f32.mrf.mxu0
      %v3080 = vadd.f32 %v2919, %v3079
      %v3081 = vpop.f32.mrf.mxu0
      %3082 = vmatprep.mubr.bf16.mxu0 0
      %3083 = vmatmul.mubr.bf16.gmra.mxu0 %v1746
      %v3084 = vpop.f32.mrf.mxu0
      %v3085 = vadd.f32 %v2924, %v3084
      %v3086 = vpop.f32.mrf.mxu0
      %v3087 = vpop.f32.mrf.mxu0
      %v3088 = vadd.f32 %v2927, %v3087
      %v3089 = vpop.f32.mrf.mxu0
      %3090 = vmatprep.mubr.bf16.mxu0 0
      %3091 = vmatmul.mubr.bf16.gmra.mxu0 %v1749
      %v3092 = vpop.f32.mrf.mxu0
      %v3093 = vadd.f32 %v2932, %v3092
      %v3094 = vpop.f32.mrf.mxu0
      %v3095 = vpop.f32.mrf.mxu0
      %v3096 = vadd.f32 %v2935, %v3095
      %v3097 = vpop.f32.mrf.mxu0
      %3098 = vmatprep.mubr.bf16.mxu0 0
      %3099 = vmatmul.mubr.bf16.gmra.mxu0 %v1752
      %v3100 = vpop.f32.mrf.mxu0
      %v3101 = vadd.f32 %v2940, %v3100
      %v3102 = vpop.f32.mrf.mxu0
      %v3103 = vpop.f32.mrf.mxu0
      %v3104 = vadd.f32 %v2943, %v3103
      %v3105 = vpop.f32.mrf.mxu0
      %3106 = vmatprep.mubr.bf16.mxu0 0
      %3107 = vmatmul.mubr.bf16.gmra.mxu0 %v1755
      %v3108 = vpop.f32.mrf.mxu0
      %v3109 = vadd.f32 %v2948, %v3108
      %v3110 = vpop.f32.mrf.mxu0
      %v3111 = vpop.f32.mrf.mxu0
      %v3112 = vadd.f32 %v2951, %v3111
      %v3113 = vpop.f32.mrf.mxu0
      %3114 = vmatprep.mubr.bf16.mxu0 0
      %3115 = vmatmul.mubr.bf16.gmra.mxu0 %v1758
      %v3116 = vpop.f32.mrf.mxu0
      %v3117 = vadd.f32 %v2956, %v3116
      %v3118 = vpop.f32.mrf.mxu0
      %v3119 = vpop.f32.mrf.mxu0
      %v3120 = vadd.f32 %v2959, %v3119
      %v3121 = vpop.f32.mrf.mxu0
      %3122 = vmatprep.mubr.bf16.mxu0 0
      %3123 = vmatmul.mubr.bf16.gmra.mxu0 %v1761
      %v3124 = vpop.f32.mrf.mxu0
      %v3125 = vadd.f32 %v2964, %v3124
      %v3126 = vpop.f32.mrf.mxu0
      %v3127 = vpop.f32.mrf.mxu0
      %v3128 = vadd.f32 %v2967, %v3127
      %v3129 = vpop.f32.mrf.mxu0
      %3130 = vmatprep.mubr.bf16.mxu0 0
      %3131 = vmatmul.mubr.bf16.gmra.mxu0 %v1764
      %v3132 = vpop.f32.mrf.mxu0
      %v3133 = vadd.f32 %v2972, %v3132
      %v3134 = vpop.f32.mrf.mxu0
      %v3135 = vpop.f32.mrf.mxu0
      %v3136 = vadd.f32 %v2975, %v3135
      %v3137 = vpop.f32.mrf.mxu0
      %3138 = vmatprep.mubr.bf16.mxu0 0
      %3139 = vmatmul.mubr.bf16.gmra.mxu0 %v1767
      %v3140 = vpop.f32.mrf.mxu0
      %v3141 = vadd.f32 %v2980, %v3140
      %v3142 = vpop.f32.mrf.mxu0
      %v3143 = vpop.f32.mrf.mxu0
      %v3144 = vadd.f32 %v2983, %v3143
      %v3145 = vpop.f32.mrf.mxu0
      %3146 = vmatprep.mubr.bf16.mxu0 0
      %3147 = vmatmul.mubr.bf16.gmra.mxu0 %v1770
      %v3148 = vpop.f32.mrf.mxu0
      %v3149 = vadd.f32 %v2988, %v3148
      %v3150 = vpop.f32.mrf.mxu0
      %v3151 = vpop.f32.mrf.mxu0
      %v3152 = vadd.f32 %v2991, %v3151
      %v3153 = vpop.f32.mrf.mxu0
      %3154 = vmatprep.mubr.bf16.mxu0 0
      %3155 = vmatmul.mubr.bf16.gmra.mxu0 %v1773
      %v3156 = vpop.f32.mrf.mxu0
      %v3157 = vadd.f32 %v2996, %v3156
      %v3158 = vpop.f32.mrf.mxu0
      %v3159 = vpop.f32.mrf.mxu0
      %v3160 = vadd.f32 %v2999, %v3159
      %v3161 = vpop.f32.mrf.mxu0
      %3162 = vmatprep.mubr.bf16.mxu0 0
      %3163 = vmatmul.mubr.bf16.gmra.mxu0 %v1776
      %v3164 = vpop.f32.mrf.mxu0
      %v3165 = vadd.f32 %v3004, %v3164
      %v3166 = vpop.f32.mrf.mxu0
      %v3167 = vpop.f32.mrf.mxu0
      %v3168 = vadd.f32 %v3007, %v3167
      %v3169 = vpop.f32.mrf.mxu0
      %3170 = vmatprep.mubr.bf16.mxu0 0
      %3171 = vmatmul.mubr.bf16.gmra.mxu0 %v1779
      %v3172 = vpop.f32.mrf.mxu0
      %v3173 = vadd.f32 %v3012, %v3172
      %v3174 = vpop.f32.mrf.mxu0
      %v3175 = vpop.f32.mrf.mxu0
      %v3176 = vadd.f32 %v3015, %v3175
      %v3177 = vpop.f32.mrf.mxu0
      %3178 = vmatprep.mubr.bf16.mxu0 0
      %3179 = vmatmul.mubr.bf16.gmra.mxu0 %v1782
      %v3180 = vpop.f32.mrf.mxu0
      %v3181 = vadd.f32 %v3020, %v3180
      %v3182 = vpop.f32.mrf.mxu0
      %v3183 = vpop.f32.mrf.mxu0
      %v3184 = vadd.f32 %v3023, %v3183
      %v3185 = vpop.f32.mrf.mxu0
      %3186 = vdwg.mxu0
      %v3187 = vxor.u32 %v3061, 2147483648
      %v3188 = vxor.u32 %v3064, 2147483648
      %v3189 = vxor.u32 %v3069, 2147483648
      %v3190 = vxor.u32 %v3072, 2147483648
      %v3191 = vxor.u32 %v3077, 2147483648
      %v3192 = vxor.u32 %v3080, 2147483648
      %v3193 = vxor.u32 %v3085, 2147483648
      %v3194 = vxor.u32 %v3088, 2147483648
      %v3195 = vxor.u32 %v3093, 2147483648
      %v3196 = vxor.u32 %v3096, 2147483648
      %v3197 = vxor.u32 %v3101, 2147483648
      %v3198 = vxor.u32 %v3104, 2147483648
      %v3199 = vxor.u32 %v3109, 2147483648
      %v3200 = vxor.u32 %v3112, 2147483648
      %v3201 = vxor.u32 %v3117, 2147483648
      %v3202 = vxor.u32 %v3120, 2147483648
      %v3203 = vxor.u32 %v3125, 2147483648
      %v3204 = vxor.u32 %v3128, 2147483648
      %v3205 = vxor.u32 %v3133, 2147483648
      %v3206 = vxor.u32 %v3136, 2147483648
      %v3207 = vxor.u32 %v3141, 2147483648
      %v3208 = vxor.u32 %v3144, 2147483648
      %v3209 = vxor.u32 %v3149, 2147483648
      %v3210 = vxor.u32 %v3152, 2147483648
      %v3211 = vxor.u32 %v3157, 2147483648
      %v3212 = vxor.u32 %v3160, 2147483648
      %v3213 = vxor.u32 %v3165, 2147483648
      %v3214 = vxor.u32 %v3168, 2147483648
      %v3215 = vxor.u32 %v3173, 2147483648
      %v3216 = vxor.u32 %v3176, 2147483648
      %v3217 = vxor.u32 %v3181, 2147483648
      %v3218 = vxor.u32 %v3184, 2147483648
      %v3219 = vmul.f32 %v3187, 1.442695
      %v3220 = vpow.pop %v3219
      %v3221 = vmul.f32 %v3188, 1.442695
      %v3222 = vpow.pop %v3221
      %v3223 = vmul.f32 %v3189, 1.442695
      %v3224 = vpow.pop %v3223
      %v3225 = vmul.f32 %v3190, 1.442695
      %v3226 = vpow.pop %v3225
      %v3227 = vmul.f32 %v3191, 1.442695
      %v3228 = vpow.pop %v3227
      %v3229 = vmul.f32 %v3192, 1.442695
      %v3230 = vpow.pop %v3229
      %v3231 = vmul.f32 %v3193, 1.442695
      %v3232 = vpow.pop %v3231
      %v3233 = vmul.f32 %v3194, 1.442695
      %v3234 = vpow.pop %v3233
      %v3235 = vmul.f32 %v3195, 1.442695
      %v3236 = vpow.pop %v3235
      %v3237 = vmul.f32 %v3196, 1.442695
      %v3238 = vpow.pop %v3237
      %v3239 = vmul.f32 %v3197, 1.442695
      %v3240 = vpow.pop %v3239
      %v3241 = vmul.f32 %v3198, 1.442695
      %v3242 = vpow.pop %v3241
      %v3243 = vmul.f32 %v3199, 1.442695
      %v3244 = vpow.pop %v3243
      %v3245 = vmul.f32 %v3200, 1.442695
      %v3246 = vpow.pop %v3245
      %v3247 = vmul.f32 %v3201, 1.442695
      %v3248 = vpow.pop %v3247
      %v3249 = vmul.f32 %v3202, 1.442695
      %v3250 = vpow.pop %v3249
      %v3251 = vmul.f32 %v3203, 1.442695
      %v3252 = vpow.pop %v3251
      %v3253 = vmul.f32 %v3204, 1.442695
      %v3254 = vpow.pop %v3253
      %v3255 = vmul.f32 %v3205, 1.442695
      %v3256 = vpow.pop %v3255
      %v3257 = vmul.f32 %v3206, 1.442695
      %v3258 = vpow.pop %v3257
      %v3259 = vmul.f32 %v3207, 1.442695
      %v3260 = vpow.pop %v3259
      %v3261 = vmul.f32 %v3208, 1.442695
      %v3262 = vpow.pop %v3261
      %v3263 = vmul.f32 %v3209, 1.442695
      %v3264 = vpow.pop %v3263
      %v3265 = vmul.f32 %v3210, 1.442695
      %v3266 = vpow.pop %v3265
      %v3267 = vmul.f32 %v3211, 1.442695
      %v3268 = vpow.pop %v3267
      %v3269 = vmul.f32 %v3212, 1.442695
      %v3270 = vpow.pop %v3269
      %v3271 = vmul.f32 %v3213, 1.442695
      %v3272 = vpow.pop %v3271
      %v3273 = vmul.f32 %v3214, 1.442695
      %v3274 = vpow.pop %v3273
      %v3275 = vmul.f32 %v3215, 1.442695
      %v3276 = vpow.pop %v3275
      %v3277 = vmul.f32 %v3216, 1.442695
      %v3278 = vpow.pop %v3277
      %v3279 = vmul.f32 %v3217, 1.442695
      %v3280 = vpow.pop %v3279
      %v3281 = vmul.f32 %v3218, 1.442695
      %v3282 = vpow.pop %v3281
      %v3283 = vadd.f32 %v3220, 1.0
      %v3284 = vadd.f32 %v3222, 1.0
      %v3285 = vadd.f32 %v3224, 1.0
      %v3286 = vadd.f32 %v3226, 1.0
      %v3287 = vadd.f32 %v3228, 1.0
      %v3288 = vadd.f32 %v3230, 1.0
      %v3289 = vadd.f32 %v3232, 1.0
      %v3290 = vadd.f32 %v3234, 1.0
      %v3291 = vadd.f32 %v3236, 1.0
      %v3292 = vadd.f32 %v3238, 1.0
      %v3293 = vadd.f32 %v3240, 1.0
      %v3294 = vadd.f32 %v3242, 1.0
      %v3295 = vadd.f32 %v3244, 1.0
      %v3296 = vadd.f32 %v3246, 1.0
      %v3297 = vadd.f32 %v3248, 1.0
      %v3298 = vadd.f32 %v3250, 1.0
      %v3299 = vadd.f32 %v3252, 1.0
      %v3300 = vadd.f32 %v3254, 1.0
      %v3301 = vadd.f32 %v3256, 1.0
      %v3302 = vadd.f32 %v3258, 1.0
      %v3303 = vadd.f32 %v3260, 1.0
      %v3304 = vadd.f32 %v3262, 1.0
      %v3305 = vadd.f32 %v3264, 1.0
      %v3306 = vadd.f32 %v3266, 1.0
      %v3307 = vadd.f32 %v3268, 1.0
      %v3308 = vadd.f32 %v3270, 1.0
      %v3309 = vadd.f32 %v3272, 1.0
      %v3310 = vadd.f32 %v3274, 1.0
      %v3311 = vadd.f32 %v3276, 1.0
      %v3312 = vadd.f32 %v3278, 1.0
      %v3313 = vadd.f32 %v3280, 1.0
      %v3314 = vadd.f32 %v3282, 1.0
      %v3315 = vrcp.pop %v3283
      %v3316 = vmul.f32 1.0, %v3315
      %v3317 = vrcp.pop %v3284
      %v3318 = vmul.f32 1.0, %v3317
      %v3319 = vrcp.pop %v3285
      %v3320 = vmul.f32 1.0, %v3319
      %v3321 = vrcp.pop %v3286
      %v3322 = vmul.f32 1.0, %v3321
      %v3323 = vrcp.pop %v3287
      %v3324 = vmul.f32 1.0, %v3323
      %v3325 = vrcp.pop %v3288
      %v3326 = vmul.f32 1.0, %v3325
      %v3327 = vrcp.pop %v3289
      %v3328 = vmul.f32 1.0, %v3327
      %v3329 = vrcp.pop %v3290
      %v3330 = vmul.f32 1.0, %v3329
      %v3331 = vrcp.pop %v3291
      %v3332 = vmul.f32 1.0, %v3331
      %v3333 = vrcp.pop %v3292
      %v3334 = vmul.f32 1.0, %v3333
      %v3335 = vrcp.pop %v3293
      %v3336 = vmul.f32 1.0, %v3335
      %v3337 = vrcp.pop %v3294
      %v3338 = vmul.f32 1.0, %v3337
      %v3339 = vrcp.pop %v3295
      %v3340 = vmul.f32 1.0, %v3339
      %v3341 = vrcp.pop %v3296
      %v3342 = vmul.f32 1.0, %v3341
      %v3343 = vrcp.pop %v3297
      %v3344 = vmul.f32 1.0, %v3343
      %v3345 = vrcp.pop %v3298
      %v3346 = vmul.f32 1.0, %v3345
      %v3347 = vrcp.pop %v3299
      %v3348 = vmul.f32 1.0, %v3347
      %v3349 = vrcp.pop %v3300
      %v3350 = vmul.f32 1.0, %v3349
      %v3351 = vrcp.pop %v3301
      %v3352 = vmul.f32 1.0, %v3351
      %v3353 = vrcp.pop %v3302
      %v3354 = vmul.f32 1.0, %v3353
      %v3355 = vrcp.pop %v3303
      %v3356 = vmul.f32 1.0, %v3355
      %v3357 = vrcp.pop %v3304
      %v3358 = vmul.f32 1.0, %v3357
      %v3359 = vrcp.pop %v3305
      %v3360 = vmul.f32 1.0, %v3359
      %v3361 = vrcp.pop %v3306
      %v3362 = vmul.f32 1.0, %v3361
      %v3363 = vrcp.pop %v3307
      %v3364 = vmul.f32 1.0, %v3363
      %v3365 = vrcp.pop %v3308
      %v3366 = vmul.f32 1.0, %v3365
      %v3367 = vrcp.pop %v3309
      %v3368 = vmul.f32 1.0, %v3367
      %v3369 = vrcp.pop %v3310
      %v3370 = vmul.f32 1.0, %v3369
      %v3371 = vrcp.pop %v3311
      %v3372 = vmul.f32 1.0, %v3371
      %v3373 = vrcp.pop %v3312
      %v3374 = vmul.f32 1.0, %v3373
      %v3375 = vrcp.pop %v3313
      %v3376 = vmul.f32 1.0, %v3375
      %v3377 = vrcp.pop %v3314
      %v3378 = vmul.f32 1.0, %v3377
      %v3379 = vmul.f32 %v3061, %v3316
      %v3380 = vmul.f32 %v3064, %v3318
      %v3381 = vmul.f32 %v3069, %v3320
      %v3382 = vmul.f32 %v3072, %v3322
      %v3383 = vmul.f32 %v3077, %v3324
      %v3384 = vmul.f32 %v3080, %v3326
      %v3385 = vmul.f32 %v3085, %v3328
      %v3386 = vmul.f32 %v3088, %v3330
      %v3387 = vmul.f32 %v3093, %v3332
      %v3388 = vmul.f32 %v3096, %v3334
      %v3389 = vmul.f32 %v3101, %v3336
      %v3390 = vmul.f32 %v3104, %v3338
      %v3391 = vmul.f32 %v3109, %v3340
      %v3392 = vmul.f32 %v3112, %v3342
      %v3393 = vmul.f32 %v3117, %v3344
      %v3394 = vmul.f32 %v3120, %v3346
      %v3395 = vmul.f32 %v3125, %v3348
      %v3396 = vmul.f32 %v3128, %v3350
      %v3397 = vmul.f32 %v3133, %v3352
      %v3398 = vmul.f32 %v3136, %v3354
      %v3399 = vmul.f32 %v3141, %v3356
      %v3400 = vmul.f32 %v3144, %v3358
      %v3401 = vmul.f32 %v3149, %v3360
      %v3402 = vmul.f32 %v3152, %v3362
      %v3403 = vmul.f32 %v3157, %v3364
      %v3404 = vmul.f32 %v3160, %v3366
      %v3405 = vmul.f32 %v3165, %v3368
      %v3406 = vmul.f32 %v3168, %v3370
      %v3407 = vmul.f32 %v3173, %v3372
      %v3408 = vmul.f32 %v3176, %v3374
      %v3409 = vmul.f32 %v3181, %v3376
      %v3410 = vmul.f32 %v3184, %v3378
      %vm3411 = vsmask.f32 3328
      %vm3412 = vsmask.f32 7440
      %vm3413 = vmor %vm3411, %vm3412
      %v3415 = vshrl.u32 %v276, 16
      %v3417 = vrot.slane %v3415, 4
      %v3418 = vshll.u32 %v276, 16
      %v3420 = vrot.slane %v3418, 5
      %v3421 = vor.u32 %v3417, %v3420
      %v3422 = vrot.slane %v3421, 4
      %v3424 = vshll.u32 %v277, 16
      %v3426 = vrot.slane %v3424, 5
      %v3427 = vsel %vm3413, %v3422, %v3426
      %v3428 = vshrl.u32 %v277, 16
      %v3430 = vrot.slane %v3428, 4
      %v3431 = vor.u32 %v3430, %v3426
      %v3432 = vrot.slane %v3431, 4
      %v3434 = vshll.u32 %v308, 16
      %v3436 = vrot.slane %v3434, 5
      %v3437 = vsel %vm3413, %v3432, %v3436
      %v3439 = vshrl.u32 %v278, 16
      %v3441 = vrot.slane %v3439, 4
      %v3442 = vshll.u32 %v278, 16
      %v3444 = vrot.slane %v3442, 5
      %v3445 = vor.u32 %v3441, %v3444
      %v3446 = vrot.slane %v3445, 4
      %v3448 = vshll.u32 %v279, 16
      %v3450 = vrot.slane %v3448, 5
      %v3451 = vsel %vm3413, %v3446, %v3450
      %v3452 = vshrl.u32 %v279, 16
      %v3454 = vrot.slane %v3452, 4
      %v3455 = vor.u32 %v3454, %v3450
      %v3456 = vrot.slane %v3455, 4
      %v3458 = vshll.u32 %v309, 16
      %v3460 = vrot.slane %v3458, 5
      %v3461 = vsel %vm3413, %v3456, %v3460
      %v3463 = vshrl.u32 %v280, 16
      %v3465 = vrot.slane %v3463, 4
      %v3466 = vshll.u32 %v280, 16
      %v3468 = vrot.slane %v3466, 5
      %v3469 = vor.u32 %v3465, %v3468
      %v3470 = vrot.slane %v3469, 4
      %v3472 = vshll.u32 %v281, 16
      %v3474 = vrot.slane %v3472, 5
      %v3475 = vsel %vm3413, %v3470, %v3474
      %v3476 = vshrl.u32 %v281, 16
      %v3478 = vrot.slane %v3476, 4
      %v3479 = vor.u32 %v3478, %v3474
      %v3480 = vrot.slane %v3479, 4
      %v3482 = vshll.u32 %v310, 16
      %v3484 = vrot.slane %v3482, 5
      %v3485 = vsel %vm3413, %v3480, %v3484
      %v3487 = vshrl.u32 %v282, 16
      %v3489 = vrot.slane %v3487, 4
      %v3490 = vshll.u32 %v282, 16
      %v3492 = vrot.slane %v3490, 5
      %v3493 = vor.u32 %v3489, %v3492
      %v3494 = vrot.slane %v3493, 4
      %v3496 = vshll.u32 %v283, 16
      %v3498 = vrot.slane %v3496, 5
      %v3499 = vsel %vm3413, %v3494, %v3498
      %v3500 = vshrl.u32 %v283, 16
      %v3502 = vrot.slane %v3500, 4
      %v3503 = vor.u32 %v3502, %v3498
      %v3504 = vrot.slane %v3503, 4
      %v3506 = vshll.u32 %v311, 16
      %v3508 = vrot.slane %v3506, 5
      %v3509 = vsel %vm3413, %v3504, %v3508
      %v3511 = vshrl.u32 %v284, 16
      %v3513 = vrot.slane %v3511, 4
      %v3514 = vshll.u32 %v284, 16
      %v3516 = vrot.slane %v3514, 5
      %v3517 = vor.u32 %v3513, %v3516
      %v3518 = vrot.slane %v3517, 4
      %v3520 = vshll.u32 %v285, 16
      %v3522 = vrot.slane %v3520, 5
      %v3523 = vsel %vm3413, %v3518, %v3522
      %v3524 = vshrl.u32 %v285, 16
      %v3526 = vrot.slane %v3524, 4
      %v3527 = vor.u32 %v3526, %v3522
      %v3528 = vrot.slane %v3527, 4
      %v3530 = vshll.u32 %v312, 16
      %v3532 = vrot.slane %v3530, 5
      %v3533 = vsel %vm3413, %v3528, %v3532
      %v3535 = vshrl.u32 %v286, 16
      %v3537 = vrot.slane %v3535, 4
      %v3538 = vshll.u32 %v286, 16
      %v3540 = vrot.slane %v3538, 5
      %v3541 = vor.u32 %v3537, %v3540
      %v3542 = vrot.slane %v3541, 4
      %v3544 = vshll.u32 %v287, 16
      %v3546 = vrot.slane %v3544, 5
      %v3547 = vsel %vm3413, %v3542, %v3546
      %v3548 = vshrl.u32 %v287, 16
      %v3550 = vrot.slane %v3548, 4
      %v3551 = vor.u32 %v3550, %v3546
      %v3552 = vrot.slane %v3551, 4
      %v3554 = vshll.u32 %v313, 16
      %v3556 = vrot.slane %v3554, 5
      %v3557 = vsel %vm3413, %v3552, %v3556
      %v3559 = vshrl.u32 %v288, 16
      %v3561 = vrot.slane %v3559, 4
      %v3562 = vshll.u32 %v288, 16
      %v3564 = vrot.slane %v3562, 5
      %v3565 = vor.u32 %v3561, %v3564
      %v3566 = vrot.slane %v3565, 4
      %v3568 = vshll.u32 %v289, 16
      %v3570 = vrot.slane %v3568, 5
      %v3571 = vsel %vm3413, %v3566, %v3570
      %v3572 = vshrl.u32 %v289, 16
      %v3574 = vrot.slane %v3572, 4
      %v3575 = vor.u32 %v3574, %v3570
      %v3576 = vrot.slane %v3575, 4
      %v3578 = vshll.u32 %v314, 16
      %v3580 = vrot.slane %v3578, 5
      %v3581 = vsel %vm3413, %v3576, %v3580
      %v3583 = vshrl.u32 %v290, 16
      %v3585 = vrot.slane %v3583, 4
      %v3586 = vshll.u32 %v290, 16
      %v3588 = vrot.slane %v3586, 5
      %v3589 = vor.u32 %v3585, %v3588
      %v3590 = vrot.slane %v3589, 4
      %v3592 = vshll.u32 %v291, 16
      %v3594 = vrot.slane %v3592, 5
      %v3595 = vsel %vm3413, %v3590, %v3594
      %v3596 = vshrl.u32 %v291, 16
      %v3598 = vrot.slane %v3596, 4
      %v3599 = vor.u32 %v3598, %v3594
      %v3600 = vrot.slane %v3599, 4
      %v3602 = vshll.u32 %v315, 16
      %v3604 = vrot.slane %v3602, 5
      %v3605 = vsel %vm3413, %v3600, %v3604
      %v3607 = vshrl.u32 %v292, 16
      %v3609 = vrot.slane %v3607, 4
      %v3610 = vshll.u32 %v292, 16
      %v3612 = vrot.slane %v3610, 5
      %v3613 = vor.u32 %v3609, %v3612
      %v3614 = vrot.slane %v3613, 4
      %v3616 = vshll.u32 %v293, 16
      %v3618 = vrot.slane %v3616, 5
      %v3619 = vsel %vm3413, %v3614, %v3618
      %v3620 = vshrl.u32 %v293, 16
      %v3622 = vrot.slane %v3620, 4
      %v3623 = vor.u32 %v3622, %v3618
      %v3624 = vrot.slane %v3623, 4
      %v3626 = vshll.u32 %v316, 16
      %v3628 = vrot.slane %v3626, 5
      %v3629 = vsel %vm3413, %v3624, %v3628
      %v3631 = vshrl.u32 %v294, 16
      %v3633 = vrot.slane %v3631, 4
      %v3634 = vshll.u32 %v294, 16
      %v3636 = vrot.slane %v3634, 5
      %v3637 = vor.u32 %v3633, %v3636
      %v3638 = vrot.slane %v3637, 4
      %v3640 = vshll.u32 %v295, 16
      %v3642 = vrot.slane %v3640, 5
      %v3643 = vsel %vm3413, %v3638, %v3642
      %v3644 = vshrl.u32 %v295, 16
      %v3646 = vrot.slane %v3644, 4
      %v3647 = vor.u32 %v3646, %v3642
      %v3648 = vrot.slane %v3647, 4
      %v3650 = vshll.u32 %v317, 16
      %v3652 = vrot.slane %v3650, 5
      %v3653 = vsel %vm3413, %v3648, %v3652
      %v3655 = vshrl.u32 %v296, 16
      %v3657 = vrot.slane %v3655, 4
      %v3658 = vshll.u32 %v296, 16
      %v3660 = vrot.slane %v3658, 5
      %v3661 = vor.u32 %v3657, %v3660
      %v3662 = vrot.slane %v3661, 4
      %v3664 = vshll.u32 %v297, 16
      %v3666 = vrot.slane %v3664, 5
      %v3667 = vsel %vm3413, %v3662, %v3666
      %v3668 = vshrl.u32 %v297, 16
      %v3670 = vrot.slane %v3668, 4
      %v3671 = vor.u32 %v3670, %v3666
      %v3672 = vrot.slane %v3671, 4
      %v3674 = vshll.u32 %v318, 16
      %v3676 = vrot.slane %v3674, 5
      %v3677 = vsel %vm3413, %v3672, %v3676
      %v3679 = vshrl.u32 %v298, 16
      %v3681 = vrot.slane %v3679, 4
      %v3682 = vshll.u32 %v298, 16
      %v3684 = vrot.slane %v3682, 5
      %v3685 = vor.u32 %v3681, %v3684
      %v3686 = vrot.slane %v3685, 4
      %v3688 = vshll.u32 %v299, 16
      %v3690 = vrot.slane %v3688, 5
      %v3691 = vsel %vm3413, %v3686, %v3690
      %v3692 = vshrl.u32 %v299, 16
      %v3694 = vrot.slane %v3692, 4
      %v3695 = vor.u32 %v3694, %v3690
      %v3696 = vrot.slane %v3695, 4
      %v3698 = vshll.u32 %v319, 16
      %v3700 = vrot.slane %v3698, 5
      %v3701 = vsel %vm3413, %v3696, %v3700
      %v3703 = vshrl.u32 %v300, 16
      %v3705 = vrot.slane %v3703, 4
      %v3706 = vshll.u32 %v300, 16
      %v3708 = vrot.slane %v3706, 5
      %v3709 = vor.u32 %v3705, %v3708
      %v3710 = vrot.slane %v3709, 4
      %v3712 = vshll.u32 %v301, 16
      %v3714 = vrot.slane %v3712, 5
      %v3715 = vsel %vm3413, %v3710, %v3714
      %v3716 = vshrl.u32 %v301, 16
      %v3718 = vrot.slane %v3716, 4
      %v3719 = vor.u32 %v3718, %v3714
      %v3720 = vrot.slane %v3719, 4
      %v3722 = vshll.u32 %v320, 16
      %v3724 = vrot.slane %v3722, 5
      %v3725 = vsel %vm3413, %v3720, %v3724
      %v3727 = vshrl.u32 %v302, 16
      %v3729 = vrot.slane %v3727, 4
      %v3730 = vshll.u32 %v302, 16
      %v3732 = vrot.slane %v3730, 5
      %v3733 = vor.u32 %v3729, %v3732
      %v3734 = vrot.slane %v3733, 4
      %v3736 = vshll.u32 %v303, 16
      %v3738 = vrot.slane %v3736, 5
      %v3739 = vsel %vm3413, %v3734, %v3738
      %v3740 = vshrl.u32 %v303, 16
      %v3742 = vrot.slane %v3740, 4
      %v3743 = vor.u32 %v3742, %v3738
      %v3744 = vrot.slane %v3743, 4
      %v3746 = vshll.u32 %v321, 16
      %v3748 = vrot.slane %v3746, 5
      %v3749 = vsel %vm3413, %v3744, %v3748
      %v3751 = vshrl.u32 %v304, 16
      %v3753 = vrot.slane %v3751, 4
      %v3754 = vshll.u32 %v304, 16
      %v3756 = vrot.slane %v3754, 5
      %v3757 = vor.u32 %v3753, %v3756
      %v3758 = vrot.slane %v3757, 4
      %v3760 = vshll.u32 %v305, 16
      %v3762 = vrot.slane %v3760, 5
      %v3763 = vsel %vm3413, %v3758, %v3762
      %v3764 = vshrl.u32 %v305, 16
      %v3766 = vrot.slane %v3764, 4
      %v3767 = vor.u32 %v3766, %v3762
      %v3768 = vrot.slane %v3767, 4
      %v3770 = vshll.u32 %v322, 16
      %v3772 = vrot.slane %v3770, 5
      %v3773 = vsel %vm3413, %v3768, %v3772
      %v3775 = vshrl.u32 %v306, 16
      %v3777 = vrot.slane %v3775, 4
      %v3778 = vshll.u32 %v306, 16
      %v3780 = vrot.slane %v3778, 5
      %v3781 = vor.u32 %v3777, %v3780
      %v3782 = vrot.slane %v3781, 4
      %v3784 = vshll.u32 %v307, 16
      %v3786 = vrot.slane %v3784, 5
      %v3787 = vsel %vm3413, %v3782, %v3786
      %v3788 = vshrl.u32 %v307, 16
      %v3790 = vrot.slane %v3788, 4
      %v3791 = vor.u32 %v3790, %v3786
      %v3792 = vrot.slane %v3791, 4
      %v3794 = vshll.u32 %v323, 16
      %v3796 = vrot.slane %v3794, 5
      %v3797 = vsel %vm3413, %v3792, %v3796
      %v3830 = vunpack.c.l.bf16 %v3427
      %v3831 = vunpack.c.l.bf16 %v3437
      %v3832 = vunpack.c.l.bf16 %v3451
      %v3833 = vunpack.c.l.bf16 %v3461
      %v3834 = vunpack.c.l.bf16 %v3475
      %v3835 = vunpack.c.l.bf16 %v3485
      %v3836 = vunpack.c.l.bf16 %v3499
      %v3837 = vunpack.c.l.bf16 %v3509
      %v3838 = vunpack.c.l.bf16 %v3523
      %v3839 = vunpack.c.l.bf16 %v3533
      %v3840 = vunpack.c.l.bf16 %v3547
      %v3841 = vunpack.c.l.bf16 %v3557
      %v3842 = vunpack.c.l.bf16 %v3571
      %v3843 = vunpack.c.l.bf16 %v3581
      %v3844 = vunpack.c.l.bf16 %v3595
      %v3845 = vunpack.c.l.bf16 %v3605
      %v3846 = vunpack.c.l.bf16 %v3619
      %v3847 = vunpack.c.l.bf16 %v3629
      %v3848 = vunpack.c.l.bf16 %v3643
      %v3849 = vunpack.c.l.bf16 %v3653
      %v3850 = vunpack.c.l.bf16 %v3667
      %v3851 = vunpack.c.l.bf16 %v3677
      %v3852 = vunpack.c.l.bf16 %v3691
      %v3853 = vunpack.c.l.bf16 %v3701
      %v3854 = vunpack.c.l.bf16 %v3715
      %v3855 = vunpack.c.l.bf16 %v3725
      %v3856 = vunpack.c.l.bf16 %v3739
      %v3857 = vunpack.c.l.bf16 %v3749
      %v3858 = vunpack.c.l.bf16 %v3763
      %v3859 = vunpack.c.l.bf16 %v3773
      %v3860 = vunpack.c.l.bf16 %v3787
      %v3861 = vunpack.c.l.bf16 %v3797
      %v3862 = vadd.f32 %v3379, %v3830
      %v3863 = vadd.f32 %v3380, %v3831
      %v3864 = vadd.f32 %v3381, %v3832
      %v3865 = vadd.f32 %v3382, %v3833
      %v3866 = vadd.f32 %v3383, %v3834
      %v3867 = vadd.f32 %v3384, %v3835
      %v3868 = vadd.f32 %v3385, %v3836
      %v3869 = vadd.f32 %v3386, %v3837
      %v3870 = vadd.f32 %v3387, %v3838
      %v3871 = vadd.f32 %v3388, %v3839
      %v3872 = vadd.f32 %v3389, %v3840
      %v3873 = vadd.f32 %v3390, %v3841
      %v3874 = vadd.f32 %v3391, %v3842
      %v3875 = vadd.f32 %v3392, %v3843
      %v3876 = vadd.f32 %v3393, %v3844
      %v3877 = vadd.f32 %v3394, %v3845
      %v3878 = vadd.f32 %v3395, %v3846
      %v3879 = vadd.f32 %v3396, %v3847
      %v3880 = vadd.f32 %v3397, %v3848
      %v3881 = vadd.f32 %v3398, %v3849
      %v3882 = vadd.f32 %v3399, %v3850
      %v3883 = vadd.f32 %v3400, %v3851
      %v3884 = vadd.f32 %v3401, %v3852
      %v3885 = vadd.f32 %v3402, %v3853
      %v3886 = vadd.f32 %v3403, %v3854
      %v3887 = vadd.f32 %v3404, %v3855
      %v3888 = vadd.f32 %v3405, %v3856
      %v3889 = vadd.f32 %v3406, %v3857
      %v3890 = vadd.f32 %v3407, %v3858
      %v3891 = vadd.f32 %v3408, %v3859
      %v3892 = vadd.f32 %v3409, %v3860
      %v3893 = vadd.f32 %v3410, %v3861
      %v3894 = vpack.c.bf16 %v3863, %v3862
      %v3895 = vpack.c.bf16 %v3865, %v3864
      %v3896 = vpack.c.bf16 %v3867, %v3866
      %v3897 = vpack.c.bf16 %v3869, %v3868
      %v3898 = vpack.c.bf16 %v3871, %v3870
      %v3899 = vpack.c.bf16 %v3873, %v3872
      %v3900 = vpack.c.bf16 %v3875, %v3874
      %v3901 = vpack.c.bf16 %v3877, %v3876
      %v3902 = vpack.c.bf16 %v3879, %v3878
      %v3903 = vpack.c.bf16 %v3881, %v3880
      %v3904 = vpack.c.bf16 %v3883, %v3882
      %v3905 = vpack.c.bf16 %v3885, %v3884
      %v3906 = vpack.c.bf16 %v3887, %v3886
      %v3907 = vpack.c.bf16 %v3889, %v3888
      %v3908 = vpack.c.bf16 %v3891, %v3890
      %v3909 = vpack.c.bf16 %v3893, %v3892
      %v3926 = vunpack.c.l.b16 %v3894
      %v3927 = vunpack.c.h.b16 %v3894
      %v3928 = vunpack.c.l.b16 %v3895
      %v3929 = vunpack.c.h.b16 %v3895
      %v3930 = vunpack.c.l.b16 %v3896
      %v3931 = vunpack.c.h.b16 %v3896
      %v3932 = vunpack.c.l.b16 %v3897
      %v3933 = vunpack.c.h.b16 %v3897
      %v3934 = vunpack.c.l.b16 %v3898
      %v3935 = vunpack.c.h.b16 %v3898
      %v3936 = vunpack.c.l.b16 %v3899
      %v3937 = vunpack.c.h.b16 %v3899
      %v3938 = vunpack.c.l.b16 %v3900
      %v3939 = vunpack.c.h.b16 %v3900
      %v3940 = vunpack.c.l.b16 %v3901
      %v3941 = vunpack.c.h.b16 %v3901
      %v3942 = vunpack.c.l.b16 %v3902
      %v3943 = vunpack.c.h.b16 %v3902
      %v3944 = vunpack.c.l.b16 %v3903
      %v3945 = vunpack.c.h.b16 %v3903
      %v3946 = vunpack.c.l.b16 %v3904
      %v3947 = vunpack.c.h.b16 %v3904
      %v3948 = vunpack.c.l.b16 %v3905
      %v3949 = vunpack.c.h.b16 %v3905
      %v3950 = vunpack.c.l.b16 %v3906
      %v3951 = vunpack.c.h.b16 %v3906
      %v3952 = vunpack.c.l.b16 %v3907
      %v3953 = vunpack.c.h.b16 %v3907
      %v3954 = vunpack.c.l.b16 %v3908
      %v3955 = vunpack.c.h.b16 %v3908
      %v3956 = vunpack.c.l.b16 %v3909
      %v3957 = vunpack.c.h.b16 %v3909
      %v3958 = vpack.c.b16 %v3926, %v3926
      %v3959 = vpack.c.b16 %v3927, %v3927
      %v3960 = vpack.c.b16 %v3928, %v3928
      %v3961 = vpack.c.b16 %v3929, %v3929
      %v3962 = vpack.c.b16 %v3930, %v3930
      %v3963 = vpack.c.b16 %v3931, %v3931
      %v3964 = vpack.c.b16 %v3932, %v3932
      %v3965 = vpack.c.b16 %v3933, %v3933
      %v3966 = vpack.c.b16 %v3934, %v3934
      %v3967 = vpack.c.b16 %v3935, %v3935
      %v3968 = vpack.c.b16 %v3936, %v3936
      %v3969 = vpack.c.b16 %v3937, %v3937
      %v3970 = vpack.c.b16 %v3938, %v3938
      %v3971 = vpack.c.b16 %v3939, %v3939
      %v3972 = vpack.c.b16 %v3940, %v3940
      %v3973 = vpack.c.b16 %v3941, %v3941
      %v3974 = vpack.c.b16 %v3942, %v3942
      %v3975 = vpack.c.b16 %v3943, %v3943
      %v3976 = vpack.c.b16 %v3944, %v3944
      %v3977 = vpack.c.b16 %v3945, %v3945
      %v3978 = vpack.c.b16 %v3946, %v3946
      %v3979 = vpack.c.b16 %v3947, %v3947
      %v3980 = vpack.c.b16 %v3948, %v3948
      %v3981 = vpack.c.b16 %v3949, %v3949
      %v3982 = vpack.c.b16 %v3950, %v3950
      %v3983 = vpack.c.b16 %v3951, %v3951
      %v3984 = vpack.c.b16 %v3952, %v3952
      %v3985 = vpack.c.b16 %v3953, %v3953
      %v3986 = vpack.c.b16 %v3954, %v3954
      %v3987 = vpack.c.b16 %v3955, %v3955
      %v3988 = vpack.c.b16 %v3956, %v3956
      %v3989 = vpack.c.b16 %v3957, %v3957
      %4022 = vst [vmem:[%s208] sm:$0xf] %v3958
      %4023 = vst [vmem:[%s208 + $0x4] sm:$0xf] %v3959
      %4024 = vst [vmem:[%s208 + $0x8] sm:$0xf] %v3960
      %4025 = vst [vmem:[%s208 + $0xc] sm:$0xf] %v3961
      %4026 = vst [vmem:[%s208 + $0x10] sm:$0xf] %v3962
      %4027 = vst [vmem:[%s208 + $0x14] sm:$0xf] %v3963
      %4028 = vst [vmem:[%s208 + $0x18] sm:$0xf] %v3964
      %4029 = vst [vmem:[%s208 + $0x1c] sm:$0xf] %v3965
      %4030 = vst [vmem:[%s208 + $0x20] sm:$0xf] %v3966
      %4031 = vst [vmem:[%s208 + $0x24] sm:$0xf] %v3967
      %4032 = vst [vmem:[%s208 + $0x28] sm:$0xf] %v3968
      %4033 = vst [vmem:[%s208 + $0x2c] sm:$0xf] %v3969
      %4034 = vst [vmem:[%s208 + $0x30] sm:$0xf] %v3970
      %4035 = vst [vmem:[%s208 + $0x34] sm:$0xf] %v3971
      %4036 = vst [vmem:[%s208 + $0x38] sm:$0xf] %v3972
      %4037 = vst [vmem:[%s208 + $0x3c] sm:$0xf] %v3973
      %4038 = vst [vmem:[%s208 + $0x40] sm:$0xf] %v3974
      %4039 = vst [vmem:[%s208 + $0x44] sm:$0xf] %v3975
      %4040 = vst [vmem:[%s208 + $0x48] sm:$0xf] %v3976
      %4041 = vst [vmem:[%s208 + $0x4c] sm:$0xf] %v3977
      %4042 = vst [vmem:[%s208 + $0x50] sm:$0xf] %v3978
      %4043 = vst [vmem:[%s208 + $0x54] sm:$0xf] %v3979
      %4044 = vst [vmem:[%s208 + $0x58] sm:$0xf] %v3980
      %4045 = vst [vmem:[%s208 + $0x5c] sm:$0xf] %v3981
      %4046 = vst [vmem:[%s208 + $0x60] sm:$0xf] %v3982
      %4047 = vst [vmem:[%s208 + $0x64] sm:$0xf] %v3983
      %4048 = vst [vmem:[%s208 + $0x68] sm:$0xf] %v3984
      %4049 = vst [vmem:[%s208 + $0x6c] sm:$0xf] %v3985
      %4050 = vst [vmem:[%s208 + $0x70] sm:$0xf] %v3986
      %4051 = vst [vmem:[%s208 + $0x74] sm:$0xf] %v3987
      %4052 = vst [vmem:[%s208 + $0x78] sm:$0xf] %v3988
      %4053 = vst [vmem:[%s208 + $0x7c] sm:$0xf] %v3989
      %s4054 = smul.u32 16, %s19
      %p4055 = scmp.lt.s32.totalorder %s18, 1
      %s4056 = scalar_select %p4055, %s18, 1
      %p4057 = scmp.lt.s32.totalorder %s4054, 15
      %s4058 = scalar_select %p4057, %s4054, 15
      %s4059 = smul.addr %s4058, 2
      %s4060 = smul.addr %s4056, 32
      %s4061 = sadd.s32 %s4059, %s4060
      %s4062 = smul.addr %s4061, 4
      %s4063 = scalar_lea.vmem %s3, %s4062
      // Predicated region
      $region33: #{_lambda_.5} parent=31 // pred_check
        %p4064 = pneg %p116
      $region34: #{_lambda_.5} parent=31 // pred_check_branch
        %4066 = sbr.rel (%p4064) target = $region36
      $region35: #{_lambda_.5} parent=31 // pred_region
        %s4067 = smul.u32 16, %s19
      $region36: #{_lambda_.5} parent=31 // pred_fallthru
        _
    $region32: #{_lambda_.5} parent=5 // pred_fallthru
      _
    %p4068 = scmp.le.s32.totalorder 2, %s9
    // Predicated region
    $region37: #{_lambda_.5} parent=5 // pred_check
      %p4069 = pneg %p4068
    $region38: #{_lambda_.5} parent=5 // pred_check_branch
      %4071 = sbr.rel (%p4069) target = $region40
    $region39: #{_lambda_.5} parent=5 // pred_region
      %s4072 = ssub.s32 %s9, 2
      // Predicated region
      $region41: #{_lambda_.5} parent=39 // pred_check
        %p4073 = pneg %p122
      $region42: #{_lambda_.5} parent=39 // pred_check_branch
        %4075 = sbr.rel (%p4073) target = $region44
      $region43: #{_lambda_.5} parent=39 // pred_region
        %s4076 = smul.u32 16, %s21
        %p4077 = scmp.lt.s32.totalorder %s20, 1
        %s4078 = scalar_select %p4077, %s20, 1
        %p4079 = scmp.lt.s32.totalorder %s4076, 15
        %s4080 = scalar_select %p4079, %s4076, 15
        %s4081 = smul.addr %s4080, 2
        %s4082 = smul.addr %s4078, 32
        %s4083 = sadd.s32 %s4081, %s4082
        %s4084 = smul.addr %s4083, 4
        %s4085 = scalar_lea.vmem %s3, %s4084
      $region44: #{_lambda_.5} parent=39 // pred_fallthru
        _
    $region40: #{_lambda_.5} parent=5 // pred_fallthru
      _
  $region6: #{_lambda_.5} parent=0 // loop_footer
    %s13 = sadd.s32 1, %s9
  $region7: #{_lambda_.5} parent=0 // loop_footer_branch
    %8 = sbr.rel target = $region3
  $region8: #{_lambda_.5} parent=0 // loop_exit
    _

</llo_original>
